<compile_context>
chip_gen: v7x
topology: tpu7x:2x2x1
jax: 0.10.0
libtpu: 0.0.40
codegen_flags: <defaults>
</compile_context>

<pallas_src>
import math
from functools import partial

import numpy as np
import jax
import jax.numpy as jnp
from jax.experimental import pallas as pl
from jax.experimental.pallas import tpu as pltpu


# ----------------------------------------------------------------------------- config

def _make_divisible(v, divisor=8, min_value=None):
    if min_value is None:
        min_value = divisor
    new_v = max(min_value, int(v + divisor / 2) // divisor * divisor)
    if new_v < 0.9 * v:
        new_v += divisor
    return new_v


CONFIGS = [
    dict(inp=16, k=3, exp=16, out=16, se=True,  hs=False, stride=1),
    dict(inp=16, k=3, exp=64, out=24, se=False, hs=False, stride=2),
    dict(inp=24, k=5, exp=72, out=40, se=True,  hs=True,  stride=2),
]
FIRST_OUT = CONFIGS[0]["inp"]
LAST_IN = CONFIGS[-1]["out"]
LAST_OUT = 6 * LAST_IN          # lastconv_output_channels = 6 * lastconv_input_channels
LAST_CHANNEL = 64               # classifier hidden width
NUM_CLASSES = 10
BN_EPS = 1e-3

VMEM_LIMIT = 32 * 1024 * 1024   # explicit scoped-VMEM budget (safe on v5e/v6e/v7x)


# ----------------------------------------------------------------------------- in-kernel helpers

def _act(y, kind):
    """f32 VPU epilogue (v5e has no bf16 VALU path, so epilogues stay f32)."""
    if kind == "relu":
        return jnp.maximum(y, 0.0)
    if kind == "hardswish":
        return y * (jnp.clip(y + 3.0, 0.0, 6.0) * (1.0 / 6.0))
    if kind == "hardsigmoid":
        return jnp.clip(y + 3.0, 0.0, 6.0) * (1.0 / 6.0)
    return y


def _mm(a, w_ref):
    """MXU matmul: bf16 operands, f32 accumulate."""
    return jnp.dot(a.astype(jnp.bfloat16), w_ref[...], preferred_element_type=jnp.float32)


# ----------------------------------------------------------------------------- fused kernel

def _mobilenet_kernel(*refs, meta):
    # One sample per grid step; everything below stays in VMEM / vregs.
    f32 = jnp.float32
    *in_refs, o_ref = refs
    it = iter(in_refs)

    # ---- stem: single K = k*k*cin matmul on the wrapper-side im2col patches + HS ----
    x_ref = next(it)
    w0, b0 = next(it), next(it)
    x = _act(_mm(x_ref[0], w0) + b0[...], "hardswish")            # [H0*W0, C0] f32

    # ---- inverted-residual blocks ----
    for bm in meta["blocks"]:
        act = bm["act"]
        if bm["has_exp"]:
            ew, eb = next(it), next(it)
        sel = next(it)
        dw, db = next(it), next(it)
        if bm["has_se"]:
            sw1, sb1, sw2, sb2 = next(it), next(it), next(it), next(it)
        pw, pb = next(it), next(it)

        # expand 1x1 (+ folded BN bias) + act
        e = _act(_mm(x, ew) + eb[...], act) if bm["has_exp"] else x
        e_bf = e.astype(jnp.bfloat16)

        # depthwise KxK: each tap is a 0/1 selection matmul (pad + stride baked into sel),
        # accumulated on the VPU against the BN-folded per-channel tap weights.
        dww = dw[...]                                             # [k*k, cexp] f32
        acc = jnp.zeros((bm["rows_out"], bm["cexp"]), f32)
        for t in range(bm["k"] * bm["k"]):
            tap = jnp.dot(sel[t], e_bf, preferred_element_type=f32)
            acc = acc + tap * dww[t:t + 1, :]
        d = _act(acc + db[...], act)

        # squeeze-excitation: avgpool -> fc1 + ReLU -> fc2 + hardsigmoid -> rescale
        if bm["has_se"]:
            pooled = jnp.sum(d, axis=0, keepdims=True) * bm["inv_hw"]
            h = jnp.maximum(_mm(pooled, sw1) + sb1[...], 0.0)
            d = d * _act(_mm(h, sw2) + sb2[...], "hardsigmoid")

        # project 1x1 (+ folded BN bias), fused residual add (reuses in-VMEM input)
        y = _mm(d, pw) + pb[...]
        if bm["has_res"]:
            y = y + x
        x = y

    # ---- head: lastconv 1x1 + HS -> global avgpool -> fc1 + HS -> (dropout=id) -> fc2 ----
    wl, bl = next(it), next(it)
    w1, b1 = next(it), next(it)
    w2, b2 = next(it), next(it)
    yl = _act(_mm(x, wl) + bl[...], "hardswish")
    pooled = jnp.sum(yl, axis=0, keepdims=True) * meta["inv_head_hw"]
    h = _act(_mm(pooled, w1) + b1[...], "hardswish")
    o_ref[0] = _mm(h, w2) + b2[...]                               # [1, NUM_CLASSES]


# ----------------------------------------------------------------------------- wrapper helpers

def _wspec(a):
    nd = a.ndim
    return pl.BlockSpec(a.shape, lambda n, _nd=nd: (0,) * _nd)


def _fold(w, scale, bias):
    """Fold a following BatchNorm (y = (x @ w) * scale + bias) into the conv weight."""
    return w * scale[None, :], bias


def _stem_im2col(x, k=3, stride=2, pad=1):
    """Tiny wrapper-side im2col (cin=3): [N,H,W,C] -> [N, ho*wo, k*k*C]."""
    N, H, W, C = x.shape
    ho = (H + 2 * pad - k) // stride + 1
    wo = (W + 2 * pad - k) // stride + 1
    xp = jnp.pad(x, ((0, 0), (pad, pad), (pad, pad), (0, 0)))
    cols = []
    for kh in range(k):
        for kw in range(k):
            cols.append(xp[:, kh:kh + stride * (ho - 1) + 1:stride,
                            kw:kw + stride * (wo - 1) + 1:stride, :])
    patches = jnp.concatenate(cols, axis=-1)                      # [N, ho, wo, k*k*C]
    return patches.reshape(N, ho * wo, k * k * C), ho, wo


def _dw_selection(h, w, k, stride, pad):
    """0/1 matrices: tap t of the depthwise conv == sel[t] @ x_flat (zero-pad folded in)."""
    ho = (h + 2 * pad - k) // stride + 1
    wo = (w + 2 * pad - k) // stride + 1
    sel = np.zeros((k * k, ho * wo, h * w), np.float32)
    for kh in range(k):
        for kw in range(k):
            t = kh * k + kw
            for i in range(ho):
                r = i * stride + kh - pad
                if not (0 <= r < h):
                    continue
                for j in range(wo):
                    c = j * stride + kw - pad
                    if 0 <= c < w:
                        sel[t, i * wo + j, r * w + c] = 1.0
    return sel, ho, wo


# ----------------------------------------------------------------------------- forward

def mobilenetv3_forward(x_nchw, params):
    # NCHW (PyTorch) -> NHWC (kernel layout)
    x = jnp.transpose(x_nchw, (0, 2, 3, 1)).astype(jnp.float32)
    N = x.shape[0]
    f32, bf16 = jnp.float32, jnp.bfloat16

    args, specs = [], []

    def add(a):
        args.append(a)
        specs.append(_wspec(a))

    # ---- stem ----
    xcol, h0, w0_sp = _stem_im2col(x, k=3, stride=2, pad=1)
    s0, kkc = h0 * w0_sp, xcol.shape[-1]
    args.append(xcol)
    specs.append(pl.BlockSpec((1, s0, kkc), lambda n: (n, 0, 0)))

    c0 = FIRST_OUT
    w0f, b0f = _fold(params["conv0_w"].reshape(kkc, c0), params["conv0_s"], params["conv0_b"])
    add(w0f.astype(bf16))
    add(b0f.reshape(1, c0).astype(f32))
    flops = 2 * s0 * kkc * c0

    # ---- blocks ----
    blocks_meta = []
    cur_h, cur_w = h0, w0_sp
    for cfg, bp in zip(CONFIGS, params["blocks"]):
        k, stride = cfg["k"], cfg["stride"]
        cin, cexp, cout = cfg["inp"], cfg["exp"], cfg["out"]
        pad = (k - 1) // 2
        has_exp = cexp != cin
        has_se = cfg["se"]
        has_res = stride == 1 and cin == cout
        act = "hardswish" if cfg["hs"] else "relu"

        if has_exp:
            ewf, ebf = _fold(bp["exp_w"], bp["exp_s"], bp["exp_b"])
            add(ewf.astype(bf16))
            add(ebf.reshape(1, cexp).astype(f32))
            flops += 2 * cur_h * cur_w * cin * cexp

        sel_np, ho, wo = _dw_selection(cur_h, cur_w, k, stride, pad)
        add(jnp.asarray(sel_np, bf16))                            # exact 0/1 in bf16
        dwf, dbf = _fold(bp["dw_w"], bp["dw_s"], bp["dw_b"])
        add(dwf.astype(f32))
        add(dbf.reshape(1, cexp).astype(f32))
        flops += 2 * (k * k) * (ho * wo) * (cur_h * cur_w) * cexp

        if has_se:
            csq = bp["se_w1"].shape[1]
            add(bp["se_w1"].astype(bf16))
            add(bp["se_b1"].reshape(1, csq).astype(f32))
            add(bp["se_w2"].astype(bf16))
            add(bp["se_b2"].reshape(1, cexp).astype(f32))
            flops += 4 * cexp * csq

        pwf, pbf = _fold(bp["proj_w"], bp["proj_s"], bp["proj_b"])
        add(pwf.astype(bf16))
        add(pbf.reshape(1, cout).astype(f32))
        flops += 2 * ho * wo * cexp * cout

        blocks_meta.append(dict(k=k, cexp=cexp, rows_out=ho * wo, inv_hw=1.0 / (ho * wo),
                                has_exp=has_exp, has_se=has_se, has_res=has_res, act=act))
        cur_h, cur_w = ho, wo

    # ---- head ----
    m = cur_h * cur_w
    wlf, blf = _fold(params["convL_w"], params["convL_s"], params["convL_b"])
    add(wlf.astype(bf16))
    add(blf.reshape(1, LAST_OUT).astype(f32))
    add(params["fc1_w"].astype(bf16))
    add(params["fc1_b"].reshape(1, LAST_CHANNEL).astype(f32))
    add(params["fc2_w"].astype(bf16))
    add(params["fc2_b"].reshape(1, NUM_CLASSES).astype(f32))
    flops += 2 * (m * LAST_IN * LAST_OUT + LAST_OUT * LAST_CHANNEL + LAST_CHANNEL * NUM_CLASSES)

    meta = dict(blocks=blocks_meta, inv_head_hw=1.0 / m)
    bytes_accessed = int(sum(int(a.size) * a.dtype.itemsize for a in args)
                         + N * NUM_CLASSES * 4)

    out = pl.pallas_call(
        partial(_mobilenet_kernel, meta=meta),
        grid=(N,),
        in_specs=specs,
        out_specs=pl.BlockSpec((1, 1, NUM_CLASSES), lambda n: (n, 0, 0)),
        out_shape=jax.ShapeDtypeStruct((N, 1, NUM_CLASSES), f32),
        compiler_params=pltpu.CompilerParams(
            dimension_semantics=("parallel",),        # N samples -> both TCs on v7x
            vmem_limit_bytes=VMEM_LIMIT),
        cost_estimate=pl.CostEstimate(flops=int(N * flops), transcendentals=0,
                                      bytes_accessed=bytes_accessed),
    )(*args)
    return out.reshape(N, NUM_CLASSES)


# ----------------------------------------------------------------------------- model params

class _KeyGen:
    def __init__(self, key):
        self.key = key

    def __call__(self):
        self.key, sub = jax.random.split(self.key)
        return sub


def _bn_fold(cout):
    # BatchNorm eval mode: gamma=1, beta=0, running_mean=0, running_var=1
    gamma = jnp.ones((cout,), jnp.float32)
    beta = jnp.zeros((cout,), jnp.float32)
    rm = jnp.zeros((cout,), jnp.float32)
    rv = jnp.ones((cout,), jnp.float32)
    scale = gamma / jnp.sqrt(rv + BN_EPS)
    bias = beta - rm * scale
    return scale, bias


def init_params(key):
    kg = _KeyGen(key)
    p = {}

    def conv_w(k, cin, cout):
        fan_out = cout * k * k          # kaiming_normal_ mode='fan_out'
        return jax.random.normal(kg(), (k, k, cin, cout), jnp.float32) * math.sqrt(2.0 / fan_out)

    p["conv0_w"] = conv_w(3, 3, FIRST_OUT)
    p["conv0_s"], p["conv0_b"] = _bn_fold(FIRST_OUT)

    p["blocks"] = []
    for cfg in CONFIGS:
        bp = {}
        if cfg["exp"] != cfg["inp"]:
            bp["exp_w"] = conv_w(1, cfg["inp"], cfg["exp"]).reshape(cfg["inp"], cfg["exp"])
            bp["exp_s"], bp["exp_b"] = _bn_fold(cfg["exp"])
        bp["dw_w"] = jax.random.normal(kg(), (cfg["k"] * cfg["k"], cfg["exp"]), jnp.float32) \
            * math.sqrt(2.0 / (cfg["k"] * cfg["k"]))
        bp["dw_s"], bp["dw_b"] = _bn_fold(cfg["exp"])
        if cfg["se"]:
            csq = _make_divisible(cfg["exp"] // 4, 8)
            bp["se_w1"] = conv_w(1, cfg["exp"], csq).reshape(cfg["exp"], csq)
            bp["se_b1"] = jnp.zeros((csq,), jnp.float32)
            bp["se_w2"] = conv_w(1, csq, cfg["exp"]).reshape(csq, cfg["exp"])
            bp["se_b2"] = jnp.zeros((cfg["exp"],), jnp.float32)
        bp["proj_w"] = conv_w(1, cfg["exp"], cfg["out"]).reshape(cfg["exp"], cfg["out"])
        bp["proj_s"], bp["proj_b"] = _bn_fold(cfg["out"])
        p["blocks"].append(bp)

    p["convL_w"] = conv_w(1, LAST_IN, LAST_OUT).reshape(LAST_IN, LAST_OUT)
    p["convL_s"], p["convL_b"] = _bn_fold(LAST_OUT)
    p["fc1_w"] = jax.random.normal(kg(), (LAST_OUT, LAST_CHANNEL), jnp.float32) * 0.01
    p["fc1_b"] = jnp.zeros((LAST_CHANNEL,), jnp.float32)
    p["fc2_w"] = jax.random.normal(kg(), (LAST_CHANNEL, NUM_CLASSES), jnp.float32) * 0.01
    p["fc2_b"] = jnp.zeros((NUM_CLASSES,), jnp.float32)
    return p
    # TODO(synk): Dropout(0.2) and BatchNorm are implemented in inference mode only
    # (dropout = identity, BN folded with running stats); training-mode statistics are
    # out of scope for this forward kernel.


# ----------------------------------------------------------------------------- main

if __name__ == "__main__":
    key = jax.random.PRNGKey(0)
    k_param, k_input = jax.random.split(key)
    params = init_params(k_param)
    x = jax.random.normal(k_input, (2, 3, 16, 16), jnp.float32)   # NCHW like PyTorch

    fwd = jax.jit(lambda inp: mobilenetv3_forward(inp, params))
    out = fwd(x)
    jax.block_until_ready(out)
    assert out.shape == (2, NUM_CLASSES)
    assert bool(jnp.all(jnp.isfinite(out)))
    print("KERNEL_OK")
</pallas_src>

<mosaic_0001>
module attributes {stable_mosaic.version = 11 : i64} {
  func.func @_mobilenet_kernel(%arg0: i32, %arg1: memref<1x64x27xf32, #tpu.memory_space<vmem>>, %arg2: memref<27x16xbf16, #tpu.memory_space<vmem>>, %arg3: memref<1x16xf32, #tpu.memory_space<vmem>>, %arg4: memref<9x64x64xbf16, #tpu.memory_space<vmem>>, %arg5: memref<9x16xf32, #tpu.memory_space<vmem>>, %arg6: memref<1x16xf32, #tpu.memory_space<vmem>>, %arg7: memref<16x8xbf16, #tpu.memory_space<vmem>>, %arg8: memref<1x8xf32, #tpu.memory_space<vmem>>, %arg9: memref<8x16xbf16, #tpu.memory_space<vmem>>, %arg10: memref<1x16xf32, #tpu.memory_space<vmem>>, %arg11: memref<16x16xbf16, #tpu.memory_space<vmem>>, %arg12: memref<1x16xf32, #tpu.memory_space<vmem>>, %arg13: memref<16x64xbf16, #tpu.memory_space<vmem>>, %arg14: memref<1x64xf32, #tpu.memory_space<vmem>>, %arg15: memref<9x16x64xbf16, #tpu.memory_space<vmem>>, %arg16: memref<9x64xf32, #tpu.memory_space<vmem>>, %arg17: memref<1x64xf32, #tpu.memory_space<vmem>>, %arg18: memref<64x24xbf16, #tpu.memory_space<vmem>>, %arg19: memref<1x24xf32, #tpu.memory_space<vmem>>, %arg20: memref<24x72xbf16, #tpu.memory_space<vmem>>, %arg21: memref<1x72xf32, #tpu.memory_space<vmem>>, %arg22: memref<25x4x16xbf16, #tpu.memory_space<vmem>>, %arg23: memref<25x72xf32, #tpu.memory_space<vmem>>, %arg24: memref<1x72xf32, #tpu.memory_space<vmem>>, %arg25: memref<72x24xbf16, #tpu.memory_space<vmem>>, %arg26: memref<1x24xf32, #tpu.memory_space<vmem>>, %arg27: memref<24x72xbf16, #tpu.memory_space<vmem>>, %arg28: memref<1x72xf32, #tpu.memory_space<vmem>>, %arg29: memref<72x40xbf16, #tpu.memory_space<vmem>>, %arg30: memref<1x40xf32, #tpu.memory_space<vmem>>, %arg31: memref<40x240xbf16, #tpu.memory_space<vmem>>, %arg32: memref<1x240xf32, #tpu.memory_space<vmem>>, %arg33: memref<240x64xbf16, #tpu.memory_space<vmem>>, %arg34: memref<1x64xf32, #tpu.memory_space<vmem>>, %arg35: memref<64x10xbf16, #tpu.memory_space<vmem>>, %arg36: memref<1x10xf32, #tpu.memory_space<vmem>>, %arg37: memref<1x1x10xf32, #tpu.memory_space<vmem>>) attributes {dimension_semantics = [#tpu.dimension_semantics<parallel>], iteration_bounds = array<i64: 2>, scalar_prefetch = 0 : i64, scratch_operands = 0 : i64, tpu.core_type = #tpu.core_type<tc>, window_params = [{transform_indices = @transform_0, window_bounds = array<i64: 1, 64, 27>}, {pipeline_mode = #tpu.pipeline_mode<synchronous>, transform_indices = @transform_1, window_bounds = array<i64: 27, 16>}, {pipeline_mode = #tpu.pipeline_mode<synchronous>, transform_indices = @transform_2, window_bounds = array<i64: 1, 16>}, {pipeline_mode = #tpu.pipeline_mode<synchronous>, transform_indices = @transform_3, window_bounds = array<i64: 9, 64, 64>}, {pipeline_mode = #tpu.pipeline_mode<synchronous>, transform_indices = @transform_4, window_bounds = array<i64: 9, 16>}, {pipeline_mode = #tpu.pipeline_mode<synchronous>, transform_indices = @transform_5, window_bounds = array<i64: 1, 16>}, {pipeline_mode = #tpu.pipeline_mode<synchronous>, transform_indices = @transform_6, window_bounds = array<i64: 16, 8>}, {pipeline_mode = #tpu.pipeline_mode<synchronous>, transform_indices = @transform_7, window_bounds = array<i64: 1, 8>}, {pipeline_mode = #tpu.pipeline_mode<synchronous>, transform_indices = @transform_8, window_bounds = array<i64: 8, 16>}, {pipeline_mode = #tpu.pipeline_mode<synchronous>, transform_indices = @transform_9, window_bounds = array<i64: 1, 16>}, {pipeline_mode = #tpu.pipeline_mode<synchronous>, transform_indices = @transform_10, window_bounds = array<i64: 16, 16>}, {pipeline_mode = #tpu.pipeline_mode<synchronous>, transform_indices = @transform_11, window_bounds = array<i64: 1, 16>}, {pipeline_mode = #tpu.pipeline_mode<synchronous>, transform_indices = @transform_12, window_bounds = array<i64: 16, 64>}, {pipeline_mode = #tpu.pipeline_mode<synchronous>, transform_indices = @transform_13, window_bounds = array<i64: 1, 64>}, {pipeline_mode = #tpu.pipeline_mode<synchronous>, transform_indices = @transform_14, window_bounds = array<i64: 9, 16, 64>}, {pipeline_mode = #tpu.pipeline_mode<synchronous>, transform_indices = @transform_15, window_bounds = array<i64: 9, 64>}, {pipeline_mode = #tpu.pipeline_mode<synchronous>, transform_indices = @transform_16, window_bounds = array<i64: 1, 64>}, {pipeline_mode = #tpu.pipeline_mode<synchronous>, transform_indices = @transform_17, window_bounds = array<i64: 64, 24>}, {pipeline_mode = #tpu.pipeline_mode<synchronous>, transform_indices = @transform_18, window_bounds = array<i64: 1, 24>}, {pipeline_mode = #tpu.pipeline_mode<synchronous>, transform_indices = @transform_19, window_bounds = array<i64: 24, 72>}, {pipeline_mode = #tpu.pipeline_mode<synchronous>, transform_indices = @transform_20, window_bounds = array<i64: 1, 72>}, {pipeline_mode = #tpu.pipeline_mode<synchronous>, transform_indices = @transform_21, window_bounds = array<i64: 25, 4, 16>}, {pipeline_mode = #tpu.pipeline_mode<synchronous>, transform_indices = @transform_22, window_bounds = array<i64: 25, 72>}, {pipeline_mode = #tpu.pipeline_mode<synchronous>, transform_indices = @transform_23, window_bounds = array<i64: 1, 72>}, {pipeline_mode = #tpu.pipeline_mode<synchronous>, transform_indices = @transform_24, window_bounds = array<i64: 72, 24>}, {pipeline_mode = #tpu.pipeline_mode<synchronous>, transform_indices = @transform_25, window_bounds = array<i64: 1, 24>}, {pipeline_mode = #tpu.pipeline_mode<synchronous>, transform_indices = @transform_26, window_bounds = array<i64: 24, 72>}, {pipeline_mode = #tpu.pipeline_mode<synchronous>, transform_indices = @transform_27, window_bounds = array<i64: 1, 72>}, {pipeline_mode = #tpu.pipeline_mode<synchronous>, transform_indices = @transform_28, window_bounds = array<i64: 72, 40>}, {pipeline_mode = #tpu.pipeline_mode<synchronous>, transform_indices = @transform_29, window_bounds = array<i64: 1, 40>}, {pipeline_mode = #tpu.pipeline_mode<synchronous>, transform_indices = @transform_30, window_bounds = array<i64: 40, 240>}, {pipeline_mode = #tpu.pipeline_mode<synchronous>, transform_indices = @transform_31, window_bounds = array<i64: 1, 240>}, {pipeline_mode = #tpu.pipeline_mode<synchronous>, transform_indices = @transform_32, window_bounds = array<i64: 240, 64>}, {pipeline_mode = #tpu.pipeline_mode<synchronous>, transform_indices = @transform_33, window_bounds = array<i64: 1, 64>}, {pipeline_mode = #tpu.pipeline_mode<synchronous>, transform_indices = @transform_34, window_bounds = array<i64: 64, 10>}, {pipeline_mode = #tpu.pipeline_mode<synchronous>, transform_indices = @transform_35, window_bounds = array<i64: 1, 10>}, {transform_indices = @transform_36, window_bounds = array<i64: 1, 1, 10>}]} {
    %c0 = arith.constant 0 : index
    %c0_0 = arith.constant 0 : index
    %c0_1 = arith.constant 0 : index
    %0 = vector.load %arg1[%c0, %c0_0, %c0_1] : memref<1x64x27xf32, #tpu.memory_space<vmem>>, vector<1x64x27xf32>
    %1 = vector.shape_cast %0 : vector<1x64x27xf32> to vector<64x27xf32>
    %2 = arith.truncf %1 : vector<64x27xf32> to vector<64x27xbf16>
    %c0_2 = arith.constant 0 : index
    %c0_3 = arith.constant 0 : index
    %3 = vector.load %arg2[%c0_2, %c0_3] : memref<27x16xbf16, #tpu.memory_space<vmem>>, vector<27x16xbf16>
    %cst = arith.constant dense<0.000000e+00> : vector<64x16xf32>
    %4 = tpu.matmul %2, %3, %cst {dimension_numbers = #tpu.dot_dimension_numbers<[1], [0], [0], [1], [0, 0, 1, 1], [], []>} : vector<64x27xbf16>, vector<27x16xbf16>, vector<64x16xf32> -> vector<64x16xf32>
    %c0_4 = arith.constant 0 : index
    %c0_5 = arith.constant 0 : index
    %5 = vector.load %arg3[%c0_4, %c0_5] : memref<1x16xf32, #tpu.memory_space<vmem>>, vector<1x16xf32>
    %6 = vector.broadcast %5 : vector<1x16xf32> to vector<64x16xf32>
    %7 = arith.addf %4, %6 : vector<64x16xf32>
    %cst_6 = arith.constant 3.000000e+00 : f32
    %8 = vector.broadcast %cst_6 : f32 to vector<64x16xf32>
    %9 = arith.addf %7, %8 : vector<64x16xf32>
    %cst_7 = arith.constant 0.000000e+00 : f32
    %cst_8 = arith.constant 6.000000e+00 : f32
    %10 = vector.broadcast %cst_7 : f32 to vector<64x16xf32>
    %11 = arith.maximumf %10, %9 : vector<64x16xf32>
    %12 = vector.broadcast %cst_8 : f32 to vector<64x16xf32>
    %13 = arith.minimumf %12, %11 : vector<64x16xf32>
    %cst_9 = arith.constant 0.166666672 : f32
    %14 = vector.broadcast %cst_9 : f32 to vector<64x16xf32>
    %15 = arith.mulf %13, %14 : vector<64x16xf32>
    %16 = arith.mulf %7, %15 : vector<64x16xf32>
    %17 = arith.truncf %16 : vector<64x16xf32> to vector<64x16xbf16>
    %c0_10 = arith.constant 0 : index
    %c0_11 = arith.constant 0 : index
    %18 = vector.load %arg5[%c0_10, %c0_11] : memref<9x16xf32, #tpu.memory_space<vmem>>, vector<9x16xf32>
    %cst_12 = arith.constant 0.000000e+00 : f32
    %19 = vector.broadcast %cst_12 : f32 to vector<64x16xf32>
    %c0_13 = arith.constant 0 : index
    %c0_14 = arith.constant 0 : index
    %c0_15 = arith.constant 0 : index
    %20 = vector.load %arg4[%c0_13, %c0_14, %c0_15] : memref<9x64x64xbf16, #tpu.memory_space<vmem>>, vector<1x64x64xbf16>
    %21 = vector.shape_cast %20 : vector<1x64x64xbf16> to vector<64x64xbf16>
    %cst_16 = arith.constant dense<0.000000e+00> : vector<64x16xf32>
    %22 = tpu.matmul %21, %17, %cst_16 {dimension_numbers = #tpu.dot_dimension_numbers<[1], [0], [0], [1], [0, 0, 1, 1], [], []>} : vector<64x64xbf16>, vector<64x16xbf16>, vector<64x16xf32> -> vector<64x16xf32>
    %23 = vector.extract_strided_slice %18 {offsets = [0, 0], sizes = [1, 16], strides = [1, 1]} : vector<9x16xf32> to vector<1x16xf32>
    %24 = vector.broadcast %23 : vector<1x16xf32> to vector<64x16xf32>
    %25 = arith.mulf %22, %24 : vector<64x16xf32>
    %26 = arith.addf %19, %25 : vector<64x16xf32>
    %c1 = arith.constant 1 : index
    %c0_17 = arith.constant 0 : index
    %c0_18 = arith.constant 0 : index
    %27 = vector.load %arg4[%c1, %c0_17, %c0_18] : memref<9x64x64xbf16, #tpu.memory_space<vmem>>, vector<1x64x64xbf16>
    %28 = vector.shape_cast %27 : vector<1x64x64xbf16> to vector<64x64xbf16>
    %cst_19 = arith.constant dense<0.000000e+00> : vector<64x16xf32>
    %29 = tpu.matmul %28, %17, %cst_19 {dimension_numbers = #tpu.dot_dimension_numbers<[1], [0], [0], [1], [0, 0, 1, 1], [], []>} : vector<64x64xbf16>, vector<64x16xbf16>, vector<64x16xf32> -> vector<64x16xf32>
    %30 = vector.extract_strided_slice %18 {offsets = [1, 0], sizes = [1, 16], strides = [1, 1]} : vector<9x16xf32> to vector<1x16xf32>
    %31 = vector.broadcast %30 : vector<1x16xf32> to vector<64x16xf32>
    %32 = arith.mulf %29, %31 : vector<64x16xf32>
    %33 = arith.addf %26, %32 : vector<64x16xf32>
    %c2 = arith.constant 2 : index
    %c0_20 = arith.constant 0 : index
    %c0_21 = arith.constant 0 : index
    %34 = vector.load %arg4[%c2, %c0_20, %c0_21] : memref<9x64x64xbf16, #tpu.memory_space<vmem>>, vector<1x64x64xbf16>
    %35 = vector.shape_cast %34 : vector<1x64x64xbf16> to vector<64x64xbf16>
    %cst_22 = arith.constant dense<0.000000e+00> : vector<64x16xf32>
    %36 = tpu.matmul %35, %17, %cst_22 {dimension_numbers = #tpu.dot_dimension_numbers<[1], [0], [0], [1], [0, 0, 1, 1], [], []>} : vector<64x64xbf16>, vector<64x16xbf16>, vector<64x16xf32> -> vector<64x16xf32>
    %37 = vector.extract_strided_slice %18 {offsets = [2, 0], sizes = [1, 16], strides = [1, 1]} : vector<9x16xf32> to vector<1x16xf32>
    %38 = vector.broadcast %37 : vector<1x16xf32> to vector<64x16xf32>
    %39 = arith.mulf %36, %38 : vector<64x16xf32>
    %40 = arith.addf %33, %39 : vector<64x16xf32>
    %c3 = arith.constant 3 : index
    %c0_23 = arith.constant 0 : index
    %c0_24 = arith.constant 0 : index
    %41 = vector.load %arg4[%c3, %c0_23, %c0_24] : memref<9x64x64xbf16, #tpu.memory_space<vmem>>, vector<1x64x64xbf16>
    %42 = vector.shape_cast %41 : vector<1x64x64xbf16> to vector<64x64xbf16>
    %cst_25 = arith.constant dense<0.000000e+00> : vector<64x16xf32>
    %43 = tpu.matmul %42, %17, %cst_25 {dimension_numbers = #tpu.dot_dimension_numbers<[1], [0], [0], [1], [0, 0, 1, 1], [], []>} : vector<64x64xbf16>, vector<64x16xbf16>, vector<64x16xf32> -> vector<64x16xf32>
    %44 = vector.extract_strided_slice %18 {offsets = [3, 0], sizes = [1, 16], strides = [1, 1]} : vector<9x16xf32> to vector<1x16xf32>
    %45 = vector.broadcast %44 : vector<1x16xf32> to vector<64x16xf32>
    %46 = arith.mulf %43, %45 : vector<64x16xf32>
    %47 = arith.addf %40, %46 : vector<64x16xf32>
    %c4 = arith.constant 4 : index
    %c0_26 = arith.constant 0 : index
    %c0_27 = arith.constant 0 : index
    %48 = vector.load %arg4[%c4, %c0_26, %c0_27] : memref<9x64x64xbf16, #tpu.memory_space<vmem>>, vector<1x64x64xbf16>
    %49 = vector.shape_cast %48 : vector<1x64x64xbf16> to vector<64x64xbf16>
    %cst_28 = arith.constant dense<0.000000e+00> : vector<64x16xf32>
    %50 = tpu.matmul %49, %17, %cst_28 {dimension_numbers = #tpu.dot_dimension_numbers<[1], [0], [0], [1], [0, 0, 1, 1], [], []>} : vector<64x64xbf16>, vector<64x16xbf16>, vector<64x16xf32> -> vector<64x16xf32>
    %51 = vector.extract_strided_slice %18 {offsets = [4, 0], sizes = [1, 16], strides = [1, 1]} : vector<9x16xf32> to vector<1x16xf32>
    %52 = vector.broadcast %51 : vector<1x16xf32> to vector<64x16xf32>
    %53 = arith.mulf %50, %52 : vector<64x16xf32>
    %54 = arith.addf %47, %53 : vector<64x16xf32>
    %c5 = arith.constant 5 : index
    %c0_29 = arith.constant 0 : index
    %c0_30 = arith.constant 0 : index
    %55 = vector.load %arg4[%c5, %c0_29, %c0_30] : memref<9x64x64xbf16, #tpu.memory_space<vmem>>, vector<1x64x64xbf16>
    %56 = vector.shape_cast %55 : vector<1x64x64xbf16> to vector<64x64xbf16>
    %cst_31 = arith.constant dense<0.000000e+00> : vector<64x16xf32>
    %57 = tpu.matmul %56, %17, %cst_31 {dimension_numbers = #tpu.dot_dimension_numbers<[1], [0], [0], [1], [0, 0, 1, 1], [], []>} : vector<64x64xbf16>, vector<64x16xbf16>, vector<64x16xf32> -> vector<64x16xf32>
    %58 = vector.extract_strided_slice %18 {offsets = [5, 0], sizes = [1, 16], strides = [1, 1]} : vector<9x16xf32> to vector<1x16xf32>
    %59 = vector.broadcast %58 : vector<1x16xf32> to vector<64x16xf32>
    %60 = arith.mulf %57, %59 : vector<64x16xf32>
    %61 = arith.addf %54, %60 : vector<64x16xf32>
    %c6 = arith.constant 6 : index
    %c0_32 = arith.constant 0 : index
    %c0_33 = arith.constant 0 : index
    %62 = vector.load %arg4[%c6, %c0_32, %c0_33] : memref<9x64x64xbf16, #tpu.memory_space<vmem>>, vector<1x64x64xbf16>
    %63 = vector.shape_cast %62 : vector<1x64x64xbf16> to vector<64x64xbf16>
    %cst_34 = arith.constant dense<0.000000e+00> : vector<64x16xf32>
    %64 = tpu.matmul %63, %17, %cst_34 {dimension_numbers = #tpu.dot_dimension_numbers<[1], [0], [0], [1], [0, 0, 1, 1], [], []>} : vector<64x64xbf16>, vector<64x16xbf16>, vector<64x16xf32> -> vector<64x16xf32>
    %65 = vector.extract_strided_slice %18 {offsets = [6, 0], sizes = [1, 16], strides = [1, 1]} : vector<9x16xf32> to vector<1x16xf32>
    %66 = vector.broadcast %65 : vector<1x16xf32> to vector<64x16xf32>
    %67 = arith.mulf %64, %66 : vector<64x16xf32>
    %68 = arith.addf %61, %67 : vector<64x16xf32>
    %c7 = arith.constant 7 : index
    %c0_35 = arith.constant 0 : index
    %c0_36 = arith.constant 0 : index
    %69 = vector.load %arg4[%c7, %c0_35, %c0_36] : memref<9x64x64xbf16, #tpu.memory_space<vmem>>, vector<1x64x64xbf16>
    %70 = vector.shape_cast %69 : vector<1x64x64xbf16> to vector<64x64xbf16>
    %cst_37 = arith.constant dense<0.000000e+00> : vector<64x16xf32>
    %71 = tpu.matmul %70, %17, %cst_37 {dimension_numbers = #tpu.dot_dimension_numbers<[1], [0], [0], [1], [0, 0, 1, 1], [], []>} : vector<64x64xbf16>, vector<64x16xbf16>, vector<64x16xf32> -> vector<64x16xf32>
    %72 = vector.extract_strided_slice %18 {offsets = [7, 0], sizes = [1, 16], strides = [1, 1]} : vector<9x16xf32> to vector<1x16xf32>
    %73 = vector.broadcast %72 : vector<1x16xf32> to vector<64x16xf32>
    %74 = arith.mulf %71, %73 : vector<64x16xf32>
    %75 = arith.addf %68, %74 : vector<64x16xf32>
    %c8 = arith.constant 8 : index
    %c0_38 = arith.constant 0 : index
    %c0_39 = arith.constant 0 : index
    %76 = vector.load %arg4[%c8, %c0_38, %c0_39] : memref<9x64x64xbf16, #tpu.memory_space<vmem>>, vector<1x64x64xbf16>
    %77 = vector.shape_cast %76 : vector<1x64x64xbf16> to vector<64x64xbf16>
    %cst_40 = arith.constant dense<0.000000e+00> : vector<64x16xf32>
    %78 = tpu.matmul %77, %17, %cst_40 {dimension_numbers = #tpu.dot_dimension_numbers<[1], [0], [0], [1], [0, 0, 1, 1], [], []>} : vector<64x64xbf16>, vector<64x16xbf16>, vector<64x16xf32> -> vector<64x16xf32>
    %79 = vector.extract_strided_slice %18 {offsets = [8, 0], sizes = [1, 16], strides = [1, 1]} : vector<9x16xf32> to vector<1x16xf32>
    %80 = vector.broadcast %79 : vector<1x16xf32> to vector<64x16xf32>
    %81 = arith.mulf %78, %80 : vector<64x16xf32>
    %82 = arith.addf %75, %81 : vector<64x16xf32>
    %c0_41 = arith.constant 0 : index
    %c0_42 = arith.constant 0 : index
    %83 = vector.load %arg6[%c0_41, %c0_42] : memref<1x16xf32, #tpu.memory_space<vmem>>, vector<1x16xf32>
    %84 = vector.broadcast %83 : vector<1x16xf32> to vector<64x16xf32>
    %85 = arith.addf %82, %84 : vector<64x16xf32>
    %cst_43 = arith.constant 0.000000e+00 : f32
    %86 = vector.broadcast %cst_43 : f32 to vector<64x16xf32>
    %87 = arith.maximumf %85, %86 : vector<64x16xf32>
    %cst_44 = arith.constant dense<0.000000e+00> : vector<16xf32>
    %88 = vector.multi_reduction <add>, %87, %cst_44 [0] : vector<64x16xf32> to vector<16xf32>
    %89 = vector.shape_cast %88 : vector<16xf32> to vector<1x16xf32>
    %cst_45 = arith.constant 1.562500e-02 : f32
    %90 = vector.broadcast %cst_45 : f32 to vector<1x16xf32>
    %91 = arith.mulf %89, %90 : vector<1x16xf32>
    %92 = arith.truncf %91 : vector<1x16xf32> to vector<1x16xbf16>
    %c0_46 = arith.constant 0 : index
    %c0_47 = arith.constant 0 : index
    %93 = vector.load %arg7[%c0_46, %c0_47] : memref<16x8xbf16, #tpu.memory_space<vmem>>, vector<16x8xbf16>
    %cst_48 = arith.constant dense<0.000000e+00> : vector<1x8xf32>
    %94 = tpu.matmul %92, %93, %cst_48 {dimension_numbers = #tpu.dot_dimension_numbers<[1], [0], [0], [1], [0, 0, 1, 1], [], []>} : vector<1x16xbf16>, vector<16x8xbf16>, vector<1x8xf32> -> vector<1x8xf32>
    %c0_49 = arith.constant 0 : index
    %c0_50 = arith.constant 0 : index
    %95 = vector.load %arg8[%c0_49, %c0_50] : memref<1x8xf32, #tpu.memory_space<vmem>>, vector<1x8xf32>
    %96 = arith.addf %94, %95 : vector<1x8xf32>
    %cst_51 = arith.constant 0.000000e+00 : f32
    %97 = vector.broadcast %cst_51 : f32 to vector<1x8xf32>
    %98 = arith.maximumf %96, %97 : vector<1x8xf32>
    %99 = arith.truncf %98 : vector<1x8xf32> to vector<1x8xbf16>
    %c0_52 = arith.constant 0 : index
    %c0_53 = arith.constant 0 : index
    %100 = vector.load %arg9[%c0_52, %c0_53] : memref<8x16xbf16, #tpu.memory_space<vmem>>, vector<8x16xbf16>
    %cst_54 = arith.constant dense<0.000000e+00> : vector<1x16xf32>
    %101 = tpu.matmul %99, %100, %cst_54 {dimension_numbers = #tpu.dot_dimension_numbers<[1], [0], [0], [1], [0, 0, 1, 1], [], []>} : vector<1x8xbf16>, vector<8x16xbf16>, vector<1x16xf32> -> vector<1x16xf32>
    %c0_55 = arith.constant 0 : index
    %c0_56 = arith.constant 0 : index
    %102 = vector.load %arg10[%c0_55, %c0_56] : memref<1x16xf32, #tpu.memory_space<vmem>>, vector<1x16xf32>
    %103 = arith.addf %101, %102 : vector<1x16xf32>
    %cst_57 = arith.constant 3.000000e+00 : f32
    %104 = vector.broadcast %cst_57 : f32 to vector<1x16xf32>
    %105 = arith.addf %103, %104 : vector<1x16xf32>
    %cst_58 = arith.constant 0.000000e+00 : f32
    %cst_59 = arith.constant 6.000000e+00 : f32
    %106 = vector.broadcast %cst_58 : f32 to vector<1x16xf32>
    %107 = arith.maximumf %106, %105 : vector<1x16xf32>
    %108 = vector.broadcast %cst_59 : f32 to vector<1x16xf32>
    %109 = arith.minimumf %108, %107 : vector<1x16xf32>
    %cst_60 = arith.constant 0.166666672 : f32
    %110 = vector.broadcast %cst_60 : f32 to vector<1x16xf32>
    %111 = arith.mulf %109, %110 : vector<1x16xf32>
    %112 = vector.broadcast %111 : vector<1x16xf32> to vector<64x16xf32>
    %113 = arith.mulf %87, %112 : vector<64x16xf32>
    %114 = arith.truncf %113 : vector<64x16xf32> to vector<64x16xbf16>
    %c0_61 = arith.constant 0 : index
    %c0_62 = arith.constant 0 : index
    %115 = vector.load %arg11[%c0_61, %c0_62] : memref<16x16xbf16, #tpu.memory_space<vmem>>, vector<16x16xbf16>
    %cst_63 = arith.constant dense<0.000000e+00> : vector<64x16xf32>
    %116 = tpu.matmul %114, %115, %cst_63 {dimension_numbers = #tpu.dot_dimension_numbers<[1], [0], [0], [1], [0, 0, 1, 1], [], []>} : vector<64x16xbf16>, vector<16x16xbf16>, vector<64x16xf32> -> vector<64x16xf32>
    %c0_64 = arith.constant 0 : index
    %c0_65 = arith.constant 0 : index
    %117 = vector.load %arg12[%c0_64, %c0_65] : memref<1x16xf32, #tpu.memory_space<vmem>>, vector<1x16xf32>
    %118 = vector.broadcast %117 : vector<1x16xf32> to vector<64x16xf32>
    %119 = arith.addf %116, %118 : vector<64x16xf32>
    %120 = arith.addf %119, %16 : vector<64x16xf32>
    %121 = arith.truncf %120 : vector<64x16xf32> to vector<64x16xbf16>
    %c0_66 = arith.constant 0 : index
    %c0_67 = arith.constant 0 : index
    %122 = vector.load %arg13[%c0_66, %c0_67] : memref<16x64xbf16, #tpu.memory_space<vmem>>, vector<16x64xbf16>
    %cst_68 = arith.constant dense<0.000000e+00> : vector<64x64xf32>
    %123 = tpu.matmul %121, %122, %cst_68 {dimension_numbers = #tpu.dot_dimension_numbers<[1], [0], [0], [1], [0, 0, 1, 1], [], []>} : vector<64x16xbf16>, vector<16x64xbf16>, vector<64x64xf32> -> vector<64x64xf32>
    %c0_69 = arith.constant 0 : index
    %c0_70 = arith.constant 0 : index
    %124 = vector.load %arg14[%c0_69, %c0_70] : memref<1x64xf32, #tpu.memory_space<vmem>>, vector<1x64xf32>
    %125 = vector.broadcast %124 : vector<1x64xf32> to vector<64x64xf32>
    %126 = arith.addf %123, %125 : vector<64x64xf32>
    %cst_71 = arith.constant 0.000000e+00 : f32
    %127 = vector.broadcast %cst_71 : f32 to vector<64x64xf32>
    %128 = arith.maximumf %126, %127 : vector<64x64xf32>
    %129 = arith.truncf %128 : vector<64x64xf32> to vector<64x64xbf16>
    %c0_72 = arith.constant 0 : index
    %c0_73 = arith.constant 0 : index
    %130 = vector.load %arg16[%c0_72, %c0_73] : memref<9x64xf32, #tpu.memory_space<vmem>>, vector<9x64xf32>
    %cst_74 = arith.constant 0.000000e+00 : f32
    %131 = vector.broadcast %cst_74 : f32 to vector<16x64xf32>
    %c0_75 = arith.constant 0 : index
    %c0_76 = arith.constant 0 : index
    %c0_77 = arith.constant 0 : index
    %132 = vector.load %arg15[%c0_75, %c0_76, %c0_77] : memref<9x16x64xbf16, #tpu.memory_space<vmem>>, vector<1x16x64xbf16>
    %133 = vector.shape_cast %132 : vector<1x16x64xbf16> to vector<16x64xbf16>
    %cst_78 = arith.constant dense<0.000000e+00> : vector<16x64xf32>
    %134 = tpu.matmul %133, %129, %cst_78 {dimension_numbers = #tpu.dot_dimension_numbers<[1], [0], [0], [1], [0, 0, 1, 1], [], []>} : vector<16x64xbf16>, vector<64x64xbf16>, vector<16x64xf32> -> vector<16x64xf32>
    %135 = vector.extract_strided_slice %130 {offsets = [0, 0], sizes = [1, 64], strides = [1, 1]} : vector<9x64xf32> to vector<1x64xf32>
    %136 = vector.broadcast %135 : vector<1x64xf32> to vector<16x64xf32>
    %137 = arith.mulf %134, %136 : vector<16x64xf32>
    %138 = arith.addf %131, %137 : vector<16x64xf32>
    %c1_79 = arith.constant 1 : index
    %c0_80 = arith.constant 0 : index
    %c0_81 = arith.constant 0 : index
    %139 = vector.load %arg15[%c1_79, %c0_80, %c0_81] : memref<9x16x64xbf16, #tpu.memory_space<vmem>>, vector<1x16x64xbf16>
    %140 = vector.shape_cast %139 : vector<1x16x64xbf16> to vector<16x64xbf16>
    %cst_82 = arith.constant dense<0.000000e+00> : vector<16x64xf32>
    %141 = tpu.matmul %140, %129, %cst_82 {dimension_numbers = #tpu.dot_dimension_numbers<[1], [0], [0], [1], [0, 0, 1, 1], [], []>} : vector<16x64xbf16>, vector<64x64xbf16>, vector<16x64xf32> -> vector<16x64xf32>
    %142 = vector.extract_strided_slice %130 {offsets = [1, 0], sizes = [1, 64], strides = [1, 1]} : vector<9x64xf32> to vector<1x64xf32>
    %143 = vector.broadcast %142 : vector<1x64xf32> to vector<16x64xf32>
    %144 = arith.mulf %141, %143 : vector<16x64xf32>
    %145 = arith.addf %138, %144 : vector<16x64xf32>
    %c2_83 = arith.constant 2 : index
    %c0_84 = arith.constant 0 : index
    %c0_85 = arith.constant 0 : index
    %146 = vector.load %arg15[%c2_83, %c0_84, %c0_85] : memref<9x16x64xbf16, #tpu.memory_space<vmem>>, vector<1x16x64xbf16>
    %147 = vector.shape_cast %146 : vector<1x16x64xbf16> to vector<16x64xbf16>
    %cst_86 = arith.constant dense<0.000000e+00> : vector<16x64xf32>
    %148 = tpu.matmul %147, %129, %cst_86 {dimension_numbers = #tpu.dot_dimension_numbers<[1], [0], [0], [1], [0, 0, 1, 1], [], []>} : vector<16x64xbf16>, vector<64x64xbf16>, vector<16x64xf32> -> vector<16x64xf32>
    %149 = vector.extract_strided_slice %130 {offsets = [2, 0], sizes = [1, 64], strides = [1, 1]} : vector<9x64xf32> to vector<1x64xf32>
    %150 = vector.broadcast %149 : vector<1x64xf32> to vector<16x64xf32>
    %151 = arith.mulf %148, %150 : vector<16x64xf32>
    %152 = arith.addf %145, %151 : vector<16x64xf32>
    %c3_87 = arith.constant 3 : index
    %c0_88 = arith.constant 0 : index
    %c0_89 = arith.constant 0 : index
    %153 = vector.load %arg15[%c3_87, %c0_88, %c0_89] : memref<9x16x64xbf16, #tpu.memory_space<vmem>>, vector<1x16x64xbf16>
    %154 = vector.shape_cast %153 : vector<1x16x64xbf16> to vector<16x64xbf16>
    %cst_90 = arith.constant dense<0.000000e+00> : vector<16x64xf32>
    %155 = tpu.matmul %154, %129, %cst_90 {dimension_numbers = #tpu.dot_dimension_numbers<[1], [0], [0], [1], [0, 0, 1, 1], [], []>} : vector<16x64xbf16>, vector<64x64xbf16>, vector<16x64xf32> -> vector<16x64xf32>
    %156 = vector.extract_strided_slice %130 {offsets = [3, 0], sizes = [1, 64], strides = [1, 1]} : vector<9x64xf32> to vector<1x64xf32>
    %157 = vector.broadcast %156 : vector<1x64xf32> to vector<16x64xf32>
    %158 = arith.mulf %155, %157 : vector<16x64xf32>
    %159 = arith.addf %152, %158 : vector<16x64xf32>
    %c4_91 = arith.constant 4 : index
    %c0_92 = arith.constant 0 : index
    %c0_93 = arith.constant 0 : index
    %160 = vector.load %arg15[%c4_91, %c0_92, %c0_93] : memref<9x16x64xbf16, #tpu.memory_space<vmem>>, vector<1x16x64xbf16>
    %161 = vector.shape_cast %160 : vector<1x16x64xbf16> to vector<16x64xbf16>
    %cst_94 = arith.constant dense<0.000000e+00> : vector<16x64xf32>
    %162 = tpu.matmul %161, %129, %cst_94 {dimension_numbers = #tpu.dot_dimension_numbers<[1], [0], [0], [1], [0, 0, 1, 1], [], []>} : vector<16x64xbf16>, vector<64x64xbf16>, vector<16x64xf32> -> vector<16x64xf32>
    %163 = vector.extract_strided_slice %130 {offsets = [4, 0], sizes = [1, 64], strides = [1, 1]} : vector<9x64xf32> to vector<1x64xf32>
    %164 = vector.broadcast %163 : vector<1x64xf32> to vector<16x64xf32>
    %165 = arith.mulf %162, %164 : vector<16x64xf32>
    %166 = arith.addf %159, %165 : vector<16x64xf32>
    %c5_95 = arith.constant 5 : index
    %c0_96 = arith.constant 0 : index
    %c0_97 = arith.constant 0 : index
    %167 = vector.load %arg15[%c5_95, %c0_96, %c0_97] : memref<9x16x64xbf16, #tpu.memory_space<vmem>>, vector<1x16x64xbf16>
    %168 = vector.shape_cast %167 : vector<1x16x64xbf16> to vector<16x64xbf16>
    %cst_98 = arith.constant dense<0.000000e+00> : vector<16x64xf32>
    %169 = tpu.matmul %168, %129, %cst_98 {dimension_numbers = #tpu.dot_dimension_numbers<[1], [0], [0], [1], [0, 0, 1, 1], [], []>} : vector<16x64xbf16>, vector<64x64xbf16>, vector<16x64xf32> -> vector<16x64xf32>
    %170 = vector.extract_strided_slice %130 {offsets = [5, 0], sizes = [1, 64], strides = [1, 1]} : vector<9x64xf32> to vector<1x64xf32>
    %171 = vector.broadcast %170 : vector<1x64xf32> to vector<16x64xf32>
    %172 = arith.mulf %169, %171 : vector<16x64xf32>
    %173 = arith.addf %166, %172 : vector<16x64xf32>
    %c6_99 = arith.constant 6 : index
    %c0_100 = arith.constant 0 : index
    %c0_101 = arith.constant 0 : index
    %174 = vector.load %arg15[%c6_99, %c0_100, %c0_101] : memref<9x16x64xbf16, #tpu.memory_space<vmem>>, vector<1x16x64xbf16>
    %175 = vector.shape_cast %174 : vector<1x16x64xbf16> to vector<16x64xbf16>
    %cst_102 = arith.constant dense<0.000000e+00> : vector<16x64xf32>
    %176 = tpu.matmul %175, %129, %cst_102 {dimension_numbers = #tpu.dot_dimension_numbers<[1], [0], [0], [1], [0, 0, 1, 1], [], []>} : vector<16x64xbf16>, vector<64x64xbf16>, vector<16x64xf32> -> vector<16x64xf32>
    %177 = vector.extract_strided_slice %130 {offsets = [6, 0], sizes = [1, 64], strides = [1, 1]} : vector<9x64xf32> to vector<1x64xf32>
    %178 = vector.broadcast %177 : vector<1x64xf32> to vector<16x64xf32>
    %179 = arith.mulf %176, %178 : vector<16x64xf32>
    %180 = arith.addf %173, %179 : vector<16x64xf32>
    %c7_103 = arith.constant 7 : index
    %c0_104 = arith.constant 0 : index
    %c0_105 = arith.constant 0 : index
    %181 = vector.load %arg15[%c7_103, %c0_104, %c0_105] : memref<9x16x64xbf16, #tpu.memory_space<vmem>>, vector<1x16x64xbf16>
    %182 = vector.shape_cast %181 : vector<1x16x64xbf16> to vector<16x64xbf16>
    %cst_106 = arith.constant dense<0.000000e+00> : vector<16x64xf32>
    %183 = tpu.matmul %182, %129, %cst_106 {dimension_numbers = #tpu.dot_dimension_numbers<[1], [0], [0], [1], [0, 0, 1, 1], [], []>} : vector<16x64xbf16>, vector<64x64xbf16>, vector<16x64xf32> -> vector<16x64xf32>
    %184 = vector.extract_strided_slice %130 {offsets = [7, 0], sizes = [1, 64], strides = [1, 1]} : vector<9x64xf32> to vector<1x64xf32>
    %185 = vector.broadcast %184 : vector<1x64xf32> to vector<16x64xf32>
    %186 = arith.mulf %183, %185 : vector<16x64xf32>
    %187 = arith.addf %180, %186 : vector<16x64xf32>
    %c8_107 = arith.constant 8 : index
    %c0_108 = arith.constant 0 : index
    %c0_109 = arith.constant 0 : index
    %188 = vector.load %arg15[%c8_107, %c0_108, %c0_109] : memref<9x16x64xbf16, #tpu.memory_space<vmem>>, vector<1x16x64xbf16>
    %189 = vector.shape_cast %188 : vector<1x16x64xbf16> to vector<16x64xbf16>
    %cst_110 = arith.constant dense<0.000000e+00> : vector<16x64xf32>
    %190 = tpu.matmul %189, %129, %cst_110 {dimension_numbers = #tpu.dot_dimension_numbers<[1], [0], [0], [1], [0, 0, 1, 1], [], []>} : vector<16x64xbf16>, vector<64x64xbf16>, vector<16x64xf32> -> vector<16x64xf32>
    %191 = vector.extract_strided_slice %130 {offsets = [8, 0], sizes = [1, 64], strides = [1, 1]} : vector<9x64xf32> to vector<1x64xf32>
    %192 = vector.broadcast %191 : vector<1x64xf32> to vector<16x64xf32>
    %193 = arith.mulf %190, %192 : vector<16x64xf32>
    %194 = arith.addf %187, %193 : vector<16x64xf32>
    %c0_111 = arith.constant 0 : index
    %c0_112 = arith.constant 0 : index
    %195 = vector.load %arg17[%c0_111, %c0_112] : memref<1x64xf32, #tpu.memory_space<vmem>>, vector<1x64xf32>
    %196 = vector.broadcast %195 : vector<1x64xf32> to vector<16x64xf32>
    %197 = arith.addf %194, %196 : vector<16x64xf32>
    %cst_113 = arith.constant 0.000000e+00 : f32
    %198 = vector.broadcast %cst_113 : f32 to vector<16x64xf32>
    %199 = arith.maximumf %197, %198 : vector<16x64xf32>
    %200 = arith.truncf %199 : vector<16x64xf32> to vector<16x64xbf16>
    %c0_114 = arith.constant 0 : index
    %c0_115 = arith.constant 0 : index
    %201 = vector.load %arg18[%c0_114, %c0_115] : memref<64x24xbf16, #tpu.memory_space<vmem>>, vector<64x24xbf16>
    %cst_116 = arith.constant dense<0.000000e+00> : vector<16x24xf32>
    %202 = tpu.matmul %200, %201, %cst_116 {dimension_numbers = #tpu.dot_dimension_numbers<[1], [0], [0], [1], [0, 0, 1, 1], [], []>} : vector<16x64xbf16>, vector<64x24xbf16>, vector<16x24xf32> -> vector<16x24xf32>
    %c0_117 = arith.constant 0 : index
    %c0_118 = arith.constant 0 : index
    %203 = vector.load %arg19[%c0_117, %c0_118] : memref<1x24xf32, #tpu.memory_space<vmem>>, vector<1x24xf32>
    %204 = vector.broadcast %203 : vector<1x24xf32> to vector<16x24xf32>
    %205 = arith.addf %202, %204 : vector<16x24xf32>
    %206 = arith.truncf %205 : vector<16x24xf32> to vector<16x24xbf16>
    %c0_119 = arith.constant 0 : index
    %c0_120 = arith.constant 0 : index
    %207 = vector.load %arg20[%c0_119, %c0_120] : memref<24x72xbf16, #tpu.memory_space<vmem>>, vector<24x72xbf16>
    %cst_121 = arith.constant dense<0.000000e+00> : vector<16x72xf32>
    %208 = tpu.matmul %206, %207, %cst_121 {dimension_numbers = #tpu.dot_dimension_numbers<[1], [0], [0], [1], [0, 0, 1, 1], [], []>} : vector<16x24xbf16>, vector<24x72xbf16>, vector<16x72xf32> -> vector<16x72xf32>
    %c0_122 = arith.constant 0 : index
    %c0_123 = arith.constant 0 : index
    %209 = vector.load %arg21[%c0_122, %c0_123] : memref<1x72xf32, #tpu.memory_space<vmem>>, vector<1x72xf32>
    %210 = vector.broadcast %209 : vector<1x72xf32> to vector<16x72xf32>
    %211 = arith.addf %208, %210 : vector<16x72xf32>
    %cst_124 = arith.constant 3.000000e+00 : f32
    %212 = vector.broadcast %cst_124 : f32 to vector<16x72xf32>
    %213 = arith.addf %211, %212 : vector<16x72xf32>
    %cst_125 = arith.constant 0.000000e+00 : f32
    %cst_126 = arith.constant 6.000000e+00 : f32
    %214 = vector.broadcast %cst_125 : f32 to vector<16x72xf32>
    %215 = arith.maximumf %214, %213 : vector<16x72xf32>
    %216 = vector.broadcast %cst_126 : f32 to vector<16x72xf32>
    %217 = arith.minimumf %216, %215 : vector<16x72xf32>
    %cst_127 = arith.constant 0.166666672 : f32
    %218 = vector.broadcast %cst_127 : f32 to vector<16x72xf32>
    %219 = arith.mulf %217, %218 : vector<16x72xf32>
    %220 = arith.mulf %211, %219 : vector<16x72xf32>
    %221 = arith.truncf %220 : vector<16x72xf32> to vector<16x72xbf16>
    %c0_128 = arith.constant 0 : index
    %c0_129 = arith.constant 0 : index
    %222 = vector.load %arg23[%c0_128, %c0_129] : memref<25x72xf32, #tpu.memory_space<vmem>>, vector<25x72xf32>
    %cst_130 = arith.constant 0.000000e+00 : f32
    %223 = vector.broadcast %cst_130 : f32 to vector<4x72xf32>
    %c0_131 = arith.constant 0 : index
    %c0_132 = arith.constant 0 : index
    %c0_133 = arith.constant 0 : index
    %224 = vector.load %arg22[%c0_131, %c0_132, %c0_133] : memref<25x4x16xbf16, #tpu.memory_space<vmem>>, vector<1x4x16xbf16>
    %225 = vector.shape_cast %224 : vector<1x4x16xbf16> to vector<4x16xbf16>
    %cst_134 = arith.constant dense<0.000000e+00> : vector<4x72xf32>
    %226 = tpu.matmul %225, %221, %cst_134 {dimension_numbers = #tpu.dot_dimension_numbers<[1], [0], [0], [1], [0, 0, 1, 1], [], []>} : vector<4x16xbf16>, vector<16x72xbf16>, vector<4x72xf32> -> vector<4x72xf32>
    %227 = vector.extract_strided_slice %222 {offsets = [0, 0], sizes = [1, 72], strides = [1, 1]} : vector<25x72xf32> to vector<1x72xf32>
    %228 = vector.broadcast %227 : vector<1x72xf32> to vector<4x72xf32>
    %229 = arith.mulf %226, %228 : vector<4x72xf32>
    %230 = arith.addf %223, %229 : vector<4x72xf32>
    %c1_135 = arith.constant 1 : index
    %c0_136 = arith.constant 0 : index
    %c0_137 = arith.constant 0 : index
    %231 = vector.load %arg22[%c1_135, %c0_136, %c0_137] : memref<25x4x16xbf16, #tpu.memory_space<vmem>>, vector<1x4x16xbf16>
    %232 = vector.shape_cast %231 : vector<1x4x16xbf16> to vector<4x16xbf16>
    %cst_138 = arith.constant dense<0.000000e+00> : vector<4x72xf32>
    %233 = tpu.matmul %232, %221, %cst_138 {dimension_numbers = #tpu.dot_dimension_numbers<[1], [0], [0], [1], [0, 0, 1, 1], [], []>} : vector<4x16xbf16>, vector<16x72xbf16>, vector<4x72xf32> -> vector<4x72xf32>
    %234 = vector.extract_strided_slice %222 {offsets = [1, 0], sizes = [1, 72], strides = [1, 1]} : vector<25x72xf32> to vector<1x72xf32>
    %235 = vector.broadcast %234 : vector<1x72xf32> to vector<4x72xf32>
    %236 = arith.mulf %233, %235 : vector<4x72xf32>
    %237 = arith.addf %230, %236 : vector<4x72xf32>
    %c2_139 = arith.constant 2 : index
    %c0_140 = arith.constant 0 : index
    %c0_141 = arith.constant 0 : index
    %238 = vector.load %arg22[%c2_139, %c0_140, %c0_141] : memref<25x4x16xbf16, #tpu.memory_space<vmem>>, vector<1x4x16xbf16>
    %239 = vector.shape_cast %238 : vector<1x4x16xbf16> to vector<4x16xbf16>
    %cst_142 = arith.constant dense<0.000000e+00> : vector<4x72xf32>
    %240 = tpu.matmul %239, %221, %cst_142 {dimension_numbers = #tpu.dot_dimension_numbers<[1], [0], [0], [1], [0, 0, 1, 1], [], []>} : vector<4x16xbf16>, vector<16x72xbf16>, vector<4x72xf32> -> vector<4x72xf32>
    %241 = vector.extract_strided_slice %222 {offsets = [2, 0], sizes = [1, 72], strides = [1, 1]} : vector<25x72xf32> to vector<1x72xf32>
    %242 = vector.broadcast %241 : vector<1x72xf32> to vector<4x72xf32>
    %243 = arith.mulf %240, %242 : vector<4x72xf32>
    %244 = arith.addf %237, %243 : vector<4x72xf32>
    %c3_143 = arith.constant 3 : index
    %c0_144 = arith.constant 0 : index
    %c0_145 = arith.constant 0 : index
    %245 = vector.load %arg22[%c3_143, %c0_144, %c0_145] : memref<25x4x16xbf16, #tpu.memory_space<vmem>>, vector<1x4x16xbf16>
    %246 = vector.shape_cast %245 : vector<1x4x16xbf16> to vector<4x16xbf16>
    %cst_146 = arith.constant dense<0.000000e+00> : vector<4x72xf32>
    %247 = tpu.matmul %246, %221, %cst_146 {dimension_numbers = #tpu.dot_dimension_numbers<[1], [0], [0], [1], [0, 0, 1, 1], [], []>} : vector<4x16xbf16>, vector<16x72xbf16>, vector<4x72xf32> -> vector<4x72xf32>
    %248 = vector.extract_strided_slice %222 {offsets = [3, 0], sizes = [1, 72], strides = [1, 1]} : vector<25x72xf32> to vector<1x72xf32>
    %249 = vector.broadcast %248 : vector<1x72xf32> to vector<4x72xf32>
    %250 = arith.mulf %247, %249 : vector<4x72xf32>
    %251 = arith.addf %244, %250 : vector<4x72xf32>
    %c4_147 = arith.constant 4 : index
    %c0_148 = arith.constant 0 : index
    %c0_149 = arith.constant 0 : index
    %252 = vector.load %arg22[%c4_147, %c0_148, %c0_149] : memref<25x4x16xbf16, #tpu.memory_space<vmem>>, vector<1x4x16xbf16>
    %253 = vector.shape_cast %252 : vector<1x4x16xbf16> to vector<4x16xbf16>
    %cst_150 = arith.constant dense<0.000000e+00> : vector<4x72xf32>
    %254 = tpu.matmul %253, %221, %cst_150 {dimension_numbers = #tpu.dot_dimension_numbers<[1], [0], [0], [1], [0, 0, 1, 1], [], []>} : vector<4x16xbf16>, vector<16x72xbf16>, vector<4x72xf32> -> vector<4x72xf32>
    %255 = vector.extract_strided_slice %222 {offsets = [4, 0], sizes = [1, 72], strides = [1, 1]} : vector<25x72xf32> to vector<1x72xf32>
    %256 = vector.broadcast %255 : vector<1x72xf32> to vector<4x72xf32>
    %257 = arith.mulf %254, %256 : vector<4x72xf32>
    %258 = arith.addf %251, %257 : vector<4x72xf32>
    %c5_151 = arith.constant 5 : index
    %c0_152 = arith.constant 0 : index
    %c0_153 = arith.constant 0 : index
    %259 = vector.load %arg22[%c5_151, %c0_152, %c0_153] : memref<25x4x16xbf16, #tpu.memory_space<vmem>>, vector<1x4x16xbf16>
    %260 = vector.shape_cast %259 : vector<1x4x16xbf16> to vector<4x16xbf16>
    %cst_154 = arith.constant dense<0.000000e+00> : vector<4x72xf32>
    %261 = tpu.matmul %260, %221, %cst_154 {dimension_numbers = #tpu.dot_dimension_numbers<[1], [0], [0], [1], [0, 0, 1, 1], [], []>} : vector<4x16xbf16>, vector<16x72xbf16>, vector<4x72xf32> -> vector<4x72xf32>
    %262 = vector.extract_strided_slice %222 {offsets = [5, 0], sizes = [1, 72], strides = [1, 1]} : vector<25x72xf32> to vector<1x72xf32>
    %263 = vector.broadcast %262 : vector<1x72xf32> to vector<4x72xf32>
    %264 = arith.mulf %261, %263 : vector<4x72xf32>
    %265 = arith.addf %258, %264 : vector<4x72xf32>
    %c6_155 = arith.constant 6 : index
    %c0_156 = arith.constant 0 : index
    %c0_157 = arith.constant 0 : index
    %266 = vector.load %arg22[%c6_155, %c0_156, %c0_157] : memref<25x4x16xbf16, #tpu.memory_space<vmem>>, vector<1x4x16xbf16>
    %267 = vector.shape_cast %266 : vector<1x4x16xbf16> to vector<4x16xbf16>
    %cst_158 = arith.constant dense<0.000000e+00> : vector<4x72xf32>
    %268 = tpu.matmul %267, %221, %cst_158 {dimension_numbers = #tpu.dot_dimension_numbers<[1], [0], [0], [1], [0, 0, 1, 1], [], []>} : vector<4x16xbf16>, vector<16x72xbf16>, vector<4x72xf32> -> vector<4x72xf32>
    %269 = vector.extract_strided_slice %222 {offsets = [6, 0], sizes = [1, 72], strides = [1, 1]} : vector<25x72xf32> to vector<1x72xf32>
    %270 = vector.broadcast %269 : vector<1x72xf32> to vector<4x72xf32>
    %271 = arith.mulf %268, %270 : vector<4x72xf32>
    %272 = arith.addf %265, %271 : vector<4x72xf32>
    %c7_159 = arith.constant 7 : index
    %c0_160 = arith.constant 0 : index
    %c0_161 = arith.constant 0 : index
    %273 = vector.load %arg22[%c7_159, %c0_160, %c0_161] : memref<25x4x16xbf16, #tpu.memory_space<vmem>>, vector<1x4x16xbf16>
    %274 = vector.shape_cast %273 : vector<1x4x16xbf16> to vector<4x16xbf16>
    %cst_162 = arith.constant dense<0.000000e+00> : vector<4x72xf32>
    %275 = tpu.matmul %274, %221, %cst_162 {dimension_numbers = #tpu.dot_dimension_numbers<[1], [0], [0], [1], [0, 0, 1, 1], [], []>} : vector<4x16xbf16>, vector<16x72xbf16>, vector<4x72xf32> -> vector<4x72xf32>
    %276 = vector.extract_strided_slice %222 {offsets = [7, 0], sizes = [1, 72], strides = [1, 1]} : vector<25x72xf32> to vector<1x72xf32>
    %277 = vector.broadcast %276 : vector<1x72xf32> to vector<4x72xf32>
    %278 = arith.mulf %275, %277 : vector<4x72xf32>
    %279 = arith.addf %272, %278 : vector<4x72xf32>
    %c8_163 = arith.constant 8 : index
    %c0_164 = arith.constant 0 : index
    %c0_165 = arith.constant 0 : index
    %280 = vector.load %arg22[%c8_163, %c0_164, %c0_165] : memref<25x4x16xbf16, #tpu.memory_space<vmem>>, vector<1x4x16xbf16>
    %281 = vector.shape_cast %280 : vector<1x4x16xbf16> to vector<4x16xbf16>
    %cst_166 = arith.constant dense<0.000000e+00> : vector<4x72xf32>
    %282 = tpu.matmul %281, %221, %cst_166 {dimension_numbers = #tpu.dot_dimension_numbers<[1], [0], [0], [1], [0, 0, 1, 1], [], []>} : vector<4x16xbf16>, vector<16x72xbf16>, vector<4x72xf32> -> vector<4x72xf32>
    %283 = vector.extract_strided_slice %222 {offsets = [8, 0], sizes = [1, 72], strides = [1, 1]} : vector<25x72xf32> to vector<1x72xf32>
    %284 = vector.broadcast %283 : vector<1x72xf32> to vector<4x72xf32>
    %285 = arith.mulf %282, %284 : vector<4x72xf32>
    %286 = arith.addf %279, %285 : vector<4x72xf32>
    %c9 = arith.constant 9 : index
    %c0_167 = arith.constant 0 : index
    %c0_168 = arith.constant 0 : index
    %287 = vector.load %arg22[%c9, %c0_167, %c0_168] : memref<25x4x16xbf16, #tpu.memory_space<vmem>>, vector<1x4x16xbf16>
    %288 = vector.shape_cast %287 : vector<1x4x16xbf16> to vector<4x16xbf16>
    %cst_169 = arith.constant dense<0.000000e+00> : vector<4x72xf32>
    %289 = tpu.matmul %288, %221, %cst_169 {dimension_numbers = #tpu.dot_dimension_numbers<[1], [0], [0], [1], [0, 0, 1, 1], [], []>} : vector<4x16xbf16>, vector<16x72xbf16>, vector<4x72xf32> -> vector<4x72xf32>
    %290 = vector.extract_strided_slice %222 {offsets = [9, 0], sizes = [1, 72], strides = [1, 1]} : vector<25x72xf32> to vector<1x72xf32>
    %291 = vector.broadcast %290 : vector<1x72xf32> to vector<4x72xf32>
    %292 = arith.mulf %289, %291 : vector<4x72xf32>
    %293 = arith.addf %286, %292 : vector<4x72xf32>
    %c10 = arith.constant 10 : index
    %c0_170 = arith.constant 0 : index
    %c0_171 = arith.constant 0 : index
    %294 = vector.load %arg22[%c10, %c0_170, %c0_171] : memref<25x4x16xbf16, #tpu.memory_space<vmem>>, vector<1x4x16xbf16>
    %295 = vector.shape_cast %294 : vector<1x4x16xbf16> to vector<4x16xbf16>
    %cst_172 = arith.constant dense<0.000000e+00> : vector<4x72xf32>
    %296 = tpu.matmul %295, %221, %cst_172 {dimension_numbers = #tpu.dot_dimension_numbers<[1], [0], [0], [1], [0, 0, 1, 1], [], []>} : vector<4x16xbf16>, vector<16x72xbf16>, vector<4x72xf32> -> vector<4x72xf32>
    %297 = vector.extract_strided_slice %222 {offsets = [10, 0], sizes = [1, 72], strides = [1, 1]} : vector<25x72xf32> to vector<1x72xf32>
    %298 = vector.broadcast %297 : vector<1x72xf32> to vector<4x72xf32>
    %299 = arith.mulf %296, %298 : vector<4x72xf32>
    %300 = arith.addf %293, %299 : vector<4x72xf32>
    %c11 = arith.constant 11 : index
    %c0_173 = arith.constant 0 : index
    %c0_174 = arith.constant 0 : index
    %301 = vector.load %arg22[%c11, %c0_173, %c0_174] : memref<25x4x16xbf16, #tpu.memory_space<vmem>>, vector<1x4x16xbf16>
    %302 = vector.shape_cast %301 : vector<1x4x16xbf16> to vector<4x16xbf16>
    %cst_175 = arith.constant dense<0.000000e+00> : vector<4x72xf32>
    %303 = tpu.matmul %302, %221, %cst_175 {dimension_numbers = #tpu.dot_dimension_numbers<[1], [0], [0], [1], [0, 0, 1, 1], [], []>} : vector<4x16xbf16>, vector<16x72xbf16>, vector<4x72xf32> -> vector<4x72xf32>
    %304 = vector.extract_strided_slice %222 {offsets = [11, 0], sizes = [1, 72], strides = [1, 1]} : vector<25x72xf32> to vector<1x72xf32>
    %305 = vector.broadcast %304 : vector<1x72xf32> to vector<4x72xf32>
    %306 = arith.mulf %303, %305 : vector<4x72xf32>
    %307 = arith.addf %300, %306 : vector<4x72xf32>
    %c12 = arith.constant 12 : index
    %c0_176 = arith.constant 0 : index
    %c0_177 = arith.constant 0 : index
    %308 = vector.load %arg22[%c12, %c0_176, %c0_177] : memref<25x4x16xbf16, #tpu.memory_space<vmem>>, vector<1x4x16xbf16>
    %309 = vector.shape_cast %308 : vector<1x4x16xbf16> to vector<4x16xbf16>
    %cst_178 = arith.constant dense<0.000000e+00> : vector<4x72xf32>
    %310 = tpu.matmul %309, %221, %cst_178 {dimension_numbers = #tpu.dot_dimension_numbers<[1], [0], [0], [1], [0, 0, 1, 1], [], []>} : vector<4x16xbf16>, vector<16x72xbf16>, vector<4x72xf32> -> vector<4x72xf32>
    %311 = vector.extract_strided_slice %222 {offsets = [12, 0], sizes = [1, 72], strides = [1, 1]} : vector<25x72xf32> to vector<1x72xf32>
    %312 = vector.broadcast %311 : vector<1x72xf32> to vector<4x72xf32>
    %313 = arith.mulf %310, %312 : vector<4x72xf32>
    %314 = arith.addf %307, %313 : vector<4x72xf32>
    %c13 = arith.constant 13 : index
    %c0_179 = arith.constant 0 : index
    %c0_180 = arith.constant 0 : index
    %315 = vector.load %arg22[%c13, %c0_179, %c0_180] : memref<25x4x16xbf16, #tpu.memory_space<vmem>>, vector<1x4x16xbf16>
    %316 = vector.shape_cast %315 : vector<1x4x16xbf16> to vector<4x16xbf16>
    %cst_181 = arith.constant dense<0.000000e+00> : vector<4x72xf32>
    %317 = tpu.matmul %316, %221, %cst_181 {dimension_numbers = #tpu.dot_dimension_numbers<[1], [0], [0], [1], [0, 0, 1, 1], [], []>} : vector<4x16xbf16>, vector<16x72xbf16>, vector<4x72xf32> -> vector<4x72xf32>
    %318 = vector.extract_strided_slice %222 {offsets = [13, 0], sizes = [1, 72], strides = [1, 1]} : vector<25x72xf32> to vector<1x72xf32>
    %319 = vector.broadcast %318 : vector<1x72xf32> to vector<4x72xf32>
    %320 = arith.mulf %317, %319 : vector<4x72xf32>
    %321 = arith.addf %314, %320 : vector<4x72xf32>
    %c14 = arith.constant 14 : index
    %c0_182 = arith.constant 0 : index
    %c0_183 = arith.constant 0 : index
    %322 = vector.load %arg22[%c14, %c0_182, %c0_183] : memref<25x4x16xbf16, #tpu.memory_space<vmem>>, vector<1x4x16xbf16>
    %323 = vector.shape_cast %322 : vector<1x4x16xbf16> to vector<4x16xbf16>
    %cst_184 = arith.constant dense<0.000000e+00> : vector<4x72xf32>
    %324 = tpu.matmul %323, %221, %cst_184 {dimension_numbers = #tpu.dot_dimension_numbers<[1], [0], [0], [1], [0, 0, 1, 1], [], []>} : vector<4x16xbf16>, vector<16x72xbf16>, vector<4x72xf32> -> vector<4x72xf32>
    %325 = vector.extract_strided_slice %222 {offsets = [14, 0], sizes = [1, 72], strides = [1, 1]} : vector<25x72xf32> to vector<1x72xf32>
    %326 = vector.broadcast %325 : vector<1x72xf32> to vector<4x72xf32>
    %327 = arith.mulf %324, %326 : vector<4x72xf32>
    %328 = arith.addf %321, %327 : vector<4x72xf32>
    %c15 = arith.constant 15 : index
    %c0_185 = arith.constant 0 : index
    %c0_186 = arith.constant 0 : index
    %329 = vector.load %arg22[%c15, %c0_185, %c0_186] : memref<25x4x16xbf16, #tpu.memory_space<vmem>>, vector<1x4x16xbf16>
    %330 = vector.shape_cast %329 : vector<1x4x16xbf16> to vector<4x16xbf16>
    %cst_187 = arith.constant dense<0.000000e+00> : vector<4x72xf32>
    %331 = tpu.matmul %330, %221, %cst_187 {dimension_numbers = #tpu.dot_dimension_numbers<[1], [0], [0], [1], [0, 0, 1, 1], [], []>} : vector<4x16xbf16>, vector<16x72xbf16>, vector<4x72xf32> -> vector<4x72xf32>
    %332 = vector.extract_strided_slice %222 {offsets = [15, 0], sizes = [1, 72], strides = [1, 1]} : vector<25x72xf32> to vector<1x72xf32>
    %333 = vector.broadcast %332 : vector<1x72xf32> to vector<4x72xf32>
    %334 = arith.mulf %331, %333 : vector<4x72xf32>
    %335 = arith.addf %328, %334 : vector<4x72xf32>
    %c16 = arith.constant 16 : index
    %c0_188 = arith.constant 0 : index
    %c0_189 = arith.constant 0 : index
    %336 = vector.load %arg22[%c16, %c0_188, %c0_189] : memref<25x4x16xbf16, #tpu.memory_space<vmem>>, vector<1x4x16xbf16>
    %337 = vector.shape_cast %336 : vector<1x4x16xbf16> to vector<4x16xbf16>
    %cst_190 = arith.constant dense<0.000000e+00> : vector<4x72xf32>
    %338 = tpu.matmul %337, %221, %cst_190 {dimension_numbers = #tpu.dot_dimension_numbers<[1], [0], [0], [1], [0, 0, 1, 1], [], []>} : vector<4x16xbf16>, vector<16x72xbf16>, vector<4x72xf32> -> vector<4x72xf32>
    %339 = vector.extract_strided_slice %222 {offsets = [16, 0], sizes = [1, 72], strides = [1, 1]} : vector<25x72xf32> to vector<1x72xf32>
    %340 = vector.broadcast %339 : vector<1x72xf32> to vector<4x72xf32>
    %341 = arith.mulf %338, %340 : vector<4x72xf32>
    %342 = arith.addf %335, %341 : vector<4x72xf32>
    %c17 = arith.constant 17 : index
    %c0_191 = arith.constant 0 : index
    %c0_192 = arith.constant 0 : index
    %343 = vector.load %arg22[%c17, %c0_191, %c0_192] : memref<25x4x16xbf16, #tpu.memory_space<vmem>>, vector<1x4x16xbf16>
    %344 = vector.shape_cast %343 : vector<1x4x16xbf16> to vector<4x16xbf16>
    %cst_193 = arith.constant dense<0.000000e+00> : vector<4x72xf32>
    %345 = tpu.matmul %344, %221, %cst_193 {dimension_numbers = #tpu.dot_dimension_numbers<[1], [0], [0], [1], [0, 0, 1, 1], [], []>} : vector<4x16xbf16>, vector<16x72xbf16>, vector<4x72xf32> -> vector<4x72xf32>
    %346 = vector.extract_strided_slice %222 {offsets = [17, 0], sizes = [1, 72], strides = [1, 1]} : vector<25x72xf32> to vector<1x72xf32>
    %347 = vector.broadcast %346 : vector<1x72xf32> to vector<4x72xf32>
    %348 = arith.mulf %345, %347 : vector<4x72xf32>
    %349 = arith.addf %342, %348 : vector<4x72xf32>
    %c18 = arith.constant 18 : index
    %c0_194 = arith.constant 0 : index
    %c0_195 = arith.constant 0 : index
    %350 = vector.load %arg22[%c18, %c0_194, %c0_195] : memref<25x4x16xbf16, #tpu.memory_space<vmem>>, vector<1x4x16xbf16>
    %351 = vector.shape_cast %350 : vector<1x4x16xbf16> to vector<4x16xbf16>
    %cst_196 = arith.constant dense<0.000000e+00> : vector<4x72xf32>
    %352 = tpu.matmul %351, %221, %cst_196 {dimension_numbers = #tpu.dot_dimension_numbers<[1], [0], [0], [1], [0, 0, 1, 1], [], []>} : vector<4x16xbf16>, vector<16x72xbf16>, vector<4x72xf32> -> vector<4x72xf32>
    %353 = vector.extract_strided_slice %222 {offsets = [18, 0], sizes = [1, 72], strides = [1, 1]} : vector<25x72xf32> to vector<1x72xf32>
    %354 = vector.broadcast %353 : vector<1x72xf32> to vector<4x72xf32>
    %355 = arith.mulf %352, %354 : vector<4x72xf32>
    %356 = arith.addf %349, %355 : vector<4x72xf32>
    %c19 = arith.constant 19 : index
    %c0_197 = arith.constant 0 : index
    %c0_198 = arith.constant 0 : index
    %357 = vector.load %arg22[%c19, %c0_197, %c0_198] : memref<25x4x16xbf16, #tpu.memory_space<vmem>>, vector<1x4x16xbf16>
    %358 = vector.shape_cast %357 : vector<1x4x16xbf16> to vector<4x16xbf16>
    %cst_199 = arith.constant dense<0.000000e+00> : vector<4x72xf32>
    %359 = tpu.matmul %358, %221, %cst_199 {dimension_numbers = #tpu.dot_dimension_numbers<[1], [0], [0], [1], [0, 0, 1, 1], [], []>} : vector<4x16xbf16>, vector<16x72xbf16>, vector<4x72xf32> -> vector<4x72xf32>
    %360 = vector.extract_strided_slice %222 {offsets = [19, 0], sizes = [1, 72], strides = [1, 1]} : vector<25x72xf32> to vector<1x72xf32>
    %361 = vector.broadcast %360 : vector<1x72xf32> to vector<4x72xf32>
    %362 = arith.mulf %359, %361 : vector<4x72xf32>
    %363 = arith.addf %356, %362 : vector<4x72xf32>
    %c20 = arith.constant 20 : index
    %c0_200 = arith.constant 0 : index
    %c0_201 = arith.constant 0 : index
    %364 = vector.load %arg22[%c20, %c0_200, %c0_201] : memref<25x4x16xbf16, #tpu.memory_space<vmem>>, vector<1x4x16xbf16>
    %365 = vector.shape_cast %364 : vector<1x4x16xbf16> to vector<4x16xbf16>
    %cst_202 = arith.constant dense<0.000000e+00> : vector<4x72xf32>
    %366 = tpu.matmul %365, %221, %cst_202 {dimension_numbers = #tpu.dot_dimension_numbers<[1], [0], [0], [1], [0, 0, 1, 1], [], []>} : vector<4x16xbf16>, vector<16x72xbf16>, vector<4x72xf32> -> vector<4x72xf32>
    %367 = vector.extract_strided_slice %222 {offsets = [20, 0], sizes = [1, 72], strides = [1, 1]} : vector<25x72xf32> to vector<1x72xf32>
    %368 = vector.broadcast %367 : vector<1x72xf32> to vector<4x72xf32>
    %369 = arith.mulf %366, %368 : vector<4x72xf32>
    %370 = arith.addf %363, %369 : vector<4x72xf32>
    %c21 = arith.constant 21 : index
    %c0_203 = arith.constant 0 : index
    %c0_204 = arith.constant 0 : index
    %371 = vector.load %arg22[%c21, %c0_203, %c0_204] : memref<25x4x16xbf16, #tpu.memory_space<vmem>>, vector<1x4x16xbf16>
    %372 = vector.shape_cast %371 : vector<1x4x16xbf16> to vector<4x16xbf16>
    %cst_205 = arith.constant dense<0.000000e+00> : vector<4x72xf32>
    %373 = tpu.matmul %372, %221, %cst_205 {dimension_numbers = #tpu.dot_dimension_numbers<[1], [0], [0], [1], [0, 0, 1, 1], [], []>} : vector<4x16xbf16>, vector<16x72xbf16>, vector<4x72xf32> -> vector<4x72xf32>
    %374 = vector.extract_strided_slice %222 {offsets = [21, 0], sizes = [1, 72], strides = [1, 1]} : vector<25x72xf32> to vector<1x72xf32>
    %375 = vector.broadcast %374 : vector<1x72xf32> to vector<4x72xf32>
    %376 = arith.mulf %373, %375 : vector<4x72xf32>
    %377 = arith.addf %370, %376 : vector<4x72xf32>
    %c22 = arith.constant 22 : index
    %c0_206 = arith.constant 0 : index
    %c0_207 = arith.constant 0 : index
    %378 = vector.load %arg22[%c22, %c0_206, %c0_207] : memref<25x4x16xbf16, #tpu.memory_space<vmem>>, vector<1x4x16xbf16>
    %379 = vector.shape_cast %378 : vector<1x4x16xbf16> to vector<4x16xbf16>
    %cst_208 = arith.constant dense<0.000000e+00> : vector<4x72xf32>
    %380 = tpu.matmul %379, %221, %cst_208 {dimension_numbers = #tpu.dot_dimension_numbers<[1], [0], [0], [1], [0, 0, 1, 1], [], []>} : vector<4x16xbf16>, vector<16x72xbf16>, vector<4x72xf32> -> vector<4x72xf32>
    %381 = vector.extract_strided_slice %222 {offsets = [22, 0], sizes = [1, 72], strides = [1, 1]} : vector<25x72xf32> to vector<1x72xf32>
    %382 = vector.broadcast %381 : vector<1x72xf32> to vector<4x72xf32>
    %383 = arith.mulf %380, %382 : vector<4x72xf32>
    %384 = arith.addf %377, %383 : vector<4x72xf32>
    %c23 = arith.constant 23 : index
    %c0_209 = arith.constant 0 : index
    %c0_210 = arith.constant 0 : index
    %385 = vector.load %arg22[%c23, %c0_209, %c0_210] : memref<25x4x16xbf16, #tpu.memory_space<vmem>>, vector<1x4x16xbf16>
    %386 = vector.shape_cast %385 : vector<1x4x16xbf16> to vector<4x16xbf16>
    %cst_211 = arith.constant dense<0.000000e+00> : vector<4x72xf32>
    %387 = tpu.matmul %386, %221, %cst_211 {dimension_numbers = #tpu.dot_dimension_numbers<[1], [0], [0], [1], [0, 0, 1, 1], [], []>} : vector<4x16xbf16>, vector<16x72xbf16>, vector<4x72xf32> -> vector<4x72xf32>
    %388 = vector.extract_strided_slice %222 {offsets = [23, 0], sizes = [1, 72], strides = [1, 1]} : vector<25x72xf32> to vector<1x72xf32>
    %389 = vector.broadcast %388 : vector<1x72xf32> to vector<4x72xf32>
    %390 = arith.mulf %387, %389 : vector<4x72xf32>
    %391 = arith.addf %384, %390 : vector<4x72xf32>
    %c24 = arith.constant 24 : index
    %c0_212 = arith.constant 0 : index
    %c0_213 = arith.constant 0 : index
    %392 = vector.load %arg22[%c24, %c0_212, %c0_213] : memref<25x4x16xbf16, #tpu.memory_space<vmem>>, vector<1x4x16xbf16>
    %393 = vector.shape_cast %392 : vector<1x4x16xbf16> to vector<4x16xbf16>
    %cst_214 = arith.constant dense<0.000000e+00> : vector<4x72xf32>
    %394 = tpu.matmul %393, %221, %cst_214 {dimension_numbers = #tpu.dot_dimension_numbers<[1], [0], [0], [1], [0, 0, 1, 1], [], []>} : vector<4x16xbf16>, vector<16x72xbf16>, vector<4x72xf32> -> vector<4x72xf32>
    %395 = vector.extract_strided_slice %222 {offsets = [24, 0], sizes = [1, 72], strides = [1, 1]} : vector<25x72xf32> to vector<1x72xf32>
    %396 = vector.broadcast %395 : vector<1x72xf32> to vector<4x72xf32>
    %397 = arith.mulf %394, %396 : vector<4x72xf32>
    %398 = arith.addf %391, %397 : vector<4x72xf32>
    %c0_215 = arith.constant 0 : index
    %c0_216 = arith.constant 0 : index
    %399 = vector.load %arg24[%c0_215, %c0_216] : memref<1x72xf32, #tpu.memory_space<vmem>>, vector<1x72xf32>
    %400 = vector.broadcast %399 : vector<1x72xf32> to vector<4x72xf32>
    %401 = arith.addf %398, %400 : vector<4x72xf32>
    %cst_217 = arith.constant 3.000000e+00 : f32
    %402 = vector.broadcast %cst_217 : f32 to vector<4x72xf32>
    %403 = arith.addf %401, %402 : vector<4x72xf32>
    %cst_218 = arith.constant 0.000000e+00 : f32
    %cst_219 = arith.constant 6.000000e+00 : f32
    %404 = vector.broadcast %cst_218 : f32 to vector<4x72xf32>
    %405 = arith.maximumf %404, %403 : vector<4x72xf32>
    %406 = vector.broadcast %cst_219 : f32 to vector<4x72xf32>
    %407 = arith.minimumf %406, %405 : vector<4x72xf32>
    %cst_220 = arith.constant 0.166666672 : f32
    %408 = vector.broadcast %cst_220 : f32 to vector<4x72xf32>
    %409 = arith.mulf %407, %408 : vector<4x72xf32>
    %410 = arith.mulf %401, %409 : vector<4x72xf32>
    %cst_221 = arith.constant dense<0.000000e+00> : vector<72xf32>
    %411 = vector.multi_reduction <add>, %410, %cst_221 [0] : vector<4x72xf32> to vector<72xf32>
    %412 = vector.shape_cast %411 : vector<72xf32> to vector<1x72xf32>
    %cst_222 = arith.constant 2.500000e-01 : f32
    %413 = vector.broadcast %cst_222 : f32 to vector<1x72xf32>
    %414 = arith.mulf %412, %413 : vector<1x72xf32>
    %415 = arith.truncf %414 : vector<1x72xf32> to vector<1x72xbf16>
    %c0_223 = arith.constant 0 : index
    %c0_224 = arith.constant 0 : index
    %416 = vector.load %arg25[%c0_223, %c0_224] : memref<72x24xbf16, #tpu.memory_space<vmem>>, vector<72x24xbf16>
    %cst_225 = arith.constant dense<0.000000e+00> : vector<1x24xf32>
    %417 = tpu.matmul %415, %416, %cst_225 {dimension_numbers = #tpu.dot_dimension_numbers<[1], [0], [0], [1], [0, 0, 1, 1], [], []>} : vector<1x72xbf16>, vector<72x24xbf16>, vector<1x24xf32> -> vector<1x24xf32>
    %c0_226 = arith.constant 0 : index
    %c0_227 = arith.constant 0 : index
    %418 = vector.load %arg26[%c0_226, %c0_227] : memref<1x24xf32, #tpu.memory_space<vmem>>, vector<1x24xf32>
    %419 = arith.addf %417, %418 : vector<1x24xf32>
    %cst_228 = arith.constant 0.000000e+00 : f32
    %420 = vector.broadcast %cst_228 : f32 to vector<1x24xf32>
    %421 = arith.maximumf %419, %420 : vector<1x24xf32>
    %422 = arith.truncf %421 : vector<1x24xf32> to vector<1x24xbf16>
    %c0_229 = arith.constant 0 : index
    %c0_230 = arith.constant 0 : index
    %423 = vector.load %arg27[%c0_229, %c0_230] : memref<24x72xbf16, #tpu.memory_space<vmem>>, vector<24x72xbf16>
    %cst_231 = arith.constant dense<0.000000e+00> : vector<1x72xf32>
    %424 = tpu.matmul %422, %423, %cst_231 {dimension_numbers = #tpu.dot_dimension_numbers<[1], [0], [0], [1], [0, 0, 1, 1], [], []>} : vector<1x24xbf16>, vector<24x72xbf16>, vector<1x72xf32> -> vector<1x72xf32>
    %c0_232 = arith.constant 0 : index
    %c0_233 = arith.constant 0 : index
    %425 = vector.load %arg28[%c0_232, %c0_233] : memref<1x72xf32, #tpu.memory_space<vmem>>, vector<1x72xf32>
    %426 = arith.addf %424, %425 : vector<1x72xf32>
    %cst_234 = arith.constant 3.000000e+00 : f32
    %427 = vector.broadcast %cst_234 : f32 to vector<1x72xf32>
    %428 = arith.addf %426, %427 : vector<1x72xf32>
    %cst_235 = arith.constant 0.000000e+00 : f32
    %cst_236 = arith.constant 6.000000e+00 : f32
    %429 = vector.broadcast %cst_235 : f32 to vector<1x72xf32>
    %430 = arith.maximumf %429, %428 : vector<1x72xf32>
    %431 = vector.broadcast %cst_236 : f32 to vector<1x72xf32>
    %432 = arith.minimumf %431, %430 : vector<1x72xf32>
    %cst_237 = arith.constant 0.166666672 : f32
    %433 = vector.broadcast %cst_237 : f32 to vector<1x72xf32>
    %434 = arith.mulf %432, %433 : vector<1x72xf32>
    %435 = vector.broadcast %434 : vector<1x72xf32> to vector<4x72xf32>
    %436 = arith.mulf %410, %435 : vector<4x72xf32>
    %437 = arith.truncf %436 : vector<4x72xf32> to vector<4x72xbf16>
    %c0_238 = arith.constant 0 : index
    %c0_239 = arith.constant 0 : index
    %438 = vector.load %arg29[%c0_238, %c0_239] : memref<72x40xbf16, #tpu.memory_space<vmem>>, vector<72x40xbf16>
    %cst_240 = arith.constant dense<0.000000e+00> : vector<4x40xf32>
    %439 = tpu.matmul %437, %438, %cst_240 {dimension_numbers = #tpu.dot_dimension_numbers<[1], [0], [0], [1], [0, 0, 1, 1], [], []>} : vector<4x72xbf16>, vector<72x40xbf16>, vector<4x40xf32> -> vector<4x40xf32>
    %c0_241 = arith.constant 0 : index
    %c0_242 = arith.constant 0 : index
    %440 = vector.load %arg30[%c0_241, %c0_242] : memref<1x40xf32, #tpu.memory_space<vmem>>, vector<1x40xf32>
    %441 = vector.broadcast %440 : vector<1x40xf32> to vector<4x40xf32>
    %442 = arith.addf %439, %441 : vector<4x40xf32>
    %443 = arith.truncf %442 : vector<4x40xf32> to vector<4x40xbf16>
    %c0_243 = arith.constant 0 : index
    %c0_244 = arith.constant 0 : index
    %444 = vector.load %arg31[%c0_243, %c0_244] : memref<40x240xbf16, #tpu.memory_space<vmem>>, vector<40x240xbf16>
    %cst_245 = arith.constant dense<0.000000e+00> : vector<4x240xf32>
    %445 = tpu.matmul %443, %444, %cst_245 {dimension_numbers = #tpu.dot_dimension_numbers<[1], [0], [0], [1], [0, 0, 1, 1], [], []>} : vector<4x40xbf16>, vector<40x240xbf16>, vector<4x240xf32> -> vector<4x240xf32>
    %c0_246 = arith.constant 0 : index
    %c0_247 = arith.constant 0 : index
    %446 = vector.load %arg32[%c0_246, %c0_247] : memref<1x240xf32, #tpu.memory_space<vmem>>, vector<1x240xf32>
    %447 = vector.broadcast %446 : vector<1x240xf32> to vector<4x240xf32>
    %448 = arith.addf %445, %447 : vector<4x240xf32>
    %cst_248 = arith.constant 3.000000e+00 : f32
    %449 = vector.broadcast %cst_248 : f32 to vector<4x240xf32>
    %450 = arith.addf %448, %449 : vector<4x240xf32>
    %cst_249 = arith.constant 0.000000e+00 : f32
    %cst_250 = arith.constant 6.000000e+00 : f32
    %451 = vector.broadcast %cst_249 : f32 to vector<4x240xf32>
    %452 = arith.maximumf %451, %450 : vector<4x240xf32>
    %453 = vector.broadcast %cst_250 : f32 to vector<4x240xf32>
    %454 = arith.minimumf %453, %452 : vector<4x240xf32>
    %cst_251 = arith.constant 0.166666672 : f32
    %455 = vector.broadcast %cst_251 : f32 to vector<4x240xf32>
    %456 = arith.mulf %454, %455 : vector<4x240xf32>
    %457 = arith.mulf %448, %456 : vector<4x240xf32>
    %cst_252 = arith.constant dense<0.000000e+00> : vector<240xf32>
    %458 = vector.multi_reduction <add>, %457, %cst_252 [0] : vector<4x240xf32> to vector<240xf32>
    %459 = vector.shape_cast %458 : vector<240xf32> to vector<1x240xf32>
    %cst_253 = arith.constant 2.500000e-01 : f32
    %460 = vector.broadcast %cst_253 : f32 to vector<1x240xf32>
    %461 = arith.mulf %459, %460 : vector<1x240xf32>
    %462 = arith.truncf %461 : vector<1x240xf32> to vector<1x240xbf16>
    %c0_254 = arith.constant 0 : index
    %c0_255 = arith.constant 0 : index
    %463 = vector.load %arg33[%c0_254, %c0_255] : memref<240x64xbf16, #tpu.memory_space<vmem>>, vector<240x64xbf16>
    %cst_256 = arith.constant dense<0.000000e+00> : vector<1x64xf32>
    %464 = tpu.matmul %462, %463, %cst_256 {dimension_numbers = #tpu.dot_dimension_numbers<[1], [0], [0], [1], [0, 0, 1, 1], [], []>} : vector<1x240xbf16>, vector<240x64xbf16>, vector<1x64xf32> -> vector<1x64xf32>
    %c0_257 = arith.constant 0 : index
    %c0_258 = arith.constant 0 : index
    %465 = vector.load %arg34[%c0_257, %c0_258] : memref<1x64xf32, #tpu.memory_space<vmem>>, vector<1x64xf32>
    %466 = arith.addf %464, %465 : vector<1x64xf32>
    %cst_259 = arith.constant 3.000000e+00 : f32
    %467 = vector.broadcast %cst_259 : f32 to vector<1x64xf32>
    %468 = arith.addf %466, %467 : vector<1x64xf32>
    %cst_260 = arith.constant 0.000000e+00 : f32
    %cst_261 = arith.constant 6.000000e+00 : f32
    %469 = vector.broadcast %cst_260 : f32 to vector<1x64xf32>
    %470 = arith.maximumf %469, %468 : vector<1x64xf32>
    %471 = vector.broadcast %cst_261 : f32 to vector<1x64xf32>
    %472 = arith.minimumf %471, %470 : vector<1x64xf32>
    %cst_262 = arith.constant 0.166666672 : f32
    %473 = vector.broadcast %cst_262 : f32 to vector<1x64xf32>
    %474 = arith.mulf %472, %473 : vector<1x64xf32>
    %475 = arith.mulf %466, %474 : vector<1x64xf32>
    %476 = arith.truncf %475 : vector<1x64xf32> to vector<1x64xbf16>
    %c0_263 = arith.constant 0 : index
    %c0_264 = arith.constant 0 : index
    %477 = vector.load %arg35[%c0_263, %c0_264] : memref<64x10xbf16, #tpu.memory_space<vmem>>, vector<64x10xbf16>
    %cst_265 = arith.constant dense<0.000000e+00> : vector<1x10xf32>
    %478 = tpu.matmul %476, %477, %cst_265 {dimension_numbers = #tpu.dot_dimension_numbers<[1], [0], [0], [1], [0, 0, 1, 1], [], []>} : vector<1x64xbf16>, vector<64x10xbf16>, vector<1x10xf32> -> vector<1x10xf32>
    %c0_266 = arith.constant 0 : index
    %c0_267 = arith.constant 0 : index
    %479 = vector.load %arg36[%c0_266, %c0_267] : memref<1x10xf32, #tpu.memory_space<vmem>>, vector<1x10xf32>
    %480 = arith.addf %478, %479 : vector<1x10xf32>
    %c0_268 = arith.constant 0 : index
    %c0_269 = arith.constant 0 : index
    %c0_270 = arith.constant 0 : index
    %481 = vector.load %arg37[%c0_268, %c0_269, %c0_270] : memref<1x1x10xf32, #tpu.memory_space<vmem>>, vector<1x1x10xf32>
    %482 = vector.shape_cast %481 : vector<1x1x10xf32> to vector<1x10xf32>
    %483 = vector.shape_cast %480 : vector<1x10xf32> to vector<1x1x10xf32>
    tpu.vector_store %arg37[%c0_268, %c0_269, %c0_270], %483 {strides = array<i32>} : memref<1x1x10xf32, #tpu.memory_space<vmem>>, vector<1x1x10xf32>,
    return
  }
  func.func @transform_0(%arg0: i32) -> (i32, i32, i32) {
    %c0_i32 = arith.constant 0 : i32
    %c0_i32_0 = arith.constant 0 : i32
    %c0_i32_1 = arith.constant 0 : i32
    return %arg0, %c0_i32, %c0_i32_0 : i32, i32, i32
  }
  func.func @transform_1(%arg0: i32) -> (i32, i32) {
    %c0_i32 = arith.constant 0 : i32
    %c0_i32_0 = arith.constant 0 : i32
    %c0_i32_1 = arith.constant 0 : i32
    return %c0_i32, %c0_i32_0 : i32, i32
  }
  func.func @transform_2(%arg0: i32) -> (i32, i32) {
    %c0_i32 = arith.constant 0 : i32
    %c0_i32_0 = arith.constant 0 : i32
    %c0_i32_1 = arith.constant 0 : i32
    return %c0_i32, %c0_i32_0 : i32, i32
  }
  func.func @transform_3(%arg0: i32) -> (i32, i32, i32) {
    %c0_i32 = arith.constant 0 : i32
    %c0_i32_0 = arith.constant 0 : i32
    %c0_i32_1 = arith.constant 0 : i32
    %c0_i32_2 = arith.constant 0 : i32
    return %c0_i32, %c0_i32_0, %c0_i32_1 : i32, i32, i32
  }
  func.func @transform_4(%arg0: i32) -> (i32, i32) {
    %c0_i32 = arith.constant 0 : i32
    %c0_i32_0 = arith.constant 0 : i32
    %c0_i32_1 = arith.constant 0 : i32
    return %c0_i32, %c0_i32_0 : i32, i32
  }
  func.func @transform_5(%arg0: i32) -> (i32, i32) {
    %c0_i32 = arith.constant 0 : i32
    %c0_i32_0 = arith.constant 0 : i32
    %c0_i32_1 = arith.constant 0 : i32
    return %c0_i32, %c0_i32_0 : i32, i32
  }
  func.func @transform_6(%arg0: i32) -> (i32, i32) {
    %c0_i32 = arith.constant 0 : i32
    %c0_i32_0 = arith.constant 0 : i32
    %c0_i32_1 = arith.constant 0 : i32
    return %c0_i32, %c0_i32_0 : i32, i32
  }
  func.func @transform_7(%arg0: i32) -> (i32, i32) {
    %c0_i32 = arith.constant 0 : i32
    %c0_i32_0 = arith.constant 0 : i32
    %c0_i32_1 = arith.constant 0 : i32
    return %c0_i32, %c0_i32_0 : i32, i32
  }
  func.func @transform_8(%arg0: i32) -> (i32, i32) {
    %c0_i32 = arith.constant 0 : i32
    %c0_i32_0 = arith.constant 0 : i32
    %c0_i32_1 = arith.constant 0 : i32
    return %c0_i32, %c0_i32_0 : i32, i32
  }
  func.func @transform_9(%arg0: i32) -> (i32, i32) {
    %c0_i32 = arith.constant 0 : i32
    %c0_i32_0 = arith.constant 0 : i32
    %c0_i32_1 = arith.constant 0 : i32
    return %c0_i32, %c0_i32_0 : i32, i32
  }
  func.func @transform_10(%arg0: i32) -> (i32, i32) {
    %c0_i32 = arith.constant 0 : i32
    %c0_i32_0 = arith.constant 0 : i32
    %c0_i32_1 = arith.constant 0 : i32
    return %c0_i32, %c0_i32_0 : i32, i32
  }
  func.func @transform_11(%arg0: i32) -> (i32, i32) {
    %c0_i32 = arith.constant 0 : i32
    %c0_i32_0 = arith.constant 0 : i32
    %c0_i32_1 = arith.constant 0 : i32
    return %c0_i32, %c0_i32_0 : i32, i32
  }
  func.func @transform_12(%arg0: i32) -> (i32, i32) {
    %c0_i32 = arith.constant 0 : i32
    %c0_i32_0 = arith.constant 0 : i32
    %c0_i32_1 = arith.constant 0 : i32
    return %c0_i32, %c0_i32_0 : i32, i32
  }
  func.func @transform_13(%arg0: i32) -> (i32, i32) {
    %c0_i32 = arith.constant 0 : i32
    %c0_i32_0 = arith.constant 0 : i32
    %c0_i32_1 = arith.constant 0 : i32
    return %c0_i32, %c0_i32_0 : i32, i32
  }
  func.func @transform_14(%arg0: i32) -> (i32, i32, i32) {
    %c0_i32 = arith.constant 0 : i32
    %c0_i32_0 = arith.constant 0 : i32
    %c0_i32_1 = arith.constant 0 : i32
    %c0_i32_2 = arith.constant 0 : i32
    return %c0_i32, %c0_i32_0, %c0_i32_1 : i32, i32, i32
  }
  func.func @transform_15(%arg0: i32) -> (i32, i32) {
    %c0_i32 = arith.constant 0 : i32
    %c0_i32_0 = arith.constant 0 : i32
    %c0_i32_1 = arith.constant 0 : i32
    return %c0_i32, %c0_i32_0 : i32, i32
  }
  func.func @transform_16(%arg0: i32) -> (i32, i32) {
    %c0_i32 = arith.constant 0 : i32
    %c0_i32_0 = arith.constant 0 : i32
    %c0_i32_1 = arith.constant 0 : i32
    return %c0_i32, %c0_i32_0 : i32, i32
  }
  func.func @transform_17(%arg0: i32) -> (i32, i32) {
    %c0_i32 = arith.constant 0 : i32
    %c0_i32_0 = arith.constant 0 : i32
    %c0_i32_1 = arith.constant 0 : i32
    return %c0_i32, %c0_i32_0 : i32, i32
  }
  func.func @transform_18(%arg0: i32) -> (i32, i32) {
    %c0_i32 = arith.constant 0 : i32
    %c0_i32_0 = arith.constant 0 : i32
    %c0_i32_1 = arith.constant 0 : i32
    return %c0_i32, %c0_i32_0 : i32, i32
  }
  func.func @transform_19(%arg0: i32) -> (i32, i32) {
    %c0_i32 = arith.constant 0 : i32
    %c0_i32_0 = arith.constant 0 : i32
    %c0_i32_1 = arith.constant 0 : i32
    return %c0_i32, %c0_i32_0 : i32, i32
  }
  func.func @transform_20(%arg0: i32) -> (i32, i32) {
    %c0_i32 = arith.constant 0 : i32
    %c0_i32_0 = arith.constant 0 : i32
    %c0_i32_1 = arith.constant 0 : i32
    return %c0_i32, %c0_i32_0 : i32, i32
  }
  func.func @transform_21(%arg0: i32) -> (i32, i32, i32) {
    %c0_i32 = arith.constant 0 : i32
    %c0_i32_0 = arith.constant 0 : i32
    %c0_i32_1 = arith.constant 0 : i32
    %c0_i32_2 = arith.constant 0 : i32
    return %c0_i32, %c0_i32_0, %c0_i32_1 : i32, i32, i32
  }
  func.func @transform_22(%arg0: i32) -> (i32, i32) {
    %c0_i32 = arith.constant 0 : i32
    %c0_i32_0 = arith.constant 0 : i32
    %c0_i32_1 = arith.constant 0 : i32
    return %c0_i32, %c0_i32_0 : i32, i32
  }
  func.func @transform_23(%arg0: i32) -> (i32, i32) {
    %c0_i32 = arith.constant 0 : i32
    %c0_i32_0 = arith.constant 0 : i32
    %c0_i32_1 = arith.constant 0 : i32
    return %c0_i32, %c0_i32_0 : i32, i32
  }
  func.func @transform_24(%arg0: i32) -> (i32, i32) {
    %c0_i32 = arith.constant 0 : i32
    %c0_i32_0 = arith.constant 0 : i32
    %c0_i32_1 = arith.constant 0 : i32
    return %c0_i32, %c0_i32_0 : i32, i32
  }
  func.func @transform_25(%arg0: i32) -> (i32, i32) {
    %c0_i32 = arith.constant 0 : i32
    %c0_i32_0 = arith.constant 0 : i32
    %c0_i32_1 = arith.constant 0 : i32
    return %c0_i32, %c0_i32_0 : i32, i32
  }
  func.func @transform_26(%arg0: i32) -> (i32, i32) {
    %c0_i32 = arith.constant 0 : i32
    %c0_i32_0 = arith.constant 0 : i32
    %c0_i32_1 = arith.constant 0 : i32
    return %c0_i32, %c0_i32_0 : i32, i32
  }
  func.func @transform_27(%arg0: i32) -> (i32, i32) {
    %c0_i32 = arith.constant 0 : i32
    %c0_i32_0 = arith.constant 0 : i32
    %c0_i32_1 = arith.constant 0 : i32
    return %c0_i32, %c0_i32_0 : i32, i32
  }
  func.func @transform_28(%arg0: i32) -> (i32, i32) {
    %c0_i32 = arith.constant 0 : i32
    %c0_i32_0 = arith.constant 0 : i32
    %c0_i32_1 = arith.constant 0 : i32
    return %c0_i32, %c0_i32_0 : i32, i32
  }
  func.func @transform_29(%arg0: i32) -> (i32, i32) {
    %c0_i32 = arith.constant 0 : i32
    %c0_i32_0 = arith.constant 0 : i32
    %c0_i32_1 = arith.constant 0 : i32
    return %c0_i32, %c0_i32_0 : i32, i32
  }
  func.func @transform_30(%arg0: i32) -> (i32, i32) {
    %c0_i32 = arith.constant 0 : i32
    %c0_i32_0 = arith.constant 0 : i32
    %c0_i32_1 = arith.constant 0 : i32
    return %c0_i32, %c0_i32_0 : i32, i32
  }
  func.func @transform_31(%arg0: i32) -> (i32, i32) {
    %c0_i32 = arith.constant 0 : i32
    %c0_i32_0 = arith.constant 0 : i32
    %c0_i32_1 = arith.constant 0 : i32
    return %c0_i32, %c0_i32_0 : i32, i32
  }
  func.func @transform_32(%arg0: i32) -> (i32, i32) {
    %c0_i32 = arith.constant 0 : i32
    %c0_i32_0 = arith.constant 0 : i32
    %c0_i32_1 = arith.constant 0 : i32
    return %c0_i32, %c0_i32_0 : i32, i32
  }
  func.func @transform_33(%arg0: i32) -> (i32, i32) {
    %c0_i32 = arith.constant 0 : i32
    %c0_i32_0 = arith.constant 0 : i32
    %c0_i32_1 = arith.constant 0 : i32
    return %c0_i32, %c0_i32_0 : i32, i32
  }
  func.func @transform_34(%arg0: i32) -> (i32, i32) {
    %c0_i32 = arith.constant 0 : i32
    %c0_i32_0 = arith.constant 0 : i32
    %c0_i32_1 = arith.constant 0 : i32
    return %c0_i32, %c0_i32_0 : i32, i32
  }
  func.func @transform_35(%arg0: i32) -> (i32, i32) {
    %c0_i32 = arith.constant 0 : i32
    %c0_i32_0 = arith.constant 0 : i32
    %c0_i32_1 = arith.constant 0 : i32
    return %c0_i32, %c0_i32_0 : i32, i32
  }
  func.func @transform_36(%arg0: i32) -> (i32, i32, i32) {
    %c0_i32 = arith.constant 0 : i32
    %c0_i32_0 = arith.constant 0 : i32
    %c0_i32_1 = arith.constant 0 : i32
    return %arg0, %c0_i32, %c0_i32_0 : i32, i32, i32
  }
}

</mosaic_0001>

<llo_original>
// kernel: _lambda_.1
$region0: #{_lambda_.1}
  #allocation0 [shape = 'u32[]', space=smem, size = 0x4, offset = 0x4, fixed_abs, tag = 'smem constant byte address 0x4 - core index']
  #allocation1 [shape = 'u32[144,128]{1,0:T(1,128)}', space=vmem, size = 0x12000, scoped, tag = 'internal scratch']
  %s0 = inlined_call_operand.smem [shape: u32[37], index: -1, kind: input, shape index: {}]
  %s1 = sld [smem:[%s0]]
  %s2 = scalar_lea.smem %s0, 1
  %s3 = sld [smem:[%s2]]
  %s4 = scalar_lea.smem %s0, 2
  %s5 = sld [smem:[%s4]]
  %s6 = scalar_lea.smem %s0, 3
  %s7 = sld [smem:[%s6]]
  %s8 = scalar_lea.smem %s0, 4
  %s9 = sld [smem:[%s8]]
  %s10 = scalar_lea.smem %s0, 5
  %s11 = sld [smem:[%s10]]
  %s12 = scalar_lea.smem %s0, 6
  %s13 = sld [smem:[%s12]]
  %s14 = scalar_lea.smem %s0, 7
  %s15 = sld [smem:[%s14]]
  %s16 = scalar_lea.smem %s0, 8
  %s17 = sld [smem:[%s16]]
  %s18 = scalar_lea.smem %s0, 9
  %s19 = sld [smem:[%s18]]
  %s20 = scalar_lea.smem %s0, 10
  %s21 = sld [smem:[%s20]]
  %s22 = scalar_lea.smem %s0, 11
  %s23 = sld [smem:[%s22]]
  %s24 = scalar_lea.smem %s0, 12
  %s25 = sld [smem:[%s24]]
  %s26 = scalar_lea.smem %s0, 13
  %s27 = sld [smem:[%s26]]
  %s28 = scalar_lea.smem %s0, 14
  %s29 = sld [smem:[%s28]]
  %s30 = scalar_lea.smem %s0, 15
  %s31 = sld [smem:[%s30]]
  %s32 = scalar_lea.smem %s0, 16
  %s33 = sld [smem:[%s32]]
  %s34 = scalar_lea.smem %s0, 17
  %s35 = sld [smem:[%s34]]
  %s36 = scalar_lea.smem %s0, 18
  %s37 = sld [smem:[%s36]]
  %s38 = scalar_lea.smem %s0, 19
  %s39 = sld [smem:[%s38]]
  %s40 = scalar_lea.smem %s0, 20
  %s41 = sld [smem:[%s40]]
  %s42 = scalar_lea.smem %s0, 21
  %s43 = sld [smem:[%s42]]
  %s44 = scalar_lea.smem %s0, 22
  %s45 = sld [smem:[%s44]]
  %s46 = scalar_lea.smem %s0, 23
  %s47 = sld [smem:[%s46]]
  %s48 = scalar_lea.smem %s0, 24
  %s49 = sld [smem:[%s48]]
  %s50 = scalar_lea.smem %s0, 25
  %s51 = sld [smem:[%s50]]
  %s52 = scalar_lea.smem %s0, 26
  %s53 = sld [smem:[%s52]]
  %s54 = scalar_lea.smem %s0, 27
  %s55 = sld [smem:[%s54]]
  %s56 = scalar_lea.smem %s0, 28
  %s57 = sld [smem:[%s56]]
  %s58 = scalar_lea.smem %s0, 29
  %s59 = sld [smem:[%s58]]
  %s60 = scalar_lea.smem %s0, 30
  %s61 = sld [smem:[%s60]]
  %s62 = scalar_lea.smem %s0, 31
  %s63 = sld [smem:[%s62]]
  %s64 = scalar_lea.smem %s0, 32
  %s65 = sld [smem:[%s64]]
  %s66 = scalar_lea.smem %s0, 33
  %s67 = sld [smem:[%s66]]
  %s68 = scalar_lea.smem %s0, 34
  %s69 = sld [smem:[%s68]]
  %s70 = scalar_lea.smem %s0, 35
  %s71 = sld [smem:[%s70]]
  %s72 = scalar_lea.smem %s0, 36
  %s73 = sld [smem:[%s72]]
  %s74 = sld [smem:[#allocation0]]
  $region177: #{_lambda_.1} parent=0
    _
  %s76 = ssub.s32 1, %s74
  %s77 = scalar_select 0, %s76, %s74
  $region1: #{_lambda_.1} parent=0
    #allocation2 [shape = 'u8[1024]{0}', space=vmem, size = 0x400, scoped, tag = 'output window, operand 0']
    #allocation3 [shape = 's32[2]{0}', space=sflag, size = 0x8, scoped, tag = 'scoped memory for _lambda_.1']
    %78 = vsyncpa [#allocation3], 0
    %s79 = scalar_lea.sflag [#allocation3], 1
    %80 = vsyncpa %s79, 0
    loop: start=0, step=1, limit=4
    $region2: #{_lambda_.1} parent=1 // loop_pre_header
      _
    $region3: #{_lambda_.1} parent=1 // loop_header
      %s82 = sphi 0, %s86
      %p83 = scmp.ge.s32.totalorder %s82, 4
      %s92 = sphi 0, %s94
      %s95 = sphi 0, %s92
      %s96 = sphi 0, %s95
      %s112 = sphi 0, %s96
      %s116 = sphi 0, %s116
      %s118 = sphi 0, %s116
      %s119 = sphi 0, %s118
      %s133 = sphi 0, %s119
      %s137 = sphi 0, %s137
      %s139 = sphi 0, %s137
      %s140 = sphi 0, %s139
      %s154 = sphi 0, %s140
      %s158 = sphi 0, %s158
      %s160 = sphi 0, %s158
      %s161 = sphi 0, %s160
      %s175 = sphi 0, %s161
      %s179 = sphi 0, %s179
      %s181 = sphi 0, %s179
      %s182 = sphi 0, %s181
      %s196 = sphi 0, %s182
      %s200 = sphi 0, %s200
      %s202 = sphi 0, %s200
      %s203 = sphi 0, %s202
      %s217 = sphi 0, %s203
      %s221 = sphi 0, %s221
      %s223 = sphi 0, %s221
      %s224 = sphi 0, %s223
      %s238 = sphi 0, %s224
      %s242 = sphi 0, %s242
      %s244 = sphi 0, %s242
      %s245 = sphi 0, %s244
      %s259 = sphi 0, %s245
      %s263 = sphi 0, %s263
      %s265 = sphi 0, %s263
      %s266 = sphi 0, %s265
      %s280 = sphi 0, %s266
      %s284 = sphi 0, %s284
      %s286 = sphi 0, %s284
      %s287 = sphi 0, %s286
      %s301 = sphi 0, %s287
      %s305 = sphi 0, %s305
      %s307 = sphi 0, %s305
      %s308 = sphi 0, %s307
      %s322 = sphi 0, %s308
      %s326 = sphi 0, %s326
      %s328 = sphi 0, %s326
      %s329 = sphi 0, %s328
      %s343 = sphi 0, %s329
      %s347 = sphi 0, %s347
      %s349 = sphi 0, %s347
      %s350 = sphi 0, %s349
      %s364 = sphi 0, %s350
      %s368 = sphi 0, %s368
      %s370 = sphi 0, %s368
      %s371 = sphi 0, %s370
      %s385 = sphi 0, %s371
      %s389 = sphi 0, %s389
      %s391 = sphi 0, %s389
      %s392 = sphi 0, %s391
      %s406 = sphi 0, %s392
      %s410 = sphi 0, %s410
      %s412 = sphi 0, %s410
      %s413 = sphi 0, %s412
      %s427 = sphi 0, %s413
      %s431 = sphi 0, %s431
      %s433 = sphi 0, %s431
      %s434 = sphi 0, %s433
      %s448 = sphi 0, %s434
      %s452 = sphi 0, %s452
      %s454 = sphi 0, %s452
      %s455 = sphi 0, %s454
      %s469 = sphi 0, %s455
      %s473 = sphi 0, %s473
      %s475 = sphi 0, %s473
      %s476 = sphi 0, %s475
      %s490 = sphi 0, %s476
      %s494 = sphi 0, %s494
      %s496 = sphi 0, %s494
      %s497 = sphi 0, %s496
      %s511 = sphi 0, %s497
      %s515 = sphi 0, %s515
      %s517 = sphi 0, %s515
      %s518 = sphi 0, %s517
      %s532 = sphi 0, %s518
      %s536 = sphi 0, %s536
      %s538 = sphi 0, %s536
      %s539 = sphi 0, %s538
      %s553 = sphi 0, %s539
      %s557 = sphi 0, %s557
      %s559 = sphi 0, %s557
      %s560 = sphi 0, %s559
      %s574 = sphi 0, %s560
      %s578 = sphi 0, %s578
      %s580 = sphi 0, %s578
      %s581 = sphi 0, %s580
      %s595 = sphi 0, %s581
      %s599 = sphi 0, %s599
      %s601 = sphi 0, %s599
      %s602 = sphi 0, %s601
      %s616 = sphi 0, %s602
      %s620 = sphi 0, %s620
      %s622 = sphi 0, %s620
      %s623 = sphi 0, %s622
      %s637 = sphi 0, %s623
      %s641 = sphi 0, %s641
      %s643 = sphi 0, %s641
      %s644 = sphi 0, %s643
      %s658 = sphi 0, %s644
      %s662 = sphi 0, %s662
      %s664 = sphi 0, %s662
      %s665 = sphi 0, %s664
      %s679 = sphi 0, %s665
      %s683 = sphi 0, %s683
      %s685 = sphi 0, %s683
      %s686 = sphi 0, %s685
      %s700 = sphi 0, %s686
      %s704 = sphi 0, %s704
      %s706 = sphi 0, %s704
      %s707 = sphi 0, %s706
      %s721 = sphi 0, %s707
      %s725 = sphi 0, %s725
      %s727 = sphi 0, %s725
      %s728 = sphi 0, %s727
      %s742 = sphi 0, %s728
      %s746 = sphi 0, %s746
      %s748 = sphi 0, %s746
      %s749 = sphi 0, %s748
      %s763 = sphi 0, %s749
      %s767 = sphi 0, %s767
      %s769 = sphi 0, %s767
      %s770 = sphi 0, %s769
      %s784 = sphi 0, %s770
      %s788 = sphi 0, %s788
      %s790 = sphi 0, %s788
      %s791 = sphi 0, %s790
      %s805 = sphi 0, %s791
      %s809 = sphi 0, %s809
      %s811 = sphi 0, %s809
      %s812 = sphi 0, %s811
      %s826 = sphi 0, %s812
      %s830 = sphi 0, %s830
      %s832 = sphi 0, %s830
      %s833 = sphi 0, %s832
      %s847 = sphi 0, %s833
      %s853 = sphi 0, %s855
      %s856 = sphi 0, %s853
      %s857 = sphi 0, %s856
      %s873 = sphi 0, %s857
    $region4: #{_lambda_.1} parent=1 // loop_header_branch
      %85 = sbr.rel (%p83) target = $region8
    $region5: #{_lambda_.1} parent=1 // loop_body
      %s87 = ssub.s32 %s82, 1
      %s88 = ssub.s32 %s82, 2
      %s89 = sadd.s32 %s82, 1
      %s90 = ssub.s32 %s82, %s89
      %p91 = scmp.eq.s32.totalorder %s90, 0
      %s93 = sadd.s32 %s92, 1
      %s94 = scalar_select %p91, %s92, %s93
      %p97 = pneg %p91
      %p98 = scmp.eq.s32.totalorder %s82, 1
      %p99 = por %p97, %p98
      %p100 = scmp.ne.s32.totalorder %s92, %s95
      %p101 = scmp.eq.s32.totalorder %s82, 0
      %p102 = por %p100, %p101
      %p103 = scmp.ne.s32.totalorder %s92, %s95
      %p104 = scmp.eq.s32.totalorder %s87, 1
      %p105 = por %p103, %p104
      %p106 = scmp.ne.s32.totalorder %s95, %s96
      %p107 = scmp.eq.s32.totalorder %s87, 0
      %p108 = por %p106, %p107
      %p109 = scmp.ne.s32.totalorder %s95, %s96
      %p110 = scmp.eq.s32.totalorder %s88, 1
      %p111 = por %p109, %p110
      %p113 = scmp.ne.s32.totalorder %s96, %s112
      %p114 = scmp.eq.s32.totalorder %s88, 0
      %p115 = por %p113, %p114
      %s117 = sadd.s32 %s116, 1
      %p120 = scmp.eq.s32.totalorder %s82, 1
      %p121 = scmp.ne.s32.totalorder %s116, %s118
      %p122 = scmp.eq.s32.totalorder %s82, 0
      %p123 = por %p121, %p122
      %p124 = scmp.ne.s32.totalorder %s116, %s118
      %p125 = scmp.eq.s32.totalorder %s87, 1
      %p126 = por %p124, %p125
      %p127 = scmp.ne.s32.totalorder %s118, %s119
      %p128 = scmp.eq.s32.totalorder %s87, 0
      %p129 = por %p127, %p128
      %p130 = scmp.ne.s32.totalorder %s118, %s119
      %p131 = scmp.eq.s32.totalorder %s88, 1
      %p132 = por %p130, %p131
      %p134 = scmp.ne.s32.totalorder %s119, %s133
      %p135 = scmp.eq.s32.totalorder %s88, 0
      %p136 = por %p134, %p135
      %s138 = sadd.s32 %s137, 1
      %p141 = scmp.eq.s32.totalorder %s82, 1
      %p142 = scmp.ne.s32.totalorder %s137, %s139
      %p143 = scmp.eq.s32.totalorder %s82, 0
      %p144 = por %p142, %p143
      %p145 = scmp.ne.s32.totalorder %s137, %s139
      %p146 = scmp.eq.s32.totalorder %s87, 1
      %p147 = por %p145, %p146
      %p148 = scmp.ne.s32.totalorder %s139, %s140
      %p149 = scmp.eq.s32.totalorder %s87, 0
      %p150 = por %p148, %p149
      %p151 = scmp.ne.s32.totalorder %s139, %s140
      %p152 = scmp.eq.s32.totalorder %s88, 1
      %p153 = por %p151, %p152
      %p155 = scmp.ne.s32.totalorder %s140, %s154
      %p156 = scmp.eq.s32.totalorder %s88, 0
      %p157 = por %p155, %p156
      %s159 = sadd.s32 %s158, 1
      %p162 = scmp.eq.s32.totalorder %s82, 1
      %p163 = scmp.ne.s32.totalorder %s158, %s160
      %p164 = scmp.eq.s32.totalorder %s82, 0
      %p165 = por %p163, %p164
      %p166 = scmp.ne.s32.totalorder %s158, %s160
      %p167 = scmp.eq.s32.totalorder %s87, 1
      %p168 = por %p166, %p167
      %p169 = scmp.ne.s32.totalorder %s160, %s161
      %p170 = scmp.eq.s32.totalorder %s87, 0
      %p171 = por %p169, %p170
      %p172 = scmp.ne.s32.totalorder %s160, %s161
      %p173 = scmp.eq.s32.totalorder %s88, 1
      %p174 = por %p172, %p173
      %p176 = scmp.ne.s32.totalorder %s161, %s175
      %p177 = scmp.eq.s32.totalorder %s88, 0
      %p178 = por %p176, %p177
      %s180 = sadd.s32 %s179, 1
      %p183 = scmp.eq.s32.totalorder %s82, 1
      %p184 = scmp.ne.s32.totalorder %s179, %s181
      %p185 = scmp.eq.s32.totalorder %s82, 0
      %p186 = por %p184, %p185
      %p187 = scmp.ne.s32.totalorder %s179, %s181
      %p188 = scmp.eq.s32.totalorder %s87, 1
      %p189 = por %p187, %p188
      %p190 = scmp.ne.s32.totalorder %s181, %s182
      %p191 = scmp.eq.s32.totalorder %s87, 0
      %p192 = por %p190, %p191
      %p193 = scmp.ne.s32.totalorder %s181, %s182
      %p194 = scmp.eq.s32.totalorder %s88, 1
      %p195 = por %p193, %p194
      %p197 = scmp.ne.s32.totalorder %s182, %s196
      %p198 = scmp.eq.s32.totalorder %s88, 0
      %p199 = por %p197, %p198
      %s201 = sadd.s32 %s200, 1
      %p204 = scmp.eq.s32.totalorder %s82, 1
      %p205 = scmp.ne.s32.totalorder %s200, %s202
      %p206 = scmp.eq.s32.totalorder %s82, 0
      %p207 = por %p205, %p206
      %p208 = scmp.ne.s32.totalorder %s200, %s202
      %p209 = scmp.eq.s32.totalorder %s87, 1
      %p210 = por %p208, %p209
      %p211 = scmp.ne.s32.totalorder %s202, %s203
      %p212 = scmp.eq.s32.totalorder %s87, 0
      %p213 = por %p211, %p212
      %p214 = scmp.ne.s32.totalorder %s202, %s203
      %p215 = scmp.eq.s32.totalorder %s88, 1
      %p216 = por %p214, %p215
      %p218 = scmp.ne.s32.totalorder %s203, %s217
      %p219 = scmp.eq.s32.totalorder %s88, 0
      %p220 = por %p218, %p219
      %s222 = sadd.s32 %s221, 1
      %p225 = scmp.eq.s32.totalorder %s82, 1
      %p226 = scmp.ne.s32.totalorder %s221, %s223
      %p227 = scmp.eq.s32.totalorder %s82, 0
      %p228 = por %p226, %p227
      %p229 = scmp.ne.s32.totalorder %s221, %s223
      %p230 = scmp.eq.s32.totalorder %s87, 1
      %p231 = por %p229, %p230
      %p232 = scmp.ne.s32.totalorder %s223, %s224
      %p233 = scmp.eq.s32.totalorder %s87, 0
      %p234 = por %p232, %p233
      %p235 = scmp.ne.s32.totalorder %s223, %s224
      %p236 = scmp.eq.s32.totalorder %s88, 1
      %p237 = por %p235, %p236
      %p239 = scmp.ne.s32.totalorder %s224, %s238
      %p240 = scmp.eq.s32.totalorder %s88, 0
      %p241 = por %p239, %p240
      %s243 = sadd.s32 %s242, 1
      %p246 = scmp.eq.s32.totalorder %s82, 1
      %p247 = scmp.ne.s32.totalorder %s242, %s244
      %p248 = scmp.eq.s32.totalorder %s82, 0
      %p249 = por %p247, %p248
      %p250 = scmp.ne.s32.totalorder %s242, %s244
      %p251 = scmp.eq.s32.totalorder %s87, 1
      %p252 = por %p250, %p251
      %p253 = scmp.ne.s32.totalorder %s244, %s245
      %p254 = scmp.eq.s32.totalorder %s87, 0
      %p255 = por %p253, %p254
      %p256 = scmp.ne.s32.totalorder %s244, %s245
      %p257 = scmp.eq.s32.totalorder %s88, 1
      %p258 = por %p256, %p257
      %p260 = scmp.ne.s32.totalorder %s245, %s259
      %p261 = scmp.eq.s32.totalorder %s88, 0
      %p262 = por %p260, %p261
      %s264 = sadd.s32 %s263, 1
      %p267 = scmp.eq.s32.totalorder %s82, 1
      %p268 = scmp.ne.s32.totalorder %s263, %s265
      %p269 = scmp.eq.s32.totalorder %s82, 0
      %p270 = por %p268, %p269
      %p271 = scmp.ne.s32.totalorder %s263, %s265
      %p272 = scmp.eq.s32.totalorder %s87, 1
      %p273 = por %p271, %p272
      %p274 = scmp.ne.s32.totalorder %s265, %s266
      %p275 = scmp.eq.s32.totalorder %s87, 0
      %p276 = por %p274, %p275
      %p277 = scmp.ne.s32.totalorder %s265, %s266
      %p278 = scmp.eq.s32.totalorder %s88, 1
      %p279 = por %p277, %p278
      %p281 = scmp.ne.s32.totalorder %s266, %s280
      %p282 = scmp.eq.s32.totalorder %s88, 0
      %p283 = por %p281, %p282
      %s285 = sadd.s32 %s284, 1
      %p288 = scmp.eq.s32.totalorder %s82, 1
      %p289 = scmp.ne.s32.totalorder %s284, %s286
      %p290 = scmp.eq.s32.totalorder %s82, 0
      %p291 = por %p289, %p290
      %p292 = scmp.ne.s32.totalorder %s284, %s286
      %p293 = scmp.eq.s32.totalorder %s87, 1
      %p294 = por %p292, %p293
      %p295 = scmp.ne.s32.totalorder %s286, %s287
      %p296 = scmp.eq.s32.totalorder %s87, 0
      %p297 = por %p295, %p296
      %p298 = scmp.ne.s32.totalorder %s286, %s287
      %p299 = scmp.eq.s32.totalorder %s88, 1
      %p300 = por %p298, %p299
      %p302 = scmp.ne.s32.totalorder %s287, %s301
      %p303 = scmp.eq.s32.totalorder %s88, 0
      %p304 = por %p302, %p303
      %s306 = sadd.s32 %s305, 1
      %p309 = scmp.eq.s32.totalorder %s82, 1
      %p310 = scmp.ne.s32.totalorder %s305, %s307
      %p311 = scmp.eq.s32.totalorder %s82, 0
      %p312 = por %p310, %p311
      %p313 = scmp.ne.s32.totalorder %s305, %s307
      %p314 = scmp.eq.s32.totalorder %s87, 1
      %p315 = por %p313, %p314
      %p316 = scmp.ne.s32.totalorder %s307, %s308
      %p317 = scmp.eq.s32.totalorder %s87, 0
      %p318 = por %p316, %p317
      %p319 = scmp.ne.s32.totalorder %s307, %s308
      %p320 = scmp.eq.s32.totalorder %s88, 1
      %p321 = por %p319, %p320
      %p323 = scmp.ne.s32.totalorder %s308, %s322
      %p324 = scmp.eq.s32.totalorder %s88, 0
      %p325 = por %p323, %p324
      %s327 = sadd.s32 %s326, 1
      %p330 = scmp.eq.s32.totalorder %s82, 1
      %p331 = scmp.ne.s32.totalorder %s326, %s328
      %p332 = scmp.eq.s32.totalorder %s82, 0
      %p333 = por %p331, %p332
      %p334 = scmp.ne.s32.totalorder %s326, %s328
      %p335 = scmp.eq.s32.totalorder %s87, 1
      %p336 = por %p334, %p335
      %p337 = scmp.ne.s32.totalorder %s328, %s329
      %p338 = scmp.eq.s32.totalorder %s87, 0
      %p339 = por %p337, %p338
      %p340 = scmp.ne.s32.totalorder %s328, %s329
      %p341 = scmp.eq.s32.totalorder %s88, 1
      %p342 = por %p340, %p341
      %p344 = scmp.ne.s32.totalorder %s329, %s343
      %p345 = scmp.eq.s32.totalorder %s88, 0
      %p346 = por %p344, %p345
      %s348 = sadd.s32 %s347, 1
      %p351 = scmp.eq.s32.totalorder %s82, 1
      %p352 = scmp.ne.s32.totalorder %s347, %s349
      %p353 = scmp.eq.s32.totalorder %s82, 0
      %p354 = por %p352, %p353
      %p355 = scmp.ne.s32.totalorder %s347, %s349
      %p356 = scmp.eq.s32.totalorder %s87, 1
      %p357 = por %p355, %p356
      %p358 = scmp.ne.s32.totalorder %s349, %s350
      %p359 = scmp.eq.s32.totalorder %s87, 0
      %p360 = por %p358, %p359
      %p361 = scmp.ne.s32.totalorder %s349, %s350
      %p362 = scmp.eq.s32.totalorder %s88, 1
      %p363 = por %p361, %p362
      %p365 = scmp.ne.s32.totalorder %s350, %s364
      %p366 = scmp.eq.s32.totalorder %s88, 0
      %p367 = por %p365, %p366
      %s369 = sadd.s32 %s368, 1
      %p372 = scmp.eq.s32.totalorder %s82, 1
      %p373 = scmp.ne.s32.totalorder %s368, %s370
      %p374 = scmp.eq.s32.totalorder %s82, 0
      %p375 = por %p373, %p374
      %p376 = scmp.ne.s32.totalorder %s368, %s370
      %p377 = scmp.eq.s32.totalorder %s87, 1
      %p378 = por %p376, %p377
      %p379 = scmp.ne.s32.totalorder %s370, %s371
      %p380 = scmp.eq.s32.totalorder %s87, 0
      %p381 = por %p379, %p380
      %p382 = scmp.ne.s32.totalorder %s370, %s371
      %p383 = scmp.eq.s32.totalorder %s88, 1
      %p384 = por %p382, %p383
      %p386 = scmp.ne.s32.totalorder %s371, %s385
      %p387 = scmp.eq.s32.totalorder %s88, 0
      %p388 = por %p386, %p387
      %s390 = sadd.s32 %s389, 1
      %p393 = scmp.eq.s32.totalorder %s82, 1
      %p394 = scmp.ne.s32.totalorder %s389, %s391
      %p395 = scmp.eq.s32.totalorder %s82, 0
      %p396 = por %p394, %p395
      %p397 = scmp.ne.s32.totalorder %s389, %s391
      %p398 = scmp.eq.s32.totalorder %s87, 1
      %p399 = por %p397, %p398
      %p400 = scmp.ne.s32.totalorder %s391, %s392
      %p401 = scmp.eq.s32.totalorder %s87, 0
      %p402 = por %p400, %p401
      %p403 = scmp.ne.s32.totalorder %s391, %s392
      %p404 = scmp.eq.s32.totalorder %s88, 1
      %p405 = por %p403, %p404
      %p407 = scmp.ne.s32.totalorder %s392, %s406
      %p408 = scmp.eq.s32.totalorder %s88, 0
      %p409 = por %p407, %p408
      %s411 = sadd.s32 %s410, 1
      %p414 = scmp.eq.s32.totalorder %s82, 1
      %p415 = scmp.ne.s32.totalorder %s410, %s412
      %p416 = scmp.eq.s32.totalorder %s82, 0
      %p417 = por %p415, %p416
      %p418 = scmp.ne.s32.totalorder %s410, %s412
      %p419 = scmp.eq.s32.totalorder %s87, 1
      %p420 = por %p418, %p419
      %p421 = scmp.ne.s32.totalorder %s412, %s413
      %p422 = scmp.eq.s32.totalorder %s87, 0
      %p423 = por %p421, %p422
      %p424 = scmp.ne.s32.totalorder %s412, %s413
      %p425 = scmp.eq.s32.totalorder %s88, 1
      %p426 = por %p424, %p425
      %p428 = scmp.ne.s32.totalorder %s413, %s427
      %p429 = scmp.eq.s32.totalorder %s88, 0
      %p430 = por %p428, %p429
      %s432 = sadd.s32 %s431, 1
      %p435 = scmp.eq.s32.totalorder %s82, 1
      %p436 = scmp.ne.s32.totalorder %s431, %s433
      %p437 = scmp.eq.s32.totalorder %s82, 0
      %p438 = por %p436, %p437
      %p439 = scmp.ne.s32.totalorder %s431, %s433
      %p440 = scmp.eq.s32.totalorder %s87, 1
      %p441 = por %p439, %p440
      %p442 = scmp.ne.s32.totalorder %s433, %s434
      %p443 = scmp.eq.s32.totalorder %s87, 0
      %p444 = por %p442, %p443
      %p445 = scmp.ne.s32.totalorder %s433, %s434
      %p446 = scmp.eq.s32.totalorder %s88, 1
      %p447 = por %p445, %p446
      %p449 = scmp.ne.s32.totalorder %s434, %s448
      %p450 = scmp.eq.s32.totalorder %s88, 0
      %p451 = por %p449, %p450
      %s453 = sadd.s32 %s452, 1
      %p456 = scmp.eq.s32.totalorder %s82, 1
      %p457 = scmp.ne.s32.totalorder %s452, %s454
      %p458 = scmp.eq.s32.totalorder %s82, 0
      %p459 = por %p457, %p458
      %p460 = scmp.ne.s32.totalorder %s452, %s454
      %p461 = scmp.eq.s32.totalorder %s87, 1
      %p462 = por %p460, %p461
      %p463 = scmp.ne.s32.totalorder %s454, %s455
      %p464 = scmp.eq.s32.totalorder %s87, 0
      %p465 = por %p463, %p464
      %p466 = scmp.ne.s32.totalorder %s454, %s455
      %p467 = scmp.eq.s32.totalorder %s88, 1
      %p468 = por %p466, %p467
      %p470 = scmp.ne.s32.totalorder %s455, %s469
      %p471 = scmp.eq.s32.totalorder %s88, 0
      %p472 = por %p470, %p471
      %s474 = sadd.s32 %s473, 1
      %p477 = scmp.eq.s32.totalorder %s82, 1
      %p478 = scmp.ne.s32.totalorder %s473, %s475
      %p479 = scmp.eq.s32.totalorder %s82, 0
      %p480 = por %p478, %p479
      %p481 = scmp.ne.s32.totalorder %s473, %s475
      %p482 = scmp.eq.s32.totalorder %s87, 1
      %p483 = por %p481, %p482
      %p484 = scmp.ne.s32.totalorder %s475, %s476
      %p485 = scmp.eq.s32.totalorder %s87, 0
      %p486 = por %p484, %p485
      %p487 = scmp.ne.s32.totalorder %s475, %s476
      %p488 = scmp.eq.s32.totalorder %s88, 1
      %p489 = por %p487, %p488
      %p491 = scmp.ne.s32.totalorder %s476, %s490
      %p492 = scmp.eq.s32.totalorder %s88, 0
      %p493 = por %p491, %p492
      %s495 = sadd.s32 %s494, 1
      %p498 = scmp.eq.s32.totalorder %s82, 1
      %p499 = scmp.ne.s32.totalorder %s494, %s496
      %p500 = scmp.eq.s32.totalorder %s82, 0
      %p501 = por %p499, %p500
      %p502 = scmp.ne.s32.totalorder %s494, %s496
      %p503 = scmp.eq.s32.totalorder %s87, 1
      %p504 = por %p502, %p503
      %p505 = scmp.ne.s32.totalorder %s496, %s497
      %p506 = scmp.eq.s32.totalorder %s87, 0
      %p507 = por %p505, %p506
      %p508 = scmp.ne.s32.totalorder %s496, %s497
      %p509 = scmp.eq.s32.totalorder %s88, 1
      %p510 = por %p508, %p509
      %p512 = scmp.ne.s32.totalorder %s497, %s511
      %p513 = scmp.eq.s32.totalorder %s88, 0
      %p514 = por %p512, %p513
      %s516 = sadd.s32 %s515, 1
      %p519 = scmp.eq.s32.totalorder %s82, 1
      %p520 = scmp.ne.s32.totalorder %s515, %s517
      %p521 = scmp.eq.s32.totalorder %s82, 0
      %p522 = por %p520, %p521
      %p523 = scmp.ne.s32.totalorder %s515, %s517
      %p524 = scmp.eq.s32.totalorder %s87, 1
      %p525 = por %p523, %p524
      %p526 = scmp.ne.s32.totalorder %s517, %s518
      %p527 = scmp.eq.s32.totalorder %s87, 0
      %p528 = por %p526, %p527
      %p529 = scmp.ne.s32.totalorder %s517, %s518
      %p530 = scmp.eq.s32.totalorder %s88, 1
      %p531 = por %p529, %p530
      %p533 = scmp.ne.s32.totalorder %s518, %s532
      %p534 = scmp.eq.s32.totalorder %s88, 0
      %p535 = por %p533, %p534
      %s537 = sadd.s32 %s536, 1
      %p540 = scmp.eq.s32.totalorder %s82, 1
      %p541 = scmp.ne.s32.totalorder %s536, %s538
      %p542 = scmp.eq.s32.totalorder %s82, 0
      %p543 = por %p541, %p542
      %p544 = scmp.ne.s32.totalorder %s536, %s538
      %p545 = scmp.eq.s32.totalorder %s87, 1
      %p546 = por %p544, %p545
      %p547 = scmp.ne.s32.totalorder %s538, %s539
      %p548 = scmp.eq.s32.totalorder %s87, 0
      %p549 = por %p547, %p548
      %p550 = scmp.ne.s32.totalorder %s538, %s539
      %p551 = scmp.eq.s32.totalorder %s88, 1
      %p552 = por %p550, %p551
      %p554 = scmp.ne.s32.totalorder %s539, %s553
      %p555 = scmp.eq.s32.totalorder %s88, 0
      %p556 = por %p554, %p555
      %s558 = sadd.s32 %s557, 1
      %p561 = scmp.eq.s32.totalorder %s82, 1
      %p562 = scmp.ne.s32.totalorder %s557, %s559
      %p563 = scmp.eq.s32.totalorder %s82, 0
      %p564 = por %p562, %p563
      %p565 = scmp.ne.s32.totalorder %s557, %s559
      %p566 = scmp.eq.s32.totalorder %s87, 1
      %p567 = por %p565, %p566
      %p568 = scmp.ne.s32.totalorder %s559, %s560
      %p569 = scmp.eq.s32.totalorder %s87, 0
      %p570 = por %p568, %p569
      %p571 = scmp.ne.s32.totalorder %s559, %s560
      %p572 = scmp.eq.s32.totalorder %s88, 1
      %p573 = por %p571, %p572
      %p575 = scmp.ne.s32.totalorder %s560, %s574
      %p576 = scmp.eq.s32.totalorder %s88, 0
      %p577 = por %p575, %p576
      %s579 = sadd.s32 %s578, 1
      %p582 = scmp.eq.s32.totalorder %s82, 1
      %p583 = scmp.ne.s32.totalorder %s578, %s580
      %p584 = scmp.eq.s32.totalorder %s82, 0
      %p585 = por %p583, %p584
      %p586 = scmp.ne.s32.totalorder %s578, %s580
      %p587 = scmp.eq.s32.totalorder %s87, 1
      %p588 = por %p586, %p587
      %p589 = scmp.ne.s32.totalorder %s580, %s581
      %p590 = scmp.eq.s32.totalorder %s87, 0
      %p591 = por %p589, %p590
      %p592 = scmp.ne.s32.totalorder %s580, %s581
      %p593 = scmp.eq.s32.totalorder %s88, 1
      %p594 = por %p592, %p593
      %p596 = scmp.ne.s32.totalorder %s581, %s595
      %p597 = scmp.eq.s32.totalorder %s88, 0
      %p598 = por %p596, %p597
      %s600 = sadd.s32 %s599, 1
      %p603 = scmp.eq.s32.totalorder %s82, 1
      %p604 = scmp.ne.s32.totalorder %s599, %s601
      %p605 = scmp.eq.s32.totalorder %s82, 0
      %p606 = por %p604, %p605
      %p607 = scmp.ne.s32.totalorder %s599, %s601
      %p608 = scmp.eq.s32.totalorder %s87, 1
      %p609 = por %p607, %p608
      %p610 = scmp.ne.s32.totalorder %s601, %s602
      %p611 = scmp.eq.s32.totalorder %s87, 0
      %p612 = por %p610, %p611
      %p613 = scmp.ne.s32.totalorder %s601, %s602
      %p614 = scmp.eq.s32.totalorder %s88, 1
      %p615 = por %p613, %p614
      %p617 = scmp.ne.s32.totalorder %s602, %s616
      %p618 = scmp.eq.s32.totalorder %s88, 0
      %p619 = por %p617, %p618
      %s621 = sadd.s32 %s620, 1
      %p624 = scmp.eq.s32.totalorder %s82, 1
      %p625 = scmp.ne.s32.totalorder %s620, %s622
      %p626 = scmp.eq.s32.totalorder %s82, 0
      %p627 = por %p625, %p626
      %p628 = scmp.ne.s32.totalorder %s620, %s622
      %p629 = scmp.eq.s32.totalorder %s87, 1
      %p630 = por %p628, %p629
      %p631 = scmp.ne.s32.totalorder %s622, %s623
      %p632 = scmp.eq.s32.totalorder %s87, 0
      %p633 = por %p631, %p632
      %p634 = scmp.ne.s32.totalorder %s622, %s623
      %p635 = scmp.eq.s32.totalorder %s88, 1
      %p636 = por %p634, %p635
      %p638 = scmp.ne.s32.totalorder %s623, %s637
      %p639 = scmp.eq.s32.totalorder %s88, 0
      %p640 = por %p638, %p639
      %s642 = sadd.s32 %s641, 1
      %p645 = scmp.eq.s32.totalorder %s82, 1
      %p646 = scmp.ne.s32.totalorder %s641, %s643
      %p647 = scmp.eq.s32.totalorder %s82, 0
      %p648 = por %p646, %p647
      %p649 = scmp.ne.s32.totalorder %s641, %s643
      %p650 = scmp.eq.s32.totalorder %s87, 1
      %p651 = por %p649, %p650
      %p652 = scmp.ne.s32.totalorder %s643, %s644
      %p653 = scmp.eq.s32.totalorder %s87, 0
      %p654 = por %p652, %p653
      %p655 = scmp.ne.s32.totalorder %s643, %s644
      %p656 = scmp.eq.s32.totalorder %s88, 1
      %p657 = por %p655, %p656
      %p659 = scmp.ne.s32.totalorder %s644, %s658
      %p660 = scmp.eq.s32.totalorder %s88, 0
      %p661 = por %p659, %p660
      %s663 = sadd.s32 %s662, 1
      %p666 = scmp.eq.s32.totalorder %s82, 1
      %p667 = scmp.ne.s32.totalorder %s662, %s664
      %p668 = scmp.eq.s32.totalorder %s82, 0
      %p669 = por %p667, %p668
      %p670 = scmp.ne.s32.totalorder %s662, %s664
      %p671 = scmp.eq.s32.totalorder %s87, 1
      %p672 = por %p670, %p671
      %p673 = scmp.ne.s32.totalorder %s664, %s665
      %p674 = scmp.eq.s32.totalorder %s87, 0
      %p675 = por %p673, %p674
      %p676 = scmp.ne.s32.totalorder %s664, %s665
      %p677 = scmp.eq.s32.totalorder %s88, 1
      %p678 = por %p676, %p677
      %p680 = scmp.ne.s32.totalorder %s665, %s679
      %p681 = scmp.eq.s32.totalorder %s88, 0
      %p682 = por %p680, %p681
      %s684 = sadd.s32 %s683, 1
      %p687 = scmp.eq.s32.totalorder %s82, 1
      %p688 = scmp.ne.s32.totalorder %s683, %s685
      %p689 = scmp.eq.s32.totalorder %s82, 0
      %p690 = por %p688, %p689
      %p691 = scmp.ne.s32.totalorder %s683, %s685
      %p692 = scmp.eq.s32.totalorder %s87, 1
      %p693 = por %p691, %p692
      %p694 = scmp.ne.s32.totalorder %s685, %s686
      %p695 = scmp.eq.s32.totalorder %s87, 0
      %p696 = por %p694, %p695
      %p697 = scmp.ne.s32.totalorder %s685, %s686
      %p698 = scmp.eq.s32.totalorder %s88, 1
      %p699 = por %p697, %p698
      %p701 = scmp.ne.s32.totalorder %s686, %s700
      %p702 = scmp.eq.s32.totalorder %s88, 0
      %p703 = por %p701, %p702
      %s705 = sadd.s32 %s704, 1
      %p708 = scmp.eq.s32.totalorder %s82, 1
      %p709 = scmp.ne.s32.totalorder %s704, %s706
      %p710 = scmp.eq.s32.totalorder %s82, 0
      %p711 = por %p709, %p710
      %p712 = scmp.ne.s32.totalorder %s704, %s706
      %p713 = scmp.eq.s32.totalorder %s87, 1
      %p714 = por %p712, %p713
      %p715 = scmp.ne.s32.totalorder %s706, %s707
      %p716 = scmp.eq.s32.totalorder %s87, 0
      %p717 = por %p715, %p716
      %p718 = scmp.ne.s32.totalorder %s706, %s707
      %p719 = scmp.eq.s32.totalorder %s88, 1
      %p720 = por %p718, %p719
      %p722 = scmp.ne.s32.totalorder %s707, %s721
      %p723 = scmp.eq.s32.totalorder %s88, 0
      %p724 = por %p722, %p723
      %s726 = sadd.s32 %s725, 1
      %p729 = scmp.eq.s32.totalorder %s82, 1
      %p730 = scmp.ne.s32.totalorder %s725, %s727
      %p731 = scmp.eq.s32.totalorder %s82, 0
      %p732 = por %p730, %p731
      %p733 = scmp.ne.s32.totalorder %s725, %s727
      %p734 = scmp.eq.s32.totalorder %s87, 1
      %p735 = por %p733, %p734
      %p736 = scmp.ne.s32.totalorder %s727, %s728
      %p737 = scmp.eq.s32.totalorder %s87, 0
      %p738 = por %p736, %p737
      %p739 = scmp.ne.s32.totalorder %s727, %s728
      %p740 = scmp.eq.s32.totalorder %s88, 1
      %p741 = por %p739, %p740
      %p743 = scmp.ne.s32.totalorder %s728, %s742
      %p744 = scmp.eq.s32.totalorder %s88, 0
      %p745 = por %p743, %p744
      %s747 = sadd.s32 %s746, 1
      %p750 = scmp.eq.s32.totalorder %s82, 1
      %p751 = scmp.ne.s32.totalorder %s746, %s748
      %p752 = scmp.eq.s32.totalorder %s82, 0
      %p753 = por %p751, %p752
      %p754 = scmp.ne.s32.totalorder %s746, %s748
      %p755 = scmp.eq.s32.totalorder %s87, 1
      %p756 = por %p754, %p755
      %p757 = scmp.ne.s32.totalorder %s748, %s749
      %p758 = scmp.eq.s32.totalorder %s87, 0
      %p759 = por %p757, %p758
      %p760 = scmp.ne.s32.totalorder %s748, %s749
      %p761 = scmp.eq.s32.totalorder %s88, 1
      %p762 = por %p760, %p761
      %p764 = scmp.ne.s32.totalorder %s749, %s763
      %p765 = scmp.eq.s32.totalorder %s88, 0
      %p766 = por %p764, %p765
      %s768 = sadd.s32 %s767, 1
      %p771 = scmp.eq.s32.totalorder %s82, 1
      %p772 = scmp.ne.s32.totalorder %s767, %s769
      %p773 = scmp.eq.s32.totalorder %s82, 0
      %p774 = por %p772, %p773
      %p775 = scmp.ne.s32.totalorder %s767, %s769
      %p776 = scmp.eq.s32.totalorder %s87, 1
      %p777 = por %p775, %p776
      %p778 = scmp.ne.s32.totalorder %s769, %s770
      %p779 = scmp.eq.s32.totalorder %s87, 0
      %p780 = por %p778, %p779
      %p781 = scmp.ne.s32.totalorder %s769, %s770
      %p782 = scmp.eq.s32.totalorder %s88, 1
      %p783 = por %p781, %p782
      %p785 = scmp.ne.s32.totalorder %s770, %s784
      %p786 = scmp.eq.s32.totalorder %s88, 0
      %p787 = por %p785, %p786
      %s789 = sadd.s32 %s788, 1
      %p792 = scmp.eq.s32.totalorder %s82, 1
      %p793 = scmp.ne.s32.totalorder %s788, %s790
      %p794 = scmp.eq.s32.totalorder %s82, 0
      %p795 = por %p793, %p794
      %p796 = scmp.ne.s32.totalorder %s788, %s790
      %p797 = scmp.eq.s32.totalorder %s87, 1
      %p798 = por %p796, %p797
      %p799 = scmp.ne.s32.totalorder %s790, %s791
      %p800 = scmp.eq.s32.totalorder %s87, 0
      %p801 = por %p799, %p800
      %p802 = scmp.ne.s32.totalorder %s790, %s791
      %p803 = scmp.eq.s32.totalorder %s88, 1
      %p804 = por %p802, %p803
      %p806 = scmp.ne.s32.totalorder %s791, %s805
      %p807 = scmp.eq.s32.totalorder %s88, 0
      %p808 = por %p806, %p807
      %s810 = sadd.s32 %s809, 1
      %p813 = scmp.eq.s32.totalorder %s82, 1
      %p814 = scmp.ne.s32.totalorder %s809, %s811
      %p815 = scmp.eq.s32.totalorder %s82, 0
      %p816 = por %p814, %p815
      %p817 = scmp.ne.s32.totalorder %s809, %s811
      %p818 = scmp.eq.s32.totalorder %s87, 1
      %p819 = por %p817, %p818
      %p820 = scmp.ne.s32.totalorder %s811, %s812
      %p821 = scmp.eq.s32.totalorder %s87, 0
      %p822 = por %p820, %p821
      %p823 = scmp.ne.s32.totalorder %s811, %s812
      %p824 = scmp.eq.s32.totalorder %s88, 1
      %p825 = por %p823, %p824
      %p827 = scmp.ne.s32.totalorder %s812, %s826
      %p828 = scmp.eq.s32.totalorder %s88, 0
      %p829 = por %p827, %p828
      %s831 = sadd.s32 %s830, 1
      %p834 = scmp.eq.s32.totalorder %s82, 1
      %p835 = scmp.ne.s32.totalorder %s830, %s832
      %p836 = scmp.eq.s32.totalorder %s82, 0
      %p837 = por %p835, %p836
      %p838 = scmp.ne.s32.totalorder %s830, %s832
      %p839 = scmp.eq.s32.totalorder %s87, 1
      %p840 = por %p838, %p839
      %p841 = scmp.ne.s32.totalorder %s832, %s833
      %p842 = scmp.eq.s32.totalorder %s87, 0
      %p843 = por %p841, %p842
      %p844 = scmp.ne.s32.totalorder %s832, %s833
      %p845 = scmp.eq.s32.totalorder %s88, 1
      %p846 = por %p844, %p845
      %p848 = scmp.ne.s32.totalorder %s833, %s847
      %p849 = scmp.eq.s32.totalorder %s88, 0
      %p850 = por %p848, %p849
      %s851 = ssub.s32 %s82, %s89
      %p852 = scmp.eq.s32.totalorder %s851, 0
      %s854 = sadd.s32 %s853, 1
      %s855 = scalar_select %p852, %s853, %s854
      %p858 = pneg %p852
      %p859 = scmp.eq.s32.totalorder %s82, 1
      %p860 = por %p858, %p859
      %p861 = scmp.ne.s32.totalorder %s853, %s856
      %p862 = scmp.eq.s32.totalorder %s82, 0
      %p863 = por %p861, %p862
      %p864 = scmp.ne.s32.totalorder %s853, %s856
      %p865 = scmp.eq.s32.totalorder %s87, 1
      %p866 = por %p864, %p865
      %p867 = scmp.ne.s32.totalorder %s856, %s857
      %p868 = scmp.eq.s32.totalorder %s87, 0
      %p869 = por %p867, %p868
      %p870 = scmp.ne.s32.totalorder %s856, %s857
      %p871 = scmp.eq.s32.totalorder %s88, 1
      %p872 = por %p870, %p871
      %p874 = scmp.ne.s32.totalorder %s857, %s873
      %p875 = scmp.eq.s32.totalorder %s88, 0
      %p876 = por %p874, %p875
      %p877 = scmp.le.s32.totalorder 1, %s82
      %p878 = scmp.lt.s32.totalorder %s82, 3
      %p879 = pnand %p877, %p878
      %p880 = pneg %p879
      // Predicated region
      $region9: #{_lambda_.1} parent=5 // pred_check
        _
      $region10: #{_lambda_.1} parent=5 // pred_check_branch
        %882 = sbr.rel (%p879) target = $region12
      $region11: #{_lambda_.1} parent=5 // pred_region
        %s883 = ssub.s32 %s82, 1
        // Predicated region
        $region13: #{_lambda_.1} parent=11 // pred_check
          %p884 = pneg %p129
        $region14: #{_lambda_.1} parent=11 // pred_check_branch
          %886 = sbr.rel (%p884) target = $region16
        $region15: #{_lambda_.1} parent=11 // pred_region
          _
        $region16: #{_lambda_.1} parent=11 // pred_fallthru
          _
        // Predicated region
        $region17: #{_lambda_.1} parent=11 // pred_check
          %p887 = pneg %p150
        $region18: #{_lambda_.1} parent=11 // pred_check_branch
          %889 = sbr.rel (%p887) target = $region20
        $region19: #{_lambda_.1} parent=11 // pred_region
          _
        $region20: #{_lambda_.1} parent=11 // pred_fallthru
          _
        // Predicated region
        $region21: #{_lambda_.1} parent=11 // pred_check
          %p890 = pneg %p171
        $region22: #{_lambda_.1} parent=11 // pred_check_branch
          %892 = sbr.rel (%p890) target = $region24
        $region23: #{_lambda_.1} parent=11 // pred_region
          _
        $region24: #{_lambda_.1} parent=11 // pred_fallthru
          _
        // Predicated region
        $region25: #{_lambda_.1} parent=11 // pred_check
          %p893 = pneg %p192
        $region26: #{_lambda_.1} parent=11 // pred_check_branch
          %895 = sbr.rel (%p893) target = $region28
        $region27: #{_lambda_.1} parent=11 // pred_region
          _
        $region28: #{_lambda_.1} parent=11 // pred_fallthru
          _
        // Predicated region
        $region29: #{_lambda_.1} parent=11 // pred_check
          %p896 = pneg %p213
        $region30: #{_lambda_.1} parent=11 // pred_check_branch
          %898 = sbr.rel (%p896) target = $region32
        $region31: #{_lambda_.1} parent=11 // pred_region
          _
        $region32: #{_lambda_.1} parent=11 // pred_fallthru
          _
        // Predicated region
        $region33: #{_lambda_.1} parent=11 // pred_check
          %p899 = pneg %p234
        $region34: #{_lambda_.1} parent=11 // pred_check_branch
          %901 = sbr.rel (%p899) target = $region36
        $region35: #{_lambda_.1} parent=11 // pred_region
          _
        $region36: #{_lambda_.1} parent=11 // pred_fallthru
          _
        // Predicated region
        $region37: #{_lambda_.1} parent=11 // pred_check
          %p902 = pneg %p255
        $region38: #{_lambda_.1} parent=11 // pred_check_branch
          %904 = sbr.rel (%p902) target = $region40
        $region39: #{_lambda_.1} parent=11 // pred_region
          _
        $region40: #{_lambda_.1} parent=11 // pred_fallthru
          _
        // Predicated region
        $region41: #{_lambda_.1} parent=11 // pred_check
          %p905 = pneg %p276
        $region42: #{_lambda_.1} parent=11 // pred_check_branch
          %907 = sbr.rel (%p905) target = $region44
        $region43: #{_lambda_.1} parent=11 // pred_region
          _
        $region44: #{_lambda_.1} parent=11 // pred_fallthru
          _
        // Predicated region
        $region45: #{_lambda_.1} parent=11 // pred_check
          %p908 = pneg %p297
        $region46: #{_lambda_.1} parent=11 // pred_check_branch
          %910 = sbr.rel (%p908) target = $region48
        $region47: #{_lambda_.1} parent=11 // pred_region
          _
        $region48: #{_lambda_.1} parent=11 // pred_fallthru
          _
        // Predicated region
        $region49: #{_lambda_.1} parent=11 // pred_check
          %p911 = pneg %p318
        $region50: #{_lambda_.1} parent=11 // pred_check_branch
          %913 = sbr.rel (%p911) target = $region52
        $region51: #{_lambda_.1} parent=11 // pred_region
          _
        $region52: #{_lambda_.1} parent=11 // pred_fallthru
          _
        // Predicated region
        $region53: #{_lambda_.1} parent=11 // pred_check
          %p914 = pneg %p339
        $region54: #{_lambda_.1} parent=11 // pred_check_branch
          %916 = sbr.rel (%p914) target = $region56
        $region55: #{_lambda_.1} parent=11 // pred_region
          _
        $region56: #{_lambda_.1} parent=11 // pred_fallthru
          _
        // Predicated region
        $region57: #{_lambda_.1} parent=11 // pred_check
          %p917 = pneg %p360
        $region58: #{_lambda_.1} parent=11 // pred_check_branch
          %919 = sbr.rel (%p917) target = $region60
        $region59: #{_lambda_.1} parent=11 // pred_region
          _
        $region60: #{_lambda_.1} parent=11 // pred_fallthru
          _
        // Predicated region
        $region61: #{_lambda_.1} parent=11 // pred_check
          %p920 = pneg %p381
        $region62: #{_lambda_.1} parent=11 // pred_check_branch
          %922 = sbr.rel (%p920) target = $region64
        $region63: #{_lambda_.1} parent=11 // pred_region
          _
        $region64: #{_lambda_.1} parent=11 // pred_fallthru
          _
        // Predicated region
        $region65: #{_lambda_.1} parent=11 // pred_check
          %p923 = pneg %p402
        $region66: #{_lambda_.1} parent=11 // pred_check_branch
          %925 = sbr.rel (%p923) target = $region68
        $region67: #{_lambda_.1} parent=11 // pred_region
          _
        $region68: #{_lambda_.1} parent=11 // pred_fallthru
          _
        // Predicated region
        $region69: #{_lambda_.1} parent=11 // pred_check
          %p926 = pneg %p423
        $region70: #{_lambda_.1} parent=11 // pred_check_branch
          %928 = sbr.rel (%p926) target = $region72
        $region71: #{_lambda_.1} parent=11 // pred_region
          _
        $region72: #{_lambda_.1} parent=11 // pred_fallthru
          _
        // Predicated region
        $region73: #{_lambda_.1} parent=11 // pred_check
          %p929 = pneg %p444
        $region74: #{_lambda_.1} parent=11 // pred_check_branch
          %931 = sbr.rel (%p929) target = $region76
        $region75: #{_lambda_.1} parent=11 // pred_region
          _
        $region76: #{_lambda_.1} parent=11 // pred_fallthru
          _
        // Predicated region
        $region77: #{_lambda_.1} parent=11 // pred_check
          %p932 = pneg %p465
        $region78: #{_lambda_.1} parent=11 // pred_check_branch
          %934 = sbr.rel (%p932) target = $region80
        $region79: #{_lambda_.1} parent=11 // pred_region
          _
        $region80: #{_lambda_.1} parent=11 // pred_fallthru
          _
        // Predicated region
        $region81: #{_lambda_.1} parent=11 // pred_check
          %p935 = pneg %p486
        $region82: #{_lambda_.1} parent=11 // pred_check_branch
          %937 = sbr.rel (%p935) target = $region84
        $region83: #{_lambda_.1} parent=11 // pred_region
          _
        $region84: #{_lambda_.1} parent=11 // pred_fallthru
          _
        // Predicated region
        $region85: #{_lambda_.1} parent=11 // pred_check
          %p938 = pneg %p507
        $region86: #{_lambda_.1} parent=11 // pred_check_branch
          %940 = sbr.rel (%p938) target = $region88
        $region87: #{_lambda_.1} parent=11 // pred_region
          _
        $region88: #{_lambda_.1} parent=11 // pred_fallthru
          _
        // Predicated region
        $region89: #{_lambda_.1} parent=11 // pred_check
          %p941 = pneg %p528
        $region90: #{_lambda_.1} parent=11 // pred_check_branch
          %943 = sbr.rel (%p941) target = $region92
        $region91: #{_lambda_.1} parent=11 // pred_region
          _
        $region92: #{_lambda_.1} parent=11 // pred_fallthru
          _
        // Predicated region
        $region93: #{_lambda_.1} parent=11 // pred_check
          %p944 = pneg %p549
        $region94: #{_lambda_.1} parent=11 // pred_check_branch
          %946 = sbr.rel (%p944) target = $region96
        $region95: #{_lambda_.1} parent=11 // pred_region
          _
        $region96: #{_lambda_.1} parent=11 // pred_fallthru
          _
        // Predicated region
        $region97: #{_lambda_.1} parent=11 // pred_check
          %p947 = pneg %p570
        $region98: #{_lambda_.1} parent=11 // pred_check_branch
          %949 = sbr.rel (%p947) target = $region100
        $region99: #{_lambda_.1} parent=11 // pred_region
          _
        $region100: #{_lambda_.1} parent=11 // pred_fallthru
          _
        // Predicated region
        $region101: #{_lambda_.1} parent=11 // pred_check
          %p950 = pneg %p591
        $region102: #{_lambda_.1} parent=11 // pred_check_branch
          %952 = sbr.rel (%p950) target = $region104
        $region103: #{_lambda_.1} parent=11 // pred_region
          _
        $region104: #{_lambda_.1} parent=11 // pred_fallthru
          _
        // Predicated region
        $region105: #{_lambda_.1} parent=11 // pred_check
          %p953 = pneg %p612
        $region106: #{_lambda_.1} parent=11 // pred_check_branch
          %955 = sbr.rel (%p953) target = $region108
        $region107: #{_lambda_.1} parent=11 // pred_region
          _
        $region108: #{_lambda_.1} parent=11 // pred_fallthru
          _
        // Predicated region
        $region109: #{_lambda_.1} parent=11 // pred_check
          %p956 = pneg %p633
        $region110: #{_lambda_.1} parent=11 // pred_check_branch
          %958 = sbr.rel (%p956) target = $region112
        $region111: #{_lambda_.1} parent=11 // pred_region
          _
        $region112: #{_lambda_.1} parent=11 // pred_fallthru
          _
        // Predicated region
        $region113: #{_lambda_.1} parent=11 // pred_check
          %p959 = pneg %p654
        $region114: #{_lambda_.1} parent=11 // pred_check_branch
          %961 = sbr.rel (%p959) target = $region116
        $region115: #{_lambda_.1} parent=11 // pred_region
          _
        $region116: #{_lambda_.1} parent=11 // pred_fallthru
          _
        // Predicated region
        $region117: #{_lambda_.1} parent=11 // pred_check
          %p962 = pneg %p675
        $region118: #{_lambda_.1} parent=11 // pred_check_branch
          %964 = sbr.rel (%p962) target = $region120
        $region119: #{_lambda_.1} parent=11 // pred_region
          _
        $region120: #{_lambda_.1} parent=11 // pred_fallthru
          _
        // Predicated region
        $region121: #{_lambda_.1} parent=11 // pred_check
          %p965 = pneg %p696
        $region122: #{_lambda_.1} parent=11 // pred_check_branch
          %967 = sbr.rel (%p965) target = $region124
        $region123: #{_lambda_.1} parent=11 // pred_region
          _
        $region124: #{_lambda_.1} parent=11 // pred_fallthru
          _
        // Predicated region
        $region125: #{_lambda_.1} parent=11 // pred_check
          %p968 = pneg %p717
        $region126: #{_lambda_.1} parent=11 // pred_check_branch
          %970 = sbr.rel (%p968) target = $region128
        $region127: #{_lambda_.1} parent=11 // pred_region
          _
        $region128: #{_lambda_.1} parent=11 // pred_fallthru
          _
        // Predicated region
        $region129: #{_lambda_.1} parent=11 // pred_check
          %p971 = pneg %p738
        $region130: #{_lambda_.1} parent=11 // pred_check_branch
          %973 = sbr.rel (%p971) target = $region132
        $region131: #{_lambda_.1} parent=11 // pred_region
          _
        $region132: #{_lambda_.1} parent=11 // pred_fallthru
          _
        // Predicated region
        $region133: #{_lambda_.1} parent=11 // pred_check
          %p974 = pneg %p759
        $region134: #{_lambda_.1} parent=11 // pred_check_branch
          %976 = sbr.rel (%p974) target = $region136
        $region135: #{_lambda_.1} parent=11 // pred_region
          _
        $region136: #{_lambda_.1} parent=11 // pred_fallthru
          _
        // Predicated region
        $region137: #{_lambda_.1} parent=11 // pred_check
          %p977 = pneg %p780
        $region138: #{_lambda_.1} parent=11 // pred_check_branch
          %979 = sbr.rel (%p977) target = $region140
        $region139: #{_lambda_.1} parent=11 // pred_region
          _
        $region140: #{_lambda_.1} parent=11 // pred_fallthru
          _
        // Predicated region
        $region141: #{_lambda_.1} parent=11 // pred_check
          %p980 = pneg %p801
        $region142: #{_lambda_.1} parent=11 // pred_check_branch
          %982 = sbr.rel (%p980) target = $region144
        $region143: #{_lambda_.1} parent=11 // pred_region
          _
        $region144: #{_lambda_.1} parent=11 // pred_fallthru
          _
        // Predicated region
        $region145: #{_lambda_.1} parent=11 // pred_check
          %p983 = pneg %p822
        $region146: #{_lambda_.1} parent=11 // pred_check_branch
          %985 = sbr.rel (%p983) target = $region148
        $region147: #{_lambda_.1} parent=11 // pred_region
          _
        $region148: #{_lambda_.1} parent=11 // pred_fallthru
          _
        // Predicated region
        $region149: #{_lambda_.1} parent=11 // pred_check
          %p986 = pneg %p843
        $region150: #{_lambda_.1} parent=11 // pred_check_branch
          %988 = sbr.rel (%p986) target = $region152
        $region151: #{_lambda_.1} parent=11 // pred_region
          _
        $region152: #{_lambda_.1} parent=11 // pred_fallthru
          _
      $region12: #{_lambda_.1} parent=5 // pred_fallthru
        _
      %p989 = scmp.lt.s32.totalorder %s82, 2
      // Predicated region
      $region153: #{_lambda_.1} parent=5 // pred_check
        %p990 = pneg %p989
      $region154: #{_lambda_.1} parent=5 // pred_check_branch
        %992 = sbr.rel (%p990) target = $region156
      $region155: #{_lambda_.1} parent=5 // pred_region
        // Predicated region
        $region157: #{_lambda_.1} parent=155 // pred_check
          %p993 = pneg %p102
        $region158: #{_lambda_.1} parent=155 // pred_check_branch
          %995 = sbr.rel (%p993) target = $region160
        $region159: #{_lambda_.1} parent=155 // pred_region
          %p996 = scmp.lt.s32.totalorder %s82, 1
          %s997 = scalar_select %p996, %s82, 1
          %s998 = smul.addr %s997, 8
          %s999 = smul.addr %s998, 8
          %s1000 = scalar_lea.vmem %s1, %s999
        $region160: #{_lambda_.1} parent=155 // pred_fallthru
          _
      $region156: #{_lambda_.1} parent=5 // pred_fallthru
        _
      %p1001 = scmp.le.s32.totalorder 1, %s82
      %p1002 = scmp.lt.s32.totalorder %s82, 3
      %p1003 = pnand %p1001, %p1002
      %p1004 = pneg %p1003
      // Predicated region
      $region161: #{_lambda_.1} parent=5 // pred_check
        _
      $region162: #{_lambda_.1} parent=5 // pred_check_branch
        %1006 = sbr.rel (%p1003) target = $region164
      $region163: #{_lambda_.1} parent=5 // pred_region
        %s1007 = ssub.s32 %s82, 1
        %p1008 = scmp.lt.s32.totalorder %s87, 1
        %s1009 = scalar_select %p1008, %s87, 1
        %s1010 = smul.addr %s1009, 8
        %s1011 = smul.addr %s1010, 8
        %s1012 = scalar_lea.vmem %s1, %s1011
        %p1013 = pneg %p108
        %p1014 = pneg %p105
        %p1015 = pneg %p129
        %p1016 = pneg %p126
        %p1017 = pneg %p150
        %p1018 = pneg %p147
        %p1019 = pneg %p171
        %p1020 = pneg %p168
        %p1021 = pneg %p192
        %p1022 = pneg %p189
        %p1023 = pneg %p213
        %p1024 = pneg %p210
        %p1025 = pneg %p234
        %p1026 = pneg %p231
        %p1027 = pneg %p255
        %p1028 = pneg %p252
        %p1029 = pneg %p276
        %p1030 = pneg %p273
        %p1031 = pneg %p297
        %p1032 = pneg %p294
        %p1033 = pneg %p318
        %p1034 = pneg %p315
        %p1035 = pneg %p339
        %p1036 = pneg %p336
        %p1037 = pneg %p360
        %p1038 = pneg %p357
        %p1039 = pneg %p381
        %p1040 = pneg %p378
        %p1041 = pneg %p402
        %p1042 = pneg %p399
        %p1043 = pneg %p423
        %p1044 = pneg %p420
        %p1045 = pneg %p444
        %p1046 = pneg %p441
        %p1047 = pneg %p465
        %p1048 = pneg %p462
        %p1049 = pneg %p486
        %p1050 = pneg %p483
        %p1051 = pneg %p507
        %p1052 = pneg %p504
        %p1053 = pneg %p528
        %p1054 = pneg %p525
        %p1055 = pneg %p549
        %p1056 = pneg %p546
        %p1057 = pneg %p570
        %p1058 = pneg %p567
        %p1059 = pneg %p591
        %p1060 = pneg %p588
        %p1061 = pneg %p612
        %p1062 = pneg %p609
        %p1063 = pneg %p633
        %p1064 = pneg %p630
        %p1065 = pneg %p654
        %p1066 = pneg %p651
        %p1067 = pneg %p675
        %p1068 = pneg %p672
        %p1069 = pneg %p696
        %p1070 = pneg %p693
        %p1071 = pneg %p717
        %p1072 = pneg %p714
        %p1073 = pneg %p738
        %p1074 = pneg %p735
        %p1075 = pneg %p759
        %p1076 = pneg %p756
        %p1077 = pneg %p780
        %p1078 = pneg %p777
        %p1079 = pneg %p801
        %p1080 = pneg %p798
        %p1081 = pneg %p822
        %p1082 = pneg %p819
        %p1083 = pneg %p843
        %p1084 = pneg %p840
        %p1085 = pneg %p869
        %p1086 = pneg %p866
        %s1087 = sand.u32 %s856, 1
        %s1088 = scalar_lea.sflag [#allocation3], %s1087
        %s1089 = sand.u32 %s856, 1
        %s1090 = scalar_lea.vmem [#allocation2], %s1089
        %p1091 = scmp.lt.s32.totalorder %s87, 1
        %s1092 = scalar_select %p1091, %s87, 1
        %s1093 = smul.addr %s1092, 8
        %s1094 = smul.addr %s1093, 8
        %s1095 = scalar_lea.vmem %s1, %s1094
        %v1097 = vld [vmem:[%s1095] sm:$0xff]
        %v1098 = vld [vmem:[%s1095 + $0x8] sm:$0xff]
        %v1099 = vld [vmem:[%s1095 + $0x10] sm:$0xff]
        %v1100 = vld [vmem:[%s1095 + $0x18] sm:$0xff]
        %v1101 = vld [vmem:[%s1095 + $0x20] sm:$0xff]
        %v1102 = vld [vmem:[%s1095 + $0x28] sm:$0xff]
        %v1103 = vld [vmem:[%s1095 + $0x30] sm:$0xff]
        %v1104 = vld [vmem:[%s1095 + $0x38] sm:$0xff]
        %v1105 = vpack.c.bf16 %v1098, %v1097
        %v1106 = vpack.c.bf16 %v1100, %v1099
        %v1107 = vpack.c.bf16 %v1102, %v1101
        %v1108 = vpack.c.bf16 %v1104, %v1103
        %v1109 = vld [vmem:[%s3] sm:$0xf]
        %v1110 = vld [vmem:[%s3 + $0x4] sm:$0xf]
        %v1111 = vld [vmem:[%s3 + $0x8] sm:$0xf]
        %v1112 = vld [vmem:[%s3 + $0xc] sm:$0x3]
        %v1113 = vld [vmem:[%s5] sm:$0x1]
        %v1115 = vlaneseq
        %v1116 = vshrl.u32 %v1115, 7
        %v1117 = vsub.s32 0, %v1116
        %v1118 = vrot.slane %v1113, %v1117
        %v1124 = vunpack.c.l.b16 %v1109
        %v1125 = vunpack.c.l.b16 %v1110
        %v1126 = vunpack.c.l.b16 %v1111
        %v1127 = vunpack.c.l.b16 %v1112
        %v1128 = vpack.c.b16 %v1125, %v1124
        %v1129 = vpack.c.b16 %v1127, %v1126
        %vm1131 = vcmask 220160
        %v1133 = vsel %vm1131, %v1105, 0
        %v1136 = vsel %vm1131, %v1106, 0
        %v1139 = vsel %vm1131, %v1107, 0
        %v1142 = vsel %vm1131, %v1108, 0
        %vm1144 = vcmask 1044480
        %vm1145 = vcmask 1045504
        %v1146 = vsel %vm1144, 4294967295, 65535
        %v1147 = vsel %vm1145, %v1146, 0
        %v1149 = vand.u32 %v1129, %v1147
        %1151 = vmatprep.subr.bf16.mxu0 0
        %1152 = vmatpush1.bf16.msra.mxu0 %v1128
        %1153 = vmatprep.subr.bf16.mxu0 0
        %1154 = vmatpush1.bf16.msra.mxu0 %v1149
        %1155 = vmatprep.subr.bf16.mxu0 0
        %1156 = vmatpush1.bf16.msra.mxu0 0
        %1157 = vmatprep.subr.bf16.mxu0 0
        %1158 = vmatpush1.bf16.msra.mxu0 0
        %1159 = vmatprep.subr.bf16.mxu0 0
        %1160 = vmatpush1.bf16.msra.mxu0 0
        %1161 = vmatprep.subr.bf16.mxu0 0
        %1162 = vmatpush1.bf16.msra.mxu0 0
        %1163 = vmatprep.subr.bf16.mxu0 0
        %1164 = vmatpush1.bf16.msra.mxu0 0
        %1165 = vmatprep.subr.bf16.mxu0 0
        %1166 = vmatpush1.bf16.msra.mxu0 0
        %1167 = vmatprep.subr.bf16.mxu0 0
        %1168 = vmatpush1.bf16.msra.mxu0 0
        %1169 = vmatprep.subr.bf16.mxu0 0
        %1170 = vmatpush1.bf16.msra.mxu0 0
        %1171 = vmatprep.subr.bf16.mxu0 0
        %1172 = vmatpush1.bf16.msra.mxu0 0
        %1173 = vmatprep.subr.bf16.mxu0 0
        %1174 = vmatpush1.bf16.msra.mxu0 0
        %1175 = vmatprep.subr.bf16.mxu0 0
        %1176 = vmatpush1.bf16.msra.mxu0 0
        %1177 = vmatprep.subr.bf16.mxu0 0
        %1178 = vmatpush1.bf16.msra.mxu0 0
        %1179 = vmatprep.subr.bf16.mxu0 0
        %1180 = vmatpush1.bf16.msra.mxu0 0
        %1181 = vmatprep.subr.bf16.mxu0 0
        %1182 = vmatpush1.bf16.msra.mxu0 0
        %1183 = vmatprep.mubr.bf16.mxu0 0
        %1184 = vmatmul.mubr.bf16.gmra.mrb[0].mxu0 %v1133
        %v1185 = vpop.f32.mrb[0].mxu0
        %v1186 = vadd.f32 %v1118, %v1185
        %v1187 = vpop.f32.mrb[0].mxu0
        %v1188 = vpop.f32.mrb[0].mxu0
        %v1189 = vadd.f32 %v1118, %v1188
        %v1190 = vpop.f32.mrb[0].mxu0
        %1191 = vmatprep.mubr.bf16.mxu0 0
        %1192 = vmatmul.mubr.bf16.gmra.mrb[0].mxu0 %v1136
        %v1193 = vpop.f32.mrb[0].mxu0
        %v1194 = vadd.f32 %v1118, %v1193
        %v1195 = vpop.f32.mrb[0].mxu0
        %v1196 = vpop.f32.mrb[0].mxu0
        %v1197 = vadd.f32 %v1118, %v1196
        %v1198 = vpop.f32.mrb[0].mxu0
        %1199 = vmatprep.mubr.bf16.mxu0 0
        %1200 = vmatmul.mubr.bf16.gmra.mrb[0].mxu0 %v1139
        %v1201 = vpop.f32.mrb[0].mxu0
        %v1202 = vadd.f32 %v1118, %v1201
        %v1203 = vpop.f32.mrb[0].mxu0
        %v1204 = vpop.f32.mrb[0].mxu0
        %v1205 = vadd.f32 %v1118, %v1204
        %v1206 = vpop.f32.mrb[0].mxu0
        %1207 = vmatprep.mubr.bf16.mxu0 0
        %1208 = vmatmul.mubr.bf16.gmra.mrb[0].mxu0 %v1142
        %v1209 = vpop.f32.mrb[0].mxu0
        %v1210 = vadd.f32 %v1118, %v1209
        %v1211 = vpop.f32.mrb[0].mxu0
        %v1212 = vpop.f32.mrb[0].mxu0
        %v1213 = vadd.f32 %v1118, %v1212
        %v1214 = vpop.f32.mrb[0].mxu0
        %1215 = vdwg.mxu0
        %v1216 = vadd.f32 %v1186, 3.0
        %v1217 = vadd.f32 %v1189, 3.0
        %v1218 = vadd.f32 %v1194, 3.0
        %v1219 = vadd.f32 %v1197, 3.0
        %v1220 = vadd.f32 %v1202, 3.0
        %v1221 = vadd.f32 %v1205, 3.0
        %v1222 = vadd.f32 %v1210, 3.0
        %v1223 = vadd.f32 %v1213, 3.0
        %v1224 = vmax.f32 %v1216, 0.0
        %v1225 = vmax.f32 %v1217, 0.0
        %v1226 = vmax.f32 %v1218, 0.0
        %v1227 = vmax.f32 %v1219, 0.0
        %v1228 = vmax.f32 %v1220, 0.0
        %v1229 = vmax.f32 %v1221, 0.0
        %v1230 = vmax.f32 %v1222, 0.0
        %v1231 = vmax.f32 %v1223, 0.0
        %v1232 = vmin.f32 %v1224, 6.0
        %v1233 = vmin.f32 %v1225, 6.0
        %v1234 = vmin.f32 %v1226, 6.0
        %v1235 = vmin.f32 %v1227, 6.0
        %v1236 = vmin.f32 %v1228, 6.0
        %v1237 = vmin.f32 %v1229, 6.0
        %v1238 = vmin.f32 %v1230, 6.0
        %v1239 = vmin.f32 %v1231, 6.0
        %v1240 = vmul.f32 %v1232, 0.16666667
        %v1241 = vmul.f32 %v1233, 0.16666667
        %v1242 = vmul.f32 %v1234, 0.16666667
        %v1243 = vmul.f32 %v1235, 0.16666667
        %v1244 = vmul.f32 %v1236, 0.16666667
        %v1245 = vmul.f32 %v1237, 0.16666667
        %v1246 = vmul.f32 %v1238, 0.16666667
        %v1247 = vmul.f32 %v1239, 0.16666667
        %v1248 = vmul.f32 %v1186, %v1240
        %v1249 = vmul.f32 %v1189, %v1241
        %v1250 = vmul.f32 %v1194, %v1242
        %v1251 = vmul.f32 %v1197, %v1243
        %v1252 = vmul.f32 %v1202, %v1244
        %v1253 = vmul.f32 %v1205, %v1245
        %v1254 = vmul.f32 %v1210, %v1246
        %v1255 = vmul.f32 %v1213, %v1247
        %v1256 = vpack.c.bf16 %v1249, %v1248
        %v1257 = vpack.c.bf16 %v1251, %v1250
        %v1258 = vpack.c.bf16 %v1253, %v1252
        %v1259 = vpack.c.bf16 %v1255, %v1254
        %v1260 = vld [vmem:[%s9] sm:$0xff]
        %v1261 = vld [vmem:[%s9 + $0x8] sm:$0x1]
        %v1262 = vld [vmem:[%s7] sm:$0xf]
        %v1263 = vld [vmem:[%s7 + $0x4] sm:$0xf]
        %v1264 = vld [vmem:[%s7 + $0x8] sm:$0xf]
        %v1265 = vld [vmem:[%s7 + $0xc] sm:$0xf]
        %v1266 = vld [vmem:[%s7 + $0x10] sm:$0xf]
        %v1267 = vld [vmem:[%s7 + $0x14] sm:$0xf]
        %v1268 = vld [vmem:[%s7 + $0x18] sm:$0xf]
        %v1269 = vld [vmem:[%s7 + $0x1c] sm:$0xf]
        %v1278 = vunpack.c.l.b16 %v1262
        %v1279 = vunpack.c.l.b16 %v1263
        %v1280 = vunpack.c.l.b16 %v1264
        %v1281 = vunpack.c.l.b16 %v1265
        %v1282 = vunpack.c.l.b16 %v1266
        %v1283 = vunpack.c.l.b16 %v1267
        %v1284 = vunpack.c.l.b16 %v1268
        %v1285 = vunpack.c.l.b16 %v1269
        %v1286 = vpack.c.b16 %v1279, %v1278
        %v1287 = vpack.c.b16 %v1281, %v1280
        %v1288 = vpack.c.b16 %v1283, %v1282
        %v1289 = vpack.c.b16 %v1285, %v1284
        %vm1290 = vcmask 523264
        %v1292 = vsel %vm1290, %v1286, 0
        %v1295 = vsel %vm1290, %v1287, 0
        %v1298 = vsel %vm1290, %v1288, 0
        %v1301 = vsel %vm1290, %v1289, 0
        %1303 = vmatprep.subr.bf16.mxu0 0
        %1304 = vmatpush1.bf16.msra.mxu0 %v1256
        %1305 = vmatprep.subr.bf16.mxu0 0
        %1306 = vmatpush1.bf16.msra.mxu0 %v1257
        %1307 = vmatprep.subr.bf16.mxu0 0
        %1308 = vmatpush1.bf16.msra.mxu0 %v1258
        %1309 = vmatprep.subr.bf16.mxu0 0
        %1310 = vmatpush1.bf16.msra.mxu0 %v1259
        %1311 = vmatprep.subr.bf16.mxu0 0
        %1312 = vmatpush1.bf16.msra.mxu0 0
        %1313 = vmatprep.subr.bf16.mxu0 0
        %1314 = vmatpush1.bf16.msra.mxu0 0
        %1315 = vmatprep.subr.bf16.mxu0 0
        %1316 = vmatpush1.bf16.msra.mxu0 0
        %1317 = vmatprep.subr.bf16.mxu0 0
        %1318 = vmatpush1.bf16.msra.mxu0 0
        %1319 = vmatprep.subr.bf16.mxu0 0
        %1320 = vmatpush1.bf16.msra.mxu0 0
        %1321 = vmatprep.subr.bf16.mxu0 0
        %1322 = vmatpush1.bf16.msra.mxu0 0
        %1323 = vmatprep.subr.bf16.mxu0 0
        %1324 = vmatpush1.bf16.msra.mxu0 0
        %1325 = vmatprep.subr.bf16.mxu0 0
        %1326 = vmatpush1.bf16.msra.mxu0 0
        %1327 = vmatprep.subr.bf16.mxu0 0
        %1328 = vmatpush1.bf16.msra.mxu0 0
        %1329 = vmatprep.subr.bf16.mxu0 0
        %1330 = vmatpush1.bf16.msra.mxu0 0
        %1331 = vmatprep.subr.bf16.mxu0 0
        %1332 = vmatpush1.bf16.msra.mxu0 0
        %1333 = vmatprep.subr.bf16.mxu0 0
        %1334 = vmatpush1.bf16.msra.mxu0 0
        %1335 = vmatprep.mubr.bf16.mxu0 0
        %1336 = vmatmul.mubr.bf16.gmra.mrb[0].mxu0 %v1292
        %v1337 = vpop.f32.mrb[0].mxu0
        %v1338 = vadd.f32 0.0, %v1337
        %v1339 = vpop.f32.mrb[0].mxu0
        %v1340 = vpop.f32.mrb[0].mxu0
        %v1341 = vadd.f32 0.0, %v1340
        %v1342 = vpop.f32.mrb[0].mxu0
        %1343 = vmatprep.mubr.bf16.mxu0 0
        %1344 = vmatmul.mubr.bf16.gmra.mrb[0].mxu0 %v1295
        %v1345 = vpop.f32.mrb[0].mxu0
        %v1346 = vadd.f32 0.0, %v1345
        %v1347 = vpop.f32.mrb[0].mxu0
        %v1348 = vpop.f32.mrb[0].mxu0
        %v1349 = vadd.f32 0.0, %v1348
        %v1350 = vpop.f32.mrb[0].mxu0
        %1351 = vmatprep.mubr.bf16.mxu0 0
        %1352 = vmatmul.mubr.bf16.gmra.mrb[0].mxu0 %v1298
        %v1353 = vpop.f32.mrb[0].mxu0
        %v1354 = vadd.f32 0.0, %v1353
        %v1355 = vpop.f32.mrb[0].mxu0
        %v1356 = vpop.f32.mrb[0].mxu0
        %v1357 = vadd.f32 0.0, %v1356
        %v1358 = vpop.f32.mrb[0].mxu0
        %1359 = vmatprep.mubr.bf16.mxu0 0
        %1360 = vmatmul.mubr.bf16.gmra.mrb[0].mxu0 %v1301
        %v1361 = vpop.f32.mrb[0].mxu0
        %v1362 = vadd.f32 0.0, %v1361
        %v1363 = vpop.f32.mrb[0].mxu0
        %v1364 = vpop.f32.mrb[0].mxu0
        %v1365 = vadd.f32 0.0, %v1364
        %v1366 = vpop.f32.mrb[0].mxu0
        %1367 = vdwg.mxu0
        %v1368 = vlaneseq
        %v1369 = vshrl.u32 %v1368, 7
        %v1370 = vsub.s32 0, %v1369
        %v1371 = vrot.slane %v1260, %v1370
        %v1372 = vmul.f32 %v1338, %v1371
        %v1373 = vmul.f32 %v1341, %v1371
        %v1374 = vmul.f32 %v1346, %v1371
        %v1375 = vmul.f32 %v1349, %v1371
        %v1376 = vmul.f32 %v1354, %v1371
        %v1377 = vmul.f32 %v1357, %v1371
        %v1378 = vmul.f32 %v1362, %v1371
        %v1379 = vmul.f32 %v1365, %v1371
        %v1380 = vadd.f32 %v1372, 0.0
        %v1381 = vadd.f32 %v1373, 0.0
        %v1382 = vadd.f32 %v1374, 0.0
        %v1383 = vadd.f32 %v1375, 0.0
        %v1384 = vadd.f32 %v1376, 0.0
        %v1385 = vadd.f32 %v1377, 0.0
        %v1386 = vadd.f32 %v1378, 0.0
        %v1387 = vadd.f32 %v1379, 0.0
        %s1388 = scalar_lea.vmem %s7, 32
        %v1389 = vld [vmem:[%s1388] sm:$0xf]
        %v1390 = vld [vmem:[%s1388 + $0x4] sm:$0xf]
        %v1391 = vld [vmem:[%s1388 + $0x8] sm:$0xf]
        %v1392 = vld [vmem:[%s1388 + $0xc] sm:$0xf]
        %v1393 = vld [vmem:[%s1388 + $0x10] sm:$0xf]
        %v1394 = vld [vmem:[%s1388 + $0x14] sm:$0xf]
        %v1395 = vld [vmem:[%s1388 + $0x18] sm:$0xf]
        %v1396 = vld [vmem:[%s1388 + $0x1c] sm:$0xf]
        %v1405 = vunpack.c.l.b16 %v1389
        %v1406 = vunpack.c.l.b16 %v1390
        %v1407 = vunpack.c.l.b16 %v1391
        %v1408 = vunpack.c.l.b16 %v1392
        %v1409 = vunpack.c.l.b16 %v1393
        %v1410 = vunpack.c.l.b16 %v1394
        %v1411 = vunpack.c.l.b16 %v1395
        %v1412 = vunpack.c.l.b16 %v1396
        %v1413 = vpack.c.b16 %v1406, %v1405
        %v1414 = vpack.c.b16 %v1408, %v1407
        %v1415 = vpack.c.b16 %v1410, %v1409
        %v1416 = vpack.c.b16 %v1412, %v1411
        %v1418 = vsel %vm1290, %v1413, 0
        %v1421 = vsel %vm1290, %v1414, 0
        %v1424 = vsel %vm1290, %v1415, 0
        %v1427 = vsel %vm1290, %v1416, 0
        %1429 = vmatprep.subr.bf16.mxu0 0
        %1430 = vmatpush1.bf16.msra.mxu0 %v1256
        %1431 = vmatprep.subr.bf16.mxu0 0
        %1432 = vmatpush1.bf16.msra.mxu0 %v1257
        %1433 = vmatprep.subr.bf16.mxu0 0
        %1434 = vmatpush1.bf16.msra.mxu0 %v1258
        %1435 = vmatprep.subr.bf16.mxu0 0
        %1436 = vmatpush1.bf16.msra.mxu0 %v1259
        %1437 = vmatprep.subr.bf16.mxu0 0
        %1438 = vmatpush1.bf16.msra.mxu0 0
        %1439 = vmatprep.subr.bf16.mxu0 0
        %1440 = vmatpush1.bf16.msra.mxu0 0
        %1441 = vmatprep.subr.bf16.mxu0 0
        %1442 = vmatpush1.bf16.msra.mxu0 0
        %1443 = vmatprep.subr.bf16.mxu0 0
        %1444 = vmatpush1.bf16.msra.mxu0 0
        %1445 = vmatprep.subr.bf16.mxu0 0
        %1446 = vmatpush1.bf16.msra.mxu0 0
        %1447 = vmatprep.subr.bf16.mxu0 0
        %1448 = vmatpush1.bf16.msra.mxu0 0
        %1449 = vmatprep.subr.bf16.mxu0 0
        %1450 = vmatpush1.bf16.msra.mxu0 0
        %1451 = vmatprep.subr.bf16.mxu0 0
        %1452 = vmatpush1.bf16.msra.mxu0 0
        %1453 = vmatprep.subr.bf16.mxu0 0
        %1454 = vmatpush1.bf16.msra.mxu0 0
        %1455 = vmatprep.subr.bf16.mxu0 0
        %1456 = vmatpush1.bf16.msra.mxu0 0
        %1457 = vmatprep.subr.bf16.mxu0 0
        %1458 = vmatpush1.bf16.msra.mxu0 0
        %1459 = vmatprep.subr.bf16.mxu0 0
        %1460 = vmatpush1.bf16.msra.mxu0 0
        %1461 = vmatprep.mubr.bf16.mxu0 0
        %1462 = vmatmul.mubr.bf16.gmra.mrb[0].mxu0 %v1418
        %v1463 = vpop.f32.mrb[0].mxu0
        %v1464 = vadd.f32 0.0, %v1463
        %v1465 = vpop.f32.mrb[0].mxu0
        %v1466 = vpop.f32.mrb[0].mxu0
        %v1467 = vadd.f32 0.0, %v1466
        %v1468 = vpop.f32.mrb[0].mxu0
        %1469 = vmatprep.mubr.bf16.mxu0 0
        %1470 = vmatmul.mubr.bf16.gmra.mrb[0].mxu0 %v1421
        %v1471 = vpop.f32.mrb[0].mxu0
        %v1472 = vadd.f32 0.0, %v1471
        %v1473 = vpop.f32.mrb[0].mxu0
        %v1474 = vpop.f32.mrb[0].mxu0
        %v1475 = vadd.f32 0.0, %v1474
        %v1476 = vpop.f32.mrb[0].mxu0
        %1477 = vmatprep.mubr.bf16.mxu0 0
        %1478 = vmatmul.mubr.bf16.gmra.mrb[0].mxu0 %v1424
        %v1479 = vpop.f32.mrb[0].mxu0
        %v1480 = vadd.f32 0.0, %v1479
        %v1481 = vpop.f32.mrb[0].mxu0
        %v1482 = vpop.f32.mrb[0].mxu0
        %v1483 = vadd.f32 0.0, %v1482
        %v1484 = vpop.f32.mrb[0].mxu0
        %1485 = vmatprep.mubr.bf16.mxu0 0
        %1486 = vmatmul.mubr.bf16.gmra.mrb[0].mxu0 %v1427
        %v1487 = vpop.f32.mrb[0].mxu0
        %v1488 = vadd.f32 0.0, %v1487
        %v1489 = vpop.f32.mrb[0].mxu0
        %v1490 = vpop.f32.mrb[0].mxu0
        %v1491 = vadd.f32 0.0, %v1490
        %v1492 = vpop.f32.mrb[0].mxu0
        %1493 = vdwg.mxu0
        %v1494 = vlaneseq
        %v1495 = vshrl.u32 %v1494, 7
        %v1496 = vsub.s32 1, %v1495
        %v1497 = vrot.slane %v1260, %v1496
        %v1498 = vmul.f32 %v1464, %v1497
        %v1499 = vmul.f32 %v1467, %v1497
        %v1500 = vmul.f32 %v1472, %v1497
        %v1501 = vmul.f32 %v1475, %v1497
        %v1502 = vmul.f32 %v1480, %v1497
        %v1503 = vmul.f32 %v1483, %v1497
        %v1504 = vmul.f32 %v1488, %v1497
        %v1505 = vmul.f32 %v1491, %v1497
        %v1506 = vadd.f32 %v1380, %v1498
        %v1507 = vadd.f32 %v1381, %v1499
        %v1508 = vadd.f32 %v1382, %v1500
        %v1509 = vadd.f32 %v1383, %v1501
        %v1510 = vadd.f32 %v1384, %v1502
        %v1511 = vadd.f32 %v1385, %v1503
        %v1512 = vadd.f32 %v1386, %v1504
        %v1513 = vadd.f32 %v1387, %v1505
        %s1514 = scalar_lea.vmem %s7, 64
        %v1515 = vld [vmem:[%s1514] sm:$0xf]
        %v1516 = vld [vmem:[%s1514 + $0x4] sm:$0xf]
        %v1517 = vld [vmem:[%s1514 + $0x8] sm:$0xf]
        %v1518 = vld [vmem:[%s1514 + $0xc] sm:$0xf]
        %v1519 = vld [vmem:[%s1514 + $0x10] sm:$0xf]
        %v1520 = vld [vmem:[%s1514 + $0x14] sm:$0xf]
        %v1521 = vld [vmem:[%s1514 + $0x18] sm:$0xf]
        %v1522 = vld [vmem:[%s1514 + $0x1c] sm:$0xf]
        %v1531 = vunpack.c.l.b16 %v1515
        %v1532 = vunpack.c.l.b16 %v1516
        %v1533 = vunpack.c.l.b16 %v1517
        %v1534 = vunpack.c.l.b16 %v1518
        %v1535 = vunpack.c.l.b16 %v1519
        %v1536 = vunpack.c.l.b16 %v1520
        %v1537 = vunpack.c.l.b16 %v1521
        %v1538 = vunpack.c.l.b16 %v1522
        %v1539 = vpack.c.b16 %v1532, %v1531
        %v1540 = vpack.c.b16 %v1534, %v1533
        %v1541 = vpack.c.b16 %v1536, %v1535
        %v1542 = vpack.c.b16 %v1538, %v1537
        %v1544 = vsel %vm1290, %v1539, 0
        %v1547 = vsel %vm1290, %v1540, 0
        %v1550 = vsel %vm1290, %v1541, 0
        %v1553 = vsel %vm1290, %v1542, 0
        %1555 = vmatprep.subr.bf16.mxu0 0
        %1556 = vmatpush1.bf16.msra.mxu0 %v1256
        %1557 = vmatprep.subr.bf16.mxu0 0
        %1558 = vmatpush1.bf16.msra.mxu0 %v1257
        %1559 = vmatprep.subr.bf16.mxu0 0
        %1560 = vmatpush1.bf16.msra.mxu0 %v1258
        %1561 = vmatprep.subr.bf16.mxu0 0
        %1562 = vmatpush1.bf16.msra.mxu0 %v1259
        %1563 = vmatprep.subr.bf16.mxu0 0
        %1564 = vmatpush1.bf16.msra.mxu0 0
        %1565 = vmatprep.subr.bf16.mxu0 0
        %1566 = vmatpush1.bf16.msra.mxu0 0
        %1567 = vmatprep.subr.bf16.mxu0 0
        %1568 = vmatpush1.bf16.msra.mxu0 0
        %1569 = vmatprep.subr.bf16.mxu0 0
        %1570 = vmatpush1.bf16.msra.mxu0 0
        %1571 = vmatprep.subr.bf16.mxu0 0
        %1572 = vmatpush1.bf16.msra.mxu0 0
        %1573 = vmatprep.subr.bf16.mxu0 0
        %1574 = vmatpush1.bf16.msra.mxu0 0
        %1575 = vmatprep.subr.bf16.mxu0 0
        %1576 = vmatpush1.bf16.msra.mxu0 0
        %1577 = vmatprep.subr.bf16.mxu0 0
        %1578 = vmatpush1.bf16.msra.mxu0 0
        %1579 = vmatprep.subr.bf16.mxu0 0
        %1580 = vmatpush1.bf16.msra.mxu0 0
        %1581 = vmatprep.subr.bf16.mxu0 0
        %1582 = vmatpush1.bf16.msra.mxu0 0
        %1583 = vmatprep.subr.bf16.mxu0 0
        %1584 = vmatpush1.bf16.msra.mxu0 0
        %1585 = vmatprep.subr.bf16.mxu0 0
        %1586 = vmatpush1.bf16.msra.mxu0 0
        %1587 = vmatprep.mubr.bf16.mxu0 0
        %1588 = vmatmul.mubr.bf16.gmra.mrb[0].mxu0 %v1544
        %v1589 = vpop.f32.mrb[0].mxu0
        %v1590 = vadd.f32 0.0, %v1589
        %v1591 = vpop.f32.mrb[0].mxu0
        %v1592 = vpop.f32.mrb[0].mxu0
        %v1593 = vadd.f32 0.0, %v1592
        %v1594 = vpop.f32.mrb[0].mxu0
        %1595 = vmatprep.mubr.bf16.mxu0 0
        %1596 = vmatmul.mubr.bf16.gmra.mrb[0].mxu0 %v1547
        %v1597 = vpop.f32.mrb[0].mxu0
        %v1598 = vadd.f32 0.0, %v1597
        %v1599 = vpop.f32.mrb[0].mxu0
        %v1600 = vpop.f32.mrb[0].mxu0
        %v1601 = vadd.f32 0.0, %v1600
        %v1602 = vpop.f32.mrb[0].mxu0
        %1603 = vmatprep.mubr.bf16.mxu0 0
        %1604 = vmatmul.mubr.bf16.gmra.mrb[0].mxu0 %v1550
        %v1605 = vpop.f32.mrb[0].mxu0
        %v1606 = vadd.f32 0.0, %v1605
        %v1607 = vpop.f32.mrb[0].mxu0
        %v1608 = vpop.f32.mrb[0].mxu0
        %v1609 = vadd.f32 0.0, %v1608
        %v1610 = vpop.f32.mrb[0].mxu0
        %1611 = vmatprep.mubr.bf16.mxu0 0
        %1612 = vmatmul.mubr.bf16.gmra.mrb[0].mxu0 %v1553
        %v1613 = vpop.f32.mrb[0].mxu0
        %v1614 = vadd.f32 0.0, %v1613
        %v1615 = vpop.f32.mrb[0].mxu0
        %v1616 = vpop.f32.mrb[0].mxu0
        %v1617 = vadd.f32 0.0, %v1616
        %v1618 = vpop.f32.mrb[0].mxu0
        %1619 = vdwg.mxu0
        %v1620 = vlaneseq
        %v1621 = vshrl.u32 %v1620, 7
        %v1622 = vsub.s32 2, %v1621
        %v1623 = vrot.slane %v1260, %v1622
        %v1624 = vmul.f32 %v1590, %v1623
        %v1625 = vmul.f32 %v1593, %v1623
        %v1626 = vmul.f32 %v1598, %v1623
        %v1627 = vmul.f32 %v1601, %v1623
        %v1628 = vmul.f32 %v1606, %v1623
        %v1629 = vmul.f32 %v1609, %v1623
        %v1630 = vmul.f32 %v1614, %v1623
        %v1631 = vmul.f32 %v1617, %v1623
        %v1632 = vadd.f32 %v1506, %v1624
        %v1633 = vadd.f32 %v1507, %v1625
        %v1634 = vadd.f32 %v1508, %v1626
        %v1635 = vadd.f32 %v1509, %v1627
        %v1636 = vadd.f32 %v1510, %v1628
        %v1637 = vadd.f32 %v1511, %v1629
        %v1638 = vadd.f32 %v1512, %v1630
        %v1639 = vadd.f32 %v1513, %v1631
        %s1640 = scalar_lea.vmem %s7, 96
        %v1641 = vld [vmem:[%s1640] sm:$0xf]
        %v1642 = vld [vmem:[%s1640 + $0x4] sm:$0xf]
        %v1643 = vld [vmem:[%s1640 + $0x8] sm:$0xf]
        %v1644 = vld [vmem:[%s1640 + $0xc] sm:$0xf]
        %v1645 = vld [vmem:[%s1640 + $0x10] sm:$0xf]
        %v1646 = vld [vmem:[%s1640 + $0x14] sm:$0xf]
        %v1647 = vld [vmem:[%s1640 + $0x18] sm:$0xf]
        %v1648 = vld [vmem:[%s1640 + $0x1c] sm:$0xf]
        %v1657 = vunpack.c.l.b16 %v1641
        %v1658 = vunpack.c.l.b16 %v1642
        %v1659 = vunpack.c.l.b16 %v1643
        %v1660 = vunpack.c.l.b16 %v1644
        %v1661 = vunpack.c.l.b16 %v1645
        %v1662 = vunpack.c.l.b16 %v1646
        %v1663 = vunpack.c.l.b16 %v1647
        %v1664 = vunpack.c.l.b16 %v1648
        %v1665 = vpack.c.b16 %v1658, %v1657
        %v1666 = vpack.c.b16 %v1660, %v1659
        %v1667 = vpack.c.b16 %v1662, %v1661
        %v1668 = vpack.c.b16 %v1664, %v1663
        %v1670 = vsel %vm1290, %v1665, 0
        %v1673 = vsel %vm1290, %v1666, 0
        %v1676 = vsel %vm1290, %v1667, 0
        %v1679 = vsel %vm1290, %v1668, 0
        %1681 = vmatprep.subr.bf16.mxu0 0
        %1682 = vmatpush1.bf16.msra.mxu0 %v1256
        %1683 = vmatprep.subr.bf16.mxu0 0
        %1684 = vmatpush1.bf16.msra.mxu0 %v1257
        %1685 = vmatprep.subr.bf16.mxu0 0
        %1686 = vmatpush1.bf16.msra.mxu0 %v1258
        %1687 = vmatprep.subr.bf16.mxu0 0
        %1688 = vmatpush1.bf16.msra.mxu0 %v1259
        %1689 = vmatprep.subr.bf16.mxu0 0
        %1690 = vmatpush1.bf16.msra.mxu0 0
        %1691 = vmatprep.subr.bf16.mxu0 0
        %1692 = vmatpush1.bf16.msra.mxu0 0
        %1693 = vmatprep.subr.bf16.mxu0 0
        %1694 = vmatpush1.bf16.msra.mxu0 0
        %1695 = vmatprep.subr.bf16.mxu0 0
        %1696 = vmatpush1.bf16.msra.mxu0 0
        %1697 = vmatprep.subr.bf16.mxu0 0
        %1698 = vmatpush1.bf16.msra.mxu0 0
        %1699 = vmatprep.subr.bf16.mxu0 0
        %1700 = vmatpush1.bf16.msra.mxu0 0
        %1701 = vmatprep.subr.bf16.mxu0 0
        %1702 = vmatpush1.bf16.msra.mxu0 0
        %1703 = vmatprep.subr.bf16.mxu0 0
        %1704 = vmatpush1.bf16.msra.mxu0 0
        %1705 = vmatprep.subr.bf16.mxu0 0
        %1706 = vmatpush1.bf16.msra.mxu0 0
        %1707 = vmatprep.subr.bf16.mxu0 0
        %1708 = vmatpush1.bf16.msra.mxu0 0
        %1709 = vmatprep.subr.bf16.mxu0 0
        %1710 = vmatpush1.bf16.msra.mxu0 0
        %1711 = vmatprep.subr.bf16.mxu0 0
        %1712 = vmatpush1.bf16.msra.mxu0 0
        %1713 = vmatprep.mubr.bf16.mxu0 0
        %1714 = vmatmul.mubr.bf16.gmra.mrb[0].mxu0 %v1670
        %v1715 = vpop.f32.mrb[0].mxu0
        %v1716 = vadd.f32 0.0, %v1715
        %v1717 = vpop.f32.mrb[0].mxu0
        %v1718 = vpop.f32.mrb[0].mxu0
        %v1719 = vadd.f32 0.0, %v1718
        %v1720 = vpop.f32.mrb[0].mxu0
        %1721 = vmatprep.mubr.bf16.mxu0 0
        %1722 = vmatmul.mubr.bf16.gmra.mrb[0].mxu0 %v1673
        %v1723 = vpop.f32.mrb[0].mxu0
        %v1724 = vadd.f32 0.0, %v1723
        %v1725 = vpop.f32.mrb[0].mxu0
        %v1726 = vpop.f32.mrb[0].mxu0
        %v1727 = vadd.f32 0.0, %v1726
        %v1728 = vpop.f32.mrb[0].mxu0
        %1729 = vmatprep.mubr.bf16.mxu0 0
        %1730 = vmatmul.mubr.bf16.gmra.mrb[0].mxu0 %v1676
        %v1731 = vpop.f32.mrb[0].mxu0
        %v1732 = vadd.f32 0.0, %v1731
        %v1733 = vpop.f32.mrb[0].mxu0
        %v1734 = vpop.f32.mrb[0].mxu0
        %v1735 = vadd.f32 0.0, %v1734
        %v1736 = vpop.f32.mrb[0].mxu0
        %1737 = vmatprep.mubr.bf16.mxu0 0
        %1738 = vmatmul.mubr.bf16.gmra.mrb[0].mxu0 %v1679
        %v1739 = vpop.f32.mrb[0].mxu0
        %v1740 = vadd.f32 0.0, %v1739
        %v1741 = vpop.f32.mrb[0].mxu0
        %v1742 = vpop.f32.mrb[0].mxu0
        %v1743 = vadd.f32 0.0, %v1742
        %v1744 = vpop.f32.mrb[0].mxu0
        %1745 = vdwg.mxu0
        %v1746 = vlaneseq
        %v1747 = vshrl.u32 %v1746, 7
        %v1748 = vsub.s32 3, %v1747
        %v1749 = vrot.slane %v1260, %v1748
        %v1750 = vmul.f32 %v1716, %v1749
        %v1751 = vmul.f32 %v1719, %v1749
        %v1752 = vmul.f32 %v1724, %v1749
        %v1753 = vmul.f32 %v1727, %v1749
        %v1754 = vmul.f32 %v1732, %v1749
        %v1755 = vmul.f32 %v1735, %v1749
        %v1756 = vmul.f32 %v1740, %v1749
        %v1757 = vmul.f32 %v1743, %v1749
        %v1758 = vadd.f32 %v1632, %v1750
        %v1759 = vadd.f32 %v1633, %v1751
        %v1760 = vadd.f32 %v1634, %v1752
        %v1761 = vadd.f32 %v1635, %v1753
        %v1762 = vadd.f32 %v1636, %v1754
        %v1763 = vadd.f32 %v1637, %v1755
        %v1764 = vadd.f32 %v1638, %v1756
        %v1765 = vadd.f32 %v1639, %v1757
        %s1766 = scalar_lea.vmem %s7, 128
        %v1767 = vld [vmem:[%s1766] sm:$0xf]
        %v1768 = vld [vmem:[%s1766 + $0x4] sm:$0xf]
        %v1769 = vld [vmem:[%s1766 + $0x8] sm:$0xf]
        %v1770 = vld [vmem:[%s1766 + $0xc] sm:$0xf]
        %v1771 = vld [vmem:[%s1766 + $0x10] sm:$0xf]
        %v1772 = vld [vmem:[%s1766 + $0x14] sm:$0xf]
        %v1773 = vld [vmem:[%s1766 + $0x18] sm:$0xf]
        %v1774 = vld [vmem:[%s1766 + $0x1c] sm:$0xf]
        %v1783 = vunpack.c.l.b16 %v1767
        %v1784 = vunpack.c.l.b16 %v1768
        %v1785 = vunpack.c.l.b16 %v1769
        %v1786 = vunpack.c.l.b16 %v1770
        %v1787 = vunpack.c.l.b16 %v1771
        %v1788 = vunpack.c.l.b16 %v1772
        %v1789 = vunpack.c.l.b16 %v1773
        %v1790 = vunpack.c.l.b16 %v1774
        %v1791 = vpack.c.b16 %v1784, %v1783
        %v1792 = vpack.c.b16 %v1786, %v1785
        %v1793 = vpack.c.b16 %v1788, %v1787
        %v1794 = vpack.c.b16 %v1790, %v1789
        %v1796 = vsel %vm1290, %v1791, 0
        %v1799 = vsel %vm1290, %v1792, 0
        %v1802 = vsel %vm1290, %v1793, 0
        %v1805 = vsel %vm1290, %v1794, 0
        %1807 = vmatprep.subr.bf16.mxu0 0
        %1808 = vmatpush1.bf16.msra.mxu0 %v1256
        %1809 = vmatprep.subr.bf16.mxu0 0
        %1810 = vmatpush1.bf16.msra.mxu0 %v1257
        %1811 = vmatprep.subr.bf16.mxu0 0
        %1812 = vmatpush1.bf16.msra.mxu0 %v1258
        %1813 = vmatprep.subr.bf16.mxu0 0
        %1814 = vmatpush1.bf16.msra.mxu0 %v1259
        %1815 = vmatprep.subr.bf16.mxu0 0
        %1816 = vmatpush1.bf16.msra.mxu0 0
        %1817 = vmatprep.subr.bf16.mxu0 0
        %1818 = vmatpush1.bf16.msra.mxu0 0
        %1819 = vmatprep.subr.bf16.mxu0 0
        %1820 = vmatpush1.bf16.msra.mxu0 0
        %1821 = vmatprep.subr.bf16.mxu0 0
        %1822 = vmatpush1.bf16.msra.mxu0 0
        %1823 = vmatprep.subr.bf16.mxu0 0
        %1824 = vmatpush1.bf16.msra.mxu0 0
        %1825 = vmatprep.subr.bf16.mxu0 0
        %1826 = vmatpush1.bf16.msra.mxu0 0
        %1827 = vmatprep.subr.bf16.mxu0 0
        %1828 = vmatpush1.bf16.msra.mxu0 0
        %1829 = vmatprep.subr.bf16.mxu0 0
        %1830 = vmatpush1.bf16.msra.mxu0 0
        %1831 = vmatprep.subr.bf16.mxu0 0
        %1832 = vmatpush1.bf16.msra.mxu0 0
        %1833 = vmatprep.subr.bf16.mxu0 0
        %1834 = vmatpush1.bf16.msra.mxu0 0
        %1835 = vmatprep.subr.bf16.mxu0 0
        %1836 = vmatpush1.bf16.msra.mxu0 0
        %1837 = vmatprep.subr.bf16.mxu0 0
        %1838 = vmatpush1.bf16.msra.mxu0 0
        %1839 = vmatprep.mubr.bf16.mxu0 0
        %1840 = vmatmul.mubr.bf16.gmra.mrb[0].mxu0 %v1796
        %v1841 = vpop.f32.mrb[0].mxu0
        %v1842 = vadd.f32 0.0, %v1841
        %v1843 = vpop.f32.mrb[0].mxu0
        %v1844 = vpop.f32.mrb[0].mxu0
        %v1845 = vadd.f32 0.0, %v1844
        %v1846 = vpop.f32.mrb[0].mxu0
        %1847 = vmatprep.mubr.bf16.mxu0 0
        %1848 = vmatmul.mubr.bf16.gmra.mrb[0].mxu0 %v1799
        %v1849 = vpop.f32.mrb[0].mxu0
        %v1850 = vadd.f32 0.0, %v1849
        %v1851 = vpop.f32.mrb[0].mxu0
        %v1852 = vpop.f32.mrb[0].mxu0
        %v1853 = vadd.f32 0.0, %v1852
        %v1854 = vpop.f32.mrb[0].mxu0
        %1855 = vmatprep.mubr.bf16.mxu0 0
        %1856 = vmatmul.mubr.bf16.gmra.mrb[0].mxu0 %v1802
        %v1857 = vpop.f32.mrb[0].mxu0
        %v1858 = vadd.f32 0.0, %v1857
        %v1859 = vpop.f32.mrb[0].mxu0
        %v1860 = vpop.f32.mrb[0].mxu0
        %v1861 = vadd.f32 0.0, %v1860
        %v1862 = vpop.f32.mrb[0].mxu0
        %1863 = vmatprep.mubr.bf16.mxu0 0
        %1864 = vmatmul.mubr.bf16.gmra.mrb[0].mxu0 %v1805
        %v1865 = vpop.f32.mrb[0].mxu0
        %v1866 = vadd.f32 0.0, %v1865
        %v1867 = vpop.f32.mrb[0].mxu0
        %v1868 = vpop.f32.mrb[0].mxu0
        %v1869 = vadd.f32 0.0, %v1868
        %v1870 = vpop.f32.mrb[0].mxu0
        %1871 = vdwg.mxu0
        %v1872 = vlaneseq
        %v1873 = vshrl.u32 %v1872, 7
        %v1874 = vsub.s32 4, %v1873
        %v1875 = vrot.slane %v1260, %v1874
        %v1876 = vmul.f32 %v1842, %v1875
        %v1877 = vmul.f32 %v1845, %v1875
        %v1878 = vmul.f32 %v1850, %v1875
        %v1879 = vmul.f32 %v1853, %v1875
        %v1880 = vmul.f32 %v1858, %v1875
        %v1881 = vmul.f32 %v1861, %v1875
        %v1882 = vmul.f32 %v1866, %v1875
        %v1883 = vmul.f32 %v1869, %v1875
        %v1884 = vadd.f32 %v1758, %v1876
        %v1885 = vadd.f32 %v1759, %v1877
        %v1886 = vadd.f32 %v1760, %v1878
        %v1887 = vadd.f32 %v1761, %v1879
        %v1888 = vadd.f32 %v1762, %v1880
        %v1889 = vadd.f32 %v1763, %v1881
        %v1890 = vadd.f32 %v1764, %v1882
        %v1891 = vadd.f32 %v1765, %v1883
        %s1892 = scalar_lea.vmem %s7, 160
        %v1893 = vld [vmem:[%s1892] sm:$0xf]
        %v1894 = vld [vmem:[%s1892 + $0x4] sm:$0xf]
        %v1895 = vld [vmem:[%s1892 + $0x8] sm:$0xf]
        %v1896 = vld [vmem:[%s1892 + $0xc] sm:$0xf]
        %v1897 = vld [vmem:[%s1892 + $0x10] sm:$0xf]
        %v1898 = vld [vmem:[%s1892 + $0x14] sm:$0xf]
        %v1899 = vld [vmem:[%s1892 + $0x18] sm:$0xf]
        %v1900 = vld [vmem:[%s1892 + $0x1c] sm:$0xf]
        %v1909 = vunpack.c.l.b16 %v1893
        %v1910 = vunpack.c.l.b16 %v1894
        %v1911 = vunpack.c.l.b16 %v1895
        %v1912 = vunpack.c.l.b16 %v1896
        %v1913 = vunpack.c.l.b16 %v1897
        %v1914 = vunpack.c.l.b16 %v1898
        %v1915 = vunpack.c.l.b16 %v1899
        %v1916 = vunpack.c.l.b16 %v1900
        %v1917 = vpack.c.b16 %v1910, %v1909
        %v1918 = vpack.c.b16 %v1912, %v1911
        %v1919 = vpack.c.b16 %v1914, %v1913
        %v1920 = vpack.c.b16 %v1916, %v1915
        %v1922 = vsel %vm1290, %v1917, 0
        %v1925 = vsel %vm1290, %v1918, 0
        %v1928 = vsel %vm1290, %v1919, 0
        %v1931 = vsel %vm1290, %v1920, 0
        %1933 = vmatprep.subr.bf16.mxu0 0
        %1934 = vmatpush1.bf16.msra.mxu0 %v1256
        %1935 = vmatprep.subr.bf16.mxu0 0
        %1936 = vmatpush1.bf16.msra.mxu0 %v1257
        %1937 = vmatprep.subr.bf16.mxu0 0
        %1938 = vmatpush1.bf16.msra.mxu0 %v1258
        %1939 = vmatprep.subr.bf16.mxu0 0
        %1940 = vmatpush1.bf16.msra.mxu0 %v1259
        %1941 = vmatprep.subr.bf16.mxu0 0
        %1942 = vmatpush1.bf16.msra.mxu0 0
        %1943 = vmatprep.subr.bf16.mxu0 0
        %1944 = vmatpush1.bf16.msra.mxu0 0
        %1945 = vmatprep.subr.bf16.mxu0 0
        %1946 = vmatpush1.bf16.msra.mxu0 0
        %1947 = vmatprep.subr.bf16.mxu0 0
        %1948 = vmatpush1.bf16.msra.mxu0 0
        %1949 = vmatprep.subr.bf16.mxu0 0
        %1950 = vmatpush1.bf16.msra.mxu0 0
        %1951 = vmatprep.subr.bf16.mxu0 0
        %1952 = vmatpush1.bf16.msra.mxu0 0
        %1953 = vmatprep.subr.bf16.mxu0 0
        %1954 = vmatpush1.bf16.msra.mxu0 0
        %1955 = vmatprep.subr.bf16.mxu0 0
        %1956 = vmatpush1.bf16.msra.mxu0 0
        %1957 = vmatprep.subr.bf16.mxu0 0
        %1958 = vmatpush1.bf16.msra.mxu0 0
        %1959 = vmatprep.subr.bf16.mxu0 0
        %1960 = vmatpush1.bf16.msra.mxu0 0
        %1961 = vmatprep.subr.bf16.mxu0 0
        %1962 = vmatpush1.bf16.msra.mxu0 0
        %1963 = vmatprep.subr.bf16.mxu0 0
        %1964 = vmatpush1.bf16.msra.mxu0 0
        %1965 = vmatprep.mubr.bf16.mxu0 0
        %1966 = vmatmul.mubr.bf16.gmra.mrb[0].mxu0 %v1922
        %v1967 = vpop.f32.mrb[0].mxu0
        %v1968 = vadd.f32 0.0, %v1967
        %v1969 = vpop.f32.mrb[0].mxu0
        %v1970 = vpop.f32.mrb[0].mxu0
        %v1971 = vadd.f32 0.0, %v1970
        %v1972 = vpop.f32.mrb[0].mxu0
        %1973 = vmatprep.mubr.bf16.mxu0 0
        %1974 = vmatmul.mubr.bf16.gmra.mrb[0].mxu0 %v1925
        %v1975 = vpop.f32.mrb[0].mxu0
        %v1976 = vadd.f32 0.0, %v1975
        %v1977 = vpop.f32.mrb[0].mxu0
        %v1978 = vpop.f32.mrb[0].mxu0
        %v1979 = vadd.f32 0.0, %v1978
        %v1980 = vpop.f32.mrb[0].mxu0
        %1981 = vmatprep.mubr.bf16.mxu0 0
        %1982 = vmatmul.mubr.bf16.gmra.mrb[0].mxu0 %v1928
        %v1983 = vpop.f32.mrb[0].mxu0
        %v1984 = vadd.f32 0.0, %v1983
        %v1985 = vpop.f32.mrb[0].mxu0
        %v1986 = vpop.f32.mrb[0].mxu0
        %v1987 = vadd.f32 0.0, %v1986
        %v1988 = vpop.f32.mrb[0].mxu0
        %1989 = vmatprep.mubr.bf16.mxu0 0
        %1990 = vmatmul.mubr.bf16.gmra.mrb[0].mxu0 %v1931
        %v1991 = vpop.f32.mrb[0].mxu0
        %v1992 = vadd.f32 0.0, %v1991
        %v1993 = vpop.f32.mrb[0].mxu0
        %v1994 = vpop.f32.mrb[0].mxu0
        %v1995 = vadd.f32 0.0, %v1994
        %v1996 = vpop.f32.mrb[0].mxu0
        %1997 = vdwg.mxu0
        %v1998 = vlaneseq
        %v1999 = vshrl.u32 %v1998, 7
        %v2000 = vsub.s32 5, %v1999
        %v2001 = vrot.slane %v1260, %v2000
        %v2002 = vmul.f32 %v1968, %v2001
        %v2003 = vmul.f32 %v1971, %v2001
        %v2004 = vmul.f32 %v1976, %v2001
        %v2005 = vmul.f32 %v1979, %v2001
        %v2006 = vmul.f32 %v1984, %v2001
        %v2007 = vmul.f32 %v1987, %v2001
        %v2008 = vmul.f32 %v1992, %v2001
        %v2009 = vmul.f32 %v1995, %v2001
        %v2010 = vadd.f32 %v1884, %v2002
        %v2011 = vadd.f32 %v1885, %v2003
        %v2012 = vadd.f32 %v1886, %v2004
        %v2013 = vadd.f32 %v1887, %v2005
        %v2014 = vadd.f32 %v1888, %v2006
        %v2015 = vadd.f32 %v1889, %v2007
        %v2016 = vadd.f32 %v1890, %v2008
        %v2017 = vadd.f32 %v1891, %v2009
        %s2018 = scalar_lea.vmem %s7, 192
        %v2019 = vld [vmem:[%s2018] sm:$0xf]
        %v2020 = vld [vmem:[%s2018 + $0x4] sm:$0xf]
        %v2021 = vld [vmem:[%s2018 + $0x8] sm:$0xf]
        %v2022 = vld [vmem:[%s2018 + $0xc] sm:$0xf]
        %v2023 = vld [vmem:[%s2018 + $0x10] sm:$0xf]
        %v2024 = vld [vmem:[%s2018 + $0x14] sm:$0xf]
        %v2025 = vld [vmem:[%s2018 + $0x18] sm:$0xf]
        %v2026 = vld [vmem:[%s2018 + $0x1c] sm:$0xf]
        %v2035 = vunpack.c.l.b16 %v2019
        %v2036 = vunpack.c.l.b16 %v2020
        %v2037 = vunpack.c.l.b16 %v2021
        %v2038 = vunpack.c.l.b16 %v2022
        %v2039 = vunpack.c.l.b16 %v2023
        %v2040 = vunpack.c.l.b16 %v2024
        %v2041 = vunpack.c.l.b16 %v2025
        %v2042 = vunpack.c.l.b16 %v2026
        %v2043 = vpack.c.b16 %v2036, %v2035
        %v2044 = vpack.c.b16 %v2038, %v2037
        %v2045 = vpack.c.b16 %v2040, %v2039
        %v2046 = vpack.c.b16 %v2042, %v2041
        %v2048 = vsel %vm1290, %v2043, 0
        %v2051 = vsel %vm1290, %v2044, 0
        %v2054 = vsel %vm1290, %v2045, 0
        %v2057 = vsel %vm1290, %v2046, 0
        %2059 = vmatprep.subr.bf16.mxu0 0
        %2060 = vmatpush1.bf16.msra.mxu0 %v1256
        %2061 = vmatprep.subr.bf16.mxu0 0
        %2062 = vmatpush1.bf16.msra.mxu0 %v1257
        %2063 = vmatprep.subr.bf16.mxu0 0
        %2064 = vmatpush1.bf16.msra.mxu0 %v1258
        %2065 = vmatprep.subr.bf16.mxu0 0
        %2066 = vmatpush1.bf16.msra.mxu0 %v1259
        %2067 = vmatprep.subr.bf16.mxu0 0
        %2068 = vmatpush1.bf16.msra.mxu0 0
        %2069 = vmatprep.subr.bf16.mxu0 0
        %2070 = vmatpush1.bf16.msra.mxu0 0
        %2071 = vmatprep.subr.bf16.mxu0 0
        %2072 = vmatpush1.bf16.msra.mxu0 0
        %2073 = vmatprep.subr.bf16.mxu0 0
        %2074 = vmatpush1.bf16.msra.mxu0 0
        %2075 = vmatprep.subr.bf16.mxu0 0
        %2076 = vmatpush1.bf16.msra.mxu0 0
        %2077 = vmatprep.subr.bf16.mxu0 0
        %2078 = vmatpush1.bf16.msra.mxu0 0
        %2079 = vmatprep.subr.bf16.mxu0 0
        %2080 = vmatpush1.bf16.msra.mxu0 0
        %2081 = vmatprep.subr.bf16.mxu0 0
        %2082 = vmatpush1.bf16.msra.mxu0 0
        %2083 = vmatprep.subr.bf16.mxu0 0
        %2084 = vmatpush1.bf16.msra.mxu0 0
        %2085 = vmatprep.subr.bf16.mxu0 0
        %2086 = vmatpush1.bf16.msra.mxu0 0
        %2087 = vmatprep.subr.bf16.mxu0 0
        %2088 = vmatpush1.bf16.msra.mxu0 0
        %2089 = vmatprep.subr.bf16.mxu0 0
        %2090 = vmatpush1.bf16.msra.mxu0 0
        %2091 = vmatprep.mubr.bf16.mxu0 0
        %2092 = vmatmul.mubr.bf16.gmra.mrb[0].mxu0 %v2048
        %v2093 = vpop.f32.mrb[0].mxu0
        %v2094 = vadd.f32 0.0, %v2093
        %v2095 = vpop.f32.mrb[0].mxu0
        %v2096 = vpop.f32.mrb[0].mxu0
        %v2097 = vadd.f32 0.0, %v2096
        %v2098 = vpop.f32.mrb[0].mxu0
        %2099 = vmatprep.mubr.bf16.mxu0 0
        %2100 = vmatmul.mubr.bf16.gmra.mrb[0].mxu0 %v2051
        %v2101 = vpop.f32.mrb[0].mxu0
        %v2102 = vadd.f32 0.0, %v2101
        %v2103 = vpop.f32.mrb[0].mxu0
        %v2104 = vpop.f32.mrb[0].mxu0
        %v2105 = vadd.f32 0.0, %v2104
        %v2106 = vpop.f32.mrb[0].mxu0
        %2107 = vmatprep.mubr.bf16.mxu0 0
        %2108 = vmatmul.mubr.bf16.gmra.mrb[0].mxu0 %v2054
        %v2109 = vpop.f32.mrb[0].mxu0
        %v2110 = vadd.f32 0.0, %v2109
        %v2111 = vpop.f32.mrb[0].mxu0
        %v2112 = vpop.f32.mrb[0].mxu0
        %v2113 = vadd.f32 0.0, %v2112
        %v2114 = vpop.f32.mrb[0].mxu0
        %2115 = vmatprep.mubr.bf16.mxu0 0
        %2116 = vmatmul.mubr.bf16.gmra.mrb[0].mxu0 %v2057
        %v2117 = vpop.f32.mrb[0].mxu0
        %v2118 = vadd.f32 0.0, %v2117
        %v2119 = vpop.f32.mrb[0].mxu0
        %v2120 = vpop.f32.mrb[0].mxu0
        %v2121 = vadd.f32 0.0, %v2120
        %v2122 = vpop.f32.mrb[0].mxu0
        %2123 = vdwg.mxu0
        %v2124 = vlaneseq
        %v2125 = vshrl.u32 %v2124, 7
        %v2126 = vsub.s32 6, %v2125
        %v2127 = vrot.slane %v1260, %v2126
        %v2128 = vmul.f32 %v2094, %v2127
        %v2129 = vmul.f32 %v2097, %v2127
        %v2130 = vmul.f32 %v2102, %v2127
        %v2131 = vmul.f32 %v2105, %v2127
        %v2132 = vmul.f32 %v2110, %v2127
        %v2133 = vmul.f32 %v2113, %v2127
        %v2134 = vmul.f32 %v2118, %v2127
        %v2135 = vmul.f32 %v2121, %v2127
        %v2136 = vadd.f32 %v2010, %v2128
        %v2137 = vadd.f32 %v2011, %v2129
        %v2138 = vadd.f32 %v2012, %v2130
        %v2139 = vadd.f32 %v2013, %v2131
        %v2140 = vadd.f32 %v2014, %v2132
        %v2141 = vadd.f32 %v2015, %v2133
        %v2142 = vadd.f32 %v2016, %v2134
        %v2143 = vadd.f32 %v2017, %v2135
        %s2144 = scalar_lea.vmem %s7, 224
        %v2145 = vld [vmem:[%s2144] sm:$0xf]
        %v2146 = vld [vmem:[%s2144 + $0x4] sm:$0xf]
        %v2147 = vld [vmem:[%s2144 + $0x8] sm:$0xf]
        %v2148 = vld [vmem:[%s2144 + $0xc] sm:$0xf]
        %v2149 = vld [vmem:[%s2144 + $0x10] sm:$0xf]
        %v2150 = vld [vmem:[%s2144 + $0x14] sm:$0xf]
        %v2151 = vld [vmem:[%s2144 + $0x18] sm:$0xf]
        %v2152 = vld [vmem:[%s2144 + $0x1c] sm:$0xf]
        %v2161 = vunpack.c.l.b16 %v2145
        %v2162 = vunpack.c.l.b16 %v2146
        %v2163 = vunpack.c.l.b16 %v2147
        %v2164 = vunpack.c.l.b16 %v2148
        %v2165 = vunpack.c.l.b16 %v2149
        %v2166 = vunpack.c.l.b16 %v2150
        %v2167 = vunpack.c.l.b16 %v2151
        %v2168 = vunpack.c.l.b16 %v2152
        %v2169 = vpack.c.b16 %v2162, %v2161
        %v2170 = vpack.c.b16 %v2164, %v2163
        %v2171 = vpack.c.b16 %v2166, %v2165
        %v2172 = vpack.c.b16 %v2168, %v2167
        %v2174 = vsel %vm1290, %v2169, 0
        %v2177 = vsel %vm1290, %v2170, 0
        %v2180 = vsel %vm1290, %v2171, 0
        %v2183 = vsel %vm1290, %v2172, 0
        %2185 = vmatprep.subr.bf16.mxu0 0
        %2186 = vmatpush1.bf16.msra.mxu0 %v1256
        %2187 = vmatprep.subr.bf16.mxu0 0
        %2188 = vmatpush1.bf16.msra.mxu0 %v1257
        %2189 = vmatprep.subr.bf16.mxu0 0
        %2190 = vmatpush1.bf16.msra.mxu0 %v1258
        %2191 = vmatprep.subr.bf16.mxu0 0
        %2192 = vmatpush1.bf16.msra.mxu0 %v1259
        %2193 = vmatprep.subr.bf16.mxu0 0
        %2194 = vmatpush1.bf16.msra.mxu0 0
        %2195 = vmatprep.subr.bf16.mxu0 0
        %2196 = vmatpush1.bf16.msra.mxu0 0
        %2197 = vmatprep.subr.bf16.mxu0 0
        %2198 = vmatpush1.bf16.msra.mxu0 0
        %2199 = vmatprep.subr.bf16.mxu0 0
        %2200 = vmatpush1.bf16.msra.mxu0 0
        %2201 = vmatprep.subr.bf16.mxu0 0
        %2202 = vmatpush1.bf16.msra.mxu0 0
        %2203 = vmatprep.subr.bf16.mxu0 0
        %2204 = vmatpush1.bf16.msra.mxu0 0
        %2205 = vmatprep.subr.bf16.mxu0 0
        %2206 = vmatpush1.bf16.msra.mxu0 0
        %2207 = vmatprep.subr.bf16.mxu0 0
        %2208 = vmatpush1.bf16.msra.mxu0 0
        %2209 = vmatprep.subr.bf16.mxu0 0
        %2210 = vmatpush1.bf16.msra.mxu0 0
        %2211 = vmatprep.subr.bf16.mxu0 0
        %2212 = vmatpush1.bf16.msra.mxu0 0
        %2213 = vmatprep.subr.bf16.mxu0 0
        %2214 = vmatpush1.bf16.msra.mxu0 0
        %2215 = vmatprep.subr.bf16.mxu0 0
        %2216 = vmatpush1.bf16.msra.mxu0 0
        %2217 = vmatprep.mubr.bf16.mxu0 0
        %2218 = vmatmul.mubr.bf16.gmra.mrb[0].mxu0 %v2174
        %v2219 = vpop.f32.mrb[0].mxu0
        %v2220 = vadd.f32 0.0, %v2219
        %v2221 = vpop.f32.mrb[0].mxu0
        %v2222 = vpop.f32.mrb[0].mxu0
        %v2223 = vadd.f32 0.0, %v2222
        %v2224 = vpop.f32.mrb[0].mxu0
        %2225 = vmatprep.mubr.bf16.mxu0 0
        %2226 = vmatmul.mubr.bf16.gmra.mrb[0].mxu0 %v2177
        %v2227 = vpop.f32.mrb[0].mxu0
        %v2228 = vadd.f32 0.0, %v2227
        %v2229 = vpop.f32.mrb[0].mxu0
        %v2230 = vpop.f32.mrb[0].mxu0
        %v2231 = vadd.f32 0.0, %v2230
        %v2232 = vpop.f32.mrb[0].mxu0
        %2233 = vmatprep.mubr.bf16.mxu0 0
        %2234 = vmatmul.mubr.bf16.gmra.mrb[0].mxu0 %v2180
        %v2235 = vpop.f32.mrb[0].mxu0
        %v2236 = vadd.f32 0.0, %v2235
        %v2237 = vpop.f32.mrb[0].mxu0
        %v2238 = vpop.f32.mrb[0].mxu0
        %v2239 = vadd.f32 0.0, %v2238
        %v2240 = vpop.f32.mrb[0].mxu0
        %2241 = vmatprep.mubr.bf16.mxu0 0
        %2242 = vmatmul.mubr.bf16.gmra.mrb[0].mxu0 %v2183
        %v2243 = vpop.f32.mrb[0].mxu0
        %v2244 = vadd.f32 0.0, %v2243
        %v2245 = vpop.f32.mrb[0].mxu0
        %v2246 = vpop.f32.mrb[0].mxu0
        %v2247 = vadd.f32 0.0, %v2246
        %v2248 = vpop.f32.mrb[0].mxu0
        %2249 = vdwg.mxu0
        %v2250 = vlaneseq
        %v2251 = vshrl.u32 %v2250, 7
        %v2252 = vsub.s32 7, %v2251
        %v2253 = vrot.slane %v1260, %v2252
        %v2254 = vmul.f32 %v2220, %v2253
        %v2255 = vmul.f32 %v2223, %v2253
        %v2256 = vmul.f32 %v2228, %v2253
        %v2257 = vmul.f32 %v2231, %v2253
        %v2258 = vmul.f32 %v2236, %v2253
        %v2259 = vmul.f32 %v2239, %v2253
        %v2260 = vmul.f32 %v2244, %v2253
        %v2261 = vmul.f32 %v2247, %v2253
        %v2262 = vadd.f32 %v2136, %v2254
        %v2263 = vadd.f32 %v2137, %v2255
        %v2264 = vadd.f32 %v2138, %v2256
        %v2265 = vadd.f32 %v2139, %v2257
        %v2266 = vadd.f32 %v2140, %v2258
        %v2267 = vadd.f32 %v2141, %v2259
        %v2268 = vadd.f32 %v2142, %v2260
        %v2269 = vadd.f32 %v2143, %v2261
        %s2270 = scalar_lea.vmem %s7, 256
        %v2271 = vld [vmem:[%s2270] sm:$0xf]
        %v2272 = vld [vmem:[%s2270 + $0x4] sm:$0xf]
        %v2273 = vld [vmem:[%s2270 + $0x8] sm:$0xf]
        %v2274 = vld [vmem:[%s2270 + $0xc] sm:$0xf]
        %v2275 = vld [vmem:[%s2270 + $0x10] sm:$0xf]
        %v2276 = vld [vmem:[%s2270 + $0x14] sm:$0xf]
        %v2277 = vld [vmem:[%s2270 + $0x18] sm:$0xf]
        %v2278 = vld [vmem:[%s2270 + $0x1c] sm:$0xf]
        %v2287 = vunpack.c.l.b16 %v2271
        %v2288 = vunpack.c.l.b16 %v2272
        %v2289 = vunpack.c.l.b16 %v2273
        %v2290 = vunpack.c.l.b16 %v2274
        %v2291 = vunpack.c.l.b16 %v2275
        %v2292 = vunpack.c.l.b16 %v2276
        %v2293 = vunpack.c.l.b16 %v2277
        %v2294 = vunpack.c.l.b16 %v2278
        %v2295 = vpack.c.b16 %v2288, %v2287
        %v2296 = vpack.c.b16 %v2290, %v2289
        %v2297 = vpack.c.b16 %v2292, %v2291
        %v2298 = vpack.c.b16 %v2294, %v2293
        %v2300 = vsel %vm1290, %v2295, 0
        %v2303 = vsel %vm1290, %v2296, 0
        %v2306 = vsel %vm1290, %v2297, 0
        %v2309 = vsel %vm1290, %v2298, 0
        %2311 = vmatprep.subr.bf16.mxu0 0
        %2312 = vmatpush1.bf16.msra.mxu0 %v1256
        %2313 = vmatprep.subr.bf16.mxu0 0
        %2314 = vmatpush1.bf16.msra.mxu0 %v1257
        %2315 = vmatprep.subr.bf16.mxu0 0
        %2316 = vmatpush1.bf16.msra.mxu0 %v1258
        %2317 = vmatprep.subr.bf16.mxu0 0
        %2318 = vmatpush1.bf16.msra.mxu0 %v1259
        %2319 = vmatprep.subr.bf16.mxu0 0
        %2320 = vmatpush1.bf16.msra.mxu0 0
        %2321 = vmatprep.subr.bf16.mxu0 0
        %2322 = vmatpush1.bf16.msra.mxu0 0
        %2323 = vmatprep.subr.bf16.mxu0 0
        %2324 = vmatpush1.bf16.msra.mxu0 0
        %2325 = vmatprep.subr.bf16.mxu0 0
        %2326 = vmatpush1.bf16.msra.mxu0 0
        %2327 = vmatprep.subr.bf16.mxu0 0
        %2328 = vmatpush1.bf16.msra.mxu0 0
        %2329 = vmatprep.subr.bf16.mxu0 0
        %2330 = vmatpush1.bf16.msra.mxu0 0
        %2331 = vmatprep.subr.bf16.mxu0 0
        %2332 = vmatpush1.bf16.msra.mxu0 0
        %2333 = vmatprep.subr.bf16.mxu0 0
        %2334 = vmatpush1.bf16.msra.mxu0 0
        %2335 = vmatprep.subr.bf16.mxu0 0
        %2336 = vmatpush1.bf16.msra.mxu0 0
        %2337 = vmatprep.subr.bf16.mxu0 0
        %2338 = vmatpush1.bf16.msra.mxu0 0
        %2339 = vmatprep.subr.bf16.mxu0 0
        %2340 = vmatpush1.bf16.msra.mxu0 0
        %2341 = vmatprep.subr.bf16.mxu0 0
        %2342 = vmatpush1.bf16.msra.mxu0 0
        %2343 = vmatprep.mubr.bf16.mxu0 0
        %2344 = vmatmul.mubr.bf16.gmra.mrb[0].mxu0 %v2300
        %v2345 = vpop.f32.mrb[0].mxu0
        %v2346 = vadd.f32 0.0, %v2345
        %v2347 = vpop.f32.mrb[0].mxu0
        %v2348 = vpop.f32.mrb[0].mxu0
        %v2349 = vadd.f32 0.0, %v2348
        %v2350 = vpop.f32.mrb[0].mxu0
        %2351 = vmatprep.mubr.bf16.mxu0 0
        %2352 = vmatmul.mubr.bf16.gmra.mrb[0].mxu0 %v2303
        %v2353 = vpop.f32.mrb[0].mxu0
        %v2354 = vadd.f32 0.0, %v2353
        %v2355 = vpop.f32.mrb[0].mxu0
        %v2356 = vpop.f32.mrb[0].mxu0
        %v2357 = vadd.f32 0.0, %v2356
        %v2358 = vpop.f32.mrb[0].mxu0
        %2359 = vmatprep.mubr.bf16.mxu0 0
        %2360 = vmatmul.mubr.bf16.gmra.mrb[0].mxu0 %v2306
        %v2361 = vpop.f32.mrb[0].mxu0
        %v2362 = vadd.f32 0.0, %v2361
        %v2363 = vpop.f32.mrb[0].mxu0
        %v2364 = vpop.f32.mrb[0].mxu0
        %v2365 = vadd.f32 0.0, %v2364
        %v2366 = vpop.f32.mrb[0].mxu0
        %2367 = vmatprep.mubr.bf16.mxu0 0
        %2368 = vmatmul.mubr.bf16.gmra.mrb[0].mxu0 %v2309
        %v2369 = vpop.f32.mrb[0].mxu0
        %v2370 = vadd.f32 0.0, %v2369
        %v2371 = vpop.f32.mrb[0].mxu0
        %v2372 = vpop.f32.mrb[0].mxu0
        %v2373 = vadd.f32 0.0, %v2372
        %v2374 = vpop.f32.mrb[0].mxu0
        %2375 = vdwg.mxu0
        %v2376 = vlaneseq
        %v2377 = vshrl.u32 %v2376, 7
        %v2378 = vsub.s32 0, %v2377
        %v2379 = vrot.slane %v1261, %v2378
        %v2380 = vmul.f32 %v2346, %v2379
        %v2381 = vmul.f32 %v2349, %v2379
        %v2382 = vmul.f32 %v2354, %v2379
        %v2383 = vmul.f32 %v2357, %v2379
        %v2384 = vmul.f32 %v2362, %v2379
        %v2385 = vmul.f32 %v2365, %v2379
        %v2386 = vmul.f32 %v2370, %v2379
        %v2387 = vmul.f32 %v2373, %v2379
        %v2388 = vadd.f32 %v2262, %v2380
        %v2389 = vadd.f32 %v2263, %v2381
        %v2390 = vadd.f32 %v2264, %v2382
        %v2391 = vadd.f32 %v2265, %v2383
        %v2392 = vadd.f32 %v2266, %v2384
        %v2393 = vadd.f32 %v2267, %v2385
        %v2394 = vadd.f32 %v2268, %v2386
        %v2395 = vadd.f32 %v2269, %v2387
        %v2396 = vld [vmem:[%s11] sm:$0x1]
        %v2398 = vlaneseq
        %v2399 = vshrl.u32 %v2398, 7
        %v2400 = vsub.s32 0, %v2399
        %v2401 = vrot.slane %v2396, %v2400
        %v2403 = vadd.f32 %v2388, %v2401
        %v2404 = vadd.f32 %v2389, %v2401
        %v2405 = vadd.f32 %v2390, %v2401
        %v2406 = vadd.f32 %v2391, %v2401
        %v2407 = vadd.f32 %v2392, %v2401
        %v2408 = vadd.f32 %v2393, %v2401
        %v2409 = vadd.f32 %v2394, %v2401
        %v2410 = vadd.f32 %v2395, %v2401
        %v2411 = vmax.f32 %v2403, 0.0
        %v2412 = vmax.f32 %v2404, 0.0
        %v2413 = vmax.f32 %v2405, 0.0
        %v2414 = vmax.f32 %v2406, 0.0
        %v2415 = vmax.f32 %v2407, 0.0
        %v2416 = vmax.f32 %v2408, 0.0
        %v2417 = vmax.f32 %v2409, 0.0
        %v2418 = vmax.f32 %v2410, 0.0
        %vm2419 = vcmask 130048
        %v2420 = vsel %vm2419, %v2411, 0.0
        %v2421 = vsel %vm2419, %v2412, 0.0
        %v2422 = vadd.f32 %v2420, %v2421
        %v2423 = vsel %vm2419, %v2413, 0.0
        %v2424 = vadd.f32 %v2422, %v2423
        %v2425 = vsel %vm2419, %v2414, 0.0
        %v2426 = vadd.f32 %v2424, %v2425
        %v2427 = vsel %vm2419, %v2415, 0.0
        %v2428 = vadd.f32 %v2426, %v2427
        %v2429 = vsel %vm2419, %v2416, 0.0
        %v2430 = vadd.f32 %v2428, %v2429
        %v2431 = vsel %vm2419, %v2417, 0.0
        %v2432 = vadd.f32 %v2430, %v2431
        %v2433 = vsel %vm2419, %v2418, 0.0
        %v2434 = vadd.f32 %v2432, %v2433
        %v2435 = vrot.slane %v2434, 4
        %v2436 = vadd.f32 %v2434, %v2435
        %v2437 = vrot.slane %v2436, 2
        %v2438 = vadd.f32 %v2436, %v2437
        %v2439 = vrot.slane %v2438, 1
        %v2440 = vadd.f32 %v2438, %v2439
        %v2441 = vmul.f32 %v2440, 0.015625
        %v2442 = vpack.c.bf16 %v2441, %v2441
        %v2443 = vld [vmem:[%s13] sm:$0xf]
        %v2444 = vld [vmem:[%s13 + $0x4] sm:$0xf]
        %v2445 = vld [vmem:[%s15] sm:$0x1]
        %v2448 = vunpack.c.l.b16 %v2443
        %v2449 = vunpack.c.l.b16 %v2444
        %v2450 = vpack.c.b16 %v2449, %v2448
        %v2453 = vsel %vm2419, %v2442, 0
        %2455 = vmatprep.subr.bf16.mxu0 0
        %2456 = vmatpush1.bf16.msra.mxu0 %v2450
        %2457 = vmatprep.subr.bf16.mxu0 0
        %2458 = vmatpush1.bf16.msra.mxu0 0
        %2459 = vmatprep.subr.bf16.mxu0 0
        %2460 = vmatpush1.bf16.msra.mxu0 0
        %2461 = vmatprep.subr.bf16.mxu0 0
        %2462 = vmatpush1.bf16.msra.mxu0 0
        %2463 = vmatprep.subr.bf16.mxu0 0
        %2464 = vmatpush1.bf16.msra.mxu0 0
        %2465 = vmatprep.subr.bf16.mxu0 0
        %2466 = vmatpush1.bf16.msra.mxu0 0
        %2467 = vmatprep.subr.bf16.mxu0 0
        %2468 = vmatpush1.bf16.msra.mxu0 0
        %2469 = vmatprep.subr.bf16.mxu0 0
        %2470 = vmatpush1.bf16.msra.mxu0 0
        %2471 = vmatprep.subr.bf16.mxu0 0
        %2472 = vmatpush1.bf16.msra.mxu0 0
        %2473 = vmatprep.subr.bf16.mxu0 0
        %2474 = vmatpush1.bf16.msra.mxu0 0
        %2475 = vmatprep.subr.bf16.mxu0 0
        %2476 = vmatpush1.bf16.msra.mxu0 0
        %2477 = vmatprep.subr.bf16.mxu0 0
        %2478 = vmatpush1.bf16.msra.mxu0 0
        %2479 = vmatprep.subr.bf16.mxu0 0
        %2480 = vmatpush1.bf16.msra.mxu0 0
        %2481 = vmatprep.subr.bf16.mxu0 0
        %2482 = vmatpush1.bf16.msra.mxu0 0
        %2483 = vmatprep.subr.bf16.mxu0 0
        %2484 = vmatpush1.bf16.msra.mxu0 0
        %2485 = vmatprep.subr.bf16.mxu0 0
        %2486 = vmatpush1.bf16.msra.mxu0 0
        %2487 = vmatprep.mubr.bf16.mxu0 0
        %2488 = vmatmul.mubr.bf16.gmra.mrb[0].mxu0 %v2453
        %v2489 = vpop.f32.mrb[0].mxu0
        %v2490 = vadd.f32 %v2445, %v2489
        %v2491 = vpop.f32.mrb[0].mxu0
        %v2492 = vpop.f32.mrb[0].mxu0
        %v2493 = vpop.f32.mrb[0].mxu0
        %2494 = vdwg.mxu0
        %v2495 = vmax.f32 %v2490, 0.0
        %v2496 = vpack.c.bf16 %v2495, %v2495
        %v2497 = vld [vmem:[%s17] sm:$0xf]
        %v2498 = vld [vmem:[%s19] sm:$0x1]
        %vm2499 = vcmask 64512
        %v2501 = vsel %vm2499, %v2496, 0
        %vm2503 = vcmask 1043456
        %v2505 = vsel %vm2503, %v2497, 0
        %2507 = vmatprep.subr.bf16.mxu0 0
        %2508 = vmatpush1.bf16.msra.mxu0 %v2505
        %2509 = vmatprep.subr.bf16.mxu0 0
        %2510 = vmatpush1.bf16.msra.mxu0 0
        %2511 = vmatprep.subr.bf16.mxu0 0
        %2512 = vmatpush1.bf16.msra.mxu0 0
        %2513 = vmatprep.subr.bf16.mxu0 0
        %2514 = vmatpush1.bf16.msra.mxu0 0
        %2515 = vmatprep.subr.bf16.mxu0 0
        %2516 = vmatpush1.bf16.msra.mxu0 0
        %2517 = vmatprep.subr.bf16.mxu0 0
        %2518 = vmatpush1.bf16.msra.mxu0 0
        %2519 = vmatprep.subr.bf16.mxu0 0
        %2520 = vmatpush1.bf16.msra.mxu0 0
        %2521 = vmatprep.subr.bf16.mxu0 0
        %2522 = vmatpush1.bf16.msra.mxu0 0
        %2523 = vmatprep.subr.bf16.mxu0 0
        %2524 = vmatpush1.bf16.msra.mxu0 0
        %2525 = vmatprep.subr.bf16.mxu0 0
        %2526 = vmatpush1.bf16.msra.mxu0 0
        %2527 = vmatprep.subr.bf16.mxu0 0
        %2528 = vmatpush1.bf16.msra.mxu0 0
        %2529 = vmatprep.subr.bf16.mxu0 0
        %2530 = vmatpush1.bf16.msra.mxu0 0
        %2531 = vmatprep.subr.bf16.mxu0 0
        %2532 = vmatpush1.bf16.msra.mxu0 0
        %2533 = vmatprep.subr.bf16.mxu0 0
        %2534 = vmatpush1.bf16.msra.mxu0 0
        %2535 = vmatprep.subr.bf16.mxu0 0
        %2536 = vmatpush1.bf16.msra.mxu0 0
        %2537 = vmatprep.subr.bf16.mxu0 0
        %2538 = vmatpush1.bf16.msra.mxu0 0
        %2539 = vmatprep.mubr.bf16.mxu0 0
        %2540 = vmatmul.mubr.bf16.gmra.mrb[0].mxu0 %v2501
        %v2541 = vpop.f32.mrb[0].mxu0
        %v2542 = vadd.f32 %v2498, %v2541
        %v2543 = vpop.f32.mrb[0].mxu0
        %v2544 = vpop.f32.mrb[0].mxu0
        %v2545 = vpop.f32.mrb[0].mxu0
        %2546 = vdwg.mxu0
        %v2547 = vadd.f32 %v2542, 3.0
        %v2548 = vmax.f32 %v2547, 0.0
        %v2549 = vmin.f32 %v2548, 6.0
        %v2550 = vmul.f32 %v2549, 0.16666667
        %v2551 = vlaneseq
        %v2552 = vshrl.u32 %v2551, 7
        %v2553 = vsub.s32 0, %v2552
        %v2554 = vrot.slane %v2550, %v2553
        %v2555 = vmul.f32 %v2411, %v2554
        %v2556 = vmul.f32 %v2412, %v2554
        %v2557 = vmul.f32 %v2413, %v2554
        %v2558 = vmul.f32 %v2414, %v2554
        %v2559 = vmul.f32 %v2415, %v2554
        %v2560 = vmul.f32 %v2416, %v2554
        %v2561 = vmul.f32 %v2417, %v2554
        %v2562 = vmul.f32 %v2418, %v2554
        %v2563 = vpack.c.bf16 %v2556, %v2555
        %v2564 = vpack.c.bf16 %v2558, %v2557
        %v2565 = vpack.c.bf16 %v2560, %v2559
        %v2566 = vpack.c.bf16 %v2562, %v2561
        %v2567 = vld [vmem:[%s21] sm:$0xf]
        %v2568 = vld [vmem:[%s21 + $0x4] sm:$0xf]
        %v2569 = vld [vmem:[%s23] sm:$0x1]
        %v2571 = vlaneseq
        %v2572 = vshrl.u32 %v2571, 7
        %v2573 = vsub.s32 0, %v2572
        %v2574 = vrot.slane %v2569, %v2573
        %v2578 = vunpack.c.l.b16 %v2567
        %v2579 = vunpack.c.l.b16 %v2568
        %v2580 = vpack.c.b16 %v2579, %v2578
        %v2583 = vsel %vm2419, %v2563, 0
        %v2586 = vsel %vm2419, %v2564, 0
        %v2589 = vsel %vm2419, %v2565, 0
        %v2592 = vsel %vm2419, %v2566, 0
        %2594 = vmatprep.subr.bf16.mxu0 0
        %2595 = vmatpush1.bf16.msra.mxu0 %v2580
        %2596 = vmatprep.subr.bf16.mxu0 0
        %2597 = vmatpush1.bf16.msra.mxu0 0
        %2598 = vmatprep.subr.bf16.mxu0 0
        %2599 = vmatpush1.bf16.msra.mxu0 0
        %2600 = vmatprep.subr.bf16.mxu0 0
        %2601 = vmatpush1.bf16.msra.mxu0 0
        %2602 = vmatprep.subr.bf16.mxu0 0
        %2603 = vmatpush1.bf16.msra.mxu0 0
        %2604 = vmatprep.subr.bf16.mxu0 0
        %2605 = vmatpush1.bf16.msra.mxu0 0
        %2606 = vmatprep.subr.bf16.mxu0 0
        %2607 = vmatpush1.bf16.msra.mxu0 0
        %2608 = vmatprep.subr.bf16.mxu0 0
        %2609 = vmatpush1.bf16.msra.mxu0 0
        %2610 = vmatprep.subr.bf16.mxu0 0
        %2611 = vmatpush1.bf16.msra.mxu0 0
        %2612 = vmatprep.subr.bf16.mxu0 0
        %2613 = vmatpush1.bf16.msra.mxu0 0
        %2614 = vmatprep.subr.bf16.mxu0 0
        %2615 = vmatpush1.bf16.msra.mxu0 0
        %2616 = vmatprep.subr.bf16.mxu0 0
        %2617 = vmatpush1.bf16.msra.mxu0 0
        %2618 = vmatprep.subr.bf16.mxu0 0
        %2619 = vmatpush1.bf16.msra.mxu0 0
        %2620 = vmatprep.subr.bf16.mxu0 0
        %2621 = vmatpush1.bf16.msra.mxu0 0
        %2622 = vmatprep.subr.bf16.mxu0 0
        %2623 = vmatpush1.bf16.msra.mxu0 0
        %2624 = vmatprep.subr.bf16.mxu0 0
        %2625 = vmatpush1.bf16.msra.mxu0 0
        %2626 = vmatprep.mubr.bf16.mxu0 0
        %2627 = vmatmul.mubr.bf16.gmra.mrb[0].mxu0 %v2583
        %v2628 = vpop.f32.mrb[0].mxu0
        %v2629 = vadd.f32 %v2574, %v2628
        %v2630 = vpop.f32.mrb[0].mxu0
        %v2631 = vpop.f32.mrb[0].mxu0
        %v2632 = vadd.f32 %v2574, %v2631
        %v2633 = vpop.f32.mrb[0].mxu0
        %2634 = vmatprep.mubr.bf16.mxu0 0
        %2635 = vmatmul.mubr.bf16.gmra.mrb[0].mxu0 %v2586
        %v2636 = vpop.f32.mrb[0].mxu0
        %v2637 = vadd.f32 %v2574, %v2636
        %v2638 = vpop.f32.mrb[0].mxu0
        %v2639 = vpop.f32.mrb[0].mxu0
        %v2640 = vadd.f32 %v2574, %v2639
        %v2641 = vpop.f32.mrb[0].mxu0
        %2642 = vmatprep.mubr.bf16.mxu0 0
        %2643 = vmatmul.mubr.bf16.gmra.mrb[0].mxu0 %v2589
        %v2644 = vpop.f32.mrb[0].mxu0
        %v2645 = vadd.f32 %v2574, %v2644
        %v2646 = vpop.f32.mrb[0].mxu0
        %v2647 = vpop.f32.mrb[0].mxu0
        %v2648 = vadd.f32 %v2574, %v2647
        %v2649 = vpop.f32.mrb[0].mxu0
        %2650 = vmatprep.mubr.bf16.mxu0 0
        %2651 = vmatmul.mubr.bf16.gmra.mrb[0].mxu0 %v2592
        %v2652 = vpop.f32.mrb[0].mxu0
        %v2653 = vadd.f32 %v2574, %v2652
        %v2654 = vpop.f32.mrb[0].mxu0
        %v2655 = vpop.f32.mrb[0].mxu0
        %v2656 = vadd.f32 %v2574, %v2655
        %v2657 = vpop.f32.mrb[0].mxu0
        %2658 = vdwg.mxu0
        %v2659 = vadd.f32 %v2629, %v1248
        %v2660 = vadd.f32 %v2632, %v1249
        %v2661 = vadd.f32 %v2637, %v1250
        %v2662 = vadd.f32 %v2640, %v1251
        %v2663 = vadd.f32 %v2645, %v1252
        %v2664 = vadd.f32 %v2648, %v1253
        %v2665 = vadd.f32 %v2653, %v1254
        %v2666 = vadd.f32 %v2656, %v1255
        %v2667 = vpack.c.bf16 %v2660, %v2659
        %v2668 = vpack.c.bf16 %v2662, %v2661
        %v2669 = vpack.c.bf16 %v2664, %v2663
        %v2670 = vpack.c.bf16 %v2666, %v2665
        %v2671 = vld [vmem:[%s25] sm:$0xf]
        %v2672 = vld [vmem:[%s25 + $0x4] sm:$0xf]
        %v2673 = vld [vmem:[%s27] sm:$0x1]
        %v2675 = vlaneseq
        %v2676 = vshrl.u32 %v2675, 7
        %v2677 = vsub.s32 0, %v2676
        %v2678 = vrot.slane %v2673, %v2677
        %v2682 = vunpack.c.l.b16 %v2671
        %v2683 = vunpack.c.l.b16 %v2672
        %v2684 = vpack.c.b16 %v2683, %v2682
        %v2687 = vsel %vm2419, %v2667, 0
        %v2690 = vsel %vm2419, %v2668, 0
        %v2693 = vsel %vm2419, %v2669, 0
        %v2696 = vsel %vm2419, %v2670, 0
        %2698 = vmatprep.subr.bf16.mxu0 0
        %2699 = vmatpush1.bf16.msra.mxu0 %v2684
        %2700 = vmatprep.subr.bf16.mxu0 0
        %2701 = vmatpush1.bf16.msra.mxu0 0
        %2702 = vmatprep.subr.bf16.mxu0 0
        %2703 = vmatpush1.bf16.msra.mxu0 0
        %2704 = vmatprep.subr.bf16.mxu0 0
        %2705 = vmatpush1.bf16.msra.mxu0 0
        %2706 = vmatprep.subr.bf16.mxu0 0
        %2707 = vmatpush1.bf16.msra.mxu0 0
        %2708 = vmatprep.subr.bf16.mxu0 0
        %2709 = vmatpush1.bf16.msra.mxu0 0
        %2710 = vmatprep.subr.bf16.mxu0 0
        %2711 = vmatpush1.bf16.msra.mxu0 0
        %2712 = vmatprep.subr.bf16.mxu0 0
        %2713 = vmatpush1.bf16.msra.mxu0 0
        %2714 = vmatprep.subr.bf16.mxu0 0
        %2715 = vmatpush1.bf16.msra.mxu0 0
        %2716 = vmatprep.subr.bf16.mxu0 0
        %2717 = vmatpush1.bf16.msra.mxu0 0
        %2718 = vmatprep.subr.bf16.mxu0 0
        %2719 = vmatpush1.bf16.msra.mxu0 0
        %2720 = vmatprep.subr.bf16.mxu0 0
        %2721 = vmatpush1.bf16.msra.mxu0 0
        %2722 = vmatprep.subr.bf16.mxu0 0
        %2723 = vmatpush1.bf16.msra.mxu0 0
        %2724 = vmatprep.subr.bf16.mxu0 0
        %2725 = vmatpush1.bf16.msra.mxu0 0
        %2726 = vmatprep.subr.bf16.mxu0 0
        %2727 = vmatpush1.bf16.msra.mxu0 0
        %2728 = vmatprep.subr.bf16.mxu0 0
        %2729 = vmatpush1.bf16.msra.mxu0 0
        %2730 = vmatprep.mubr.bf16.mxu0 0
        %2731 = vmatmul.mubr.bf16.gmra.mrb[0].mxu0 %v2687
        %v2732 = vpop.f32.mrb[0].mxu0
        %v2733 = vadd.f32 %v2678, %v2732
        %v2734 = vpop.f32.mrb[0].mxu0
        %v2735 = vpop.f32.mrb[0].mxu0
        %v2736 = vadd.f32 %v2678, %v2735
        %v2737 = vpop.f32.mrb[0].mxu0
        %2738 = vmatprep.mubr.bf16.mxu0 0
        %2739 = vmatmul.mubr.bf16.gmra.mrb[0].mxu0 %v2690
        %v2740 = vpop.f32.mrb[0].mxu0
        %v2741 = vadd.f32 %v2678, %v2740
        %v2742 = vpop.f32.mrb[0].mxu0
        %v2743 = vpop.f32.mrb[0].mxu0
        %v2744 = vadd.f32 %v2678, %v2743
        %v2745 = vpop.f32.mrb[0].mxu0
        %2746 = vmatprep.mubr.bf16.mxu0 0
        %2747 = vmatmul.mubr.bf16.gmra.mrb[0].mxu0 %v2693
        %v2748 = vpop.f32.mrb[0].mxu0
        %v2749 = vadd.f32 %v2678, %v2748
        %v2750 = vpop.f32.mrb[0].mxu0
        %v2751 = vpop.f32.mrb[0].mxu0
        %v2752 = vadd.f32 %v2678, %v2751
        %v2753 = vpop.f32.mrb[0].mxu0
        %2754 = vmatprep.mubr.bf16.mxu0 0
        %2755 = vmatmul.mubr.bf16.gmra.mrb[0].mxu0 %v2696
        %v2756 = vpop.f32.mrb[0].mxu0
        %v2757 = vadd.f32 %v2678, %v2756
        %v2758 = vpop.f32.mrb[0].mxu0
        %v2759 = vpop.f32.mrb[0].mxu0
        %v2760 = vadd.f32 %v2678, %v2759
        %v2761 = vpop.f32.mrb[0].mxu0
        %2762 = vdwg.mxu0
        %v2763 = vmax.f32 %v2733, 0.0
        %v2764 = vmax.f32 %v2736, 0.0
        %v2765 = vmax.f32 %v2741, 0.0
        %v2766 = vmax.f32 %v2744, 0.0
        %v2767 = vmax.f32 %v2749, 0.0
        %v2768 = vmax.f32 %v2752, 0.0
        %v2769 = vmax.f32 %v2757, 0.0
        %v2770 = vmax.f32 %v2760, 0.0
        %v2771 = vpack.c.bf16 %v2764, %v2763
        %v2772 = vpack.c.bf16 %v2766, %v2765
        %v2773 = vpack.c.bf16 %v2768, %v2767
        %v2774 = vpack.c.bf16 %v2770, %v2769
        %v2775 = vld [vmem:[%s31] sm:$0xff]
        %v2776 = vld [vmem:[%s31 + $0x8] sm:$0x1]
        %v2777 = vld [vmem:[%s29] sm:$0xf]
        %v2778 = vld [vmem:[%s29 + $0x4] sm:$0xf]
        %v2781 = vunpack.c.l.b16 %v2777
        %v2782 = vunpack.c.l.b16 %v2778
        %v2783 = vpack.c.b16 %v2782, %v2781
        %v2785 = vsel %vm1290, %v2783, 0
        %2787 = vmatprep.subr.bf16.mxu0 0
        %2788 = vmatpush1.bf16.msra.mxu0 %v2771
        %2789 = vmatprep.subr.bf16.mxu0 0
        %2790 = vmatpush1.bf16.msra.mxu0 %v2772
        %2791 = vmatprep.subr.bf16.mxu0 0
        %2792 = vmatpush1.bf16.msra.mxu0 %v2773
        %2793 = vmatprep.subr.bf16.mxu0 0
        %2794 = vmatpush1.bf16.msra.mxu0 %v2774
        %2795 = vmatprep.subr.bf16.mxu0 0
        %2796 = vmatpush1.bf16.msra.mxu0 0
        %2797 = vmatprep.subr.bf16.mxu0 0
        %2798 = vmatpush1.bf16.msra.mxu0 0
        %2799 = vmatprep.subr.bf16.mxu0 0
        %2800 = vmatpush1.bf16.msra.mxu0 0
        %2801 = vmatprep.subr.bf16.mxu0 0
        %2802 = vmatpush1.bf16.msra.mxu0 0
        %2803 = vmatprep.subr.bf16.mxu0 0
        %2804 = vmatpush1.bf16.msra.mxu0 0
        %2805 = vmatprep.subr.bf16.mxu0 0
        %2806 = vmatpush1.bf16.msra.mxu0 0
        %2807 = vmatprep.subr.bf16.mxu0 0
        %2808 = vmatpush1.bf16.msra.mxu0 0
        %2809 = vmatprep.subr.bf16.mxu0 0
        %2810 = vmatpush1.bf16.msra.mxu0 0
        %2811 = vmatprep.subr.bf16.mxu0 0
        %2812 = vmatpush1.bf16.msra.mxu0 0
        %2813 = vmatprep.subr.bf16.mxu0 0
        %2814 = vmatpush1.bf16.msra.mxu0 0
        %2815 = vmatprep.subr.bf16.mxu0 0
        %2816 = vmatpush1.bf16.msra.mxu0 0
        %2817 = vmatprep.subr.bf16.mxu0 0
        %2818 = vmatpush1.bf16.msra.mxu0 0
        %2819 = vmatprep.mubr.bf16.mxu0 0
        %2820 = vmatmul.mubr.bf16.gmra.mrb[0].mxu0 %v2785
        %v2821 = vpop.f32.mrb[0].mxu0
        %v2822 = vadd.f32 0.0, %v2821
        %v2823 = vpop.f32.mrb[0].mxu0
        %v2824 = vpop.f32.mrb[0].mxu0
        %v2825 = vadd.f32 0.0, %v2824
        %v2826 = vpop.f32.mrb[0].mxu0
        %2827 = vdwg.mxu0
        %v2828 = vlaneseq
        %v2829 = vshrl.u32 %v2828, 7
        %v2830 = vsub.s32 0, %v2829
        %v2831 = vrot.slane %v2775, %v2830
        %v2832 = vmul.f32 %v2822, %v2831
        %v2833 = vmul.f32 %v2825, %v2831
        %v2834 = vadd.f32 %v2832, 0.0
        %v2835 = vadd.f32 %v2833, 0.0
        %s2836 = scalar_lea.vmem %s29, 8
        %v2837 = vld [vmem:[%s2836] sm:$0xf]
        %v2838 = vld [vmem:[%s2836 + $0x4] sm:$0xf]
        %v2841 = vunpack.c.l.b16 %v2837
        %v2842 = vunpack.c.l.b16 %v2838
        %v2843 = vpack.c.b16 %v2842, %v2841
        %v2845 = vsel %vm1290, %v2843, 0
        %2847 = vmatprep.subr.bf16.mxu0 0
        %2848 = vmatpush1.bf16.msra.mxu0 %v2771
        %2849 = vmatprep.subr.bf16.mxu0 0
        %2850 = vmatpush1.bf16.msra.mxu0 %v2772
        %2851 = vmatprep.subr.bf16.mxu0 0
        %2852 = vmatpush1.bf16.msra.mxu0 %v2773
        %2853 = vmatprep.subr.bf16.mxu0 0
        %2854 = vmatpush1.bf16.msra.mxu0 %v2774
        %2855 = vmatprep.subr.bf16.mxu0 0
        %2856 = vmatpush1.bf16.msra.mxu0 0
        %2857 = vmatprep.subr.bf16.mxu0 0
        %2858 = vmatpush1.bf16.msra.mxu0 0
        %2859 = vmatprep.subr.bf16.mxu0 0
        %2860 = vmatpush1.bf16.msra.mxu0 0
        %2861 = vmatprep.subr.bf16.mxu0 0
        %2862 = vmatpush1.bf16.msra.mxu0 0
        %2863 = vmatprep.subr.bf16.mxu0 0
        %2864 = vmatpush1.bf16.msra.mxu0 0
        %2865 = vmatprep.subr.bf16.mxu0 0
        %2866 = vmatpush1.bf16.msra.mxu0 0
        %2867 = vmatprep.subr.bf16.mxu0 0
        %2868 = vmatpush1.bf16.msra.mxu0 0
        %2869 = vmatprep.subr.bf16.mxu0 0
        %2870 = vmatpush1.bf16.msra.mxu0 0
        %2871 = vmatprep.subr.bf16.mxu0 0
        %2872 = vmatpush1.bf16.msra.mxu0 0
        %2873 = vmatprep.subr.bf16.mxu0 0
        %2874 = vmatpush1.bf16.msra.mxu0 0
        %2875 = vmatprep.subr.bf16.mxu0 0
        %2876 = vmatpush1.bf16.msra.mxu0 0
        %2877 = vmatprep.subr.bf16.mxu0 0
        %2878 = vmatpush1.bf16.msra.mxu0 0
        %2879 = vmatprep.mubr.bf16.mxu0 0
        %2880 = vmatmul.mubr.bf16.gmra.mrb[0].mxu0 %v2845
        %v2881 = vpop.f32.mrb[0].mxu0
        %v2882 = vadd.f32 0.0, %v2881
        %v2883 = vpop.f32.mrb[0].mxu0
        %v2884 = vpop.f32.mrb[0].mxu0
        %v2885 = vadd.f32 0.0, %v2884
        %v2886 = vpop.f32.mrb[0].mxu0
        %2887 = vdwg.mxu0
        %v2888 = vlaneseq
        %v2889 = vshrl.u32 %v2888, 7
        %v2890 = vsub.s32 1, %v2889
        %v2891 = vrot.slane %v2775, %v2890
        %v2892 = vmul.f32 %v2882, %v2891
        %v2893 = vmul.f32 %v2885, %v2891
        %v2894 = vadd.f32 %v2834, %v2892
        %v2895 = vadd.f32 %v2835, %v2893
        %s2896 = scalar_lea.vmem %s29, 16
        %v2897 = vld [vmem:[%s2896] sm:$0xf]
        %v2898 = vld [vmem:[%s2896 + $0x4] sm:$0xf]
        %v2901 = vunpack.c.l.b16 %v2897
        %v2902 = vunpack.c.l.b16 %v2898
        %v2903 = vpack.c.b16 %v2902, %v2901
        %v2905 = vsel %vm1290, %v2903, 0
        %2907 = vmatprep.subr.bf16.mxu0 0
        %2908 = vmatpush1.bf16.msra.mxu0 %v2771
        %2909 = vmatprep.subr.bf16.mxu0 0
        %2910 = vmatpush1.bf16.msra.mxu0 %v2772
        %2911 = vmatprep.subr.bf16.mxu0 0
        %2912 = vmatpush1.bf16.msra.mxu0 %v2773
        %2913 = vmatprep.subr.bf16.mxu0 0
        %2914 = vmatpush1.bf16.msra.mxu0 %v2774
        %2915 = vmatprep.subr.bf16.mxu0 0
        %2916 = vmatpush1.bf16.msra.mxu0 0
        %2917 = vmatprep.subr.bf16.mxu0 0
        %2918 = vmatpush1.bf16.msra.mxu0 0
        %2919 = vmatprep.subr.bf16.mxu0 0
        %2920 = vmatpush1.bf16.msra.mxu0 0
        %2921 = vmatprep.subr.bf16.mxu0 0
        %2922 = vmatpush1.bf16.msra.mxu0 0
        %2923 = vmatprep.subr.bf16.mxu0 0
        %2924 = vmatpush1.bf16.msra.mxu0 0
        %2925 = vmatprep.subr.bf16.mxu0 0
        %2926 = vmatpush1.bf16.msra.mxu0 0
        %2927 = vmatprep.subr.bf16.mxu0 0
        %2928 = vmatpush1.bf16.msra.mxu0 0
        %2929 = vmatprep.subr.bf16.mxu0 0
        %2930 = vmatpush1.bf16.msra.mxu0 0
        %2931 = vmatprep.subr.bf16.mxu0 0
        %2932 = vmatpush1.bf16.msra.mxu0 0
        %2933 = vmatprep.subr.bf16.mxu0 0
        %2934 = vmatpush1.bf16.msra.mxu0 0
        %2935 = vmatprep.subr.bf16.mxu0 0
        %2936 = vmatpush1.bf16.msra.mxu0 0
        %2937 = vmatprep.subr.bf16.mxu0 0
        %2938 = vmatpush1.bf16.msra.mxu0 0
        %2939 = vmatprep.mubr.bf16.mxu0 0
        %2940 = vmatmul.mubr.bf16.gmra.mrb[0].mxu0 %v2905
        %v2941 = vpop.f32.mrb[0].mxu0
        %v2942 = vadd.f32 0.0, %v2941
        %v2943 = vpop.f32.mrb[0].mxu0
        %v2944 = vpop.f32.mrb[0].mxu0
        %v2945 = vadd.f32 0.0, %v2944
        %v2946 = vpop.f32.mrb[0].mxu0
        %2947 = vdwg.mxu0
        %v2948 = vlaneseq
        %v2949 = vshrl.u32 %v2948, 7
        %v2950 = vsub.s32 2, %v2949
        %v2951 = vrot.slane %v2775, %v2950
        %v2952 = vmul.f32 %v2942, %v2951
        %v2953 = vmul.f32 %v2945, %v2951
        %v2954 = vadd.f32 %v2894, %v2952
        %v2955 = vadd.f32 %v2895, %v2953
        %s2956 = scalar_lea.vmem %s29, 24
        %v2957 = vld [vmem:[%s2956] sm:$0xf]
        %v2958 = vld [vmem:[%s2956 + $0x4] sm:$0xf]
        %v2961 = vunpack.c.l.b16 %v2957
        %v2962 = vunpack.c.l.b16 %v2958
        %v2963 = vpack.c.b16 %v2962, %v2961
        %v2965 = vsel %vm1290, %v2963, 0
        %2967 = vmatprep.subr.bf16.mxu0 0
        %2968 = vmatpush1.bf16.msra.mxu0 %v2771
        %2969 = vmatprep.subr.bf16.mxu0 0
        %2970 = vmatpush1.bf16.msra.mxu0 %v2772
        %2971 = vmatprep.subr.bf16.mxu0 0
        %2972 = vmatpush1.bf16.msra.mxu0 %v2773
        %2973 = vmatprep.subr.bf16.mxu0 0
        %2974 = vmatpush1.bf16.msra.mxu0 %v2774
        %2975 = vmatprep.subr.bf16.mxu0 0
        %2976 = vmatpush1.bf16.msra.mxu0 0
        %2977 = vmatprep.subr.bf16.mxu0 0
        %2978 = vmatpush1.bf16.msra.mxu0 0
        %2979 = vmatprep.subr.bf16.mxu0 0
        %2980 = vmatpush1.bf16.msra.mxu0 0
        %2981 = vmatprep.subr.bf16.mxu0 0
        %2982 = vmatpush1.bf16.msra.mxu0 0
        %2983 = vmatprep.subr.bf16.mxu0 0
        %2984 = vmatpush1.bf16.msra.mxu0 0
        %2985 = vmatprep.subr.bf16.mxu0 0
        %2986 = vmatpush1.bf16.msra.mxu0 0
        %2987 = vmatprep.subr.bf16.mxu0 0
        %2988 = vmatpush1.bf16.msra.mxu0 0
        %2989 = vmatprep.subr.bf16.mxu0 0
        %2990 = vmatpush1.bf16.msra.mxu0 0
        %2991 = vmatprep.subr.bf16.mxu0 0
        %2992 = vmatpush1.bf16.msra.mxu0 0
        %2993 = vmatprep.subr.bf16.mxu0 0
        %2994 = vmatpush1.bf16.msra.mxu0 0
        %2995 = vmatprep.subr.bf16.mxu0 0
        %2996 = vmatpush1.bf16.msra.mxu0 0
        %2997 = vmatprep.subr.bf16.mxu0 0
        %2998 = vmatpush1.bf16.msra.mxu0 0
        %2999 = vmatprep.mubr.bf16.mxu0 0
        %3000 = vmatmul.mubr.bf16.gmra.mrb[0].mxu0 %v2965
        %v3001 = vpop.f32.mrb[0].mxu0
        %v3002 = vadd.f32 0.0, %v3001
        %v3003 = vpop.f32.mrb[0].mxu0
        %v3004 = vpop.f32.mrb[0].mxu0
        %v3005 = vadd.f32 0.0, %v3004
        %v3006 = vpop.f32.mrb[0].mxu0
        %3007 = vdwg.mxu0
        %v3008 = vlaneseq
        %v3009 = vshrl.u32 %v3008, 7
        %v3010 = vsub.s32 3, %v3009
        %v3011 = vrot.slane %v2775, %v3010
        %v3012 = vmul.f32 %v3002, %v3011
        %v3013 = vmul.f32 %v3005, %v3011
        %v3014 = vadd.f32 %v2954, %v3012
        %v3015 = vadd.f32 %v2955, %v3013
        %s3016 = scalar_lea.vmem %s29, 32
        %v3017 = vld [vmem:[%s3016] sm:$0xf]
        %v3018 = vld [vmem:[%s3016 + $0x4] sm:$0xf]
        %v3021 = vunpack.c.l.b16 %v3017
        %v3022 = vunpack.c.l.b16 %v3018
        %v3023 = vpack.c.b16 %v3022, %v3021
        %v3025 = vsel %vm1290, %v3023, 0
        %3027 = vmatprep.subr.bf16.mxu0 0
        %3028 = vmatpush1.bf16.msra.mxu0 %v2771
        %3029 = vmatprep.subr.bf16.mxu0 0
        %3030 = vmatpush1.bf16.msra.mxu0 %v2772
        %3031 = vmatprep.subr.bf16.mxu0 0
        %3032 = vmatpush1.bf16.msra.mxu0 %v2773
        %3033 = vmatprep.subr.bf16.mxu0 0
        %3034 = vmatpush1.bf16.msra.mxu0 %v2774
        %3035 = vmatprep.subr.bf16.mxu0 0
        %3036 = vmatpush1.bf16.msra.mxu0 0
        %3037 = vmatprep.subr.bf16.mxu0 0
        %3038 = vmatpush1.bf16.msra.mxu0 0
        %3039 = vmatprep.subr.bf16.mxu0 0
        %3040 = vmatpush1.bf16.msra.mxu0 0
        %3041 = vmatprep.subr.bf16.mxu0 0
        %3042 = vmatpush1.bf16.msra.mxu0 0
        %3043 = vmatprep.subr.bf16.mxu0 0
        %3044 = vmatpush1.bf16.msra.mxu0 0
        %3045 = vmatprep.subr.bf16.mxu0 0
        %3046 = vmatpush1.bf16.msra.mxu0 0
        %3047 = vmatprep.subr.bf16.mxu0 0
        %3048 = vmatpush1.bf16.msra.mxu0 0
        %3049 = vmatprep.subr.bf16.mxu0 0
        %3050 = vmatpush1.bf16.msra.mxu0 0
        %3051 = vmatprep.subr.bf16.mxu0 0
        %3052 = vmatpush1.bf16.msra.mxu0 0
        %3053 = vmatprep.subr.bf16.mxu0 0
        %3054 = vmatpush1.bf16.msra.mxu0 0
        %3055 = vmatprep.subr.bf16.mxu0 0
        %3056 = vmatpush1.bf16.msra.mxu0 0
        %3057 = vmatprep.subr.bf16.mxu0 0
        %3058 = vmatpush1.bf16.msra.mxu0 0
        %3059 = vmatprep.mubr.bf16.mxu0 0
        %3060 = vmatmul.mubr.bf16.gmra.mrb[0].mxu0 %v3025
        %v3061 = vpop.f32.mrb[0].mxu0
        %v3062 = vadd.f32 0.0, %v3061
        %v3063 = vpop.f32.mrb[0].mxu0
        %v3064 = vpop.f32.mrb[0].mxu0
        %v3065 = vadd.f32 0.0, %v3064
        %v3066 = vpop.f32.mrb[0].mxu0
        %3067 = vdwg.mxu0
        %v3068 = vlaneseq
        %v3069 = vshrl.u32 %v3068, 7
        %v3070 = vsub.s32 4, %v3069
        %v3071 = vrot.slane %v2775, %v3070
        %v3072 = vmul.f32 %v3062, %v3071
        %v3073 = vmul.f32 %v3065, %v3071
        %v3074 = vadd.f32 %v3014, %v3072
        %v3075 = vadd.f32 %v3015, %v3073
        %s3076 = scalar_lea.vmem %s29, 40
        %v3077 = vld [vmem:[%s3076] sm:$0xf]
        %v3078 = vld [vmem:[%s3076 + $0x4] sm:$0xf]
        %v3081 = vunpack.c.l.b16 %v3077
        %v3082 = vunpack.c.l.b16 %v3078
        %v3083 = vpack.c.b16 %v3082, %v3081
        %v3085 = vsel %vm1290, %v3083, 0
        %3087 = vmatprep.subr.bf16.mxu0 0
        %3088 = vmatpush1.bf16.msra.mxu0 %v2771
        %3089 = vmatprep.subr.bf16.mxu0 0
        %3090 = vmatpush1.bf16.msra.mxu0 %v2772
        %3091 = vmatprep.subr.bf16.mxu0 0
        %3092 = vmatpush1.bf16.msra.mxu0 %v2773
        %3093 = vmatprep.subr.bf16.mxu0 0
        %3094 = vmatpush1.bf16.msra.mxu0 %v2774
        %3095 = vmatprep.subr.bf16.mxu0 0
        %3096 = vmatpush1.bf16.msra.mxu0 0
        %3097 = vmatprep.subr.bf16.mxu0 0
        %3098 = vmatpush1.bf16.msra.mxu0 0
        %3099 = vmatprep.subr.bf16.mxu0 0
        %3100 = vmatpush1.bf16.msra.mxu0 0
        %3101 = vmatprep.subr.bf16.mxu0 0
        %3102 = vmatpush1.bf16.msra.mxu0 0
        %3103 = vmatprep.subr.bf16.mxu0 0
        %3104 = vmatpush1.bf16.msra.mxu0 0
        %3105 = vmatprep.subr.bf16.mxu0 0
        %3106 = vmatpush1.bf16.msra.mxu0 0
        %3107 = vmatprep.subr.bf16.mxu0 0
        %3108 = vmatpush1.bf16.msra.mxu0 0
        %3109 = vmatprep.subr.bf16.mxu0 0
        %3110 = vmatpush1.bf16.msra.mxu0 0
        %3111 = vmatprep.subr.bf16.mxu0 0
        %3112 = vmatpush1.bf16.msra.mxu0 0
        %3113 = vmatprep.subr.bf16.mxu0 0
        %3114 = vmatpush1.bf16.msra.mxu0 0
        %3115 = vmatprep.subr.bf16.mxu0 0
        %3116 = vmatpush1.bf16.msra.mxu0 0
        %3117 = vmatprep.subr.bf16.mxu0 0
        %3118 = vmatpush1.bf16.msra.mxu0 0
        %3119 = vmatprep.mubr.bf16.mxu0 0
        %3120 = vmatmul.mubr.bf16.gmra.mrb[0].mxu0 %v3085
        %v3121 = vpop.f32.mrb[0].mxu0
        %v3122 = vadd.f32 0.0, %v3121
        %v3123 = vpop.f32.mrb[0].mxu0
        %v3124 = vpop.f32.mrb[0].mxu0
        %v3125 = vadd.f32 0.0, %v3124
        %v3126 = vpop.f32.mrb[0].mxu0
        %3127 = vdwg.mxu0
        %v3128 = vlaneseq
        %v3129 = vshrl.u32 %v3128, 7
        %v3130 = vsub.s32 5, %v3129
        %v3131 = vrot.slane %v2775, %v3130
        %v3132 = vmul.f32 %v3122, %v3131
        %v3133 = vmul.f32 %v3125, %v3131
        %v3134 = vadd.f32 %v3074, %v3132
        %v3135 = vadd.f32 %v3075, %v3133
        %s3136 = scalar_lea.vmem %s29, 48
        %v3137 = vld [vmem:[%s3136] sm:$0xf]
        %v3138 = vld [vmem:[%s3136 + $0x4] sm:$0xf]
        %v3141 = vunpack.c.l.b16 %v3137
        %v3142 = vunpack.c.l.b16 %v3138
        %v3143 = vpack.c.b16 %v3142, %v3141
        %v3145 = vsel %vm1290, %v3143, 0
        %3147 = vmatprep.subr.bf16.mxu0 0
        %3148 = vmatpush1.bf16.msra.mxu0 %v2771
        %3149 = vmatprep.subr.bf16.mxu0 0
        %3150 = vmatpush1.bf16.msra.mxu0 %v2772
        %3151 = vmatprep.subr.bf16.mxu0 0
        %3152 = vmatpush1.bf16.msra.mxu0 %v2773
        %3153 = vmatprep.subr.bf16.mxu0 0
        %3154 = vmatpush1.bf16.msra.mxu0 %v2774
        %3155 = vmatprep.subr.bf16.mxu0 0
        %3156 = vmatpush1.bf16.msra.mxu0 0
        %3157 = vmatprep.subr.bf16.mxu0 0
        %3158 = vmatpush1.bf16.msra.mxu0 0
        %3159 = vmatprep.subr.bf16.mxu0 0
        %3160 = vmatpush1.bf16.msra.mxu0 0
        %3161 = vmatprep.subr.bf16.mxu0 0
        %3162 = vmatpush1.bf16.msra.mxu0 0
        %3163 = vmatprep.subr.bf16.mxu0 0
        %3164 = vmatpush1.bf16.msra.mxu0 0
        %3165 = vmatprep.subr.bf16.mxu0 0
        %3166 = vmatpush1.bf16.msra.mxu0 0
        %3167 = vmatprep.subr.bf16.mxu0 0
        %3168 = vmatpush1.bf16.msra.mxu0 0
        %3169 = vmatprep.subr.bf16.mxu0 0
        %3170 = vmatpush1.bf16.msra.mxu0 0
        %3171 = vmatprep.subr.bf16.mxu0 0
        %3172 = vmatpush1.bf16.msra.mxu0 0
        %3173 = vmatprep.subr.bf16.mxu0 0
        %3174 = vmatpush1.bf16.msra.mxu0 0
        %3175 = vmatprep.subr.bf16.mxu0 0
        %3176 = vmatpush1.bf16.msra.mxu0 0
        %3177 = vmatprep.subr.bf16.mxu0 0
        %3178 = vmatpush1.bf16.msra.mxu0 0
        %3179 = vmatprep.mubr.bf16.mxu0 0
        %3180 = vmatmul.mubr.bf16.gmra.mrb[0].mxu0 %v3145
        %v3181 = vpop.f32.mrb[0].mxu0
        %v3182 = vadd.f32 0.0, %v3181
        %v3183 = vpop.f32.mrb[0].mxu0
        %v3184 = vpop.f32.mrb[0].mxu0
        %v3185 = vadd.f32 0.0, %v3184
        %v3186 = vpop.f32.mrb[0].mxu0
        %3187 = vdwg.mxu0
        %v3188 = vlaneseq
        %v3189 = vshrl.u32 %v3188, 7
        %v3190 = vsub.s32 6, %v3189
        %v3191 = vrot.slane %v2775, %v3190
        %v3192 = vmul.f32 %v3182, %v3191
        %v3193 = vmul.f32 %v3185, %v3191
        %v3194 = vadd.f32 %v3134, %v3192
        %v3195 = vadd.f32 %v3135, %v3193
        %s3196 = scalar_lea.vmem %s29, 56
        %v3197 = vld [vmem:[%s3196] sm:$0xf]
        %v3198 = vld [vmem:[%s3196 + $0x4] sm:$0xf]
        %v3201 = vunpack.c.l.b16 %v3197
        %v3202 = vunpack.c.l.b16 %v3198
        %v3203 = vpack.c.b16 %v3202, %v3201
        %v3205 = vsel %vm1290, %v3203, 0
        %3207 = vmatprep.subr.bf16.mxu0 0
        %3208 = vmatpush1.bf16.msra.mxu0 %v2771
        %3209 = vmatprep.subr.bf16.mxu0 0
        %3210 = vmatpush1.bf16.msra.mxu0 %v2772
        %3211 = vmatprep.subr.bf16.mxu0 0
        %3212 = vmatpush1.bf16.msra.mxu0 %v2773
        %3213 = vmatprep.subr.bf16.mxu0 0
        %3214 = vmatpush1.bf16.msra.mxu0 %v2774
        %3215 = vmatprep.subr.bf16.mxu0 0
        %3216 = vmatpush1.bf16.msra.mxu0 0
        %3217 = vmatprep.subr.bf16.mxu0 0
        %3218 = vmatpush1.bf16.msra.mxu0 0
        %3219 = vmatprep.subr.bf16.mxu0 0
        %3220 = vmatpush1.bf16.msra.mxu0 0
        %3221 = vmatprep.subr.bf16.mxu0 0
        %3222 = vmatpush1.bf16.msra.mxu0 0
        %3223 = vmatprep.subr.bf16.mxu0 0
        %3224 = vmatpush1.bf16.msra.mxu0 0
        %3225 = vmatprep.subr.bf16.mxu0 0
        %3226 = vmatpush1.bf16.msra.mxu0 0
        %3227 = vmatprep.subr.bf16.mxu0 0
        %3228 = vmatpush1.bf16.msra.mxu0 0
        %3229 = vmatprep.subr.bf16.mxu0 0
        %3230 = vmatpush1.bf16.msra.mxu0 0
        %3231 = vmatprep.subr.bf16.mxu0 0
        %3232 = vmatpush1.bf16.msra.mxu0 0
        %3233 = vmatprep.subr.bf16.mxu0 0
        %3234 = vmatpush1.bf16.msra.mxu0 0
        %3235 = vmatprep.subr.bf16.mxu0 0
        %3236 = vmatpush1.bf16.msra.mxu0 0
        %3237 = vmatprep.subr.bf16.mxu0 0
        %3238 = vmatpush1.bf16.msra.mxu0 0
        %3239 = vmatprep.mubr.bf16.mxu0 0
        %3240 = vmatmul.mubr.bf16.gmra.mrb[0].mxu0 %v3205
        %v3241 = vpop.f32.mrb[0].mxu0
        %v3242 = vadd.f32 0.0, %v3241
        %v3243 = vpop.f32.mrb[0].mxu0
        %v3244 = vpop.f32.mrb[0].mxu0
        %v3245 = vadd.f32 0.0, %v3244
        %v3246 = vpop.f32.mrb[0].mxu0
        %3247 = vdwg.mxu0
        %v3248 = vlaneseq
        %v3249 = vshrl.u32 %v3248, 7
        %v3250 = vsub.s32 7, %v3249
        %v3251 = vrot.slane %v2775, %v3250
        %v3252 = vmul.f32 %v3242, %v3251
        %v3253 = vmul.f32 %v3245, %v3251
        %v3254 = vadd.f32 %v3194, %v3252
        %v3255 = vadd.f32 %v3195, %v3253
        %s3256 = scalar_lea.vmem %s29, 64
        %v3257 = vld [vmem:[%s3256] sm:$0xf]
        %v3258 = vld [vmem:[%s3256 + $0x4] sm:$0xf]
        %v3261 = vunpack.c.l.b16 %v3257
        %v3262 = vunpack.c.l.b16 %v3258
        %v3263 = vpack.c.b16 %v3262, %v3261
        %v3265 = vsel %vm1290, %v3263, 0
        %3267 = vmatprep.subr.bf16.mxu0 0
        %3268 = vmatpush1.bf16.msra.mxu0 %v2771
        %3269 = vmatprep.subr.bf16.mxu0 0
        %3270 = vmatpush1.bf16.msra.mxu0 %v2772
        %3271 = vmatprep.subr.bf16.mxu0 0
        %3272 = vmatpush1.bf16.msra.mxu0 %v2773
        %3273 = vmatprep.subr.bf16.mxu0 0
        %3274 = vmatpush1.bf16.msra.mxu0 %v2774
        %3275 = vmatprep.subr.bf16.mxu0 0
        %3276 = vmatpush1.bf16.msra.mxu0 0
        %3277 = vmatprep.subr.bf16.mxu0 0
        %3278 = vmatpush1.bf16.msra.mxu0 0
        %3279 = vmatprep.subr.bf16.mxu0 0
        %3280 = vmatpush1.bf16.msra.mxu0 0
        %3281 = vmatprep.subr.bf16.mxu0 0
        %3282 = vmatpush1.bf16.msra.mxu0 0
        %3283 = vmatprep.subr.bf16.mxu0 0
        %3284 = vmatpush1.bf16.msra.mxu0 0
        %3285 = vmatprep.subr.bf16.mxu0 0
        %3286 = vmatpush1.bf16.msra.mxu0 0
        %3287 = vmatprep.subr.bf16.mxu0 0
        %3288 = vmatpush1.bf16.msra.mxu0 0
        %3289 = vmatprep.subr.bf16.mxu0 0
        %3290 = vmatpush1.bf16.msra.mxu0 0
        %3291 = vmatprep.subr.bf16.mxu0 0
        %3292 = vmatpush1.bf16.msra.mxu0 0
        %3293 = vmatprep.subr.bf16.mxu0 0
        %3294 = vmatpush1.bf16.msra.mxu0 0
        %3295 = vmatprep.subr.bf16.mxu0 0
        %3296 = vmatpush1.bf16.msra.mxu0 0
        %3297 = vmatprep.subr.bf16.mxu0 0
        %3298 = vmatpush1.bf16.msra.mxu0 0
        %3299 = vmatprep.mubr.bf16.mxu0 0
        %3300 = vmatmul.mubr.bf16.gmra.mrb[0].mxu0 %v3265
        %v3301 = vpop.f32.mrb[0].mxu0
        %v3302 = vadd.f32 0.0, %v3301
        %v3303 = vpop.f32.mrb[0].mxu0
        %v3304 = vpop.f32.mrb[0].mxu0
        %v3305 = vadd.f32 0.0, %v3304
        %v3306 = vpop.f32.mrb[0].mxu0
        %3307 = vdwg.mxu0
        %v3308 = vlaneseq
        %v3309 = vshrl.u32 %v3308, 7
        %v3310 = vsub.s32 0, %v3309
        %v3311 = vrot.slane %v2776, %v3310
        %v3312 = vmul.f32 %v3302, %v3311
        %v3313 = vmul.f32 %v3305, %v3311
        %v3314 = vadd.f32 %v3254, %v3312
        %v3315 = vadd.f32 %v3255, %v3313
        %v3316 = vld [vmem:[%s33] sm:$0x1]
        %v3318 = vlaneseq
        %v3319 = vshrl.u32 %v3318, 7
        %v3320 = vsub.s32 0, %v3319
        %v3321 = vrot.slane %v3316, %v3320
        %v3323 = vadd.f32 %v3314, %v3321
        %v3324 = vadd.f32 %v3315, %v3321
        %v3325 = vmax.f32 %v3323, 0.0
        %v3326 = vmax.f32 %v3324, 0.0
        %v3327 = vpack.c.bf16 %v3326, %v3325
        %v3328 = vld [vmem:[%s35] sm:$0xf]
        %v3329 = vld [vmem:[%s35 + $0x4] sm:$0xf]
        %v3330 = vld [vmem:[%s35 + $0x8] sm:$0xf]
        %v3331 = vld [vmem:[%s35 + $0xc] sm:$0xf]
        %v3332 = vld [vmem:[%s35 + $0x10] sm:$0xf]
        %v3333 = vld [vmem:[%s35 + $0x14] sm:$0xf]
        %v3334 = vld [vmem:[%s35 + $0x18] sm:$0xf]
        %v3335 = vld [vmem:[%s35 + $0x1c] sm:$0xf]
        %v3336 = vld [vmem:[%s37] sm:$0x1]
        %v3338 = vlaneseq
        %v3339 = vshrl.u32 %v3338, 7
        %v3340 = vsub.s32 0, %v3339
        %v3341 = vrot.slane %v3336, %v3340
        %v3351 = vunpack.c.l.b16 %v3328
        %v3352 = vunpack.c.l.b16 %v3329
        %v3353 = vunpack.c.l.b16 %v3330
        %v3354 = vunpack.c.l.b16 %v3331
        %v3355 = vunpack.c.l.b16 %v3332
        %v3356 = vunpack.c.l.b16 %v3333
        %v3357 = vunpack.c.l.b16 %v3334
        %v3358 = vunpack.c.l.b16 %v3335
        %v3359 = vpack.c.b16 %v3352, %v3351
        %v3360 = vpack.c.b16 %v3354, %v3353
        %v3361 = vpack.c.b16 %v3356, %v3355
        %v3362 = vpack.c.b16 %v3358, %v3357
        %v3368 = vsel %vm1290, %v3327, 0
        %3370 = vmatprep.subr.bf16.mxu0 0
        %3371 = vmatpush1.bf16.msra.mxu0 %v3359
        %3372 = vmatprep.subr.bf16.mxu0 0
        %3373 = vmatpush1.bf16.msra.mxu0 %v3360
        %3374 = vmatprep.subr.bf16.mxu0 0
        %3375 = vmatpush1.bf16.msra.mxu0 %v3361
        %3376 = vmatprep.subr.bf16.mxu0 0
        %3377 = vmatpush1.bf16.msra.mxu0 %v3362
        %3378 = vmatprep.subr.bf16.mxu0 0
        %3379 = vmatpush1.bf16.msra.mxu0 0
        %3380 = vmatprep.subr.bf16.mxu0 0
        %3381 = vmatpush1.bf16.msra.mxu0 0
        %3382 = vmatprep.subr.bf16.mxu0 0
        %3383 = vmatpush1.bf16.msra.mxu0 0
        %3384 = vmatprep.subr.bf16.mxu0 0
        %3385 = vmatpush1.bf16.msra.mxu0 0
        %3386 = vmatprep.subr.bf16.mxu0 0
        %3387 = vmatpush1.bf16.msra.mxu0 0
        %3388 = vmatprep.subr.bf16.mxu0 0
        %3389 = vmatpush1.bf16.msra.mxu0 0
        %3390 = vmatprep.subr.bf16.mxu0 0
        %3391 = vmatpush1.bf16.msra.mxu0 0
        %3392 = vmatprep.subr.bf16.mxu0 0
        %3393 = vmatpush1.bf16.msra.mxu0 0
        %3394 = vmatprep.subr.bf16.mxu0 0
        %3395 = vmatpush1.bf16.msra.mxu0 0
        %3396 = vmatprep.subr.bf16.mxu0 0
        %3397 = vmatpush1.bf16.msra.mxu0 0
        %3398 = vmatprep.subr.bf16.mxu0 0
        %3399 = vmatpush1.bf16.msra.mxu0 0
        %3400 = vmatprep.subr.bf16.mxu0 0
        %3401 = vmatpush1.bf16.msra.mxu0 0
        %3402 = vmatprep.mubr.bf16.mxu0 0
        %3403 = vmatmul.mubr.bf16.gmra.mrb[0].mxu0 %v3368
        %v3404 = vpop.f32.mrb[0].mxu0
        %v3405 = vadd.f32 %v3341, %v3404
        %v3406 = vpop.f32.mrb[0].mxu0
        %v3407 = vpop.f32.mrb[0].mxu0
        %v3408 = vadd.f32 %v3341, %v3407
        %v3409 = vpop.f32.mrb[0].mxu0
        %3410 = vdwg.mxu0
        %v3411 = vpack.c.bf16 %v3408, %v3405
        %v3412 = vld [vmem:[%s39] sm:$0xf]
        %v3413 = vld [vmem:[%s39 + $0x4] sm:$0xf]
        %v3414 = vld [vmem:[%s39 + $0x8] sm:$0xf]
        %v3415 = vld [vmem:[%s41] sm:$0x1]
        %v3417 = vlaneseq
        %v3418 = vshrl.u32 %v3417, 7
        %v3419 = vsub.s32 0, %v3418
        %v3420 = vrot.slane %v3415, %v3419
        %v3425 = vunpack.c.l.b16 %v3412
        %v3426 = vunpack.c.l.b16 %v3413
        %v3427 = vunpack.c.l.b16 %v3414
        %v3428 = vpack.c.b16 %v3426, %v3425
        %v3429 = vpack.c.b16 %v3427, %v3427
        %vm3431 = vcmask 195584
        %v3433 = vsel %vm3431, %v3411, 0
        %v3436 = vsel %vm2503, %v3429, 0
        %3438 = vmatprep.subr.bf16.mxu0 0
        %3439 = vmatpush1.bf16.msra.mxu0 %v3428
        %3440 = vmatprep.subr.bf16.mxu0 0
        %3441 = vmatpush1.bf16.msra.mxu0 %v3436
        %3442 = vmatprep.subr.bf16.mxu0 0
        %3443 = vmatpush1.bf16.msra.mxu0 0
        %3444 = vmatprep.subr.bf16.mxu0 0
        %3445 = vmatpush1.bf16.msra.mxu0 0
        %3446 = vmatprep.subr.bf16.mxu0 0
        %3447 = vmatpush1.bf16.msra.mxu0 0
        %3448 = vmatprep.subr.bf16.mxu0 0
        %3449 = vmatpush1.bf16.msra.mxu0 0
        %3450 = vmatprep.subr.bf16.mxu0 0
        %3451 = vmatpush1.bf16.msra.mxu0 0
        %3452 = vmatprep.subr.bf16.mxu0 0
        %3453 = vmatpush1.bf16.msra.mxu0 0
        %3454 = vmatprep.subr.bf16.mxu0 0
        %3455 = vmatpush1.bf16.msra.mxu0 0
        %3456 = vmatprep.subr.bf16.mxu0 0
        %3457 = vmatpush1.bf16.msra.mxu0 0
        %3458 = vmatprep.subr.bf16.mxu0 0
        %3459 = vmatpush1.bf16.msra.mxu0 0
        %3460 = vmatprep.subr.bf16.mxu0 0
        %3461 = vmatpush1.bf16.msra.mxu0 0
        %3462 = vmatprep.subr.bf16.mxu0 0
        %3463 = vmatpush1.bf16.msra.mxu0 0
        %3464 = vmatprep.subr.bf16.mxu0 0
        %3465 = vmatpush1.bf16.msra.mxu0 0
        %3466 = vmatprep.subr.bf16.mxu0 0
        %3467 = vmatpush1.bf16.msra.mxu0 0
        %3468 = vmatprep.subr.bf16.mxu0 0
        %3469 = vmatpush1.bf16.msra.mxu0 0
        %3470 = vmatprep.mubr.bf16.mxu0 0
        %3471 = vmatmul.mubr.bf16.gmra.mrb[0].mxu0 %v3433
        %v3472 = vpop.f32.mrb[0].mxu0
        %v3473 = vadd.f32 %v3420, %v3472
        %v3474 = vpop.f32.mrb[0].mxu0
        %v3475 = vpop.f32.mrb[0].mxu0
        %v3476 = vadd.f32 %v3420, %v3475
        %v3477 = vpop.f32.mrb[0].mxu0
        %3478 = vdwg.mxu0
        %v3479 = vadd.f32 %v3473, 3.0
        %v3480 = vadd.f32 %v3476, 3.0
        %v3481 = vmax.f32 %v3479, 0.0
        %v3482 = vmax.f32 %v3480, 0.0
        %v3483 = vmin.f32 %v3481, 6.0
        %v3484 = vmin.f32 %v3482, 6.0
        %v3485 = vmul.f32 %v3483, 0.16666667
        %v3486 = vmul.f32 %v3484, 0.16666667
        %v3487 = vmul.f32 %v3473, %v3485
        %v3488 = vmul.f32 %v3476, %v3486
        %v3489 = vpack.c.bf16 %v3488, %v3487
        %v3490 = vld [vmem:[%s45] sm:$0xff]
        %v3491 = vld [vmem:[%s45 + $0x8] sm:$0xff]
        %v3492 = vld [vmem:[%s45 + $0x10] sm:$0xff]
        %v3493 = vld [vmem:[%s45 + $0x18] sm:$0x1]
        %v3494 = vld [vmem:[%s43] sm:$0x3]
        %v3496 = vsel %vm2419, %v3494, 0
        %3498 = vmatprep.subr.bf16.mxu0 0
        %3499 = vmatpush1.bf16.msra.mxu0 %v3489
        %3500 = vmatprep.subr.bf16.mxu0 0
        %3501 = vmatpush1.bf16.msra.mxu0 0
        %3502 = vmatprep.subr.bf16.mxu0 0
        %3503 = vmatpush1.bf16.msra.mxu0 0
        %3504 = vmatprep.subr.bf16.mxu0 0
        %3505 = vmatpush1.bf16.msra.mxu0 0
        %3506 = vmatprep.subr.bf16.mxu0 0
        %3507 = vmatpush1.bf16.msra.mxu0 0
        %3508 = vmatprep.subr.bf16.mxu0 0
        %3509 = vmatpush1.bf16.msra.mxu0 0
        %3510 = vmatprep.subr.bf16.mxu0 0
        %3511 = vmatpush1.bf16.msra.mxu0 0
        %3512 = vmatprep.subr.bf16.mxu0 0
        %3513 = vmatpush1.bf16.msra.mxu0 0
        %3514 = vmatprep.subr.bf16.mxu0 0
        %3515 = vmatpush1.bf16.msra.mxu0 0
        %3516 = vmatprep.subr.bf16.mxu0 0
        %3517 = vmatpush1.bf16.msra.mxu0 0
        %3518 = vmatprep.subr.bf16.mxu0 0
        %3519 = vmatpush1.bf16.msra.mxu0 0
        %3520 = vmatprep.subr.bf16.mxu0 0
        %3521 = vmatpush1.bf16.msra.mxu0 0
        %3522 = vmatprep.subr.bf16.mxu0 0
        %3523 = vmatpush1.bf16.msra.mxu0 0
        %3524 = vmatprep.subr.bf16.mxu0 0
        %3525 = vmatpush1.bf16.msra.mxu0 0
        %3526 = vmatprep.subr.bf16.mxu0 0
        %3527 = vmatpush1.bf16.msra.mxu0 0
        %3528 = vmatprep.subr.bf16.mxu0 0
        %3529 = vmatpush1.bf16.msra.mxu0 0
        %3530 = vmatprep.mubr.bf16.mxu0 0
        %3531 = vmatmul.mubr.bf16.gmra.mrb[0].mxu0 %v3496
        %v3532 = vpop.f32.mrb[0].mxu0
        %v3533 = vadd.f32 0.0, %v3532
        %v3534 = vpop.f32.mrb[0].mxu0
        %v3535 = vpop.f32.mrb[0].mxu0
        %v3536 = vpop.f32.mrb[0].mxu0
        %3537 = vdwg.mxu0
        %v3538 = vlaneseq
        %v3539 = vshrl.u32 %v3538, 7
        %v3540 = vsub.s32 0, %v3539
        %v3541 = vrot.slane %v3490, %v3540
        %v3542 = vmul.f32 %v3533, %v3541
        %v3543 = vadd.f32 %v3542, 0.0
        %s3544 = scalar_lea.vmem %s43, 2
        %v3545 = vld [vmem:[%s3544] sm:$0x3]
        %v3547 = vsel %vm2419, %v3545, 0
        %3549 = vmatprep.subr.bf16.mxu0 0
        %3550 = vmatpush1.bf16.msra.mxu0 %v3489
        %3551 = vmatprep.subr.bf16.mxu0 0
        %3552 = vmatpush1.bf16.msra.mxu0 0
        %3553 = vmatprep.subr.bf16.mxu0 0
        %3554 = vmatpush1.bf16.msra.mxu0 0
        %3555 = vmatprep.subr.bf16.mxu0 0
        %3556 = vmatpush1.bf16.msra.mxu0 0
        %3557 = vmatprep.subr.bf16.mxu0 0
        %3558 = vmatpush1.bf16.msra.mxu0 0
        %3559 = vmatprep.subr.bf16.mxu0 0
        %3560 = vmatpush1.bf16.msra.mxu0 0
        %3561 = vmatprep.subr.bf16.mxu0 0
        %3562 = vmatpush1.bf16.msra.mxu0 0
        %3563 = vmatprep.subr.bf16.mxu0 0
        %3564 = vmatpush1.bf16.msra.mxu0 0
        %3565 = vmatprep.subr.bf16.mxu0 0
        %3566 = vmatpush1.bf16.msra.mxu0 0
        %3567 = vmatprep.subr.bf16.mxu0 0
        %3568 = vmatpush1.bf16.msra.mxu0 0
        %3569 = vmatprep.subr.bf16.mxu0 0
        %3570 = vmatpush1.bf16.msra.mxu0 0
        %3571 = vmatprep.subr.bf16.mxu0 0
        %3572 = vmatpush1.bf16.msra.mxu0 0
        %3573 = vmatprep.subr.bf16.mxu0 0
        %3574 = vmatpush1.bf16.msra.mxu0 0
        %3575 = vmatprep.subr.bf16.mxu0 0
        %3576 = vmatpush1.bf16.msra.mxu0 0
        %3577 = vmatprep.subr.bf16.mxu0 0
        %3578 = vmatpush1.bf16.msra.mxu0 0
        %3579 = vmatprep.subr.bf16.mxu0 0
        %3580 = vmatpush1.bf16.msra.mxu0 0
        %3581 = vmatprep.mubr.bf16.mxu0 0
        %3582 = vmatmul.mubr.bf16.gmra.mrb[0].mxu0 %v3547
        %v3583 = vpop.f32.mrb[0].mxu0
        %v3584 = vadd.f32 0.0, %v3583
        %v3585 = vpop.f32.mrb[0].mxu0
        %v3586 = vpop.f32.mrb[0].mxu0
        %v3587 = vpop.f32.mrb[0].mxu0
        %3588 = vdwg.mxu0
        %v3589 = vlaneseq
        %v3590 = vshrl.u32 %v3589, 7
        %v3591 = vsub.s32 1, %v3590
        %v3592 = vrot.slane %v3490, %v3591
        %v3593 = vmul.f32 %v3584, %v3592
        %v3594 = vadd.f32 %v3543, %v3593
        %s3595 = scalar_lea.vmem %s43, 4
        %v3596 = vld [vmem:[%s3595] sm:$0x3]
        %v3598 = vsel %vm2419, %v3596, 0
        %3600 = vmatprep.subr.bf16.mxu0 0
        %3601 = vmatpush1.bf16.msra.mxu0 %v3489
        %3602 = vmatprep.subr.bf16.mxu0 0
        %3603 = vmatpush1.bf16.msra.mxu0 0
        %3604 = vmatprep.subr.bf16.mxu0 0
        %3605 = vmatpush1.bf16.msra.mxu0 0
        %3606 = vmatprep.subr.bf16.mxu0 0
        %3607 = vmatpush1.bf16.msra.mxu0 0
        %3608 = vmatprep.subr.bf16.mxu0 0
        %3609 = vmatpush1.bf16.msra.mxu0 0
        %3610 = vmatprep.subr.bf16.mxu0 0
        %3611 = vmatpush1.bf16.msra.mxu0 0
        %3612 = vmatprep.subr.bf16.mxu0 0
        %3613 = vmatpush1.bf16.msra.mxu0 0
        %3614 = vmatprep.subr.bf16.mxu0 0
        %3615 = vmatpush1.bf16.msra.mxu0 0
        %3616 = vmatprep.subr.bf16.mxu0 0
        %3617 = vmatpush1.bf16.msra.mxu0 0
        %3618 = vmatprep.subr.bf16.mxu0 0
        %3619 = vmatpush1.bf16.msra.mxu0 0
        %3620 = vmatprep.subr.bf16.mxu0 0
        %3621 = vmatpush1.bf16.msra.mxu0 0
        %3622 = vmatprep.subr.bf16.mxu0 0
        %3623 = vmatpush1.bf16.msra.mxu0 0
        %3624 = vmatprep.subr.bf16.mxu0 0
        %3625 = vmatpush1.bf16.msra.mxu0 0
        %3626 = vmatprep.subr.bf16.mxu0 0
        %3627 = vmatpush1.bf16.msra.mxu0 0
        %3628 = vmatprep.subr.bf16.mxu0 0
        %3629 = vmatpush1.bf16.msra.mxu0 0
        %3630 = vmatprep.subr.bf16.mxu0 0
        %3631 = vmatpush1.bf16.msra.mxu0 0
        %3632 = vmatprep.mubr.bf16.mxu0 0
        %3633 = vmatmul.mubr.bf16.gmra.mrb[0].mxu0 %v3598
        %v3634 = vpop.f32.mrb[0].mxu0
        %v3635 = vadd.f32 0.0, %v3634
        %v3636 = vpop.f32.mrb[0].mxu0
        %v3637 = vpop.f32.mrb[0].mxu0
        %v3638 = vpop.f32.mrb[0].mxu0
        %3639 = vdwg.mxu0
        %v3640 = vlaneseq
        %v3641 = vshrl.u32 %v3640, 7
        %v3642 = vsub.s32 2, %v3641
        %v3643 = vrot.slane %v3490, %v3642
        %v3644 = vmul.f32 %v3635, %v3643
        %v3645 = vadd.f32 %v3594, %v3644
        %s3646 = scalar_lea.vmem %s43, 6
        %v3647 = vld [vmem:[%s3646] sm:$0x3]
        %v3649 = vsel %vm2419, %v3647, 0
        %3651 = vmatprep.subr.bf16.mxu0 0
        %3652 = vmatpush1.bf16.msra.mxu0 %v3489
        %3653 = vmatprep.subr.bf16.mxu0 0
        %3654 = vmatpush1.bf16.msra.mxu0 0
        %3655 = vmatprep.subr.bf16.mxu0 0
        %3656 = vmatpush1.bf16.msra.mxu0 0
        %3657 = vmatprep.subr.bf16.mxu0 0
        %3658 = vmatpush1.bf16.msra.mxu0 0
        %3659 = vmatprep.subr.bf16.mxu0 0
        %3660 = vmatpush1.bf16.msra.mxu0 0
        %3661 = vmatprep.subr.bf16.mxu0 0
        %3662 = vmatpush1.bf16.msra.mxu0 0
        %3663 = vmatprep.subr.bf16.mxu0 0
        %3664 = vmatpush1.bf16.msra.mxu0 0
        %3665 = vmatprep.subr.bf16.mxu0 0
        %3666 = vmatpush1.bf16.msra.mxu0 0
        %3667 = vmatprep.subr.bf16.mxu0 0
        %3668 = vmatpush1.bf16.msra.mxu0 0
        %3669 = vmatprep.subr.bf16.mxu0 0
        %3670 = vmatpush1.bf16.msra.mxu0 0
        %3671 = vmatprep.subr.bf16.mxu0 0
        %3672 = vmatpush1.bf16.msra.mxu0 0
        %3673 = vmatprep.subr.bf16.mxu0 0
        %3674 = vmatpush1.bf16.msra.mxu0 0
        %3675 = vmatprep.subr.bf16.mxu0 0
        %3676 = vmatpush1.bf16.msra.mxu0 0
        %3677 = vmatprep.subr.bf16.mxu0 0
        %3678 = vmatpush1.bf16.msra.mxu0 0
        %3679 = vmatprep.subr.bf16.mxu0 0
        %3680 = vmatpush1.bf16.msra.mxu0 0
        %3681 = vmatprep.subr.bf16.mxu0 0
        %3682 = vmatpush1.bf16.msra.mxu0 0
        %3683 = vmatprep.mubr.bf16.mxu0 0
        %3684 = vmatmul.mubr.bf16.gmra.mrb[0].mxu0 %v3649
        %v3685 = vpop.f32.mrb[0].mxu0
        %v3686 = vadd.f32 0.0, %v3685
        %v3687 = vpop.f32.mrb[0].mxu0
        %v3688 = vpop.f32.mrb[0].mxu0
        %v3689 = vpop.f32.mrb[0].mxu0
        %3690 = vdwg.mxu0
        %v3691 = vlaneseq
        %v3692 = vshrl.u32 %v3691, 7
        %v3693 = vsub.s32 3, %v3692
        %v3694 = vrot.slane %v3490, %v3693
        %v3695 = vmul.f32 %v3686, %v3694
        %v3696 = vadd.f32 %v3645, %v3695
        %s3697 = scalar_lea.vmem %s43, 8
        %v3698 = vld [vmem:[%s3697] sm:$0x3]
        %v3700 = vsel %vm2419, %v3698, 0
        %3702 = vmatprep.subr.bf16.mxu0 0
        %3703 = vmatpush1.bf16.msra.mxu0 %v3489
        %3704 = vmatprep.subr.bf16.mxu0 0
        %3705 = vmatpush1.bf16.msra.mxu0 0
        %3706 = vmatprep.subr.bf16.mxu0 0
        %3707 = vmatpush1.bf16.msra.mxu0 0
        %3708 = vmatprep.subr.bf16.mxu0 0
        %3709 = vmatpush1.bf16.msra.mxu0 0
        %3710 = vmatprep.subr.bf16.mxu0 0
        %3711 = vmatpush1.bf16.msra.mxu0 0
        %3712 = vmatprep.subr.bf16.mxu0 0
        %3713 = vmatpush1.bf16.msra.mxu0 0
        %3714 = vmatprep.subr.bf16.mxu0 0
        %3715 = vmatpush1.bf16.msra.mxu0 0
        %3716 = vmatprep.subr.bf16.mxu0 0
        %3717 = vmatpush1.bf16.msra.mxu0 0
        %3718 = vmatprep.subr.bf16.mxu0 0
        %3719 = vmatpush1.bf16.msra.mxu0 0
        %3720 = vmatprep.subr.bf16.mxu0 0
        %3721 = vmatpush1.bf16.msra.mxu0 0
        %3722 = vmatprep.subr.bf16.mxu0 0
        %3723 = vmatpush1.bf16.msra.mxu0 0
        %3724 = vmatprep.subr.bf16.mxu0 0
        %3725 = vmatpush1.bf16.msra.mxu0 0
        %3726 = vmatprep.subr.bf16.mxu0 0
        %3727 = vmatpush1.bf16.msra.mxu0 0
        %3728 = vmatprep.subr.bf16.mxu0 0
        %3729 = vmatpush1.bf16.msra.mxu0 0
        %3730 = vmatprep.subr.bf16.mxu0 0
        %3731 = vmatpush1.bf16.msra.mxu0 0
        %3732 = vmatprep.subr.bf16.mxu0 0
        %3733 = vmatpush1.bf16.msra.mxu0 0
        %3734 = vmatprep.mubr.bf16.mxu0 0
        %3735 = vmatmul.mubr.bf16.gmra.mrb[0].mxu0 %v3700
        %v3736 = vpop.f32.mrb[0].mxu0
        %v3737 = vadd.f32 0.0, %v3736
        %v3738 = vpop.f32.mrb[0].mxu0
        %v3739 = vpop.f32.mrb[0].mxu0
        %v3740 = vpop.f32.mrb[0].mxu0
        %3741 = vdwg.mxu0
        %v3742 = vlaneseq
        %v3743 = vshrl.u32 %v3742, 7
        %v3744 = vsub.s32 4, %v3743
        %v3745 = vrot.slane %v3490, %v3744
        %v3746 = vmul.f32 %v3737, %v3745
        %v3747 = vadd.f32 %v3696, %v3746
        %s3748 = scalar_lea.vmem %s43, 10
        %v3749 = vld [vmem:[%s3748] sm:$0x3]
        %v3751 = vsel %vm2419, %v3749, 0
        %3753 = vmatprep.subr.bf16.mxu0 0
        %3754 = vmatpush1.bf16.msra.mxu0 %v3489
        %3755 = vmatprep.subr.bf16.mxu0 0
        %3756 = vmatpush1.bf16.msra.mxu0 0
        %3757 = vmatprep.subr.bf16.mxu0 0
        %3758 = vmatpush1.bf16.msra.mxu0 0
        %3759 = vmatprep.subr.bf16.mxu0 0
        %3760 = vmatpush1.bf16.msra.mxu0 0
        %3761 = vmatprep.subr.bf16.mxu0 0
        %3762 = vmatpush1.bf16.msra.mxu0 0
        %3763 = vmatprep.subr.bf16.mxu0 0
        %3764 = vmatpush1.bf16.msra.mxu0 0
        %3765 = vmatprep.subr.bf16.mxu0 0
        %3766 = vmatpush1.bf16.msra.mxu0 0
        %3767 = vmatprep.subr.bf16.mxu0 0
        %3768 = vmatpush1.bf16.msra.mxu0 0
        %3769 = vmatprep.subr.bf16.mxu0 0
        %3770 = vmatpush1.bf16.msra.mxu0 0
        %3771 = vmatprep.subr.bf16.mxu0 0
        %3772 = vmatpush1.bf16.msra.mxu0 0
        %3773 = vmatprep.subr.bf16.mxu0 0
        %3774 = vmatpush1.bf16.msra.mxu0 0
        %3775 = vmatprep.subr.bf16.mxu0 0
        %3776 = vmatpush1.bf16.msra.mxu0 0
        %3777 = vmatprep.subr.bf16.mxu0 0
        %3778 = vmatpush1.bf16.msra.mxu0 0
        %3779 = vmatprep.subr.bf16.mxu0 0
        %3780 = vmatpush1.bf16.msra.mxu0 0
        %3781 = vmatprep.subr.bf16.mxu0 0
        %3782 = vmatpush1.bf16.msra.mxu0 0
        %3783 = vmatprep.subr.bf16.mxu0 0
        %3784 = vmatpush1.bf16.msra.mxu0 0
        %3785 = vmatprep.mubr.bf16.mxu0 0
        %3786 = vmatmul.mubr.bf16.gmra.mrb[0].mxu0 %v3751
        %v3787 = vpop.f32.mrb[0].mxu0
        %v3788 = vadd.f32 0.0, %v3787
        %v3789 = vpop.f32.mrb[0].mxu0
        %v3790 = vpop.f32.mrb[0].mxu0
        %v3791 = vpop.f32.mrb[0].mxu0
        %3792 = vdwg.mxu0
        %v3793 = vlaneseq
        %v3794 = vshrl.u32 %v3793, 7
        %v3795 = vsub.s32 5, %v3794
        %v3796 = vrot.slane %v3490, %v3795
        %v3797 = vmul.f32 %v3788, %v3796
        %v3798 = vadd.f32 %v3747, %v3797
        %s3799 = scalar_lea.vmem %s43, 12
        %v3800 = vld [vmem:[%s3799] sm:$0x3]
        %v3802 = vsel %vm2419, %v3800, 0
        %3804 = vmatprep.subr.bf16.mxu0 0
        %3805 = vmatpush1.bf16.msra.mxu0 %v3489
        %3806 = vmatprep.subr.bf16.mxu0 0
        %3807 = vmatpush1.bf16.msra.mxu0 0
        %3808 = vmatprep.subr.bf16.mxu0 0
        %3809 = vmatpush1.bf16.msra.mxu0 0
        %3810 = vmatprep.subr.bf16.mxu0 0
        %3811 = vmatpush1.bf16.msra.mxu0 0
        %3812 = vmatprep.subr.bf16.mxu0 0
        %3813 = vmatpush1.bf16.msra.mxu0 0
        %3814 = vmatprep.subr.bf16.mxu0 0
        %3815 = vmatpush1.bf16.msra.mxu0 0
        %3816 = vmatprep.subr.bf16.mxu0 0
        %3817 = vmatpush1.bf16.msra.mxu0 0
        %3818 = vmatprep.subr.bf16.mxu0 0
        %3819 = vmatpush1.bf16.msra.mxu0 0
        %3820 = vmatprep.subr.bf16.mxu0 0
        %3821 = vmatpush1.bf16.msra.mxu0 0
        %3822 = vmatprep.subr.bf16.mxu0 0
        %3823 = vmatpush1.bf16.msra.mxu0 0
        %3824 = vmatprep.subr.bf16.mxu0 0
        %3825 = vmatpush1.bf16.msra.mxu0 0
        %3826 = vmatprep.subr.bf16.mxu0 0
        %3827 = vmatpush1.bf16.msra.mxu0 0
        %3828 = vmatprep.subr.bf16.mxu0 0
        %3829 = vmatpush1.bf16.msra.mxu0 0
        %3830 = vmatprep.subr.bf16.mxu0 0
        %3831 = vmatpush1.bf16.msra.mxu0 0
        %3832 = vmatprep.subr.bf16.mxu0 0
        %3833 = vmatpush1.bf16.msra.mxu0 0
        %3834 = vmatprep.subr.bf16.mxu0 0
        %3835 = vmatpush1.bf16.msra.mxu0 0
        %3836 = vmatprep.mubr.bf16.mxu0 0
        %3837 = vmatmul.mubr.bf16.gmra.mrb[0].mxu0 %v3802
        %v3838 = vpop.f32.mrb[0].mxu0
        %v3839 = vadd.f32 0.0, %v3838
        %v3840 = vpop.f32.mrb[0].mxu0
        %v3841 = vpop.f32.mrb[0].mxu0
        %v3842 = vpop.f32.mrb[0].mxu0
        %3843 = vdwg.mxu0
        %v3844 = vlaneseq
        %v3845 = vshrl.u32 %v3844, 7
        %v3846 = vsub.s32 6, %v3845
        %v3847 = vrot.slane %v3490, %v3846
        %v3848 = vmul.f32 %v3839, %v3847
        %v3849 = vadd.f32 %v3798, %v3848
        %s3850 = scalar_lea.vmem %s43, 14
        %v3851 = vld [vmem:[%s3850] sm:$0x3]
        %v3853 = vsel %vm2419, %v3851, 0
        %3855 = vmatprep.subr.bf16.mxu0 0
        %3856 = vmatpush1.bf16.msra.mxu0 %v3489
        %3857 = vmatprep.subr.bf16.mxu0 0
        %3858 = vmatpush1.bf16.msra.mxu0 0
        %3859 = vmatprep.subr.bf16.mxu0 0
        %3860 = vmatpush1.bf16.msra.mxu0 0
        %3861 = vmatprep.subr.bf16.mxu0 0
        %3862 = vmatpush1.bf16.msra.mxu0 0
        %3863 = vmatprep.subr.bf16.mxu0 0
        %3864 = vmatpush1.bf16.msra.mxu0 0
        %3865 = vmatprep.subr.bf16.mxu0 0
        %3866 = vmatpush1.bf16.msra.mxu0 0
        %3867 = vmatprep.subr.bf16.mxu0 0
        %3868 = vmatpush1.bf16.msra.mxu0 0
        %3869 = vmatprep.subr.bf16.mxu0 0
        %3870 = vmatpush1.bf16.msra.mxu0 0
        %3871 = vmatprep.subr.bf16.mxu0 0
        %3872 = vmatpush1.bf16.msra.mxu0 0
        %3873 = vmatprep.subr.bf16.mxu0 0
        %3874 = vmatpush1.bf16.msra.mxu0 0
        %3875 = vmatprep.subr.bf16.mxu0 0
        %3876 = vmatpush1.bf16.msra.mxu0 0
        %3877 = vmatprep.subr.bf16.mxu0 0
        %3878 = vmatpush1.bf16.msra.mxu0 0
        %3879 = vmatprep.subr.bf16.mxu0 0
        %3880 = vmatpush1.bf16.msra.mxu0 0
        %3881 = vmatprep.subr.bf16.mxu0 0
        %3882 = vmatpush1.bf16.msra.mxu0 0
        %3883 = vmatprep.subr.bf16.mxu0 0
        %3884 = vmatpush1.bf16.msra.mxu0 0
        %3885 = vmatprep.subr.bf16.mxu0 0
        %3886 = vmatpush1.bf16.msra.mxu0 0
        %3887 = vmatprep.mubr.bf16.mxu0 0
        %3888 = vmatmul.mubr.bf16.gmra.mrb[0].mxu0 %v3853
        %v3889 = vpop.f32.mrb[0].mxu0
        %v3890 = vadd.f32 0.0, %v3889
        %v3891 = vpop.f32.mrb[0].mxu0
        %v3892 = vpop.f32.mrb[0].mxu0
        %v3893 = vpop.f32.mrb[0].mxu0
        %3894 = vdwg.mxu0
        %v3895 = vlaneseq
        %v3896 = vshrl.u32 %v3895, 7
        %v3897 = vsub.s32 7, %v3896
        %v3898 = vrot.slane %v3490, %v3897
        %v3899 = vmul.f32 %v3890, %v3898
        %v3900 = vadd.f32 %v3849, %v3899
        %s3901 = scalar_lea.vmem %s43, 16
        %v3902 = vld [vmem:[%s3901] sm:$0x3]
        %v3904 = vsel %vm2419, %v3902, 0
        %3906 = vmatprep.subr.bf16.mxu0 0
        %3907 = vmatpush1.bf16.msra.mxu0 %v3489
        %3908 = vmatprep.subr.bf16.mxu0 0
        %3909 = vmatpush1.bf16.msra.mxu0 0
        %3910 = vmatprep.subr.bf16.mxu0 0
        %3911 = vmatpush1.bf16.msra.mxu0 0
        %3912 = vmatprep.subr.bf16.mxu0 0
        %3913 = vmatpush1.bf16.msra.mxu0 0
        %3914 = vmatprep.subr.bf16.mxu0 0
        %3915 = vmatpush1.bf16.msra.mxu0 0
        %3916 = vmatprep.subr.bf16.mxu0 0
        %3917 = vmatpush1.bf16.msra.mxu0 0
        %3918 = vmatprep.subr.bf16.mxu0 0
        %3919 = vmatpush1.bf16.msra.mxu0 0
        %3920 = vmatprep.subr.bf16.mxu0 0
        %3921 = vmatpush1.bf16.msra.mxu0 0
        %3922 = vmatprep.subr.bf16.mxu0 0
        %3923 = vmatpush1.bf16.msra.mxu0 0
        %3924 = vmatprep.subr.bf16.mxu0 0
        %3925 = vmatpush1.bf16.msra.mxu0 0
        %3926 = vmatprep.subr.bf16.mxu0 0
        %3927 = vmatpush1.bf16.msra.mxu0 0
        %3928 = vmatprep.subr.bf16.mxu0 0
        %3929 = vmatpush1.bf16.msra.mxu0 0
        %3930 = vmatprep.subr.bf16.mxu0 0
        %3931 = vmatpush1.bf16.msra.mxu0 0
        %3932 = vmatprep.subr.bf16.mxu0 0
        %3933 = vmatpush1.bf16.msra.mxu0 0
        %3934 = vmatprep.subr.bf16.mxu0 0
        %3935 = vmatpush1.bf16.msra.mxu0 0
        %3936 = vmatprep.subr.bf16.mxu0 0
        %3937 = vmatpush1.bf16.msra.mxu0 0
        %3938 = vmatprep.mubr.bf16.mxu0 0
        %3939 = vmatmul.mubr.bf16.gmra.mrb[0].mxu0 %v3904
        %v3940 = vpop.f32.mrb[0].mxu0
        %v3941 = vadd.f32 0.0, %v3940
        %v3942 = vpop.f32.mrb[0].mxu0
        %v3943 = vpop.f32.mrb[0].mxu0
        %v3944 = vpop.f32.mrb[0].mxu0
        %3945 = vdwg.mxu0
        %v3946 = vlaneseq
        %v3947 = vshrl.u32 %v3946, 7
        %v3948 = vsub.s32 0, %v3947
        %v3949 = vrot.slane %v3491, %v3948
        %v3950 = vmul.f32 %v3941, %v3949
        %v3951 = vadd.f32 %v3900, %v3950
        %s3952 = scalar_lea.vmem %s43, 18
        %v3953 = vld [vmem:[%s3952] sm:$0x3]
        %v3955 = vsel %vm2419, %v3953, 0
        %3957 = vmatprep.subr.bf16.mxu0 0
        %3958 = vmatpush1.bf16.msra.mxu0 %v3489
        %3959 = vmatprep.subr.bf16.mxu0 0
        %3960 = vmatpush1.bf16.msra.mxu0 0
        %3961 = vmatprep.subr.bf16.mxu0 0
        %3962 = vmatpush1.bf16.msra.mxu0 0
        %3963 = vmatprep.subr.bf16.mxu0 0
        %3964 = vmatpush1.bf16.msra.mxu0 0
        %3965 = vmatprep.subr.bf16.mxu0 0
        %3966 = vmatpush1.bf16.msra.mxu0 0
        %3967 = vmatprep.subr.bf16.mxu0 0
        %3968 = vmatpush1.bf16.msra.mxu0 0
        %3969 = vmatprep.subr.bf16.mxu0 0
        %3970 = vmatpush1.bf16.msra.mxu0 0
        %3971 = vmatprep.subr.bf16.mxu0 0
        %3972 = vmatpush1.bf16.msra.mxu0 0
        %3973 = vmatprep.subr.bf16.mxu0 0
        %3974 = vmatpush1.bf16.msra.mxu0 0
        %3975 = vmatprep.subr.bf16.mxu0 0
        %3976 = vmatpush1.bf16.msra.mxu0 0
        %3977 = vmatprep.subr.bf16.mxu0 0
        %3978 = vmatpush1.bf16.msra.mxu0 0
        %3979 = vmatprep.subr.bf16.mxu0 0
        %3980 = vmatpush1.bf16.msra.mxu0 0
        %3981 = vmatprep.subr.bf16.mxu0 0
        %3982 = vmatpush1.bf16.msra.mxu0 0
        %3983 = vmatprep.subr.bf16.mxu0 0
        %3984 = vmatpush1.bf16.msra.mxu0 0
        %3985 = vmatprep.subr.bf16.mxu0 0
        %3986 = vmatpush1.bf16.msra.mxu0 0
        %3987 = vmatprep.subr.bf16.mxu0 0
        %3988 = vmatpush1.bf16.msra.mxu0 0
        %3989 = vmatprep.mubr.bf16.mxu0 0
        %3990 = vmatmul.mubr.bf16.gmra.mrb[0].mxu0 %v3955
        %v3991 = vpop.f32.mrb[0].mxu0
        %v3992 = vadd.f32 0.0, %v3991
        %v3993 = vpop.f32.mrb[0].mxu0
        %v3994 = vpop.f32.mrb[0].mxu0
        %v3995 = vpop.f32.mrb[0].mxu0
        %3996 = vdwg.mxu0
        %v3997 = vlaneseq
        %v3998 = vshrl.u32 %v3997, 7
        %v3999 = vsub.s32 1, %v3998
        %v4000 = vrot.slane %v3491, %v3999
        %v4001 = vmul.f32 %v3992, %v4000
        %v4002 = vadd.f32 %v3951, %v4001
        %s4003 = scalar_lea.vmem %s43, 20
        %v4004 = vld [vmem:[%s4003] sm:$0x3]
        %v4006 = vsel %vm2419, %v4004, 0
        %4008 = vmatprep.subr.bf16.mxu0 0
        %4009 = vmatpush1.bf16.msra.mxu0 %v3489
        %4010 = vmatprep.subr.bf16.mxu0 0
        %4011 = vmatpush1.bf16.msra.mxu0 0
        %4012 = vmatprep.subr.bf16.mxu0 0
        %4013 = vmatpush1.bf16.msra.mxu0 0
        %4014 = vmatprep.subr.bf16.mxu0 0
        %4015 = vmatpush1.bf16.msra.mxu0 0
        %4016 = vmatprep.subr.bf16.mxu0 0
        %4017 = vmatpush1.bf16.msra.mxu0 0
        %4018 = vmatprep.subr.bf16.mxu0 0
        %4019 = vmatpush1.bf16.msra.mxu0 0
        %4020 = vmatprep.subr.bf16.mxu0 0
        %4021 = vmatpush1.bf16.msra.mxu0 0
        %4022 = vmatprep.subr.bf16.mxu0 0
        %4023 = vmatpush1.bf16.msra.mxu0 0
        %4024 = vmatprep.subr.bf16.mxu0 0
        %4025 = vmatpush1.bf16.msra.mxu0 0
        %4026 = vmatprep.subr.bf16.mxu0 0
        %4027 = vmatpush1.bf16.msra.mxu0 0
        %4028 = vmatprep.subr.bf16.mxu0 0
        %4029 = vmatpush1.bf16.msra.mxu0 0
        %4030 = vmatprep.subr.bf16.mxu0 0
        %4031 = vmatpush1.bf16.msra.mxu0 0
        %4032 = vmatprep.subr.bf16.mxu0 0
        %4033 = vmatpush1.bf16.msra.mxu0 0
        %4034 = vmatprep.subr.bf16.mxu0 0
        %4035 = vmatpush1.bf16.msra.mxu0 0
        %4036 = vmatprep.subr.bf16.mxu0 0
        %4037 = vmatpush1.bf16.msra.mxu0 0
        %4038 = vmatprep.subr.bf16.mxu0 0
        %4039 = vmatpush1.bf16.msra.mxu0 0
        %4040 = vmatprep.mubr.bf16.mxu0 0
        %4041 = vmatmul.mubr.bf16.gmra.mrb[0].mxu0 %v4006
        %v4042 = vpop.f32.mrb[0].mxu0
        %v4043 = vadd.f32 0.0, %v4042
        %v4044 = vpop.f32.mrb[0].mxu0
        %v4045 = vpop.f32.mrb[0].mxu0
        %v4046 = vpop.f32.mrb[0].mxu0
        %4047 = vdwg.mxu0
        %v4048 = vlaneseq
        %v4049 = vshrl.u32 %v4048, 7
        %v4050 = vsub.s32 2, %v4049
        %v4051 = vrot.slane %v3491, %v4050
        %v4052 = vmul.f32 %v4043, %v4051
        %v4053 = vadd.f32 %v4002, %v4052
        %s4054 = scalar_lea.vmem %s43, 22
        %v4055 = vld [vmem:[%s4054] sm:$0x3]
        %v4057 = vsel %vm2419, %v4055, 0
        %4059 = vmatprep.subr.bf16.mxu0 0
        %4060 = vmatpush1.bf16.msra.mxu0 %v3489
        %4061 = vmatprep.subr.bf16.mxu0 0
        %4062 = vmatpush1.bf16.msra.mxu0 0
        %4063 = vmatprep.subr.bf16.mxu0 0
        %4064 = vmatpush1.bf16.msra.mxu0 0
        %4065 = vmatprep.subr.bf16.mxu0 0
        %4066 = vmatpush1.bf16.msra.mxu0 0
        %4067 = vmatprep.subr.bf16.mxu0 0
        %4068 = vmatpush1.bf16.msra.mxu0 0
        %4069 = vmatprep.subr.bf16.mxu0 0
        %4070 = vmatpush1.bf16.msra.mxu0 0
        %4071 = vmatprep.subr.bf16.mxu0 0
        %4072 = vmatpush1.bf16.msra.mxu0 0
        %4073 = vmatprep.subr.bf16.mxu0 0
        %4074 = vmatpush1.bf16.msra.mxu0 0
        %4075 = vmatprep.subr.bf16.mxu0 0
        %4076 = vmatpush1.bf16.msra.mxu0 0
        %4077 = vmatprep.subr.bf16.mxu0 0
        %4078 = vmatpush1.bf16.msra.mxu0 0
        %4079 = vmatprep.subr.bf16.mxu0 0
        %4080 = vmatpush1.bf16.msra.mxu0 0
        %4081 = vmatprep.subr.bf16.mxu0 0
        %4082 = vmatpush1.bf16.msra.mxu0 0
        %4083 = vmatprep.subr.bf16.mxu0 0
        %4084 = vmatpush1.bf16.msra.mxu0 0
        %4085 = vmatprep.subr.bf16.mxu0 0
        %4086 = vmatpush1.bf16.msra.mxu0 0
        %4087 = vmatprep.subr.bf16.mxu0 0
        %4088 = vmatpush1.bf16.msra.mxu0 0
        %4089 = vmatprep.subr.bf16.mxu0 0
        %4090 = vmatpush1.bf16.msra.mxu0 0
        %4091 = vmatprep.mubr.bf16.mxu0 0
        %4092 = vmatmul.mubr.bf16.gmra.mrb[0].mxu0 %v4057
        %v4093 = vpop.f32.mrb[0].mxu0
        %v4094 = vadd.f32 0.0, %v4093
        %v4095 = vpop.f32.mrb[0].mxu0
        %v4096 = vpop.f32.mrb[0].mxu0
        %v4097 = vpop.f32.mrb[0].mxu0
        %4098 = vdwg.mxu0
        %v4099 = vlaneseq
        %v4100 = vshrl.u32 %v4099, 7
        %v4101 = vsub.s32 3, %v4100
        %v4102 = vrot.slane %v3491, %v4101
        %v4103 = vmul.f32 %v4094, %v4102
        %v4104 = vadd.f32 %v4053, %v4103
        %s4105 = scalar_lea.vmem %s43, 24
        %v4106 = vld [vmem:[%s4105] sm:$0x3]
        %v4108 = vsel %vm2419, %v4106, 0
        %4110 = vmatprep.subr.bf16.mxu0 0
        %4111 = vmatpush1.bf16.msra.mxu0 %v3489
        %4112 = vmatprep.subr.bf16.mxu0 0
        %4113 = vmatpush1.bf16.msra.mxu0 0
        %4114 = vmatprep.subr.bf16.mxu0 0
        %4115 = vmatpush1.bf16.msra.mxu0 0
        %4116 = vmatprep.subr.bf16.mxu0 0
        %4117 = vmatpush1.bf16.msra.mxu0 0
        %4118 = vmatprep.subr.bf16.mxu0 0
        %4119 = vmatpush1.bf16.msra.mxu0 0
        %4120 = vmatprep.subr.bf16.mxu0 0
        %4121 = vmatpush1.bf16.msra.mxu0 0
        %4122 = vmatprep.subr.bf16.mxu0 0
        %4123 = vmatpush1.bf16.msra.mxu0 0
        %4124 = vmatprep.subr.bf16.mxu0 0
        %4125 = vmatpush1.bf16.msra.mxu0 0
        %4126 = vmatprep.subr.bf16.mxu0 0
        %4127 = vmatpush1.bf16.msra.mxu0 0
        %4128 = vmatprep.subr.bf16.mxu0 0
        %4129 = vmatpush1.bf16.msra.mxu0 0
        %4130 = vmatprep.subr.bf16.mxu0 0
        %4131 = vmatpush1.bf16.msra.mxu0 0
        %4132 = vmatprep.subr.bf16.mxu0 0
        %4133 = vmatpush1.bf16.msra.mxu0 0
        %4134 = vmatprep.subr.bf16.mxu0 0
        %4135 = vmatpush1.bf16.msra.mxu0 0
        %4136 = vmatprep.subr.bf16.mxu0 0
        %4137 = vmatpush1.bf16.msra.mxu0 0
        %4138 = vmatprep.subr.bf16.mxu0 0
        %4139 = vmatpush1.bf16.msra.mxu0 0
        %4140 = vmatprep.subr.bf16.mxu0 0
        %4141 = vmatpush1.bf16.msra.mxu0 0
        %4142 = vmatprep.mubr.bf16.mxu0 0
        %4143 = vmatmul.mubr.bf16.gmra.mrb[0].mxu0 %v4108
        %v4144 = vpop.f32.mrb[0].mxu0
        %v4145 = vadd.f32 0.0, %v4144
        %v4146 = vpop.f32.mrb[0].mxu0
        %v4147 = vpop.f32.mrb[0].mxu0
        %v4148 = vpop.f32.mrb[0].mxu0
        %4149 = vdwg.mxu0
        %v4150 = vlaneseq
        %v4151 = vshrl.u32 %v4150, 7
        %v4152 = vsub.s32 4, %v4151
        %v4153 = vrot.slane %v3491, %v4152
        %v4154 = vmul.f32 %v4145, %v4153
        %v4155 = vadd.f32 %v4104, %v4154
        %s4156 = scalar_lea.vmem %s43, 26
        %v4157 = vld [vmem:[%s4156] sm:$0x3]
        %v4159 = vsel %vm2419, %v4157, 0
        %4161 = vmatprep.subr.bf16.mxu0 0
        %4162 = vmatpush1.bf16.msra.mxu0 %v3489
        %4163 = vmatprep.subr.bf16.mxu0 0
        %4164 = vmatpush1.bf16.msra.mxu0 0
        %4165 = vmatprep.subr.bf16.mxu0 0
        %4166 = vmatpush1.bf16.msra.mxu0 0
        %4167 = vmatprep.subr.bf16.mxu0 0
        %4168 = vmatpush1.bf16.msra.mxu0 0
        %4169 = vmatprep.subr.bf16.mxu0 0
        %4170 = vmatpush1.bf16.msra.mxu0 0
        %4171 = vmatprep.subr.bf16.mxu0 0
        %4172 = vmatpush1.bf16.msra.mxu0 0
        %4173 = vmatprep.subr.bf16.mxu0 0
        %4174 = vmatpush1.bf16.msra.mxu0 0
        %4175 = vmatprep.subr.bf16.mxu0 0
        %4176 = vmatpush1.bf16.msra.mxu0 0
        %4177 = vmatprep.subr.bf16.mxu0 0
        %4178 = vmatpush1.bf16.msra.mxu0 0
        %4179 = vmatprep.subr.bf16.mxu0 0
        %4180 = vmatpush1.bf16.msra.mxu0 0
        %4181 = vmatprep.subr.bf16.mxu0 0
        %4182 = vmatpush1.bf16.msra.mxu0 0
        %4183 = vmatprep.subr.bf16.mxu0 0
        %4184 = vmatpush1.bf16.msra.mxu0 0
        %4185 = vmatprep.subr.bf16.mxu0 0
        %4186 = vmatpush1.bf16.msra.mxu0 0
        %4187 = vmatprep.subr.bf16.mxu0 0
        %4188 = vmatpush1.bf16.msra.mxu0 0
        %4189 = vmatprep.subr.bf16.mxu0 0
        %4190 = vmatpush1.bf16.msra.mxu0 0
        %4191 = vmatprep.subr.bf16.mxu0 0
        %4192 = vmatpush1.bf16.msra.mxu0 0
        %4193 = vmatprep.mubr.bf16.mxu0 0
        %4194 = vmatmul.mubr.bf16.gmra.mrb[0].mxu0 %v4159
        %v4195 = vpop.f32.mrb[0].mxu0
        %v4196 = vadd.f32 0.0, %v4195
        %v4197 = vpop.f32.mrb[0].mxu0
        %v4198 = vpop.f32.mrb[0].mxu0
        %v4199 = vpop.f32.mrb[0].mxu0
        %4200 = vdwg.mxu0
        %v4201 = vlaneseq
        %v4202 = vshrl.u32 %v4201, 7
        %v4203 = vsub.s32 5, %v4202
        %v4204 = vrot.slane %v3491, %v4203
        %v4205 = vmul.f32 %v4196, %v4204
        %v4206 = vadd.f32 %v4155, %v4205
        %s4207 = scalar_lea.vmem %s43, 28
        %v4208 = vld [vmem:[%s4207] sm:$0x3]
        %v4210 = vsel %vm2419, %v4208, 0
        %4212 = vmatprep.subr.bf16.mxu0 0
        %4213 = vmatpush1.bf16.msra.mxu0 %v3489
        %4214 = vmatprep.subr.bf16.mxu0 0
        %4215 = vmatpush1.bf16.msra.mxu0 0
        %4216 = vmatprep.subr.bf16.mxu0 0
        %4217 = vmatpush1.bf16.msra.mxu0 0
        %4218 = vmatprep.subr.bf16.mxu0 0
        %4219 = vmatpush1.bf16.msra.mxu0 0
        %4220 = vmatprep.subr.bf16.mxu0 0
        %4221 = vmatpush1.bf16.msra.mxu0 0
        %4222 = vmatprep.subr.bf16.mxu0 0
        %4223 = vmatpush1.bf16.msra.mxu0 0
        %4224 = vmatprep.subr.bf16.mxu0 0
        %4225 = vmatpush1.bf16.msra.mxu0 0
        %4226 = vmatprep.subr.bf16.mxu0 0
        %4227 = vmatpush1.bf16.msra.mxu0 0
        %4228 = vmatprep.subr.bf16.mxu0 0
        %4229 = vmatpush1.bf16.msra.mxu0 0
        %4230 = vmatprep.subr.bf16.mxu0 0
        %4231 = vmatpush1.bf16.msra.mxu0 0
        %4232 = vmatprep.subr.bf16.mxu0 0
        %4233 = vmatpush1.bf16.msra.mxu0 0
        %4234 = vmatprep.subr.bf16.mxu0 0
        %4235 = vmatpush1.bf16.msra.mxu0 0
        %4236 = vmatprep.subr.bf16.mxu0 0
        %4237 = vmatpush1.bf16.msra.mxu0 0
        %4238 = vmatprep.subr.bf16.mxu0 0
        %4239 = vmatpush1.bf16.msra.mxu0 0
        %4240 = vmatprep.subr.bf16.mxu0 0
        %4241 = vmatpush1.bf16.msra.mxu0 0
        %4242 = vmatprep.subr.bf16.mxu0 0
        %4243 = vmatpush1.bf16.msra.mxu0 0
        %4244 = vmatprep.mubr.bf16.mxu0 0
        %4245 = vmatmul.mubr.bf16.gmra.mrb[0].mxu0 %v4210
        %v4246 = vpop.f32.mrb[0].mxu0
        %v4247 = vadd.f32 0.0, %v4246
        %v4248 = vpop.f32.mrb[0].mxu0
        %v4249 = vpop.f32.mrb[0].mxu0
        %v4250 = vpop.f32.mrb[0].mxu0
        %4251 = vdwg.mxu0
        %v4252 = vlaneseq
        %v4253 = vshrl.u32 %v4252, 7
        %v4254 = vsub.s32 6, %v4253
        %v4255 = vrot.slane %v3491, %v4254
        %v4256 = vmul.f32 %v4247, %v4255
        %v4257 = vadd.f32 %v4206, %v4256
        %s4258 = scalar_lea.vmem %s43, 30
        %v4259 = vld [vmem:[%s4258] sm:$0x3]
        %v4261 = vsel %vm2419, %v4259, 0
        %4263 = vmatprep.subr.bf16.mxu0 0
        %4264 = vmatpush1.bf16.msra.mxu0 %v3489
        %4265 = vmatprep.subr.bf16.mxu0 0
        %4266 = vmatpush1.bf16.msra.mxu0 0
        %4267 = vmatprep.subr.bf16.mxu0 0
        %4268 = vmatpush1.bf16.msra.mxu0 0
        %4269 = vmatprep.subr.bf16.mxu0 0
        %4270 = vmatpush1.bf16.msra.mxu0 0
        %4271 = vmatprep.subr.bf16.mxu0 0
        %4272 = vmatpush1.bf16.msra.mxu0 0
        %4273 = vmatprep.subr.bf16.mxu0 0
        %4274 = vmatpush1.bf16.msra.mxu0 0
        %4275 = vmatprep.subr.bf16.mxu0 0
        %4276 = vmatpush1.bf16.msra.mxu0 0
        %4277 = vmatprep.subr.bf16.mxu0 0
        %4278 = vmatpush1.bf16.msra.mxu0 0
        %4279 = vmatprep.subr.bf16.mxu0 0
        %4280 = vmatpush1.bf16.msra.mxu0 0
        %4281 = vmatprep.subr.bf16.mxu0 0
        %4282 = vmatpush1.bf16.msra.mxu0 0
        %4283 = vmatprep.subr.bf16.mxu0 0
        %4284 = vmatpush1.bf16.msra.mxu0 0
        %4285 = vmatprep.subr.bf16.mxu0 0
        %4286 = vmatpush1.bf16.msra.mxu0 0
        %4287 = vmatprep.subr.bf16.mxu0 0
        %4288 = vmatpush1.bf16.msra.mxu0 0
        %4289 = vmatprep.subr.bf16.mxu0 0
        %4290 = vmatpush1.bf16.msra.mxu0 0
        %4291 = vmatprep.subr.bf16.mxu0 0
        %4292 = vmatpush1.bf16.msra.mxu0 0
        %4293 = vmatprep.subr.bf16.mxu0 0
        %4294 = vmatpush1.bf16.msra.mxu0 0
        %4295 = vmatprep.mubr.bf16.mxu0 0
        %4296 = vmatmul.mubr.bf16.gmra.mrb[0].mxu0 %v4261
        %v4297 = vpop.f32.mrb[0].mxu0
        %v4298 = vadd.f32 0.0, %v4297
        %v4299 = vpop.f32.mrb[0].mxu0
        %v4300 = vpop.f32.mrb[0].mxu0
        %v4301 = vpop.f32.mrb[0].mxu0
        %4302 = vdwg.mxu0
        %v4303 = vlaneseq
        %v4304 = vshrl.u32 %v4303, 7
        %v4305 = vsub.s32 7, %v4304
        %v4306 = vrot.slane %v3491, %v4305
        %v4307 = vmul.f32 %v4298, %v4306
        %v4308 = vadd.f32 %v4257, %v4307
        %s4309 = scalar_lea.vmem %s43, 32
        %v4310 = vld [vmem:[%s4309] sm:$0x3]
        %v4312 = vsel %vm2419, %v4310, 0
        %4314 = vmatprep.subr.bf16.mxu0 0
        %4315 = vmatpush1.bf16.msra.mxu0 %v3489
        %4316 = vmatprep.subr.bf16.mxu0 0
        %4317 = vmatpush1.bf16.msra.mxu0 0
        %4318 = vmatprep.subr.bf16.mxu0 0
        %4319 = vmatpush1.bf16.msra.mxu0 0
        %4320 = vmatprep.subr.bf16.mxu0 0
        %4321 = vmatpush1.bf16.msra.mxu0 0
        %4322 = vmatprep.subr.bf16.mxu0 0
        %4323 = vmatpush1.bf16.msra.mxu0 0
        %4324 = vmatprep.subr.bf16.mxu0 0
        %4325 = vmatpush1.bf16.msra.mxu0 0
        %4326 = vmatprep.subr.bf16.mxu0 0
        %4327 = vmatpush1.bf16.msra.mxu0 0
        %4328 = vmatprep.subr.bf16.mxu0 0
        %4329 = vmatpush1.bf16.msra.mxu0 0
        %4330 = vmatprep.subr.bf16.mxu0 0
        %4331 = vmatpush1.bf16.msra.mxu0 0
        %4332 = vmatprep.subr.bf16.mxu0 0
        %4333 = vmatpush1.bf16.msra.mxu0 0
        %4334 = vmatprep.subr.bf16.mxu0 0
        %4335 = vmatpush1.bf16.msra.mxu0 0
        %4336 = vmatprep.subr.bf16.mxu0 0
        %4337 = vmatpush1.bf16.msra.mxu0 0
        %4338 = vmatprep.subr.bf16.mxu0 0
        %4339 = vmatpush1.bf16.msra.mxu0 0
        %4340 = vmatprep.subr.bf16.mxu0 0
        %4341 = vmatpush1.bf16.msra.mxu0 0
        %4342 = vmatprep.subr.bf16.mxu0 0
        %4343 = vmatpush1.bf16.msra.mxu0 0
        %4344 = vmatprep.subr.bf16.mxu0 0
        %4345 = vmatpush1.bf16.msra.mxu0 0
        %4346 = vmatprep.mubr.bf16.mxu0 0
        %4347 = vmatmul.mubr.bf16.gmra.mrb[0].mxu0 %v4312
        %v4348 = vpop.f32.mrb[0].mxu0
        %v4349 = vadd.f32 0.0, %v4348
        %v4350 = vpop.f32.mrb[0].mxu0
        %v4351 = vpop.f32.mrb[0].mxu0
        %v4352 = vpop.f32.mrb[0].mxu0
        %4353 = vdwg.mxu0
        %v4354 = vlaneseq
        %v4355 = vshrl.u32 %v4354, 7
        %v4356 = vsub.s32 0, %v4355
        %v4357 = vrot.slane %v3492, %v4356
        %v4358 = vmul.f32 %v4349, %v4357
        %v4359 = vadd.f32 %v4308, %v4358
        %s4360 = scalar_lea.vmem %s43, 34
        %v4361 = vld [vmem:[%s4360] sm:$0x3]
        %v4363 = vsel %vm2419, %v4361, 0
        %4365 = vmatprep.subr.bf16.mxu0 0
        %4366 = vmatpush1.bf16.msra.mxu0 %v3489
        %4367 = vmatprep.subr.bf16.mxu0 0
        %4368 = vmatpush1.bf16.msra.mxu0 0
        %4369 = vmatprep.subr.bf16.mxu0 0
        %4370 = vmatpush1.bf16.msra.mxu0 0
        %4371 = vmatprep.subr.bf16.mxu0 0
        %4372 = vmatpush1.bf16.msra.mxu0 0
        %4373 = vmatprep.subr.bf16.mxu0 0
        %4374 = vmatpush1.bf16.msra.mxu0 0
        %4375 = vmatprep.subr.bf16.mxu0 0
        %4376 = vmatpush1.bf16.msra.mxu0 0
        %4377 = vmatprep.subr.bf16.mxu0 0
        %4378 = vmatpush1.bf16.msra.mxu0 0
        %4379 = vmatprep.subr.bf16.mxu0 0
        %4380 = vmatpush1.bf16.msra.mxu0 0
        %4381 = vmatprep.subr.bf16.mxu0 0
        %4382 = vmatpush1.bf16.msra.mxu0 0
        %4383 = vmatprep.subr.bf16.mxu0 0
        %4384 = vmatpush1.bf16.msra.mxu0 0
        %4385 = vmatprep.subr.bf16.mxu0 0
        %4386 = vmatpush1.bf16.msra.mxu0 0
        %4387 = vmatprep.subr.bf16.mxu0 0
        %4388 = vmatpush1.bf16.msra.mxu0 0
        %4389 = vmatprep.subr.bf16.mxu0 0
        %4390 = vmatpush1.bf16.msra.mxu0 0
        %4391 = vmatprep.subr.bf16.mxu0 0
        %4392 = vmatpush1.bf16.msra.mxu0 0
        %4393 = vmatprep.subr.bf16.mxu0 0
        %4394 = vmatpush1.bf16.msra.mxu0 0
        %4395 = vmatprep.subr.bf16.mxu0 0
        %4396 = vmatpush1.bf16.msra.mxu0 0
        %4397 = vmatprep.mubr.bf16.mxu0 0
        %4398 = vmatmul.mubr.bf16.gmra.mrb[0].mxu0 %v4363
        %v4399 = vpop.f32.mrb[0].mxu0
        %v4400 = vadd.f32 0.0, %v4399
        %v4401 = vpop.f32.mrb[0].mxu0
        %v4402 = vpop.f32.mrb[0].mxu0
        %v4403 = vpop.f32.mrb[0].mxu0
        %4404 = vdwg.mxu0
        %v4405 = vlaneseq
        %v4406 = vshrl.u32 %v4405, 7
        %v4407 = vsub.s32 1, %v4406
        %v4408 = vrot.slane %v3492, %v4407
        %v4409 = vmul.f32 %v4400, %v4408
        %v4410 = vadd.f32 %v4359, %v4409
        %s4411 = scalar_lea.vmem %s43, 36
        %v4412 = vld [vmem:[%s4411] sm:$0x3]
        %v4414 = vsel %vm2419, %v4412, 0
        %4416 = vmatprep.subr.bf16.mxu0 0
        %4417 = vmatpush1.bf16.msra.mxu0 %v3489
        %4418 = vmatprep.subr.bf16.mxu0 0
        %4419 = vmatpush1.bf16.msra.mxu0 0
        %4420 = vmatprep.subr.bf16.mxu0 0
        %4421 = vmatpush1.bf16.msra.mxu0 0
        %4422 = vmatprep.subr.bf16.mxu0 0
        %4423 = vmatpush1.bf16.msra.mxu0 0
        %4424 = vmatprep.subr.bf16.mxu0 0
        %4425 = vmatpush1.bf16.msra.mxu0 0
        %4426 = vmatprep.subr.bf16.mxu0 0
        %4427 = vmatpush1.bf16.msra.mxu0 0
        %4428 = vmatprep.subr.bf16.mxu0 0
        %4429 = vmatpush1.bf16.msra.mxu0 0
        %4430 = vmatprep.subr.bf16.mxu0 0
        %4431 = vmatpush1.bf16.msra.mxu0 0
        %4432 = vmatprep.subr.bf16.mxu0 0
        %4433 = vmatpush1.bf16.msra.mxu0 0
        %4434 = vmatprep.subr.bf16.mxu0 0
        %4435 = vmatpush1.bf16.msra.mxu0 0
        %4436 = vmatprep.subr.bf16.mxu0 0
        %4437 = vmatpush1.bf16.msra.mxu0 0
        %4438 = vmatprep.subr.bf16.mxu0 0
        %4439 = vmatpush1.bf16.msra.mxu0 0
        %4440 = vmatprep.subr.bf16.mxu0 0
        %4441 = vmatpush1.bf16.msra.mxu0 0
        %4442 = vmatprep.subr.bf16.mxu0 0
        %4443 = vmatpush1.bf16.msra.mxu0 0
        %4444 = vmatprep.subr.bf16.mxu0 0
        %4445 = vmatpush1.bf16.msra.mxu0 0
        %4446 = vmatprep.subr.bf16.mxu0 0
        %4447 = vmatpush1.bf16.msra.mxu0 0
        %4448 = vmatprep.mubr.bf16.mxu0 0
        %4449 = vmatmul.mubr.bf16.gmra.mrb[0].mxu0 %v4414
        %v4450 = vpop.f32.mrb[0].mxu0
        %v4451 = vadd.f32 0.0, %v4450
        %v4452 = vpop.f32.mrb[0].mxu0
        %v4453 = vpop.f32.mrb[0].mxu0
        %v4454 = vpop.f32.mrb[0].mxu0
        %4455 = vdwg.mxu0
        %v4456 = vlaneseq
        %v4457 = vshrl.u32 %v4456, 7
        %v4458 = vsub.s32 2, %v4457
        %v4459 = vrot.slane %v3492, %v4458
        %v4460 = vmul.f32 %v4451, %v4459
        %v4461 = vadd.f32 %v4410, %v4460
        %s4462 = scalar_lea.vmem %s43, 38
        %v4463 = vld [vmem:[%s4462] sm:$0x3]
        %v4465 = vsel %vm2419, %v4463, 0
        %4467 = vmatprep.subr.bf16.mxu0 0
        %4468 = vmatpush1.bf16.msra.mxu0 %v3489
        %4469 = vmatprep.subr.bf16.mxu0 0
        %4470 = vmatpush1.bf16.msra.mxu0 0
        %4471 = vmatprep.subr.bf16.mxu0 0
        %4472 = vmatpush1.bf16.msra.mxu0 0
        %4473 = vmatprep.subr.bf16.mxu0 0
        %4474 = vmatpush1.bf16.msra.mxu0 0
        %4475 = vmatprep.subr.bf16.mxu0 0
        %4476 = vmatpush1.bf16.msra.mxu0 0
        %4477 = vmatprep.subr.bf16.mxu0 0
        %4478 = vmatpush1.bf16.msra.mxu0 0
        %4479 = vmatprep.subr.bf16.mxu0 0
        %4480 = vmatpush1.bf16.msra.mxu0 0
        %4481 = vmatprep.subr.bf16.mxu0 0
        %4482 = vmatpush1.bf16.msra.mxu0 0
        %4483 = vmatprep.subr.bf16.mxu0 0
        %4484 = vmatpush1.bf16.msra.mxu0 0
        %4485 = vmatprep.subr.bf16.mxu0 0
        %4486 = vmatpush1.bf16.msra.mxu0 0
        %4487 = vmatprep.subr.bf16.mxu0 0
        %4488 = vmatpush1.bf16.msra.mxu0 0
        %4489 = vmatprep.subr.bf16.mxu0 0
        %4490 = vmatpush1.bf16.msra.mxu0 0
        %4491 = vmatprep.subr.bf16.mxu0 0
        %4492 = vmatpush1.bf16.msra.mxu0 0
        %4493 = vmatprep.subr.bf16.mxu0 0
        %4494 = vmatpush1.bf16.msra.mxu0 0
        %4495 = vmatprep.subr.bf16.mxu0 0
        %4496 = vmatpush1.bf16.msra.mxu0 0
        %4497 = vmatprep.subr.bf16.mxu0 0
        %4498 = vmatpush1.bf16.msra.mxu0 0
        %4499 = vmatprep.mubr.bf16.mxu0 0
        %4500 = vmatmul.mubr.bf16.gmra.mrb[0].mxu0 %v4465
        %v4501 = vpop.f32.mrb[0].mxu0
        %v4502 = vadd.f32 0.0, %v4501
        %v4503 = vpop.f32.mrb[0].mxu0
        %v4504 = vpop.f32.mrb[0].mxu0
        %v4505 = vpop.f32.mrb[0].mxu0
        %4506 = vdwg.mxu0
        %v4507 = vlaneseq
        %v4508 = vshrl.u32 %v4507, 7
        %v4509 = vsub.s32 3, %v4508
        %v4510 = vrot.slane %v3492, %v4509
        %v4511 = vmul.f32 %v4502, %v4510
        %v4512 = vadd.f32 %v4461, %v4511
        %s4513 = scalar_lea.vmem %s43, 40
        %v4514 = vld [vmem:[%s4513] sm:$0x3]
        %v4516 = vsel %vm2419, %v4514, 0
        %4518 = vmatprep.subr.bf16.mxu0 0
        %4519 = vmatpush1.bf16.msra.mxu0 %v3489
        %4520 = vmatprep.subr.bf16.mxu0 0
        %4521 = vmatpush1.bf16.msra.mxu0 0
        %4522 = vmatprep.subr.bf16.mxu0 0
        %4523 = vmatpush1.bf16.msra.mxu0 0
        %4524 = vmatprep.subr.bf16.mxu0 0
        %4525 = vmatpush1.bf16.msra.mxu0 0
        %4526 = vmatprep.subr.bf16.mxu0 0
        %4527 = vmatpush1.bf16.msra.mxu0 0
        %4528 = vmatprep.subr.bf16.mxu0 0
        %4529 = vmatpush1.bf16.msra.mxu0 0
        %4530 = vmatprep.subr.bf16.mxu0 0
        %4531 = vmatpush1.bf16.msra.mxu0 0
        %4532 = vmatprep.subr.bf16.mxu0 0
        %4533 = vmatpush1.bf16.msra.mxu0 0
        %4534 = vmatprep.subr.bf16.mxu0 0
        %4535 = vmatpush1.bf16.msra.mxu0 0
        %4536 = vmatprep.subr.bf16.mxu0 0
        %4537 = vmatpush1.bf16.msra.mxu0 0
        %4538 = vmatprep.subr.bf16.mxu0 0
        %4539 = vmatpush1.bf16.msra.mxu0 0
        %4540 = vmatprep.subr.bf16.mxu0 0
        %4541 = vmatpush1.bf16.msra.mxu0 0
        %4542 = vmatprep.subr.bf16.mxu0 0
        %4543 = vmatpush1.bf16.msra.mxu0 0
        %4544 = vmatprep.subr.bf16.mxu0 0
        %4545 = vmatpush1.bf16.msra.mxu0 0
        %4546 = vmatprep.subr.bf16.mxu0 0
        %4547 = vmatpush1.bf16.msra.mxu0 0
        %4548 = vmatprep.subr.bf16.mxu0 0
        %4549 = vmatpush1.bf16.msra.mxu0 0
        %4550 = vmatprep.mubr.bf16.mxu0 0
        %4551 = vmatmul.mubr.bf16.gmra.mrb[0].mxu0 %v4516
        %v4552 = vpop.f32.mrb[0].mxu0
        %v4553 = vadd.f32 0.0, %v4552
        %v4554 = vpop.f32.mrb[0].mxu0
        %v4555 = vpop.f32.mrb[0].mxu0
        %v4556 = vpop.f32.mrb[0].mxu0
        %4557 = vdwg.mxu0
        %v4558 = vlaneseq
        %v4559 = vshrl.u32 %v4558, 7
        %v4560 = vsub.s32 4, %v4559
        %v4561 = vrot.slane %v3492, %v4560
        %v4562 = vmul.f32 %v4553, %v4561
        %v4563 = vadd.f32 %v4512, %v4562
        %s4564 = scalar_lea.vmem %s43, 42
        %v4565 = vld [vmem:[%s4564] sm:$0x3]
        %v4567 = vsel %vm2419, %v4565, 0
        %4569 = vmatprep.subr.bf16.mxu0 0
        %4570 = vmatpush1.bf16.msra.mxu0 %v3489
        %4571 = vmatprep.subr.bf16.mxu0 0
        %4572 = vmatpush1.bf16.msra.mxu0 0
        %4573 = vmatprep.subr.bf16.mxu0 0
        %4574 = vmatpush1.bf16.msra.mxu0 0
        %4575 = vmatprep.subr.bf16.mxu0 0
        %4576 = vmatpush1.bf16.msra.mxu0 0
        %4577 = vmatprep.subr.bf16.mxu0 0
        %4578 = vmatpush1.bf16.msra.mxu0 0
        %4579 = vmatprep.subr.bf16.mxu0 0
        %4580 = vmatpush1.bf16.msra.mxu0 0
        %4581 = vmatprep.subr.bf16.mxu0 0
        %4582 = vmatpush1.bf16.msra.mxu0 0
        %4583 = vmatprep.subr.bf16.mxu0 0
        %4584 = vmatpush1.bf16.msra.mxu0 0
        %4585 = vmatprep.subr.bf16.mxu0 0
        %4586 = vmatpush1.bf16.msra.mxu0 0
        %4587 = vmatprep.subr.bf16.mxu0 0
        %4588 = vmatpush1.bf16.msra.mxu0 0
        %4589 = vmatprep.subr.bf16.mxu0 0
        %4590 = vmatpush1.bf16.msra.mxu0 0
        %4591 = vmatprep.subr.bf16.mxu0 0
        %4592 = vmatpush1.bf16.msra.mxu0 0
        %4593 = vmatprep.subr.bf16.mxu0 0
        %4594 = vmatpush1.bf16.msra.mxu0 0
        %4595 = vmatprep.subr.bf16.mxu0 0
        %4596 = vmatpush1.bf16.msra.mxu0 0
        %4597 = vmatprep.subr.bf16.mxu0 0
        %4598 = vmatpush1.bf16.msra.mxu0 0
        %4599 = vmatprep.subr.bf16.mxu0 0
        %4600 = vmatpush1.bf16.msra.mxu0 0
        %4601 = vmatprep.mubr.bf16.mxu0 0
        %4602 = vmatmul.mubr.bf16.gmra.mrb[0].mxu0 %v4567
        %v4603 = vpop.f32.mrb[0].mxu0
        %v4604 = vadd.f32 0.0, %v4603
        %v4605 = vpop.f32.mrb[0].mxu0
        %v4606 = vpop.f32.mrb[0].mxu0
        %v4607 = vpop.f32.mrb[0].mxu0
        %4608 = vdwg.mxu0
        %v4609 = vlaneseq
        %v4610 = vshrl.u32 %v4609, 7
        %v4611 = vsub.s32 5, %v4610
        %v4612 = vrot.slane %v3492, %v4611
        %v4613 = vmul.f32 %v4604, %v4612
        %v4614 = vadd.f32 %v4563, %v4613
        %s4615 = scalar_lea.vmem %s43, 44
        %v4616 = vld [vmem:[%s4615] sm:$0x3]
        %v4618 = vsel %vm2419, %v4616, 0
        %4620 = vmatprep.subr.bf16.mxu0 0
        %4621 = vmatpush1.bf16.msra.mxu0 %v3489
        %4622 = vmatprep.subr.bf16.mxu0 0
        %4623 = vmatpush1.bf16.msra.mxu0 0
        %4624 = vmatprep.subr.bf16.mxu0 0
        %4625 = vmatpush1.bf16.msra.mxu0 0
        %4626 = vmatprep.subr.bf16.mxu0 0
        %4627 = vmatpush1.bf16.msra.mxu0 0
        %4628 = vmatprep.subr.bf16.mxu0 0
        %4629 = vmatpush1.bf16.msra.mxu0 0
        %4630 = vmatprep.subr.bf16.mxu0 0
        %4631 = vmatpush1.bf16.msra.mxu0 0
        %4632 = vmatprep.subr.bf16.mxu0 0
        %4633 = vmatpush1.bf16.msra.mxu0 0
        %4634 = vmatprep.subr.bf16.mxu0 0
        %4635 = vmatpush1.bf16.msra.mxu0 0
        %4636 = vmatprep.subr.bf16.mxu0 0
        %4637 = vmatpush1.bf16.msra.mxu0 0
        %4638 = vmatprep.subr.bf16.mxu0 0
        %4639 = vmatpush1.bf16.msra.mxu0 0
        %4640 = vmatprep.subr.bf16.mxu0 0
        %4641 = vmatpush1.bf16.msra.mxu0 0
        %4642 = vmatprep.subr.bf16.mxu0 0
        %4643 = vmatpush1.bf16.msra.mxu0 0
        %4644 = vmatprep.subr.bf16.mxu0 0
        %4645 = vmatpush1.bf16.msra.mxu0 0
        %4646 = vmatprep.subr.bf16.mxu0 0
        %4647 = vmatpush1.bf16.msra.mxu0 0
        %4648 = vmatprep.subr.bf16.mxu0 0
        %4649 = vmatpush1.bf16.msra.mxu0 0
        %4650 = vmatprep.subr.bf16.mxu0 0
        %4651 = vmatpush1.bf16.msra.mxu0 0
        %4652 = vmatprep.mubr.bf16.mxu0 0
        %4653 = vmatmul.mubr.bf16.gmra.mrb[0].mxu0 %v4618
        %v4654 = vpop.f32.mrb[0].mxu0
        %v4655 = vadd.f32 0.0, %v4654
        %v4656 = vpop.f32.mrb[0].mxu0
        %v4657 = vpop.f32.mrb[0].mxu0
        %v4658 = vpop.f32.mrb[0].mxu0
        %4659 = vdwg.mxu0
        %v4660 = vlaneseq
        %v4661 = vshrl.u32 %v4660, 7
        %v4662 = vsub.s32 6, %v4661
        %v4663 = vrot.slane %v3492, %v4662
        %v4664 = vmul.f32 %v4655, %v4663
        %v4665 = vadd.f32 %v4614, %v4664
        %s4666 = scalar_lea.vmem %s43, 46
        %v4667 = vld [vmem:[%s4666] sm:$0x3]
        %v4669 = vsel %vm2419, %v4667, 0
        %4671 = vmatprep.subr.bf16.mxu0 0
        %4672 = vmatpush1.bf16.msra.mxu0 %v3489
        %4673 = vmatprep.subr.bf16.mxu0 0
        %4674 = vmatpush1.bf16.msra.mxu0 0
        %4675 = vmatprep.subr.bf16.mxu0 0
        %4676 = vmatpush1.bf16.msra.mxu0 0
        %4677 = vmatprep.subr.bf16.mxu0 0
        %4678 = vmatpush1.bf16.msra.mxu0 0
        %4679 = vmatprep.subr.bf16.mxu0 0
        %4680 = vmatpush1.bf16.msra.mxu0 0
        %4681 = vmatprep.subr.bf16.mxu0 0
        %4682 = vmatpush1.bf16.msra.mxu0 0
        %4683 = vmatprep.subr.bf16.mxu0 0
        %4684 = vmatpush1.bf16.msra.mxu0 0
        %4685 = vmatprep.subr.bf16.mxu0 0
        %4686 = vmatpush1.bf16.msra.mxu0 0
        %4687 = vmatprep.subr.bf16.mxu0 0
        %4688 = vmatpush1.bf16.msra.mxu0 0
        %4689 = vmatprep.subr.bf16.mxu0 0
        %4690 = vmatpush1.bf16.msra.mxu0 0
        %4691 = vmatprep.subr.bf16.mxu0 0
        %4692 = vmatpush1.bf16.msra.mxu0 0
        %4693 = vmatprep.subr.bf16.mxu0 0
        %4694 = vmatpush1.bf16.msra.mxu0 0
        %4695 = vmatprep.subr.bf16.mxu0 0
        %4696 = vmatpush1.bf16.msra.mxu0 0
        %4697 = vmatprep.subr.bf16.mxu0 0
        %4698 = vmatpush1.bf16.msra.mxu0 0
        %4699 = vmatprep.subr.bf16.mxu0 0
        %4700 = vmatpush1.bf16.msra.mxu0 0
        %4701 = vmatprep.subr.bf16.mxu0 0
        %4702 = vmatpush1.bf16.msra.mxu0 0
        %4703 = vmatprep.mubr.bf16.mxu0 0
        %4704 = vmatmul.mubr.bf16.gmra.mrb[0].mxu0 %v4669
        %v4705 = vpop.f32.mrb[0].mxu0
        %v4706 = vadd.f32 0.0, %v4705
        %v4707 = vpop.f32.mrb[0].mxu0
        %v4708 = vpop.f32.mrb[0].mxu0
        %v4709 = vpop.f32.mrb[0].mxu0
        %4710 = vdwg.mxu0
        %v4711 = vlaneseq
        %v4712 = vshrl.u32 %v4711, 7
        %v4713 = vsub.s32 7, %v4712
        %v4714 = vrot.slane %v3492, %v4713
        %v4715 = vmul.f32 %v4706, %v4714
        %v4716 = vadd.f32 %v4665, %v4715
        %s4717 = scalar_lea.vmem %s43, 48
        %v4718 = vld [vmem:[%s4717] sm:$0x3]
        %v4720 = vsel %vm2419, %v4718, 0
        %4722 = vmatprep.subr.bf16.mxu0 0
        %4723 = vmatpush1.bf16.msra.mxu0 %v3489
        %4724 = vmatprep.subr.bf16.mxu0 0
        %4725 = vmatpush1.bf16.msra.mxu0 0
        %4726 = vmatprep.subr.bf16.mxu0 0
        %4727 = vmatpush1.bf16.msra.mxu0 0
        %4728 = vmatprep.subr.bf16.mxu0 0
        %4729 = vmatpush1.bf16.msra.mxu0 0
        %4730 = vmatprep.subr.bf16.mxu0 0
        %4731 = vmatpush1.bf16.msra.mxu0 0
        %4732 = vmatprep.subr.bf16.mxu0 0
        %4733 = vmatpush1.bf16.msra.mxu0 0
        %4734 = vmatprep.subr.bf16.mxu0 0
        %4735 = vmatpush1.bf16.msra.mxu0 0
        %4736 = vmatprep.subr.bf16.mxu0 0
        %4737 = vmatpush1.bf16.msra.mxu0 0
        %4738 = vmatprep.subr.bf16.mxu0 0
        %4739 = vmatpush1.bf16.msra.mxu0 0
        %4740 = vmatprep.subr.bf16.mxu0 0
        %4741 = vmatpush1.bf16.msra.mxu0 0
        %4742 = vmatprep.subr.bf16.mxu0 0
        %4743 = vmatpush1.bf16.msra.mxu0 0
        %4744 = vmatprep.subr.bf16.mxu0 0
        %4745 = vmatpush1.bf16.msra.mxu0 0
        %4746 = vmatprep.subr.bf16.mxu0 0
        %4747 = vmatpush1.bf16.msra.mxu0 0
        %4748 = vmatprep.subr.bf16.mxu0 0
        %4749 = vmatpush1.bf16.msra.mxu0 0
        %4750 = vmatprep.subr.bf16.mxu0 0
        %4751 = vmatpush1.bf16.msra.mxu0 0
        %4752 = vmatprep.subr.bf16.mxu0 0
        %4753 = vmatpush1.bf16.msra.mxu0 0
        %4754 = vmatprep.mubr.bf16.mxu0 0
        %4755 = vmatmul.mubr.bf16.gmra.mrb[0].mxu0 %v4720
        %v4756 = vpop.f32.mrb[0].mxu0
        %v4757 = vadd.f32 0.0, %v4756
        %v4758 = vpop.f32.mrb[0].mxu0
        %v4759 = vpop.f32.mrb[0].mxu0
        %v4760 = vpop.f32.mrb[0].mxu0
        %4761 = vdwg.mxu0
        %v4762 = vlaneseq
        %v4763 = vshrl.u32 %v4762, 7
        %v4764 = vsub.s32 0, %v4763
        %v4765 = vrot.slane %v3493, %v4764
        %v4766 = vmul.f32 %v4757, %v4765
        %v4767 = vadd.f32 %v4716, %v4766
        %v4768 = vld [vmem:[%s47] sm:$0x1]
        %v4770 = vlaneseq
        %v4771 = vshrl.u32 %v4770, 7
        %v4772 = vsub.s32 0, %v4771
        %v4773 = vrot.slane %v4768, %v4772
        %v4775 = vadd.f32 %v4767, %v4773
        %v4776 = vadd.f32 %v4775, 3.0
        %v4777 = vmax.f32 %v4776, 0.0
        %v4778 = vmin.f32 %v4777, 6.0
        %v4779 = vmul.f32 %v4778, 0.16666667
        %v4780 = vmul.f32 %v4775, %v4779
        %vm4781 = vcmask 584704
        %v4782 = vsel %vm4781, %v4780, 0.0
        %v4783 = vrot.slane %v4782, 4
        %v4784 = vadd.f32 %v4782, %v4783
        %v4785 = vrot.slane %v4784, 2
        %v4786 = vadd.f32 %v4784, %v4785
        %v4787 = vrot.slane %v4786, 1
        %v4788 = vadd.f32 %v4786, %v4787
        %v4789 = vmul.f32 %v4788, 0.25
        %v4790 = vpack.c.bf16 %v4789, %v4789
        %v4791 = vld [vmem:[%s49] sm:$0xf]
        %v4792 = vld [vmem:[%s49 + $0x4] sm:$0xf]
        %v4793 = vld [vmem:[%s49 + $0x8] sm:$0xf]
        %v4794 = vld [vmem:[%s49 + $0xc] sm:$0xf]
        %v4795 = vld [vmem:[%s49 + $0x10] sm:$0xf]
        %v4796 = vld [vmem:[%s49 + $0x14] sm:$0xf]
        %v4797 = vld [vmem:[%s49 + $0x18] sm:$0xf]
        %v4798 = vld [vmem:[%s49 + $0x1c] sm:$0xf]
        %v4799 = vld [vmem:[%s49 + $0x20] sm:$0xf]
        %v4800 = vld [vmem:[%s51] sm:$0x1]
        %v4810 = vunpack.c.l.b16 %v4791
        %v4811 = vunpack.c.l.b16 %v4792
        %v4812 = vunpack.c.l.b16 %v4793
        %v4813 = vunpack.c.l.b16 %v4794
        %v4814 = vunpack.c.l.b16 %v4795
        %v4815 = vunpack.c.l.b16 %v4796
        %v4816 = vunpack.c.l.b16 %v4797
        %v4817 = vunpack.c.l.b16 %v4798
        %v4818 = vunpack.c.l.b16 %v4799
        %v4819 = vpack.c.b16 %v4811, %v4810
        %v4820 = vpack.c.b16 %v4813, %v4812
        %v4821 = vpack.c.b16 %v4815, %v4814
        %v4822 = vpack.c.b16 %v4817, %v4816
        %v4823 = vpack.c.b16 %v4818, %v4818
        %vm4828 = vcmask 588800
        %v4830 = vsel %vm4828, %v4790, 0
        %v4833 = vsel %vm2503, %v4823, 0
        %4835 = vmatprep.subr.bf16.mxu0 0
        %4836 = vmatpush1.bf16.msra.mxu0 %v4819
        %4837 = vmatprep.subr.bf16.mxu0 0
        %4838 = vmatpush1.bf16.msra.mxu0 %v4820
        %4839 = vmatprep.subr.bf16.mxu0 0
        %4840 = vmatpush1.bf16.msra.mxu0 %v4821
        %4841 = vmatprep.subr.bf16.mxu0 0
        %4842 = vmatpush1.bf16.msra.mxu0 %v4822
        %4843 = vmatprep.subr.bf16.mxu0 0
        %4844 = vmatpush1.bf16.msra.mxu0 %v4833
        %4845 = vmatprep.subr.bf16.mxu0 0
        %4846 = vmatpush1.bf16.msra.mxu0 0
        %4847 = vmatprep.subr.bf16.mxu0 0
        %4848 = vmatpush1.bf16.msra.mxu0 0
        %4849 = vmatprep.subr.bf16.mxu0 0
        %4850 = vmatpush1.bf16.msra.mxu0 0
        %4851 = vmatprep.subr.bf16.mxu0 0
        %4852 = vmatpush1.bf16.msra.mxu0 0
        %4853 = vmatprep.subr.bf16.mxu0 0
        %4854 = vmatpush1.bf16.msra.mxu0 0
        %4855 = vmatprep.subr.bf16.mxu0 0
        %4856 = vmatpush1.bf16.msra.mxu0 0
        %4857 = vmatprep.subr.bf16.mxu0 0
        %4858 = vmatpush1.bf16.msra.mxu0 0
        %4859 = vmatprep.subr.bf16.mxu0 0
        %4860 = vmatpush1.bf16.msra.mxu0 0
        %4861 = vmatprep.subr.bf16.mxu0 0
        %4862 = vmatpush1.bf16.msra.mxu0 0
        %4863 = vmatprep.subr.bf16.mxu0 0
        %4864 = vmatpush1.bf16.msra.mxu0 0
        %4865 = vmatprep.subr.bf16.mxu0 0
        %4866 = vmatpush1.bf16.msra.mxu0 0
        %4867 = vmatprep.mubr.bf16.mxu0 0
        %4868 = vmatmul.mubr.bf16.gmra.mrb[0].mxu0 %v4830
        %v4869 = vpop.f32.mrb[0].mxu0
        %v4870 = vadd.f32 %v4800, %v4869
        %v4871 = vpop.f32.mrb[0].mxu0
        %v4872 = vpop.f32.mrb[0].mxu0
        %v4873 = vpop.f32.mrb[0].mxu0
        %4874 = vdwg.mxu0
        %v4875 = vmax.f32 %v4870, 0.0
        %v4876 = vpack.c.bf16 %v4875, %v4875
        %v4877 = vld [vmem:[%s53] sm:$0xf]
        %v4878 = vld [vmem:[%s53 + $0x4] sm:$0xf]
        %v4879 = vld [vmem:[%s53 + $0x8] sm:$0xf]
        %v4880 = vld [vmem:[%s55] sm:$0x1]
        %v4884 = vunpack.c.l.b16 %v4877
        %v4885 = vunpack.c.l.b16 %v4878
        %v4886 = vunpack.c.l.b16 %v4879
        %v4887 = vpack.c.b16 %v4885, %v4884
        %v4888 = vpack.c.b16 %v4886, %v4886
        %v4891 = vsel %vm3431, %v4876, 0
        %v4894 = vsel %vm2503, %v4888, 0
        %4896 = vmatprep.subr.bf16.mxu0 0
        %4897 = vmatpush1.bf16.msra.mxu0 %v4887
        %4898 = vmatprep.subr.bf16.mxu0 0
        %4899 = vmatpush1.bf16.msra.mxu0 %v4894
        %4900 = vmatprep.subr.bf16.mxu0 0
        %4901 = vmatpush1.bf16.msra.mxu0 0
        %4902 = vmatprep.subr.bf16.mxu0 0
        %4903 = vmatpush1.bf16.msra.mxu0 0
        %4904 = vmatprep.subr.bf16.mxu0 0
        %4905 = vmatpush1.bf16.msra.mxu0 0
        %4906 = vmatprep.subr.bf16.mxu0 0
        %4907 = vmatpush1.bf16.msra.mxu0 0
        %4908 = vmatprep.subr.bf16.mxu0 0
        %4909 = vmatpush1.bf16.msra.mxu0 0
        %4910 = vmatprep.subr.bf16.mxu0 0
        %4911 = vmatpush1.bf16.msra.mxu0 0
        %4912 = vmatprep.subr.bf16.mxu0 0
        %4913 = vmatpush1.bf16.msra.mxu0 0
        %4914 = vmatprep.subr.bf16.mxu0 0
        %4915 = vmatpush1.bf16.msra.mxu0 0
        %4916 = vmatprep.subr.bf16.mxu0 0
        %4917 = vmatpush1.bf16.msra.mxu0 0
        %4918 = vmatprep.subr.bf16.mxu0 0
        %4919 = vmatpush1.bf16.msra.mxu0 0
        %4920 = vmatprep.subr.bf16.mxu0 0
        %4921 = vmatpush1.bf16.msra.mxu0 0
        %4922 = vmatprep.subr.bf16.mxu0 0
        %4923 = vmatpush1.bf16.msra.mxu0 0
        %4924 = vmatprep.subr.bf16.mxu0 0
        %4925 = vmatpush1.bf16.msra.mxu0 0
        %4926 = vmatprep.subr.bf16.mxu0 0
        %4927 = vmatpush1.bf16.msra.mxu0 0
        %4928 = vmatprep.mubr.bf16.mxu0 0
        %4929 = vmatmul.mubr.bf16.gmra.mrb[0].mxu0 %v4891
        %v4930 = vpop.f32.mrb[0].mxu0
        %v4931 = vadd.f32 %v4880, %v4930
        %v4932 = vpop.f32.mrb[0].mxu0
        %v4933 = vpop.f32.mrb[0].mxu0
        %v4934 = vpop.f32.mrb[0].mxu0
        %4935 = vdwg.mxu0
        %v4936 = vadd.f32 %v4931, 3.0
        %v4937 = vmax.f32 %v4936, 0.0
        %v4938 = vmin.f32 %v4937, 6.0
        %v4939 = vmul.f32 %v4938, 0.16666667
        %v4940 = vlaneseq
        %v4941 = vshrl.u32 %v4940, 7
        %v4942 = vsub.s32 0, %v4941
        %v4943 = vrot.slane %v4939, %v4942
        %v4944 = vmul.f32 %v4780, %v4943
        %v4945 = vpack.c.bf16 %v4944, %v4944
        %v4946 = vld [vmem:[%s57] sm:$0xf]
        %v4947 = vld [vmem:[%s57 + $0x4] sm:$0xf]
        %v4948 = vld [vmem:[%s57 + $0x8] sm:$0xf]
        %v4949 = vld [vmem:[%s57 + $0xc] sm:$0xf]
        %v4950 = vld [vmem:[%s57 + $0x10] sm:$0xf]
        %v4951 = vld [vmem:[%s57 + $0x14] sm:$0xf]
        %v4952 = vld [vmem:[%s57 + $0x18] sm:$0xf]
        %v4953 = vld [vmem:[%s57 + $0x1c] sm:$0xf]
        %v4954 = vld [vmem:[%s57 + $0x20] sm:$0xf]
        %v4955 = vld [vmem:[%s59] sm:$0x1]
        %v4957 = vlaneseq
        %v4958 = vshrl.u32 %v4957, 7
        %v4959 = vsub.s32 0, %v4958
        %v4960 = vrot.slane %v4955, %v4959
        %v4971 = vunpack.c.l.b16 %v4946
        %v4972 = vunpack.c.l.b16 %v4947
        %v4973 = vunpack.c.l.b16 %v4948
        %v4974 = vunpack.c.l.b16 %v4949
        %v4975 = vunpack.c.l.b16 %v4950
        %v4976 = vunpack.c.l.b16 %v4951
        %v4977 = vunpack.c.l.b16 %v4952
        %v4978 = vunpack.c.l.b16 %v4953
        %v4979 = vunpack.c.l.b16 %v4954
        %v4980 = vpack.c.b16 %v4972, %v4971
        %v4981 = vpack.c.b16 %v4974, %v4973
        %v4982 = vpack.c.b16 %v4976, %v4975
        %v4983 = vpack.c.b16 %v4978, %v4977
        %v4984 = vpack.c.b16 %v4979, %v4979
        %v4990 = vsel %vm4828, %v4945, 0
        %v4993 = vsel %vm2503, %v4984, 0
        %4995 = vmatprep.subr.bf16.mxu0 0
        %4996 = vmatpush1.bf16.msra.mxu0 %v4980
        %4997 = vmatprep.subr.bf16.mxu0 0
        %4998 = vmatpush1.bf16.msra.mxu0 %v4981
        %4999 = vmatprep.subr.bf16.mxu0 0
        %5000 = vmatpush1.bf16.msra.mxu0 %v4982
        %5001 = vmatprep.subr.bf16.mxu0 0
        %5002 = vmatpush1.bf16.msra.mxu0 %v4983
        %5003 = vmatprep.subr.bf16.mxu0 0
        %5004 = vmatpush1.bf16.msra.mxu0 %v4993
        %5005 = vmatprep.subr.bf16.mxu0 0
        %5006 = vmatpush1.bf16.msra.mxu0 0
        %5007 = vmatprep.subr.bf16.mxu0 0
        %5008 = vmatpush1.bf16.msra.mxu0 0
        %5009 = vmatprep.subr.bf16.mxu0 0
        %5010 = vmatpush1.bf16.msra.mxu0 0
        %5011 = vmatprep.subr.bf16.mxu0 0
        %5012 = vmatpush1.bf16.msra.mxu0 0
        %5013 = vmatprep.subr.bf16.mxu0 0
        %5014 = vmatpush1.bf16.msra.mxu0 0
        %5015 = vmatprep.subr.bf16.mxu0 0
        %5016 = vmatpush1.bf16.msra.mxu0 0
        %5017 = vmatprep.subr.bf16.mxu0 0
        %5018 = vmatpush1.bf16.msra.mxu0 0
        %5019 = vmatprep.subr.bf16.mxu0 0
        %5020 = vmatpush1.bf16.msra.mxu0 0
        %5021 = vmatprep.subr.bf16.mxu0 0
        %5022 = vmatpush1.bf16.msra.mxu0 0
        %5023 = vmatprep.subr.bf16.mxu0 0
        %5024 = vmatpush1.bf16.msra.mxu0 0
        %5025 = vmatprep.subr.bf16.mxu0 0
        %5026 = vmatpush1.bf16.msra.mxu0 0
        %5027 = vmatprep.mubr.bf16.mxu0 0
        %5028 = vmatmul.mubr.bf16.gmra.mrb[0].mxu0 %v4990
        %v5029 = vpop.f32.mrb[0].mxu0
        %v5030 = vadd.f32 %v4960, %v5029
        %v5031 = vpop.f32.mrb[0].mxu0
        %v5032 = vpop.f32.mrb[0].mxu0
        %v5033 = vpop.f32.mrb[0].mxu0
        %5034 = vdwg.mxu0
        %v5035 = vpack.c.bf16 %v5030, %v5030
        %v5036 = vld [vmem:[%s61] sm:$0xff]
        %v5037 = vld [vmem:[%s61 + $0x8] sm:$0xff]
        %v5038 = vld [vmem:[%s61 + $0x10] sm:$0xff]
        %v5039 = vld [vmem:[%s61 + $0x18] sm:$0xff]
        %v5040 = vld [vmem:[%s61 + $0x20] sm:$0xff]
        %v5041 = vld [vmem:[%s63] sm:$0x3]
        %v5043 = vlaneseq
        %v5044 = vshrl.u32 %v5043, 7
        %v5045 = vsub.s32 0, %v5044
        %v5046 = vrot.slane %v5041, %v5045
        %v5047 = vlaneseq
        %v5048 = vshrl.u32 %v5047, 7
        %v5049 = vsub.s32 1, %v5048
        %v5050 = vrot.slane %v5041, %v5049
        %v5058 = vunpack.c.l.b16 %v5036
        %v5059 = vunpack.c.h.b16 %v5036
        %v5060 = vunpack.c.l.b16 %v5037
        %v5061 = vunpack.c.h.b16 %v5037
        %v5062 = vunpack.c.l.b16 %v5038
        %v5063 = vunpack.c.h.b16 %v5038
        %v5064 = vunpack.c.l.b16 %v5039
        %v5065 = vunpack.c.h.b16 %v5039
        %v5066 = vunpack.c.l.b16 %v5040
        %v5067 = vunpack.c.h.b16 %v5040
        %v5068 = vpack.c.b16 %v5060, %v5058
        %v5069 = vpack.c.b16 %v5061, %v5059
        %v5070 = vpack.c.b16 %v5064, %v5062
        %v5071 = vpack.c.b16 %v5065, %v5063
        %v5072 = vpack.c.b16 %v5066, %v5066
        %v5073 = vpack.c.b16 %v5067, %v5067
        %vm5078 = vcmask 326656
        %v5080 = vsel %vm5078, %v5035, 0
        %v5083 = vsel %vm2503, %v5072, 0
        %v5086 = vsel %vm2503, %v5073, 0
        %5088 = vmatprep.subr.bf16.mxu0 %v5069
        %5089 = vmatpush1.bf16.msra.mxu0 %v5068
        %5090 = vmatprep.subr.bf16.mxu0 %v5071
        %5091 = vmatpush1.bf16.msra.mxu0 %v5070
        %5092 = vmatprep.subr.bf16.mxu0 %v5086
        %5093 = vmatpush1.bf16.msra.mxu0 %v5083
        %5094 = vmatprep.subr.bf16.mxu0 0
        %5095 = vmatpush1.bf16.msra.mxu0 0
        %5096 = vmatprep.subr.bf16.mxu0 0
        %5097 = vmatpush1.bf16.msra.mxu0 0
        %5098 = vmatprep.subr.bf16.mxu0 0
        %5099 = vmatpush1.bf16.msra.mxu0 0
        %5100 = vmatprep.subr.bf16.mxu0 0
        %5101 = vmatpush1.bf16.msra.mxu0 0
        %5102 = vmatprep.subr.bf16.mxu0 0
        %5103 = vmatpush1.bf16.msra.mxu0 0
        %5104 = vmatprep.subr.bf16.mxu0 0
        %5105 = vmatpush1.bf16.msra.mxu0 0
        %5106 = vmatprep.subr.bf16.mxu0 0
        %5107 = vmatpush1.bf16.msra.mxu0 0
        %5108 = vmatprep.subr.bf16.mxu0 0
        %5109 = vmatpush1.bf16.msra.mxu0 0
        %5110 = vmatprep.subr.bf16.mxu0 0
        %5111 = vmatpush1.bf16.msra.mxu0 0
        %5112 = vmatprep.subr.bf16.mxu0 0
        %5113 = vmatpush1.bf16.msra.mxu0 0
        %5114 = vmatprep.subr.bf16.mxu0 0
        %5115 = vmatpush1.bf16.msra.mxu0 0
        %5116 = vmatprep.subr.bf16.mxu0 0
        %5117 = vmatpush1.bf16.msra.mxu0 0
        %5118 = vmatprep.subr.bf16.mxu0 0
        %5119 = vmatpush1.bf16.msra.mxu0 0
        %5120 = vmatprep.mubr.bf16.mxu0 0
        %5121 = vmatmul.mubr.bf16.gmra.mrb[0].mxu0 %v5080
        %v5122 = vpop.f32.mrb[0].mxu0
        %v5123 = vadd.f32 %v5046, %v5122
        %v5124 = vpop.f32.mrb[0].mxu0
        %v5125 = vadd.f32 %v5050, %v5124
        %v5126 = vpop.f32.mrb[0].mxu0
        %v5127 = vpop.f32.mrb[0].mxu0
        %5128 = vdwg.mxu0
        %v5129 = vadd.f32 %v5123, 3.0
        %v5130 = vadd.f32 %v5125, 3.0
        %v5131 = vmax.f32 %v5129, 0.0
        %v5132 = vmax.f32 %v5130, 0.0
        %v5133 = vmin.f32 %v5131, 6.0
        %v5134 = vmin.f32 %v5132, 6.0
        %v5135 = vmul.f32 %v5133, 0.16666667
        %v5136 = vmul.f32 %v5134, 0.16666667
        %v5137 = vmul.f32 %v5123, %v5135
        %v5138 = vmul.f32 %v5125, %v5136
        %v5139 = vsel %vm2503, %v5137, 0.0
        %v5140 = vrot.slane %v5139, 4
        %v5141 = vadd.f32 %v5139, %v5140
        %v5142 = vrot.slane %v5141, 2
        %v5143 = vadd.f32 %v5141, %v5142
        %v5144 = vrot.slane %v5143, 1
        %v5145 = vadd.f32 %v5143, %v5144
        %vm5146 = vcmask 912384
        %v5147 = vsel %vm5146, %v5138, 0.0
        %v5148 = vrot.slane %v5147, 4
        %v5149 = vadd.f32 %v5147, %v5148
        %v5150 = vrot.slane %v5149, 2
        %v5151 = vadd.f32 %v5149, %v5150
        %v5152 = vrot.slane %v5151, 1
        %v5153 = vadd.f32 %v5151, %v5152
        %v5154 = vmul.f32 %v5145, 0.25
        %v5155 = vmul.f32 %v5153, 0.25
        %v5156 = vpack.c.bf16 %v5154, %v5154
        %v5157 = vpack.c.bf16 %v5155, %v5155
        %v5158 = vld [vmem:[%s65] sm:$0xf]
        %v5159 = vld [vmem:[%s65 + $0x4] sm:$0xf]
        %v5160 = vld [vmem:[%s65 + $0x8] sm:$0xf]
        %v5161 = vld [vmem:[%s65 + $0xc] sm:$0xf]
        %v5162 = vld [vmem:[%s65 + $0x10] sm:$0xf]
        %v5163 = vld [vmem:[%s65 + $0x14] sm:$0xf]
        %v5164 = vld [vmem:[%s65 + $0x18] sm:$0xf]
        %v5165 = vld [vmem:[%s65 + $0x1c] sm:$0xf]
        %v5166 = vld [vmem:[%s65 + $0x20] sm:$0xf]
        %v5167 = vld [vmem:[%s65 + $0x24] sm:$0xf]
        %v5168 = vld [vmem:[%s65 + $0x28] sm:$0xf]
        %v5169 = vld [vmem:[%s65 + $0x2c] sm:$0xf]
        %v5170 = vld [vmem:[%s65 + $0x30] sm:$0xf]
        %v5171 = vld [vmem:[%s65 + $0x34] sm:$0xf]
        %v5172 = vld [vmem:[%s65 + $0x38] sm:$0xf]
        %v5173 = vld [vmem:[%s65 + $0x3c] sm:$0xf]
        %v5174 = vld [vmem:[%s65 + $0x40] sm:$0xf]
        %v5175 = vld [vmem:[%s65 + $0x44] sm:$0xf]
        %v5176 = vld [vmem:[%s65 + $0x48] sm:$0xf]
        %v5177 = vld [vmem:[%s65 + $0x4c] sm:$0xf]
        %v5178 = vld [vmem:[%s65 + $0x50] sm:$0xf]
        %v5179 = vld [vmem:[%s65 + $0x54] sm:$0xf]
        %v5180 = vld [vmem:[%s65 + $0x58] sm:$0xf]
        %v5181 = vld [vmem:[%s65 + $0x5c] sm:$0xf]
        %v5182 = vld [vmem:[%s65 + $0x60] sm:$0xf]
        %v5183 = vld [vmem:[%s65 + $0x64] sm:$0xf]
        %v5184 = vld [vmem:[%s65 + $0x68] sm:$0xf]
        %v5185 = vld [vmem:[%s65 + $0x6c] sm:$0xf]
        %v5186 = vld [vmem:[%s65 + $0x70] sm:$0xf]
        %v5187 = vld [vmem:[%s65 + $0x74] sm:$0xf]
        %v5188 = vld [vmem:[%s67] sm:$0x1]
        %v5219 = vunpack.c.l.b16 %v5158
        %v5220 = vunpack.c.l.b16 %v5159
        %v5221 = vunpack.c.l.b16 %v5160
        %v5222 = vunpack.c.l.b16 %v5161
        %v5223 = vunpack.c.l.b16 %v5162
        %v5224 = vunpack.c.l.b16 %v5163
        %v5225 = vunpack.c.l.b16 %v5164
        %v5226 = vunpack.c.l.b16 %v5165
        %v5227 = vunpack.c.l.b16 %v5166
        %v5228 = vunpack.c.l.b16 %v5167
        %v5229 = vunpack.c.l.b16 %v5168
        %v5230 = vunpack.c.l.b16 %v5169
        %v5231 = vunpack.c.l.b16 %v5170
        %v5232 = vunpack.c.l.b16 %v5171
        %v5233 = vunpack.c.l.b16 %v5172
        %v5234 = vunpack.c.l.b16 %v5173
        %v5235 = vunpack.c.l.b16 %v5174
        %v5236 = vunpack.c.l.b16 %v5175
        %v5237 = vunpack.c.l.b16 %v5176
        %v5238 = vunpack.c.l.b16 %v5177
        %v5239 = vunpack.c.l.b16 %v5178
        %v5240 = vunpack.c.l.b16 %v5179
        %v5241 = vunpack.c.l.b16 %v5180
        %v5242 = vunpack.c.l.b16 %v5181
        %v5243 = vunpack.c.l.b16 %v5182
        %v5244 = vunpack.c.l.b16 %v5183
        %v5245 = vunpack.c.l.b16 %v5184
        %v5246 = vunpack.c.l.b16 %v5185
        %v5247 = vunpack.c.l.b16 %v5186
        %v5248 = vunpack.c.l.b16 %v5187
        %v5249 = vpack.c.b16 %v5220, %v5219
        %v5250 = vpack.c.b16 %v5222, %v5221
        %v5251 = vpack.c.b16 %v5224, %v5223
        %v5252 = vpack.c.b16 %v5226, %v5225
        %v5253 = vpack.c.b16 %v5228, %v5227
        %v5254 = vpack.c.b16 %v5230, %v5229
        %v5255 = vpack.c.b16 %v5232, %v5231
        %v5256 = vpack.c.b16 %v5234, %v5233
        %v5257 = vpack.c.b16 %v5236, %v5235
        %v5258 = vpack.c.b16 %v5238, %v5237
        %v5259 = vpack.c.b16 %v5240, %v5239
        %v5260 = vpack.c.b16 %v5242, %v5241
        %v5261 = vpack.c.b16 %v5244, %v5243
        %v5262 = vpack.c.b16 %v5246, %v5245
        %v5263 = vpack.c.b16 %v5248, %v5247
        %vm5279 = vcmask 916480
        %v5281 = vsel %vm5279, %v5157, 0
        %5283 = vmatprep.subr.bf16.mxu0 0
        %5284 = vmatpush1.bf16.msra.mxu0 %v5249
        %5285 = vmatprep.subr.bf16.mxu0 0
        %5286 = vmatpush1.bf16.msra.mxu0 %v5250
        %5287 = vmatprep.subr.bf16.mxu0 0
        %5288 = vmatpush1.bf16.msra.mxu0 %v5251
        %5289 = vmatprep.subr.bf16.mxu0 0
        %5290 = vmatpush1.bf16.msra.mxu0 %v5252
        %5291 = vmatprep.subr.bf16.mxu0 0
        %5292 = vmatpush1.bf16.msra.mxu0 %v5253
        %5293 = vmatprep.subr.bf16.mxu0 0
        %5294 = vmatpush1.bf16.msra.mxu0 %v5254
        %5295 = vmatprep.subr.bf16.mxu0 0
        %5296 = vmatpush1.bf16.msra.mxu0 %v5255
        %5297 = vmatprep.subr.bf16.mxu0 0
        %5298 = vmatpush1.bf16.msra.mxu0 %v5256
        %5299 = vmatprep.subr.bf16.mxu0 0
        %5300 = vmatpush1.bf16.msra.mxu0 %v5257
        %5301 = vmatprep.subr.bf16.mxu0 0
        %5302 = vmatpush1.bf16.msra.mxu0 %v5258
        %5303 = vmatprep.subr.bf16.mxu0 0
        %5304 = vmatpush1.bf16.msra.mxu0 %v5259
        %5305 = vmatprep.subr.bf16.mxu0 0
        %5306 = vmatpush1.bf16.msra.mxu0 %v5260
        %5307 = vmatprep.subr.bf16.mxu0 0
        %5308 = vmatpush1.bf16.msra.mxu0 %v5261
        %5309 = vmatprep.subr.bf16.mxu0 0
        %5310 = vmatpush1.bf16.msra.mxu0 %v5262
        %5311 = vmatprep.subr.bf16.mxu0 0
        %5312 = vmatpush1.bf16.msra.mxu0 %v5263
        %5313 = vmatprep.subr.bf16.mxu0 0
        %5314 = vmatpush1.bf16.msra.mxu0 0
        %5315 = vmatprep.mubr.bf16.mxu0 %v5281
        %5316 = vmatmul.mubr.bf16.gmra.mrb[0].mxu0 %v5156
        %v5317 = vpop.f32.mrb[0].mxu0
        %v5318 = vadd.f32 %v5188, %v5317
        %v5319 = vpop.f32.mrb[0].mxu0
        %v5320 = vpop.f32.mrb[0].mxu0
        %v5321 = vpop.f32.mrb[0].mxu0
        %5322 = vdwg.mxu0
        %v5323 = vadd.f32 %v5318, 3.0
        %v5324 = vmax.f32 %v5323, 0.0
        %v5325 = vmin.f32 %v5324, 6.0
        %v5326 = vmul.f32 %v5325, 0.16666667
        %v5327 = vmul.f32 %v5318, %v5326
        %v5328 = vpack.c.bf16 %v5327, %v5327
        %v5329 = vld [vmem:[%s69] sm:$0xf]
        %v5330 = vld [vmem:[%s69 + $0x4] sm:$0xf]
        %v5331 = vld [vmem:[%s69 + $0x8] sm:$0xf]
        %v5332 = vld [vmem:[%s69 + $0xc] sm:$0xf]
        %v5333 = vld [vmem:[%s69 + $0x10] sm:$0xf]
        %v5334 = vld [vmem:[%s69 + $0x14] sm:$0xf]
        %v5335 = vld [vmem:[%s69 + $0x18] sm:$0xf]
        %v5336 = vld [vmem:[%s69 + $0x1c] sm:$0xf]
        %v5337 = vld [vmem:[%s71] sm:$0x1]
        %v5346 = vunpack.c.l.b16 %v5329
        %v5347 = vunpack.c.l.b16 %v5330
        %v5348 = vunpack.c.l.b16 %v5331
        %v5349 = vunpack.c.l.b16 %v5332
        %v5350 = vunpack.c.l.b16 %v5333
        %v5351 = vunpack.c.l.b16 %v5334
        %v5352 = vunpack.c.l.b16 %v5335
        %v5353 = vunpack.c.l.b16 %v5336
        %v5354 = vpack.c.b16 %v5347, %v5346
        %v5355 = vpack.c.b16 %v5349, %v5348
        %v5356 = vpack.c.b16 %v5351, %v5350
        %v5357 = vpack.c.b16 %v5353, %v5352
        %v5363 = vsel %vm1290, %v5328, 0
        %5365 = vmatprep.subr.bf16.mxu0 0
        %5366 = vmatpush1.bf16.msra.mxu0 %v5354
        %5367 = vmatprep.subr.bf16.mxu0 0
        %5368 = vmatpush1.bf16.msra.mxu0 %v5355
        %5369 = vmatprep.subr.bf16.mxu0 0
        %5370 = vmatpush1.bf16.msra.mxu0 %v5356
        %5371 = vmatprep.subr.bf16.mxu0 0
        %5372 = vmatpush1.bf16.msra.mxu0 %v5357
        %5373 = vmatprep.subr.bf16.mxu0 0
        %5374 = vmatpush1.bf16.msra.mxu0 0
        %5375 = vmatprep.subr.bf16.mxu0 0
        %5376 = vmatpush1.bf16.msra.mxu0 0
        %5377 = vmatprep.subr.bf16.mxu0 0
        %5378 = vmatpush1.bf16.msra.mxu0 0
        %5379 = vmatprep.subr.bf16.mxu0 0
        %5380 = vmatpush1.bf16.msra.mxu0 0
        %5381 = vmatprep.subr.bf16.mxu0 0
        %5382 = vmatpush1.bf16.msra.mxu0 0
        %5383 = vmatprep.subr.bf16.mxu0 0
        %5384 = vmatpush1.bf16.msra.mxu0 0
        %5385 = vmatprep.subr.bf16.mxu0 0
        %5386 = vmatpush1.bf16.msra.mxu0 0
        %5387 = vmatprep.subr.bf16.mxu0 0
        %5388 = vmatpush1.bf16.msra.mxu0 0
        %5389 = vmatprep.subr.bf16.mxu0 0
        %5390 = vmatpush1.bf16.msra.mxu0 0
        %5391 = vmatprep.subr.bf16.mxu0 0
        %5392 = vmatpush1.bf16.msra.mxu0 0
        %5393 = vmatprep.subr.bf16.mxu0 0
        %5394 = vmatpush1.bf16.msra.mxu0 0
        %5395 = vmatprep.subr.bf16.mxu0 0
        %5396 = vmatpush1.bf16.msra.mxu0 0
        %5397 = vmatprep.mubr.bf16.mxu0 0
        %5398 = vmatmul.mubr.bf16.gmra.mrb[0].mxu0 %v5363
        %v5399 = vpop.f32.mrb[0].mxu0
        %v5400 = vadd.f32 %v5337, %v5399
        %v5401 = vpop.f32.mrb[0].mxu0
        %v5402 = vpop.f32.mrb[0].mxu0
        %v5403 = vpop.f32.mrb[0].mxu0
        %5404 = vdwg.mxu0
        %vm5405 = vcmask 73728
        %5406 = vst.msk [vmem:[%s1090] sm:$0x1] %vm5405, %v5400
        %s5407 = sand.u32 %s856, 1
        %s5408 = scalar_lea.sflag [#allocation3], %s5407
        %s5409 = sand.u32 %s856, 1
        %s5410 = scalar_lea.vmem [#allocation2], %s5409
        // Predicated region
        $region165: #{_lambda_.1} parent=163 // pred_check
          %p5411 = pneg %p866
        $region166: #{_lambda_.1} parent=163 // pred_check_branch
          %5413 = sbr.rel (%p5411) target = $region168
        $region167: #{_lambda_.1} parent=163 // pred_region
          %s5415 = ssub.s32 16, 16
          %5416 = vsyncadd %s5408, %s5415
          %s5417 = smul.addr %s87, 16
          %s5418 = scalar_lea.hbm %s73, %s5417
          %s5420 = sshll.u32 %s5410, 4
          %s5421 = int_to_ptr.vmem [resolvable:$true] %s5420
          %5423 = dma.vmem_to_hbm [thread:$0]  %s5421, 16, %s5418, %s5408
        $region168: #{_lambda_.1} parent=163 // pred_fallthru
          _
      $region164: #{_lambda_.1} parent=5 // pred_fallthru
        _
      %p5424 = scmp.le.s32.totalorder 2, %s82
      // Predicated region
      $region169: #{_lambda_.1} parent=5 // pred_check
        %p5425 = pneg %p5424
      $region170: #{_lambda_.1} parent=5 // pred_check_branch
        %5427 = sbr.rel (%p5425) target = $region172
      $region171: #{_lambda_.1} parent=5 // pred_region
        %s5428 = ssub.s32 %s82, 2
        // Predicated region
        $region173: #{_lambda_.1} parent=171 // pred_check
          %p5429 = pneg %p872
        $region174: #{_lambda_.1} parent=171 // pred_check_branch
          %5431 = sbr.rel (%p5429) target = $region176
        $region175: #{_lambda_.1} parent=171 // pred_region
          %s5432 = sand.u32 %s857, 1
          %s5433 = scalar_lea.sflag [#allocation3], %s5432
          %s5434 = sand.u32 %s857, 1
          %s5435 = scalar_lea.vmem [#allocation2], %s5434
          %5436 = dma.done %s5433, 16
        $region176: #{_lambda_.1} parent=171 // pred_fallthru
          _
      $region172: #{_lambda_.1} parent=5 // pred_fallthru
        _
    $region6: #{_lambda_.1} parent=1 // loop_footer
      %s86 = sadd.s32 1, %s82
    $region7: #{_lambda_.1} parent=1 // loop_footer_branch
      %81 = sbr.rel target = $region3
    $region8: #{_lambda_.1} parent=1 // loop_exit
      _
    %5437 = vsyncpa [#allocation3], 1
    %s5438 = scalar_lea.sflag [#allocation3], 1
    %5439 = vsyncpa %s5438, 1

</llo_original>
